<compile_context>
chip_gen: v7x
topology: tpu7x:2x2x1
jax: 0.10.0
libtpu: 0.0.40
codegen_flags: <defaults>
</compile_context>

<pallas_src>
import functools

import numpy as np

import jax
import jax.numpy as jnp
from jax import lax
from jax.experimental import pallas as pl
from jax.experimental.pallas import tpu as pltpu

TB = 128                      # batch tile = lane dimension of every store
MXU_DTYPE = jnp.bfloat16      # MXU input dtype (all accumulation stays f32)


# ----------------------------------------------------------------------------
# Fused kernel: conv1 -> pool1 -> conv2 -> pool2 -> fc1 -> out, one batch tile.
# ----------------------------------------------------------------------------
def _fused_forward_kernel(x_ref, w1_ref, w2_ref, b2_ref, wf_ref, bf_ref,
                          wo_ref, bo_ref, out_ref, xb_ref, p1_ref, p2_ref):
    """Whole ConvMNIST forward for one batch tile of TB samples.

    Layout: the batch occupies the lane (last) dimension everywhere.
      x_ref : (896, TB)        f32   input, row index = h*32 + w (W padded to
                                     32; padding col 31 holds 1.0 -> conv1 bias)
      w1_ref: (2, 416, 96)     bf16  conv1 block-Toeplitz weight
                                     ([parity], pw*32+oc, kh*32 + col + kw)
      w2_ref: (64, 288)        bf16  conv2 weight, K = kh*96 + kw*32 + ic
      b2_ref: (64, 1)          f32
      wf_ref: (5, 128, 320)    bf16  fc1 weight grouped by pool2 row (qh)
      bf_ref: (128, 1)         f32
      wo_ref: (NCLS_PAD, 128)  bf16
      bo_ref: (NCLS_PAD, 1)    f32
      out_ref: (NCLS_PAD, TB)  f32   logits (classes x batch), lane dense
      xb_ref: (896, TB)        bf16  scratch: bf16 copy of the input tile
      p1_ref: (13, 416, TB)    bf16  scratch: pool1, (ph, pw*32 + c, n)
      p2_ref: (5, 320, TB)     bf16  scratch: pool2, (qh, qw*64 + c, n)
    """
    # ---- stage the input tile as bf16 (chunked -> low vreg pressure) -------
    for i in range(7):
        sl = slice(i * 128, (i + 1) * 128)
        xb_ref[sl, :] = x_ref[sl, :].astype(MXU_DTYPE)

    # ---- conv1 (block-Toeplitz on the MXU) + ReLU + 2x2/2 max-pool ---------
    # One pool row ph needs conv rows 2ph, 2ph+1 -> input rows 2ph .. 2ph+3.
    # w1_ref[0] computes all even output columns of one conv row, w1_ref[1]
    # the odd ones, so the column-pool is max(even_dot, odd_dot) and the
    # row-pool is a max over the two 96-row input slabs.  The conv1 bias is
    # folded into the weight via the ones column, so ReLU(max(...)) is exact.
    def conv1_pool1_row(ph, carry):
        off0 = pl.multiple_of(ph * 64, 64)        # input row 2*ph   (32 f/row)
        off1 = pl.multiple_of(ph * 64 + 32, 32)   # input row 2*ph+1
        xr0 = xb_ref[pl.ds(off0, 96), :]          # rows 2ph .. 2ph+2  (96, TB)
        xr1 = xb_ref[pl.ds(off1, 96), :]          # rows 2ph+1 .. 2ph+3
        m = jnp.maximum(
            jnp.dot(w1_ref[0], xr0, preferred_element_type=jnp.float32),
            jnp.dot(w1_ref[1], xr0, preferred_element_type=jnp.float32))
        m = jnp.maximum(m, jnp.dot(w1_ref[0], xr1,
                                   preferred_element_type=jnp.float32))
        m = jnp.maximum(m, jnp.dot(w1_ref[1], xr1,
                                   preferred_element_type=jnp.float32))
        p1_ref[ph] = jnp.maximum(m, 0.0).astype(p1_ref.dtype)     # (416, TB)
        return carry

    lax.fori_loop(0, 13, conv1_pool1_row, 0)

    # ---- conv2 (32->64, 3x3, K merged to 288) + ReLU + 2x2/2 max-pool ------
    def conv2_pool2_row(qh, carry):
        w2m = w2_ref[...]                         # (64, 288) bf16 (per-qh read)
        b2v = b2_ref[...]                         # (64, 1)   f32
        oh0 = qh * 2
        for qw in range(5):                       # static column indices
            best = None
            for dh in range(2):
                for dw in range(2):
                    ow = 2 * qw + dw
                    # (kh, kw*32+ic) window, contiguous 96-row chunks per kh.
                    win = jnp.concatenate(
                        [p1_ref[oh0 + dh + kh, ow * 32:(ow + 3) * 32, :]
                         for kh in range(3)], axis=0)             # (288, TB)
                    r = jnp.dot(w2m, win, preferred_element_type=jnp.float32)
                    best = r if best is None else jnp.maximum(best, r)
            feat = jnp.maximum(best + b2v, 0.0)                   # (64, TB)
            p2_ref[qh, qw * 64:(qw + 1) * 64, :] = feat.astype(p2_ref.dtype)
        return carry

    lax.fori_loop(0, 5, conv2_pool2_row, 0)

    # ---- fc1 (K=1600 as 5 lane-dense K=320 slabs) + output layer -----------
    acc = jnp.dot(wf_ref[0], p2_ref[0], preferred_element_type=jnp.float32)
    for qh in range(1, 5):
        acc = acc + jnp.dot(wf_ref[qh], p2_ref[qh],
                            preferred_element_type=jnp.float32)
    feat = acc + bf_ref[...]                                      # (128, TB)
    logits = jnp.dot(wo_ref[...], feat.astype(MXU_DTYPE),
                     preferred_element_type=jnp.float32) + bo_ref[...]
    out_ref[...] = logits


# ----------------------------------------------------------------------------
# Wrapper
# ----------------------------------------------------------------------------
def _build_pallas_call(ncls_pad, npad):
    grid = (npad // TB,)
    return pl.pallas_call(
        _fused_forward_kernel,
        out_shape=jax.ShapeDtypeStruct((ncls_pad, npad), jnp.float32),
        grid_spec=pltpu.PrefetchScalarGridSpec(
            num_scalar_prefetch=0,
            grid=grid,
            in_specs=[
                pl.BlockSpec((896, TB), lambda b: (0, b)),         # x
                pl.BlockSpec((2, 416, 96), lambda b: (0, 0, 0)),   # conv1 Toepl.
                pl.BlockSpec((64, 288), lambda b: (0, 0)),         # conv2 w
                pl.BlockSpec((64, 1), lambda b: (0, 0)),           # conv2 b
                pl.BlockSpec((5, 128, 320), lambda b: (0, 0, 0)),  # fc1 w
                pl.BlockSpec((128, 1), lambda b: (0, 0)),          # fc1 b
                pl.BlockSpec((ncls_pad, 128), lambda b: (0, 0)),   # out w
                pl.BlockSpec((ncls_pad, 1), lambda b: (0, 0)),     # out b
            ],
            out_specs=pl.BlockSpec((ncls_pad, TB), lambda b: (0, b)),
            scratch_shapes=[
                pltpu.VMEM((896, TB), MXU_DTYPE),        # bf16 input copy
                pltpu.VMEM((13, 416, TB), MXU_DTYPE),    # pool1
                pltpu.VMEM((5, 320, TB), MXU_DTYPE),     # pool2 (fc1 RHS)
            ],
        ),
        compiler_params=pltpu.CompilerParams(
            dimension_semantics=("parallel",),   # batch tiles -> 2 TCs on v7x
            vmem_limit_bytes=32 * 1024 * 1024,
        ),
    )


def prepare_params(params):
    """One-time host-side weight re-layout for the fused kernel."""
    ncls = params["out_w"].shape[0]
    ncls_pad = max(8, ((ncls + 7) // 8) * 8)

    # conv1 -> block-Toeplitz (parity, pw*32+oc, kh*32 + col + kw), col=2pw+par.
    # The conv1 bias is written into column 31 (the input's ones column).
    cw = np.asarray(params["conv1_w"], np.float32)[:, 0]          # (32, 3, 3)
    cb = np.asarray(params["conv1_b"], np.float32)                # (32,)
    w1 = np.zeros((2, 13 * 32, 96), np.float32)
    for par in range(2):
        for pw in range(13):
            col = 2 * pw + par
            rows = slice(pw * 32, (pw + 1) * 32)
            w1[par, rows, 31] = cb
            for kh in range(3):
                for kw in range(3):
                    w1[par, rows, kh * 32 + col + kw] = cw[:, kh, kw]

    # conv2 (OC,IC,kh,kw) -> (OC, kh*96 + kw*32 + ic) to match the p1 windows.
    w2 = np.transpose(np.asarray(params["conv2_w"], np.float32),
                      (0, 2, 3, 1)).reshape(64, 288)

    # fc1 (128, 1600 = C*5*5 NCHW flatten) -> (qh, 128, qw*64 + oc) so the
    # PyTorch flatten order is baked into the weight (no activation shuffle).
    wf = np.transpose(np.asarray(params["fc1_w"], np.float32)
                      .reshape(128, 64, 5, 5), (2, 0, 3, 1)).reshape(5, 128, 320)

    # out (ncls, 128): pad class rows to a multiple of 8 for an aligned store.
    wo = np.zeros((ncls_pad, 128), np.float32)
    wo[:ncls] = np.asarray(params["out_w"], np.float32)
    bo = np.zeros((ncls_pad, 1), np.float32)
    bo[:ncls, 0] = np.asarray(params["out_b"], np.float32)

    return {
        "w1": jnp.asarray(w1, MXU_DTYPE),
        "w2": jnp.asarray(w2, MXU_DTYPE),
        "b2": jnp.asarray(np.asarray(params["conv2_b"], np.float32)
                          .reshape(64, 1)),
        "wf": jnp.asarray(wf, MXU_DTYPE),
        "bf": jnp.asarray(np.asarray(params["fc1_b"], np.float32)
                          .reshape(128, 1)),
        "wo": jnp.asarray(wo, MXU_DTYPE),
        "bo": jnp.asarray(bo),
    }


@functools.partial(jax.jit, static_argnames=("n_classes",))
def conv_mnist_forward(prep, x_nchw, *, n_classes):
    """x_nchw: (N, 1, 28, 28) f32 -> logits (N, n_classes). Eval-mode dropout."""
    n = x_nchw.shape[0]
    ncls_pad = prep["wo"].shape[0]
    npad = ((n + TB - 1) // TB) * TB
    xt = jnp.transpose(x_nchw[:, 0, :, :], (1, 2, 0))            # (28, 28, N)
    xt = jnp.pad(xt, ((0, 0), (0, 4), (0, npad - n)))            # (28, 32, npad)
    xt = xt.at[:, 31, :].set(1.0)           # ones column -> conv1 bias on MXU
    xflat = xt.reshape(28 * 32, npad)                            # (896, npad)
    call = _build_pallas_call(ncls_pad, npad)
    logits_t = call(xflat, prep["w1"], prep["w2"], prep["b2"],
                    prep["wf"], prep["bf"], prep["wo"], prep["bo"])
    return logits_t[:n_classes, :n].T                            # (N, n_classes)


# ----------------------------------------------------------------------------
# Params / reference
# ----------------------------------------------------------------------------
def init_params(key, n_classes):
    ks = jax.random.split(key, 8)
    s = 0.05
    return {
        "conv1_w": s * jax.random.normal(ks[0], (32, 1, 3, 3), jnp.float32),
        "conv1_b": s * jax.random.normal(ks[1], (32,), jnp.float32),
        "conv2_w": s * jax.random.normal(ks[2], (64, 32, 3, 3), jnp.float32),
        "conv2_b": s * jax.random.normal(ks[3], (64,), jnp.float32),
        "fc1_w": s * jax.random.normal(ks[4], (128, 1600), jnp.float32),
        "fc1_b": s * jax.random.normal(ks[5], (128,), jnp.float32),
        "out_w": s * jax.random.normal(ks[6], (n_classes, 128), jnp.float32),
        "out_b": s * jax.random.normal(ks[7], (n_classes,), jnp.float32),
    }


def reference_forward(params, x):
    """Pure-JAX/XLA f32 reference of the PyTorch module (eval mode)."""
    dn = ("NCHW", "OIHW", "NCHW")
    h = lax.conv_general_dilated(x, params["conv1_w"], (1, 1), "VALID",
                                 dimension_numbers=dn)
    h = jax.nn.relu(h + params["conv1_b"][None, :, None, None])
    h = lax.reduce_window(h, -jnp.inf, lax.max, (1, 1, 2, 2), (1, 1, 2, 2),
                          "VALID")
    h = lax.conv_general_dilated(h, params["conv2_w"], (1, 1), "VALID",
                                 dimension_numbers=dn)
    h = jax.nn.relu(h + params["conv2_b"][None, :, None, None])
    h = lax.reduce_window(h, -jnp.inf, lax.max, (1, 1, 2, 2), (1, 1, 2, 2),
                          "VALID")
    feats = h.reshape(x.shape[0], -1)
    fv = feats @ params["fc1_w"].T + params["fc1_b"]
    return fv @ params["out_w"].T + params["out_b"]


# ----------------------------------------------------------------------------
if __name__ == "__main__":
    n_classes = 10
    key = jax.random.PRNGKey(0)
    k_param, k_x = jax.random.split(key)

    params = init_params(k_param, n_classes)
    prep = prepare_params(params)          # one-time weight re-layout
    # MNIST-shaped input (flatten constraint 1600 = 64*5*5 requires 28x28).
    x = jax.random.normal(k_x, (2, 1, 28, 28), jnp.float32)

    logits = conv_mnist_forward(prep, x, n_classes=n_classes)
    jax.block_until_ready(logits)
    assert logits.shape == (2, n_classes), logits.shape

    # Numerical sanity check vs. an f32 XLA reference (the kernel uses bf16 on
    # the MXU with f32 accumulation, so allow a loose-but-meaningful tolerance).
    ref = reference_forward(params, x)
    if not jnp.allclose(logits, ref, atol=5e-2, rtol=5e-2):
        raise AssertionError(
            "kernel/reference mismatch: max abs err "
            f"{float(jnp.max(jnp.abs(logits - ref)))}")
    print("KERNEL_OK")
</pallas_src>

<mosaic_0001>
module attributes {stable_mosaic.version = 11 : i64} {
  func.func @_fused_forward_kernel(%arg0: i32, %arg1: memref<896x128xf32, #tpu.memory_space<vmem>>, %arg2: memref<2x416x96xbf16, #tpu.memory_space<vmem>>, %arg3: memref<64x288xbf16, #tpu.memory_space<vmem>>, %arg4: memref<64x1xf32, #tpu.memory_space<vmem>>, %arg5: memref<5x128x320xbf16, #tpu.memory_space<vmem>>, %arg6: memref<128x1xf32, #tpu.memory_space<vmem>>, %arg7: memref<16x128xbf16, #tpu.memory_space<vmem>>, %arg8: memref<16x1xf32, #tpu.memory_space<vmem>>, %arg9: memref<16x128xf32, #tpu.memory_space<vmem>>, %arg10: memref<896x128xbf16, #tpu.memory_space<vmem>>, %arg11: memref<13x416x128xbf16, #tpu.memory_space<vmem>>, %arg12: memref<5x320x128xbf16, #tpu.memory_space<vmem>>) attributes {dimension_semantics = [#tpu.dimension_semantics<parallel>], iteration_bounds = array<i64: 1>, scalar_prefetch = 0 : i64, scratch_operands = 3 : i64, tpu.core_type = #tpu.core_type<tc>, window_params = [{transform_indices = @transform_0, window_bounds = array<i64: 896, 128>}, {pipeline_mode = #tpu.pipeline_mode<synchronous>, transform_indices = @transform_1, window_bounds = array<i64: 2, 416, 96>}, {pipeline_mode = #tpu.pipeline_mode<synchronous>, transform_indices = @transform_2, window_bounds = array<i64: 64, 288>}, {pipeline_mode = #tpu.pipeline_mode<synchronous>, transform_indices = @transform_3, window_bounds = array<i64: 64, 1>}, {pipeline_mode = #tpu.pipeline_mode<synchronous>, transform_indices = @transform_4, window_bounds = array<i64: 5, 128, 320>}, {pipeline_mode = #tpu.pipeline_mode<synchronous>, transform_indices = @transform_5, window_bounds = array<i64: 128, 1>}, {pipeline_mode = #tpu.pipeline_mode<synchronous>, transform_indices = @transform_6, window_bounds = array<i64: 16, 128>}, {pipeline_mode = #tpu.pipeline_mode<synchronous>, transform_indices = @transform_7, window_bounds = array<i64: 16, 1>}, {transform_indices = @transform_8, window_bounds = array<i64: 16, 128>}]} {
    %c0 = arith.constant 0 : index
    %c0_0 = arith.constant 0 : index
    %0 = vector.load %arg1[%c0, %c0_0] : memref<896x128xf32, #tpu.memory_space<vmem>>, vector<128x128xf32>
    %1 = arith.truncf %0 : vector<128x128xf32> to vector<128x128xbf16>
    %c0_1 = arith.constant 0 : index
    %c0_2 = arith.constant 0 : index
    %2 = vector.load %arg10[%c0_1, %c0_2] : memref<896x128xbf16, #tpu.memory_space<vmem>>, vector<128x128xbf16>
    tpu.vector_store %arg10[%c0_1, %c0_2], %1 {strides = array<i32>} : memref<896x128xbf16, #tpu.memory_space<vmem>>, vector<128x128xbf16>,
    %c128 = arith.constant 128 : index
    %c0_3 = arith.constant 0 : index
    %3 = vector.load %arg1[%c128, %c0_3] : memref<896x128xf32, #tpu.memory_space<vmem>>, vector<128x128xf32>
    %4 = arith.truncf %3 : vector<128x128xf32> to vector<128x128xbf16>
    %c128_4 = arith.constant 128 : index
    %c0_5 = arith.constant 0 : index
    %5 = vector.load %arg10[%c128_4, %c0_5] : memref<896x128xbf16, #tpu.memory_space<vmem>>, vector<128x128xbf16>
    tpu.vector_store %arg10[%c128_4, %c0_5], %4 {strides = array<i32>} : memref<896x128xbf16, #tpu.memory_space<vmem>>, vector<128x128xbf16>,
    %c256 = arith.constant 256 : index
    %c0_6 = arith.constant 0 : index
    %6 = vector.load %arg1[%c256, %c0_6] : memref<896x128xf32, #tpu.memory_space<vmem>>, vector<128x128xf32>
    %7 = arith.truncf %6 : vector<128x128xf32> to vector<128x128xbf16>
    %c256_7 = arith.constant 256 : index
    %c0_8 = arith.constant 0 : index
    %8 = vector.load %arg10[%c256_7, %c0_8] : memref<896x128xbf16, #tpu.memory_space<vmem>>, vector<128x128xbf16>
    tpu.vector_store %arg10[%c256_7, %c0_8], %7 {strides = array<i32>} : memref<896x128xbf16, #tpu.memory_space<vmem>>, vector<128x128xbf16>,
    %c384 = arith.constant 384 : index
    %c0_9 = arith.constant 0 : index
    %9 = vector.load %arg1[%c384, %c0_9] : memref<896x128xf32, #tpu.memory_space<vmem>>, vector<128x128xf32>
    %10 = arith.truncf %9 : vector<128x128xf32> to vector<128x128xbf16>
    %c384_10 = arith.constant 384 : index
    %c0_11 = arith.constant 0 : index
    %11 = vector.load %arg10[%c384_10, %c0_11] : memref<896x128xbf16, #tpu.memory_space<vmem>>, vector<128x128xbf16>
    tpu.vector_store %arg10[%c384_10, %c0_11], %10 {strides = array<i32>} : memref<896x128xbf16, #tpu.memory_space<vmem>>, vector<128x128xbf16>,
    %c512 = arith.constant 512 : index
    %c0_12 = arith.constant 0 : index
    %12 = vector.load %arg1[%c512, %c0_12] : memref<896x128xf32, #tpu.memory_space<vmem>>, vector<128x128xf32>
    %13 = arith.truncf %12 : vector<128x128xf32> to vector<128x128xbf16>
    %c512_13 = arith.constant 512 : index
    %c0_14 = arith.constant 0 : index
    %14 = vector.load %arg10[%c512_13, %c0_14] : memref<896x128xbf16, #tpu.memory_space<vmem>>, vector<128x128xbf16>
    tpu.vector_store %arg10[%c512_13, %c0_14], %13 {strides = array<i32>} : memref<896x128xbf16, #tpu.memory_space<vmem>>, vector<128x128xbf16>,
    %c640 = arith.constant 640 : index
    %c0_15 = arith.constant 0 : index
    %15 = vector.load %arg1[%c640, %c0_15] : memref<896x128xf32, #tpu.memory_space<vmem>>, vector<128x128xf32>
    %16 = arith.truncf %15 : vector<128x128xf32> to vector<128x128xbf16>
    %c640_16 = arith.constant 640 : index
    %c0_17 = arith.constant 0 : index
    %17 = vector.load %arg10[%c640_16, %c0_17] : memref<896x128xbf16, #tpu.memory_space<vmem>>, vector<128x128xbf16>
    tpu.vector_store %arg10[%c640_16, %c0_17], %16 {strides = array<i32>} : memref<896x128xbf16, #tpu.memory_space<vmem>>, vector<128x128xbf16>,
    %c768 = arith.constant 768 : index
    %c0_18 = arith.constant 0 : index
    %18 = vector.load %arg1[%c768, %c0_18] : memref<896x128xf32, #tpu.memory_space<vmem>>, vector<128x128xf32>
    %19 = arith.truncf %18 : vector<128x128xf32> to vector<128x128xbf16>
    %c768_19 = arith.constant 768 : index
    %c0_20 = arith.constant 0 : index
    %20 = vector.load %arg10[%c768_19, %c0_20] : memref<896x128xbf16, #tpu.memory_space<vmem>>, vector<128x128xbf16>
    tpu.vector_store %arg10[%c768_19, %c0_20], %19 {strides = array<i32>} : memref<896x128xbf16, #tpu.memory_space<vmem>>, vector<128x128xbf16>,
    %c0_i32 = arith.constant 0 : i32
    %c13_i32 = arith.constant 13 : i32
    %21 = arith.addi %c0_i32, %c13_i32 : i32
    %c1_i32 = arith.constant 1 : i32
    scf.for %arg13 = %c0_i32 to %21 step %c1_i32  : i32 {
      %c64_i32 = arith.constant 64 : i32
      %62 = arith.muli %arg13, %c64_i32 : i32
      %63 = tpu.assume_multiple %62, 64 : i32
      %c64_i32_64 = arith.constant 64 : i32
      %64 = arith.muli %arg13, %c64_i32_64 : i32
      %c32_i32 = arith.constant 32 : i32
      %65 = arith.addi %64, %c32_i32 : i32
      %66 = tpu.assume_multiple %65, 32 : i32
      %67 = arith.index_cast %63 : i32 to index
      %c0_65 = arith.constant 0 : index
      %68 = vector.load %arg10[%67, %c0_65] : memref<896x128xbf16, #tpu.memory_space<vmem>>, vector<96x128xbf16>
      %69 = arith.index_cast %66 : i32 to index
      %c0_66 = arith.constant 0 : index
      %70 = vector.load %arg10[%69, %c0_66] : memref<896x128xbf16, #tpu.memory_space<vmem>>, vector<96x128xbf16>
      %c0_67 = arith.constant 0 : index
      %c0_68 = arith.constant 0 : index
      %c0_69 = arith.constant 0 : index
      %71 = vector.load %arg2[%c0_67, %c0_68, %c0_69] : memref<2x416x96xbf16, #tpu.memory_space<vmem>>, vector<1x416x96xbf16>
      %72 = vector.shape_cast %71 : vector<1x416x96xbf16> to vector<416x96xbf16>
      %cst_70 = arith.constant dense<0.000000e+00> : vector<416x128xf32>
      %73 = tpu.matmul %72, %68, %cst_70 {dimension_numbers = #tpu.dot_dimension_numbers<[1], [0], [0], [1], [0, 0, 1, 1], [], []>} : vector<416x96xbf16>, vector<96x128xbf16>, vector<416x128xf32> -> vector<416x128xf32>
      %c1_71 = arith.constant 1 : index
      %c0_72 = arith.constant 0 : index
      %c0_73 = arith.constant 0 : index
      %74 = vector.load %arg2[%c1_71, %c0_72, %c0_73] : memref<2x416x96xbf16, #tpu.memory_space<vmem>>, vector<1x416x96xbf16>
      %75 = vector.shape_cast %74 : vector<1x416x96xbf16> to vector<416x96xbf16>
      %cst_74 = arith.constant dense<0.000000e+00> : vector<416x128xf32>
      %76 = tpu.matmul %75, %68, %cst_74 {dimension_numbers = #tpu.dot_dimension_numbers<[1], [0], [0], [1], [0, 0, 1, 1], [], []>} : vector<416x96xbf16>, vector<96x128xbf16>, vector<416x128xf32> -> vector<416x128xf32>
      %77 = arith.maximumf %73, %76 : vector<416x128xf32>
      %c0_75 = arith.constant 0 : index
      %c0_76 = arith.constant 0 : index
      %c0_77 = arith.constant 0 : index
      %78 = vector.load %arg2[%c0_75, %c0_76, %c0_77] : memref<2x416x96xbf16, #tpu.memory_space<vmem>>, vector<1x416x96xbf16>
      %79 = vector.shape_cast %78 : vector<1x416x96xbf16> to vector<416x96xbf16>
      %cst_78 = arith.constant dense<0.000000e+00> : vector<416x128xf32>
      %80 = tpu.matmul %79, %70, %cst_78 {dimension_numbers = #tpu.dot_dimension_numbers<[1], [0], [0], [1], [0, 0, 1, 1], [], []>} : vector<416x96xbf16>, vector<96x128xbf16>, vector<416x128xf32> -> vector<416x128xf32>
      %81 = arith.maximumf %77, %80 : vector<416x128xf32>
      %c1_79 = arith.constant 1 : index
      %c0_80 = arith.constant 0 : index
      %c0_81 = arith.constant 0 : index
      %82 = vector.load %arg2[%c1_79, %c0_80, %c0_81] : memref<2x416x96xbf16, #tpu.memory_space<vmem>>, vector<1x416x96xbf16>
      %83 = vector.shape_cast %82 : vector<1x416x96xbf16> to vector<416x96xbf16>
      %cst_82 = arith.constant dense<0.000000e+00> : vector<416x128xf32>
      %84 = tpu.matmul %83, %70, %cst_82 {dimension_numbers = #tpu.dot_dimension_numbers<[1], [0], [0], [1], [0, 0, 1, 1], [], []>} : vector<416x96xbf16>, vector<96x128xbf16>, vector<416x128xf32> -> vector<416x128xf32>
      %85 = arith.maximumf %81, %84 : vector<416x128xf32>
      %cst_83 = arith.constant 0.000000e+00 : f32
      %86 = vector.broadcast %cst_83 : f32 to vector<416x128xf32>
      %87 = arith.maximumf %85, %86 : vector<416x128xf32>
      %88 = arith.truncf %87 : vector<416x128xf32> to vector<416x128xbf16>
      %89 = arith.index_cast %arg13 : i32 to index
      %c0_84 = arith.constant 0 : index
      %c0_85 = arith.constant 0 : index
      %90 = vector.load %arg11[%89, %c0_84, %c0_85] : memref<13x416x128xbf16, #tpu.memory_space<vmem>>, vector<1x416x128xbf16>
      %91 = vector.shape_cast %90 : vector<1x416x128xbf16> to vector<416x128xbf16>
      %92 = vector.shape_cast %88 : vector<416x128xbf16> to vector<1x416x128xbf16>
      tpu.vector_store %arg11[%89, %c0_84, %c0_85], %92 {strides = array<i32>} : memref<13x416x128xbf16, #tpu.memory_space<vmem>>, vector<1x416x128xbf16>,
    }
    %c13_i32_21 = arith.constant 13 : i32
    %c0_i32_22 = arith.constant 0 : i32
    %c5_i32 = arith.constant 5 : i32
    %22 = arith.addi %c0_i32_22, %c5_i32 : i32
    %c1_i32_23 = arith.constant 1 : i32
    scf.for %arg13 = %c0_i32_22 to %22 step %c1_i32_23  : i32 {
      %c0_64 = arith.constant 0 : index
      %c0_65 = arith.constant 0 : index
      %62 = vector.load %arg3[%c0_64, %c0_65] : memref<64x288xbf16, #tpu.memory_space<vmem>>, vector<64x288xbf16>
      %c0_66 = arith.constant 0 : index
      %c0_67 = arith.constant 0 : index
      %63 = vector.load %arg4[%c0_66, %c0_67] : memref<64x1xf32, #tpu.memory_space<vmem>>, vector<64x1xf32>
      %c2_i32 = arith.constant 2 : i32
      %64 = arith.muli %arg13, %c2_i32 : i32
      %c0_i32_68 = arith.constant 0 : i32
      %65 = arith.addi %64, %c0_i32_68 : i32
      %c0_i32_69 = arith.constant 0 : i32
      %66 = arith.addi %65, %c0_i32_69 : i32
      %67 = arith.index_cast %66 : i32 to index
      %c0_70 = arith.constant 0 : index
      %c0_71 = arith.constant 0 : index
      %68 = vector.load %arg11[%67, %c0_70, %c0_71] : memref<13x416x128xbf16, #tpu.memory_space<vmem>>, vector<1x96x128xbf16>
      %69 = vector.shape_cast %68 : vector<1x96x128xbf16> to vector<96x128xbf16>
      %c0_i32_72 = arith.constant 0 : i32
      %70 = arith.addi %64, %c0_i32_72 : i32
      %c1_i32_73 = arith.constant 1 : i32
      %71 = arith.addi %70, %c1_i32_73 : i32
      %72 = arith.index_cast %71 : i32 to index
      %c0_74 = arith.constant 0 : index
      %c0_75 = arith.constant 0 : index
      %73 = vector.load %arg11[%72, %c0_74, %c0_75] : memref<13x416x128xbf16, #tpu.memory_space<vmem>>, vector<1x96x128xbf16>
      %74 = vector.shape_cast %73 : vector<1x96x128xbf16> to vector<96x128xbf16>
      %c0_i32_76 = arith.constant 0 : i32
      %75 = arith.addi %64, %c0_i32_76 : i32
      %c2_i32_77 = arith.constant 2 : i32
      %76 = arith.addi %75, %c2_i32_77 : i32
      %77 = arith.index_cast %76 : i32 to index
      %c0_78 = arith.constant 0 : index
      %c0_79 = arith.constant 0 : index
      %78 = vector.load %arg11[%77, %c0_78, %c0_79] : memref<13x416x128xbf16, #tpu.memory_space<vmem>>, vector<1x96x128xbf16>
      %79 = vector.shape_cast %78 : vector<1x96x128xbf16> to vector<96x128xbf16>
      %80 = tpu.concatenate %69, %74, %79 in 0 : vector<96x128xbf16>, vector<96x128xbf16>, vector<96x128xbf16> -> vector<288x128xbf16>
      %cst_80 = arith.constant dense<0.000000e+00> : vector<64x128xf32>
      %81 = tpu.matmul %62, %80, %cst_80 {dimension_numbers = #tpu.dot_dimension_numbers<[1], [0], [0], [1], [0, 0, 1, 1], [], []>} : vector<64x288xbf16>, vector<288x128xbf16>, vector<64x128xf32> -> vector<64x128xf32>
      %c0_i32_81 = arith.constant 0 : i32
      %82 = arith.addi %64, %c0_i32_81 : i32
      %c0_i32_82 = arith.constant 0 : i32
      %83 = arith.addi %82, %c0_i32_82 : i32
      %84 = arith.index_cast %83 : i32 to index
      %c32 = arith.constant 32 : index
      %c0_83 = arith.constant 0 : index
      %85 = vector.load %arg11[%84, %c32, %c0_83] : memref<13x416x128xbf16, #tpu.memory_space<vmem>>, vector<1x96x128xbf16>
      %86 = vector.shape_cast %85 : vector<1x96x128xbf16> to vector<96x128xbf16>
      %c0_i32_84 = arith.constant 0 : i32
      %87 = arith.addi %64, %c0_i32_84 : i32
      %c1_i32_85 = arith.constant 1 : i32
      %88 = arith.addi %87, %c1_i32_85 : i32
      %89 = arith.index_cast %88 : i32 to index
      %c32_86 = arith.constant 32 : index
      %c0_87 = arith.constant 0 : index
      %90 = vector.load %arg11[%89, %c32_86, %c0_87] : memref<13x416x128xbf16, #tpu.memory_space<vmem>>, vector<1x96x128xbf16>
      %91 = vector.shape_cast %90 : vector<1x96x128xbf16> to vector<96x128xbf16>
      %c0_i32_88 = arith.constant 0 : i32
      %92 = arith.addi %64, %c0_i32_88 : i32
      %c2_i32_89 = arith.constant 2 : i32
      %93 = arith.addi %92, %c2_i32_89 : i32
      %94 = arith.index_cast %93 : i32 to index
      %c32_90 = arith.constant 32 : index
      %c0_91 = arith.constant 0 : index
      %95 = vector.load %arg11[%94, %c32_90, %c0_91] : memref<13x416x128xbf16, #tpu.memory_space<vmem>>, vector<1x96x128xbf16>
      %96 = vector.shape_cast %95 : vector<1x96x128xbf16> to vector<96x128xbf16>
      %97 = tpu.concatenate %86, %91, %96 in 0 : vector<96x128xbf16>, vector<96x128xbf16>, vector<96x128xbf16> -> vector<288x128xbf16>
      %cst_92 = arith.constant dense<0.000000e+00> : vector<64x128xf32>
      %98 = tpu.matmul %62, %97, %cst_92 {dimension_numbers = #tpu.dot_dimension_numbers<[1], [0], [0], [1], [0, 0, 1, 1], [], []>} : vector<64x288xbf16>, vector<288x128xbf16>, vector<64x128xf32> -> vector<64x128xf32>
      %99 = arith.maximumf %81, %98 : vector<64x128xf32>
      %c1_i32_93 = arith.constant 1 : i32
      %100 = arith.addi %64, %c1_i32_93 : i32
      %c0_i32_94 = arith.constant 0 : i32
      %101 = arith.addi %100, %c0_i32_94 : i32
      %102 = arith.index_cast %101 : i32 to index
      %c0_95 = arith.constant 0 : index
      %c0_96 = arith.constant 0 : index
      %103 = vector.load %arg11[%102, %c0_95, %c0_96] : memref<13x416x128xbf16, #tpu.memory_space<vmem>>, vector<1x96x128xbf16>
      %104 = vector.shape_cast %103 : vector<1x96x128xbf16> to vector<96x128xbf16>
      %c1_i32_97 = arith.constant 1 : i32
      %105 = arith.addi %64, %c1_i32_97 : i32
      %c1_i32_98 = arith.constant 1 : i32
      %106 = arith.addi %105, %c1_i32_98 : i32
      %107 = arith.index_cast %106 : i32 to index
      %c0_99 = arith.constant 0 : index
      %c0_100 = arith.constant 0 : index
      %108 = vector.load %arg11[%107, %c0_99, %c0_100] : memref<13x416x128xbf16, #tpu.memory_space<vmem>>, vector<1x96x128xbf16>
      %109 = vector.shape_cast %108 : vector<1x96x128xbf16> to vector<96x128xbf16>
      %c1_i32_101 = arith.constant 1 : i32
      %110 = arith.addi %64, %c1_i32_101 : i32
      %c2_i32_102 = arith.constant 2 : i32
      %111 = arith.addi %110, %c2_i32_102 : i32
      %112 = arith.index_cast %111 : i32 to index
      %c0_103 = arith.constant 0 : index
      %c0_104 = arith.constant 0 : index
      %113 = vector.load %arg11[%112, %c0_103, %c0_104] : memref<13x416x128xbf16, #tpu.memory_space<vmem>>, vector<1x96x128xbf16>
      %114 = vector.shape_cast %113 : vector<1x96x128xbf16> to vector<96x128xbf16>
      %115 = tpu.concatenate %104, %109, %114 in 0 : vector<96x128xbf16>, vector<96x128xbf16>, vector<96x128xbf16> -> vector<288x128xbf16>
      %cst_105 = arith.constant dense<0.000000e+00> : vector<64x128xf32>
      %116 = tpu.matmul %62, %115, %cst_105 {dimension_numbers = #tpu.dot_dimension_numbers<[1], [0], [0], [1], [0, 0, 1, 1], [], []>} : vector<64x288xbf16>, vector<288x128xbf16>, vector<64x128xf32> -> vector<64x128xf32>
      %117 = arith.maximumf %99, %116 : vector<64x128xf32>
      %c1_i32_106 = arith.constant 1 : i32
      %118 = arith.addi %64, %c1_i32_106 : i32
      %c0_i32_107 = arith.constant 0 : i32
      %119 = arith.addi %118, %c0_i32_107 : i32
      %120 = arith.index_cast %119 : i32 to index
      %c32_108 = arith.constant 32 : index
      %c0_109 = arith.constant 0 : index
      %121 = vector.load %arg11[%120, %c32_108, %c0_109] : memref<13x416x128xbf16, #tpu.memory_space<vmem>>, vector<1x96x128xbf16>
      %122 = vector.shape_cast %121 : vector<1x96x128xbf16> to vector<96x128xbf16>
      %c1_i32_110 = arith.constant 1 : i32
      %123 = arith.addi %64, %c1_i32_110 : i32
      %c1_i32_111 = arith.constant 1 : i32
      %124 = arith.addi %123, %c1_i32_111 : i32
      %125 = arith.index_cast %124 : i32 to index
      %c32_112 = arith.constant 32 : index
      %c0_113 = arith.constant 0 : index
      %126 = vector.load %arg11[%125, %c32_112, %c0_113] : memref<13x416x128xbf16, #tpu.memory_space<vmem>>, vector<1x96x128xbf16>
      %127 = vector.shape_cast %126 : vector<1x96x128xbf16> to vector<96x128xbf16>
      %c1_i32_114 = arith.constant 1 : i32
      %128 = arith.addi %64, %c1_i32_114 : i32
      %c2_i32_115 = arith.constant 2 : i32
      %129 = arith.addi %128, %c2_i32_115 : i32
      %130 = arith.index_cast %129 : i32 to index
      %c32_116 = arith.constant 32 : index
      %c0_117 = arith.constant 0 : index
      %131 = vector.load %arg11[%130, %c32_116, %c0_117] : memref<13x416x128xbf16, #tpu.memory_space<vmem>>, vector<1x96x128xbf16>
      %132 = vector.shape_cast %131 : vector<1x96x128xbf16> to vector<96x128xbf16>
      %133 = tpu.concatenate %122, %127, %132 in 0 : vector<96x128xbf16>, vector<96x128xbf16>, vector<96x128xbf16> -> vector<288x128xbf16>
      %cst_118 = arith.constant dense<0.000000e+00> : vector<64x128xf32>
      %134 = tpu.matmul %62, %133, %cst_118 {dimension_numbers = #tpu.dot_dimension_numbers<[1], [0], [0], [1], [0, 0, 1, 1], [], []>} : vector<64x288xbf16>, vector<288x128xbf16>, vector<64x128xf32> -> vector<64x128xf32>
      %135 = arith.maximumf %117, %134 : vector<64x128xf32>
      %136 = vector.broadcast %63 : vector<64x1xf32> to vector<64x128xf32>
      %137 = arith.addf %135, %136 : vector<64x128xf32>
      %cst_119 = arith.constant 0.000000e+00 : f32
      %138 = vector.broadcast %cst_119 : f32 to vector<64x128xf32>
      %139 = arith.maximumf %137, %138 : vector<64x128xf32>
      %140 = arith.truncf %139 : vector<64x128xf32> to vector<64x128xbf16>
      %141 = arith.index_cast %arg13 : i32 to index
      %c0_120 = arith.constant 0 : index
      %c0_121 = arith.constant 0 : index
      %142 = vector.load %arg12[%141, %c0_120, %c0_121] : memref<5x320x128xbf16, #tpu.memory_space<vmem>>, vector<1x64x128xbf16>
      %143 = vector.shape_cast %142 : vector<1x64x128xbf16> to vector<64x128xbf16>
      %144 = vector.shape_cast %140 : vector<64x128xbf16> to vector<1x64x128xbf16>
      tpu.vector_store %arg12[%141, %c0_120, %c0_121], %144 {strides = array<i32>} : memref<5x320x128xbf16, #tpu.memory_space<vmem>>, vector<1x64x128xbf16>,
      %c0_i32_122 = arith.constant 0 : i32
      %145 = arith.addi %64, %c0_i32_122 : i32
      %c0_i32_123 = arith.constant 0 : i32
      %146 = arith.addi %145, %c0_i32_123 : i32
      %147 = arith.index_cast %146 : i32 to index
      %c64 = arith.constant 64 : index
      %c0_124 = arith.constant 0 : index
      %148 = vector.load %arg11[%147, %c64, %c0_124] : memref<13x416x128xbf16, #tpu.memory_space<vmem>>, vector<1x96x128xbf16>
      %149 = vector.shape_cast %148 : vector<1x96x128xbf16> to vector<96x128xbf16>
      %c0_i32_125 = arith.constant 0 : i32
      %150 = arith.addi %64, %c0_i32_125 : i32
      %c1_i32_126 = arith.constant 1 : i32
      %151 = arith.addi %150, %c1_i32_126 : i32
      %152 = arith.index_cast %151 : i32 to index
      %c64_127 = arith.constant 64 : index
      %c0_128 = arith.constant 0 : index
      %153 = vector.load %arg11[%152, %c64_127, %c0_128] : memref<13x416x128xbf16, #tpu.memory_space<vmem>>, vector<1x96x128xbf16>
      %154 = vector.shape_cast %153 : vector<1x96x128xbf16> to vector<96x128xbf16>
      %c0_i32_129 = arith.constant 0 : i32
      %155 = arith.addi %64, %c0_i32_129 : i32
      %c2_i32_130 = arith.constant 2 : i32
      %156 = arith.addi %155, %c2_i32_130 : i32
      %157 = arith.index_cast %156 : i32 to index
      %c64_131 = arith.constant 64 : index
      %c0_132 = arith.constant 0 : index
      %158 = vector.load %arg11[%157, %c64_131, %c0_132] : memref<13x416x128xbf16, #tpu.memory_space<vmem>>, vector<1x96x128xbf16>
      %159 = vector.shape_cast %158 : vector<1x96x128xbf16> to vector<96x128xbf16>
      %160 = tpu.concatenate %149, %154, %159 in 0 : vector<96x128xbf16>, vector<96x128xbf16>, vector<96x128xbf16> -> vector<288x128xbf16>
      %cst_133 = arith.constant dense<0.000000e+00> : vector<64x128xf32>
      %161 = tpu.matmul %62, %160, %cst_133 {dimension_numbers = #tpu.dot_dimension_numbers<[1], [0], [0], [1], [0, 0, 1, 1], [], []>} : vector<64x288xbf16>, vector<288x128xbf16>, vector<64x128xf32> -> vector<64x128xf32>
      %c0_i32_134 = arith.constant 0 : i32
      %162 = arith.addi %64, %c0_i32_134 : i32
      %c0_i32_135 = arith.constant 0 : i32
      %163 = arith.addi %162, %c0_i32_135 : i32
      %164 = arith.index_cast %163 : i32 to index
      %c96 = arith.constant 96 : index
      %c0_136 = arith.constant 0 : index
      %165 = vector.load %arg11[%164, %c96, %c0_136] : memref<13x416x128xbf16, #tpu.memory_space<vmem>>, vector<1x96x128xbf16>
      %166 = vector.shape_cast %165 : vector<1x96x128xbf16> to vector<96x128xbf16>
      %c0_i32_137 = arith.constant 0 : i32
      %167 = arith.addi %64, %c0_i32_137 : i32
      %c1_i32_138 = arith.constant 1 : i32
      %168 = arith.addi %167, %c1_i32_138 : i32
      %169 = arith.index_cast %168 : i32 to index
      %c96_139 = arith.constant 96 : index
      %c0_140 = arith.constant 0 : index
      %170 = vector.load %arg11[%169, %c96_139, %c0_140] : memref<13x416x128xbf16, #tpu.memory_space<vmem>>, vector<1x96x128xbf16>
      %171 = vector.shape_cast %170 : vector<1x96x128xbf16> to vector<96x128xbf16>
      %c0_i32_141 = arith.constant 0 : i32
      %172 = arith.addi %64, %c0_i32_141 : i32
      %c2_i32_142 = arith.constant 2 : i32
      %173 = arith.addi %172, %c2_i32_142 : i32
      %174 = arith.index_cast %173 : i32 to index
      %c96_143 = arith.constant 96 : index
      %c0_144 = arith.constant 0 : index
      %175 = vector.load %arg11[%174, %c96_143, %c0_144] : memref<13x416x128xbf16, #tpu.memory_space<vmem>>, vector<1x96x128xbf16>
      %176 = vector.shape_cast %175 : vector<1x96x128xbf16> to vector<96x128xbf16>
      %177 = tpu.concatenate %166, %171, %176 in 0 : vector<96x128xbf16>, vector<96x128xbf16>, vector<96x128xbf16> -> vector<288x128xbf16>
      %cst_145 = arith.constant dense<0.000000e+00> : vector<64x128xf32>
      %178 = tpu.matmul %62, %177, %cst_145 {dimension_numbers = #tpu.dot_dimension_numbers<[1], [0], [0], [1], [0, 0, 1, 1], [], []>} : vector<64x288xbf16>, vector<288x128xbf16>, vector<64x128xf32> -> vector<64x128xf32>
      %179 = arith.maximumf %161, %178 : vector<64x128xf32>
      %c1_i32_146 = arith.constant 1 : i32
      %180 = arith.addi %64, %c1_i32_146 : i32
      %c0_i32_147 = arith.constant 0 : i32
      %181 = arith.addi %180, %c0_i32_147 : i32
      %182 = arith.index_cast %181 : i32 to index
      %c64_148 = arith.constant 64 : index
      %c0_149 = arith.constant 0 : index
      %183 = vector.load %arg11[%182, %c64_148, %c0_149] : memref<13x416x128xbf16, #tpu.memory_space<vmem>>, vector<1x96x128xbf16>
      %184 = vector.shape_cast %183 : vector<1x96x128xbf16> to vector<96x128xbf16>
      %c1_i32_150 = arith.constant 1 : i32
      %185 = arith.addi %64, %c1_i32_150 : i32
      %c1_i32_151 = arith.constant 1 : i32
      %186 = arith.addi %185, %c1_i32_151 : i32
      %187 = arith.index_cast %186 : i32 to index
      %c64_152 = arith.constant 64 : index
      %c0_153 = arith.constant 0 : index
      %188 = vector.load %arg11[%187, %c64_152, %c0_153] : memref<13x416x128xbf16, #tpu.memory_space<vmem>>, vector<1x96x128xbf16>
      %189 = vector.shape_cast %188 : vector<1x96x128xbf16> to vector<96x128xbf16>
      %c1_i32_154 = arith.constant 1 : i32
      %190 = arith.addi %64, %c1_i32_154 : i32
      %c2_i32_155 = arith.constant 2 : i32
      %191 = arith.addi %190, %c2_i32_155 : i32
      %192 = arith.index_cast %191 : i32 to index
      %c64_156 = arith.constant 64 : index
      %c0_157 = arith.constant 0 : index
      %193 = vector.load %arg11[%192, %c64_156, %c0_157] : memref<13x416x128xbf16, #tpu.memory_space<vmem>>, vector<1x96x128xbf16>
      %194 = vector.shape_cast %193 : vector<1x96x128xbf16> to vector<96x128xbf16>
      %195 = tpu.concatenate %184, %189, %194 in 0 : vector<96x128xbf16>, vector<96x128xbf16>, vector<96x128xbf16> -> vector<288x128xbf16>
      %cst_158 = arith.constant dense<0.000000e+00> : vector<64x128xf32>
      %196 = tpu.matmul %62, %195, %cst_158 {dimension_numbers = #tpu.dot_dimension_numbers<[1], [0], [0], [1], [0, 0, 1, 1], [], []>} : vector<64x288xbf16>, vector<288x128xbf16>, vector<64x128xf32> -> vector<64x128xf32>
      %197 = arith.maximumf %179, %196 : vector<64x128xf32>
      %c1_i32_159 = arith.constant 1 : i32
      %198 = arith.addi %64, %c1_i32_159 : i32
      %c0_i32_160 = arith.constant 0 : i32
      %199 = arith.addi %198, %c0_i32_160 : i32
      %200 = arith.index_cast %199 : i32 to index
      %c96_161 = arith.constant 96 : index
      %c0_162 = arith.constant 0 : index
      %201 = vector.load %arg11[%200, %c96_161, %c0_162] : memref<13x416x128xbf16, #tpu.memory_space<vmem>>, vector<1x96x128xbf16>
      %202 = vector.shape_cast %201 : vector<1x96x128xbf16> to vector<96x128xbf16>
      %c1_i32_163 = arith.constant 1 : i32
      %203 = arith.addi %64, %c1_i32_163 : i32
      %c1_i32_164 = arith.constant 1 : i32
      %204 = arith.addi %203, %c1_i32_164 : i32
      %205 = arith.index_cast %204 : i32 to index
      %c96_165 = arith.constant 96 : index
      %c0_166 = arith.constant 0 : index
      %206 = vector.load %arg11[%205, %c96_165, %c0_166] : memref<13x416x128xbf16, #tpu.memory_space<vmem>>, vector<1x96x128xbf16>
      %207 = vector.shape_cast %206 : vector<1x96x128xbf16> to vector<96x128xbf16>
      %c1_i32_167 = arith.constant 1 : i32
      %208 = arith.addi %64, %c1_i32_167 : i32
      %c2_i32_168 = arith.constant 2 : i32
      %209 = arith.addi %208, %c2_i32_168 : i32
      %210 = arith.index_cast %209 : i32 to index
      %c96_169 = arith.constant 96 : index
      %c0_170 = arith.constant 0 : index
      %211 = vector.load %arg11[%210, %c96_169, %c0_170] : memref<13x416x128xbf16, #tpu.memory_space<vmem>>, vector<1x96x128xbf16>
      %212 = vector.shape_cast %211 : vector<1x96x128xbf16> to vector<96x128xbf16>
      %213 = tpu.concatenate %202, %207, %212 in 0 : vector<96x128xbf16>, vector<96x128xbf16>, vector<96x128xbf16> -> vector<288x128xbf16>
      %cst_171 = arith.constant dense<0.000000e+00> : vector<64x128xf32>
      %214 = tpu.matmul %62, %213, %cst_171 {dimension_numbers = #tpu.dot_dimension_numbers<[1], [0], [0], [1], [0, 0, 1, 1], [], []>} : vector<64x288xbf16>, vector<288x128xbf16>, vector<64x128xf32> -> vector<64x128xf32>
      %215 = arith.maximumf %197, %214 : vector<64x128xf32>
      %216 = vector.broadcast %63 : vector<64x1xf32> to vector<64x128xf32>
      %217 = arith.addf %215, %216 : vector<64x128xf32>
      %cst_172 = arith.constant 0.000000e+00 : f32
      %218 = vector.broadcast %cst_172 : f32 to vector<64x128xf32>
      %219 = arith.maximumf %217, %218 : vector<64x128xf32>
      %220 = arith.truncf %219 : vector<64x128xf32> to vector<64x128xbf16>
      %221 = arith.index_cast %arg13 : i32 to index
      %c64_173 = arith.constant 64 : index
      %c0_174 = arith.constant 0 : index
      %222 = vector.load %arg12[%221, %c64_173, %c0_174] : memref<5x320x128xbf16, #tpu.memory_space<vmem>>, vector<1x64x128xbf16>
      %223 = vector.shape_cast %222 : vector<1x64x128xbf16> to vector<64x128xbf16>
      %224 = vector.shape_cast %220 : vector<64x128xbf16> to vector<1x64x128xbf16>
      tpu.vector_store %arg12[%221, %c64_173, %c0_174], %224 {strides = array<i32>} : memref<5x320x128xbf16, #tpu.memory_space<vmem>>, vector<1x64x128xbf16>,
      %c0_i32_175 = arith.constant 0 : i32
      %225 = arith.addi %64, %c0_i32_175 : i32
      %c0_i32_176 = arith.constant 0 : i32
      %226 = arith.addi %225, %c0_i32_176 : i32
      %227 = arith.index_cast %226 : i32 to index
      %c128_177 = arith.constant 128 : index
      %c0_178 = arith.constant 0 : index
      %228 = vector.load %arg11[%227, %c128_177, %c0_178] : memref<13x416x128xbf16, #tpu.memory_space<vmem>>, vector<1x96x128xbf16>
      %229 = vector.shape_cast %228 : vector<1x96x128xbf16> to vector<96x128xbf16>
      %c0_i32_179 = arith.constant 0 : i32
      %230 = arith.addi %64, %c0_i32_179 : i32
      %c1_i32_180 = arith.constant 1 : i32
      %231 = arith.addi %230, %c1_i32_180 : i32
      %232 = arith.index_cast %231 : i32 to index
      %c128_181 = arith.constant 128 : index
      %c0_182 = arith.constant 0 : index
      %233 = vector.load %arg11[%232, %c128_181, %c0_182] : memref<13x416x128xbf16, #tpu.memory_space<vmem>>, vector<1x96x128xbf16>
      %234 = vector.shape_cast %233 : vector<1x96x128xbf16> to vector<96x128xbf16>
      %c0_i32_183 = arith.constant 0 : i32
      %235 = arith.addi %64, %c0_i32_183 : i32
      %c2_i32_184 = arith.constant 2 : i32
      %236 = arith.addi %235, %c2_i32_184 : i32
      %237 = arith.index_cast %236 : i32 to index
      %c128_185 = arith.constant 128 : index
      %c0_186 = arith.constant 0 : index
      %238 = vector.load %arg11[%237, %c128_185, %c0_186] : memref<13x416x128xbf16, #tpu.memory_space<vmem>>, vector<1x96x128xbf16>
      %239 = vector.shape_cast %238 : vector<1x96x128xbf16> to vector<96x128xbf16>
      %240 = tpu.concatenate %229, %234, %239 in 0 : vector<96x128xbf16>, vector<96x128xbf16>, vector<96x128xbf16> -> vector<288x128xbf16>
      %cst_187 = arith.constant dense<0.000000e+00> : vector<64x128xf32>
      %241 = tpu.matmul %62, %240, %cst_187 {dimension_numbers = #tpu.dot_dimension_numbers<[1], [0], [0], [1], [0, 0, 1, 1], [], []>} : vector<64x288xbf16>, vector<288x128xbf16>, vector<64x128xf32> -> vector<64x128xf32>
      %c0_i32_188 = arith.constant 0 : i32
      %242 = arith.addi %64, %c0_i32_188 : i32
      %c0_i32_189 = arith.constant 0 : i32
      %243 = arith.addi %242, %c0_i32_189 : i32
      %244 = arith.index_cast %243 : i32 to index
      %c160 = arith.constant 160 : index
      %c0_190 = arith.constant 0 : index
      %245 = vector.load %arg11[%244, %c160, %c0_190] : memref<13x416x128xbf16, #tpu.memory_space<vmem>>, vector<1x96x128xbf16>
      %246 = vector.shape_cast %245 : vector<1x96x128xbf16> to vector<96x128xbf16>
      %c0_i32_191 = arith.constant 0 : i32
      %247 = arith.addi %64, %c0_i32_191 : i32
      %c1_i32_192 = arith.constant 1 : i32
      %248 = arith.addi %247, %c1_i32_192 : i32
      %249 = arith.index_cast %248 : i32 to index
      %c160_193 = arith.constant 160 : index
      %c0_194 = arith.constant 0 : index
      %250 = vector.load %arg11[%249, %c160_193, %c0_194] : memref<13x416x128xbf16, #tpu.memory_space<vmem>>, vector<1x96x128xbf16>
      %251 = vector.shape_cast %250 : vector<1x96x128xbf16> to vector<96x128xbf16>
      %c0_i32_195 = arith.constant 0 : i32
      %252 = arith.addi %64, %c0_i32_195 : i32
      %c2_i32_196 = arith.constant 2 : i32
      %253 = arith.addi %252, %c2_i32_196 : i32
      %254 = arith.index_cast %253 : i32 to index
      %c160_197 = arith.constant 160 : index
      %c0_198 = arith.constant 0 : index
      %255 = vector.load %arg11[%254, %c160_197, %c0_198] : memref<13x416x128xbf16, #tpu.memory_space<vmem>>, vector<1x96x128xbf16>
      %256 = vector.shape_cast %255 : vector<1x96x128xbf16> to vector<96x128xbf16>
      %257 = tpu.concatenate %246, %251, %256 in 0 : vector<96x128xbf16>, vector<96x128xbf16>, vector<96x128xbf16> -> vector<288x128xbf16>
      %cst_199 = arith.constant dense<0.000000e+00> : vector<64x128xf32>
      %258 = tpu.matmul %62, %257, %cst_199 {dimension_numbers = #tpu.dot_dimension_numbers<[1], [0], [0], [1], [0, 0, 1, 1], [], []>} : vector<64x288xbf16>, vector<288x128xbf16>, vector<64x128xf32> -> vector<64x128xf32>
      %259 = arith.maximumf %241, %258 : vector<64x128xf32>
      %c1_i32_200 = arith.constant 1 : i32
      %260 = arith.addi %64, %c1_i32_200 : i32
      %c0_i32_201 = arith.constant 0 : i32
      %261 = arith.addi %260, %c0_i32_201 : i32
      %262 = arith.index_cast %261 : i32 to index
      %c128_202 = arith.constant 128 : index
      %c0_203 = arith.constant 0 : index
      %263 = vector.load %arg11[%262, %c128_202, %c0_203] : memref<13x416x128xbf16, #tpu.memory_space<vmem>>, vector<1x96x128xbf16>
      %264 = vector.shape_cast %263 : vector<1x96x128xbf16> to vector<96x128xbf16>
      %c1_i32_204 = arith.constant 1 : i32
      %265 = arith.addi %64, %c1_i32_204 : i32
      %c1_i32_205 = arith.constant 1 : i32
      %266 = arith.addi %265, %c1_i32_205 : i32
      %267 = arith.index_cast %266 : i32 to index
      %c128_206 = arith.constant 128 : index
      %c0_207 = arith.constant 0 : index
      %268 = vector.load %arg11[%267, %c128_206, %c0_207] : memref<13x416x128xbf16, #tpu.memory_space<vmem>>, vector<1x96x128xbf16>
      %269 = vector.shape_cast %268 : vector<1x96x128xbf16> to vector<96x128xbf16>
      %c1_i32_208 = arith.constant 1 : i32
      %270 = arith.addi %64, %c1_i32_208 : i32
      %c2_i32_209 = arith.constant 2 : i32
      %271 = arith.addi %270, %c2_i32_209 : i32
      %272 = arith.index_cast %271 : i32 to index
      %c128_210 = arith.constant 128 : index
      %c0_211 = arith.constant 0 : index
      %273 = vector.load %arg11[%272, %c128_210, %c0_211] : memref<13x416x128xbf16, #tpu.memory_space<vmem>>, vector<1x96x128xbf16>
      %274 = vector.shape_cast %273 : vector<1x96x128xbf16> to vector<96x128xbf16>
      %275 = tpu.concatenate %264, %269, %274 in 0 : vector<96x128xbf16>, vector<96x128xbf16>, vector<96x128xbf16> -> vector<288x128xbf16>
      %cst_212 = arith.constant dense<0.000000e+00> : vector<64x128xf32>
      %276 = tpu.matmul %62, %275, %cst_212 {dimension_numbers = #tpu.dot_dimension_numbers<[1], [0], [0], [1], [0, 0, 1, 1], [], []>} : vector<64x288xbf16>, vector<288x128xbf16>, vector<64x128xf32> -> vector<64x128xf32>
      %277 = arith.maximumf %259, %276 : vector<64x128xf32>
      %c1_i32_213 = arith.constant 1 : i32
      %278 = arith.addi %64, %c1_i32_213 : i32
      %c0_i32_214 = arith.constant 0 : i32
      %279 = arith.addi %278, %c0_i32_214 : i32
      %280 = arith.index_cast %279 : i32 to index
      %c160_215 = arith.constant 160 : index
      %c0_216 = arith.constant 0 : index
      %281 = vector.load %arg11[%280, %c160_215, %c0_216] : memref<13x416x128xbf16, #tpu.memory_space<vmem>>, vector<1x96x128xbf16>
      %282 = vector.shape_cast %281 : vector<1x96x128xbf16> to vector<96x128xbf16>
      %c1_i32_217 = arith.constant 1 : i32
      %283 = arith.addi %64, %c1_i32_217 : i32
      %c1_i32_218 = arith.constant 1 : i32
      %284 = arith.addi %283, %c1_i32_218 : i32
      %285 = arith.index_cast %284 : i32 to index
      %c160_219 = arith.constant 160 : index
      %c0_220 = arith.constant 0 : index
      %286 = vector.load %arg11[%285, %c160_219, %c0_220] : memref<13x416x128xbf16, #tpu.memory_space<vmem>>, vector<1x96x128xbf16>
      %287 = vector.shape_cast %286 : vector<1x96x128xbf16> to vector<96x128xbf16>
      %c1_i32_221 = arith.constant 1 : i32
      %288 = arith.addi %64, %c1_i32_221 : i32
      %c2_i32_222 = arith.constant 2 : i32
      %289 = arith.addi %288, %c2_i32_222 : i32
      %290 = arith.index_cast %289 : i32 to index
      %c160_223 = arith.constant 160 : index
      %c0_224 = arith.constant 0 : index
      %291 = vector.load %arg11[%290, %c160_223, %c0_224] : memref<13x416x128xbf16, #tpu.memory_space<vmem>>, vector<1x96x128xbf16>
      %292 = vector.shape_cast %291 : vector<1x96x128xbf16> to vector<96x128xbf16>
      %293 = tpu.concatenate %282, %287, %292 in 0 : vector<96x128xbf16>, vector<96x128xbf16>, vector<96x128xbf16> -> vector<288x128xbf16>
      %cst_225 = arith.constant dense<0.000000e+00> : vector<64x128xf32>
      %294 = tpu.matmul %62, %293, %cst_225 {dimension_numbers = #tpu.dot_dimension_numbers<[1], [0], [0], [1], [0, 0, 1, 1], [], []>} : vector<64x288xbf16>, vector<288x128xbf16>, vector<64x128xf32> -> vector<64x128xf32>
      %295 = arith.maximumf %277, %294 : vector<64x128xf32>
      %296 = vector.broadcast %63 : vector<64x1xf32> to vector<64x128xf32>
      %297 = arith.addf %295, %296 : vector<64x128xf32>
      %cst_226 = arith.constant 0.000000e+00 : f32
      %298 = vector.broadcast %cst_226 : f32 to vector<64x128xf32>
      %299 = arith.maximumf %297, %298 : vector<64x128xf32>
      %300 = arith.truncf %299 : vector<64x128xf32> to vector<64x128xbf16>
      %301 = arith.index_cast %arg13 : i32 to index
      %c128_227 = arith.constant 128 : index
      %c0_228 = arith.constant 0 : index
      %302 = vector.load %arg12[%301, %c128_227, %c0_228] : memref<5x320x128xbf16, #tpu.memory_space<vmem>>, vector<1x64x128xbf16>
      %303 = vector.shape_cast %302 : vector<1x64x128xbf16> to vector<64x128xbf16>
      %304 = vector.shape_cast %300 : vector<64x128xbf16> to vector<1x64x128xbf16>
      tpu.vector_store %arg12[%301, %c128_227, %c0_228], %304 {strides = array<i32>} : memref<5x320x128xbf16, #tpu.memory_space<vmem>>, vector<1x64x128xbf16>,
      %c0_i32_229 = arith.constant 0 : i32
      %305 = arith.addi %64, %c0_i32_229 : i32
      %c0_i32_230 = arith.constant 0 : i32
      %306 = arith.addi %305, %c0_i32_230 : i32
      %307 = arith.index_cast %306 : i32 to index
      %c192 = arith.constant 192 : index
      %c0_231 = arith.constant 0 : index
      %308 = vector.load %arg11[%307, %c192, %c0_231] : memref<13x416x128xbf16, #tpu.memory_space<vmem>>, vector<1x96x128xbf16>
      %309 = vector.shape_cast %308 : vector<1x96x128xbf16> to vector<96x128xbf16>
      %c0_i32_232 = arith.constant 0 : i32
      %310 = arith.addi %64, %c0_i32_232 : i32
      %c1_i32_233 = arith.constant 1 : i32
      %311 = arith.addi %310, %c1_i32_233 : i32
      %312 = arith.index_cast %311 : i32 to index
      %c192_234 = arith.constant 192 : index
      %c0_235 = arith.constant 0 : index
      %313 = vector.load %arg11[%312, %c192_234, %c0_235] : memref<13x416x128xbf16, #tpu.memory_space<vmem>>, vector<1x96x128xbf16>
      %314 = vector.shape_cast %313 : vector<1x96x128xbf16> to vector<96x128xbf16>
      %c0_i32_236 = arith.constant 0 : i32
      %315 = arith.addi %64, %c0_i32_236 : i32
      %c2_i32_237 = arith.constant 2 : i32
      %316 = arith.addi %315, %c2_i32_237 : i32
      %317 = arith.index_cast %316 : i32 to index
      %c192_238 = arith.constant 192 : index
      %c0_239 = arith.constant 0 : index
      %318 = vector.load %arg11[%317, %c192_238, %c0_239] : memref<13x416x128xbf16, #tpu.memory_space<vmem>>, vector<1x96x128xbf16>
      %319 = vector.shape_cast %318 : vector<1x96x128xbf16> to vector<96x128xbf16>
      %320 = tpu.concatenate %309, %314, %319 in 0 : vector<96x128xbf16>, vector<96x128xbf16>, vector<96x128xbf16> -> vector<288x128xbf16>
      %cst_240 = arith.constant dense<0.000000e+00> : vector<64x128xf32>
      %321 = tpu.matmul %62, %320, %cst_240 {dimension_numbers = #tpu.dot_dimension_numbers<[1], [0], [0], [1], [0, 0, 1, 1], [], []>} : vector<64x288xbf16>, vector<288x128xbf16>, vector<64x128xf32> -> vector<64x128xf32>
      %c0_i32_241 = arith.constant 0 : i32
      %322 = arith.addi %64, %c0_i32_241 : i32
      %c0_i32_242 = arith.constant 0 : i32
      %323 = arith.addi %322, %c0_i32_242 : i32
      %324 = arith.index_cast %323 : i32 to index
      %c224 = arith.constant 224 : index
      %c0_243 = arith.constant 0 : index
      %325 = vector.load %arg11[%324, %c224, %c0_243] : memref<13x416x128xbf16, #tpu.memory_space<vmem>>, vector<1x96x128xbf16>
      %326 = vector.shape_cast %325 : vector<1x96x128xbf16> to vector<96x128xbf16>
      %c0_i32_244 = arith.constant 0 : i32
      %327 = arith.addi %64, %c0_i32_244 : i32
      %c1_i32_245 = arith.constant 1 : i32
      %328 = arith.addi %327, %c1_i32_245 : i32
      %329 = arith.index_cast %328 : i32 to index
      %c224_246 = arith.constant 224 : index
      %c0_247 = arith.constant 0 : index
      %330 = vector.load %arg11[%329, %c224_246, %c0_247] : memref<13x416x128xbf16, #tpu.memory_space<vmem>>, vector<1x96x128xbf16>
      %331 = vector.shape_cast %330 : vector<1x96x128xbf16> to vector<96x128xbf16>
      %c0_i32_248 = arith.constant 0 : i32
      %332 = arith.addi %64, %c0_i32_248 : i32
      %c2_i32_249 = arith.constant 2 : i32
      %333 = arith.addi %332, %c2_i32_249 : i32
      %334 = arith.index_cast %333 : i32 to index
      %c224_250 = arith.constant 224 : index
      %c0_251 = arith.constant 0 : index
      %335 = vector.load %arg11[%334, %c224_250, %c0_251] : memref<13x416x128xbf16, #tpu.memory_space<vmem>>, vector<1x96x128xbf16>
      %336 = vector.shape_cast %335 : vector<1x96x128xbf16> to vector<96x128xbf16>
      %337 = tpu.concatenate %326, %331, %336 in 0 : vector<96x128xbf16>, vector<96x128xbf16>, vector<96x128xbf16> -> vector<288x128xbf16>
      %cst_252 = arith.constant dense<0.000000e+00> : vector<64x128xf32>
      %338 = tpu.matmul %62, %337, %cst_252 {dimension_numbers = #tpu.dot_dimension_numbers<[1], [0], [0], [1], [0, 0, 1, 1], [], []>} : vector<64x288xbf16>, vector<288x128xbf16>, vector<64x128xf32> -> vector<64x128xf32>
      %339 = arith.maximumf %321, %338 : vector<64x128xf32>
      %c1_i32_253 = arith.constant 1 : i32
      %340 = arith.addi %64, %c1_i32_253 : i32
      %c0_i32_254 = arith.constant 0 : i32
      %341 = arith.addi %340, %c0_i32_254 : i32
      %342 = arith.index_cast %341 : i32 to index
      %c192_255 = arith.constant 192 : index
      %c0_256 = arith.constant 0 : index
      %343 = vector.load %arg11[%342, %c192_255, %c0_256] : memref<13x416x128xbf16, #tpu.memory_space<vmem>>, vector<1x96x128xbf16>
      %344 = vector.shape_cast %343 : vector<1x96x128xbf16> to vector<96x128xbf16>
      %c1_i32_257 = arith.constant 1 : i32
      %345 = arith.addi %64, %c1_i32_257 : i32
      %c1_i32_258 = arith.constant 1 : i32
      %346 = arith.addi %345, %c1_i32_258 : i32
      %347 = arith.index_cast %346 : i32 to index
      %c192_259 = arith.constant 192 : index
      %c0_260 = arith.constant 0 : index
      %348 = vector.load %arg11[%347, %c192_259, %c0_260] : memref<13x416x128xbf16, #tpu.memory_space<vmem>>, vector<1x96x128xbf16>
      %349 = vector.shape_cast %348 : vector<1x96x128xbf16> to vector<96x128xbf16>
      %c1_i32_261 = arith.constant 1 : i32
      %350 = arith.addi %64, %c1_i32_261 : i32
      %c2_i32_262 = arith.constant 2 : i32
      %351 = arith.addi %350, %c2_i32_262 : i32
      %352 = arith.index_cast %351 : i32 to index
      %c192_263 = arith.constant 192 : index
      %c0_264 = arith.constant 0 : index
      %353 = vector.load %arg11[%352, %c192_263, %c0_264] : memref<13x416x128xbf16, #tpu.memory_space<vmem>>, vector<1x96x128xbf16>
      %354 = vector.shape_cast %353 : vector<1x96x128xbf16> to vector<96x128xbf16>
      %355 = tpu.concatenate %344, %349, %354 in 0 : vector<96x128xbf16>, vector<96x128xbf16>, vector<96x128xbf16> -> vector<288x128xbf16>
      %cst_265 = arith.constant dense<0.000000e+00> : vector<64x128xf32>
      %356 = tpu.matmul %62, %355, %cst_265 {dimension_numbers = #tpu.dot_dimension_numbers<[1], [0], [0], [1], [0, 0, 1, 1], [], []>} : vector<64x288xbf16>, vector<288x128xbf16>, vector<64x128xf32> -> vector<64x128xf32>
      %357 = arith.maximumf %339, %356 : vector<64x128xf32>
      %c1_i32_266 = arith.constant 1 : i32
      %358 = arith.addi %64, %c1_i32_266 : i32
      %c0_i32_267 = arith.constant 0 : i32
      %359 = arith.addi %358, %c0_i32_267 : i32
      %360 = arith.index_cast %359 : i32 to index
      %c224_268 = arith.constant 224 : index
      %c0_269 = arith.constant 0 : index
      %361 = vector.load %arg11[%360, %c224_268, %c0_269] : memref<13x416x128xbf16, #tpu.memory_space<vmem>>, vector<1x96x128xbf16>
      %362 = vector.shape_cast %361 : vector<1x96x128xbf16> to vector<96x128xbf16>
      %c1_i32_270 = arith.constant 1 : i32
      %363 = arith.addi %64, %c1_i32_270 : i32
      %c1_i32_271 = arith.constant 1 : i32
      %364 = arith.addi %363, %c1_i32_271 : i32
      %365 = arith.index_cast %364 : i32 to index
      %c224_272 = arith.constant 224 : index
      %c0_273 = arith.constant 0 : index
      %366 = vector.load %arg11[%365, %c224_272, %c0_273] : memref<13x416x128xbf16, #tpu.memory_space<vmem>>, vector<1x96x128xbf16>
      %367 = vector.shape_cast %366 : vector<1x96x128xbf16> to vector<96x128xbf16>
      %c1_i32_274 = arith.constant 1 : i32
      %368 = arith.addi %64, %c1_i32_274 : i32
      %c2_i32_275 = arith.constant 2 : i32
      %369 = arith.addi %368, %c2_i32_275 : i32
      %370 = arith.index_cast %369 : i32 to index
      %c224_276 = arith.constant 224 : index
      %c0_277 = arith.constant 0 : index
      %371 = vector.load %arg11[%370, %c224_276, %c0_277] : memref<13x416x128xbf16, #tpu.memory_space<vmem>>, vector<1x96x128xbf16>
      %372 = vector.shape_cast %371 : vector<1x96x128xbf16> to vector<96x128xbf16>
      %373 = tpu.concatenate %362, %367, %372 in 0 : vector<96x128xbf16>, vector<96x128xbf16>, vector<96x128xbf16> -> vector<288x128xbf16>
      %cst_278 = arith.constant dense<0.000000e+00> : vector<64x128xf32>
      %374 = tpu.matmul %62, %373, %cst_278 {dimension_numbers = #tpu.dot_dimension_numbers<[1], [0], [0], [1], [0, 0, 1, 1], [], []>} : vector<64x288xbf16>, vector<288x128xbf16>, vector<64x128xf32> -> vector<64x128xf32>
      %375 = arith.maximumf %357, %374 : vector<64x128xf32>
      %376 = vector.broadcast %63 : vector<64x1xf32> to vector<64x128xf32>
      %377 = arith.addf %375, %376 : vector<64x128xf32>
      %cst_279 = arith.constant 0.000000e+00 : f32
      %378 = vector.broadcast %cst_279 : f32 to vector<64x128xf32>
      %379 = arith.maximumf %377, %378 : vector<64x128xf32>
      %380 = arith.truncf %379 : vector<64x128xf32> to vector<64x128xbf16>
      %381 = arith.index_cast %arg13 : i32 to index
      %c192_280 = arith.constant 192 : index
      %c0_281 = arith.constant 0 : index
      %382 = vector.load %arg12[%381, %c192_280, %c0_281] : memref<5x320x128xbf16, #tpu.memory_space<vmem>>, vector<1x64x128xbf16>
      %383 = vector.shape_cast %382 : vector<1x64x128xbf16> to vector<64x128xbf16>
      %384 = vector.shape_cast %380 : vector<64x128xbf16> to vector<1x64x128xbf16>
      tpu.vector_store %arg12[%381, %c192_280, %c0_281], %384 {strides = array<i32>} : memref<5x320x128xbf16, #tpu.memory_space<vmem>>, vector<1x64x128xbf16>,
      %c0_i32_282 = arith.constant 0 : i32
      %385 = arith.addi %64, %c0_i32_282 : i32
      %c0_i32_283 = arith.constant 0 : i32
      %386 = arith.addi %385, %c0_i32_283 : i32
      %387 = arith.index_cast %386 : i32 to index
      %c256_284 = arith.constant 256 : index
      %c0_285 = arith.constant 0 : index
      %388 = vector.load %arg11[%387, %c256_284, %c0_285] : memref<13x416x128xbf16, #tpu.memory_space<vmem>>, vector<1x96x128xbf16>
      %389 = vector.shape_cast %388 : vector<1x96x128xbf16> to vector<96x128xbf16>
      %c0_i32_286 = arith.constant 0 : i32
      %390 = arith.addi %64, %c0_i32_286 : i32
      %c1_i32_287 = arith.constant 1 : i32
      %391 = arith.addi %390, %c1_i32_287 : i32
      %392 = arith.index_cast %391 : i32 to index
      %c256_288 = arith.constant 256 : index
      %c0_289 = arith.constant 0 : index
      %393 = vector.load %arg11[%392, %c256_288, %c0_289] : memref<13x416x128xbf16, #tpu.memory_space<vmem>>, vector<1x96x128xbf16>
      %394 = vector.shape_cast %393 : vector<1x96x128xbf16> to vector<96x128xbf16>
      %c0_i32_290 = arith.constant 0 : i32
      %395 = arith.addi %64, %c0_i32_290 : i32
      %c2_i32_291 = arith.constant 2 : i32
      %396 = arith.addi %395, %c2_i32_291 : i32
      %397 = arith.index_cast %396 : i32 to index
      %c256_292 = arith.constant 256 : index
      %c0_293 = arith.constant 0 : index
      %398 = vector.load %arg11[%397, %c256_292, %c0_293] : memref<13x416x128xbf16, #tpu.memory_space<vmem>>, vector<1x96x128xbf16>
      %399 = vector.shape_cast %398 : vector<1x96x128xbf16> to vector<96x128xbf16>
      %400 = tpu.concatenate %389, %394, %399 in 0 : vector<96x128xbf16>, vector<96x128xbf16>, vector<96x128xbf16> -> vector<288x128xbf16>
      %cst_294 = arith.constant dense<0.000000e+00> : vector<64x128xf32>
      %401 = tpu.matmul %62, %400, %cst_294 {dimension_numbers = #tpu.dot_dimension_numbers<[1], [0], [0], [1], [0, 0, 1, 1], [], []>} : vector<64x288xbf16>, vector<288x128xbf16>, vector<64x128xf32> -> vector<64x128xf32>
      %c0_i32_295 = arith.constant 0 : i32
      %402 = arith.addi %64, %c0_i32_295 : i32
      %c0_i32_296 = arith.constant 0 : i32
      %403 = arith.addi %402, %c0_i32_296 : i32
      %404 = arith.index_cast %403 : i32 to index
      %c288 = arith.constant 288 : index
      %c0_297 = arith.constant 0 : index
      %405 = vector.load %arg11[%404, %c288, %c0_297] : memref<13x416x128xbf16, #tpu.memory_space<vmem>>, vector<1x96x128xbf16>
      %406 = vector.shape_cast %405 : vector<1x96x128xbf16> to vector<96x128xbf16>
      %c0_i32_298 = arith.constant 0 : i32
      %407 = arith.addi %64, %c0_i32_298 : i32
      %c1_i32_299 = arith.constant 1 : i32
      %408 = arith.addi %407, %c1_i32_299 : i32
      %409 = arith.index_cast %408 : i32 to index
      %c288_300 = arith.constant 288 : index
      %c0_301 = arith.constant 0 : index
      %410 = vector.load %arg11[%409, %c288_300, %c0_301] : memref<13x416x128xbf16, #tpu.memory_space<vmem>>, vector<1x96x128xbf16>
      %411 = vector.shape_cast %410 : vector<1x96x128xbf16> to vector<96x128xbf16>
      %c0_i32_302 = arith.constant 0 : i32
      %412 = arith.addi %64, %c0_i32_302 : i32
      %c2_i32_303 = arith.constant 2 : i32
      %413 = arith.addi %412, %c2_i32_303 : i32
      %414 = arith.index_cast %413 : i32 to index
      %c288_304 = arith.constant 288 : index
      %c0_305 = arith.constant 0 : index
      %415 = vector.load %arg11[%414, %c288_304, %c0_305] : memref<13x416x128xbf16, #tpu.memory_space<vmem>>, vector<1x96x128xbf16>
      %416 = vector.shape_cast %415 : vector<1x96x128xbf16> to vector<96x128xbf16>
      %417 = tpu.concatenate %406, %411, %416 in 0 : vector<96x128xbf16>, vector<96x128xbf16>, vector<96x128xbf16> -> vector<288x128xbf16>
      %cst_306 = arith.constant dense<0.000000e+00> : vector<64x128xf32>
      %418 = tpu.matmul %62, %417, %cst_306 {dimension_numbers = #tpu.dot_dimension_numbers<[1], [0], [0], [1], [0, 0, 1, 1], [], []>} : vector<64x288xbf16>, vector<288x128xbf16>, vector<64x128xf32> -> vector<64x128xf32>
      %419 = arith.maximumf %401, %418 : vector<64x128xf32>
      %c1_i32_307 = arith.constant 1 : i32
      %420 = arith.addi %64, %c1_i32_307 : i32
      %c0_i32_308 = arith.constant 0 : i32
      %421 = arith.addi %420, %c0_i32_308 : i32
      %422 = arith.index_cast %421 : i32 to index
      %c256_309 = arith.constant 256 : index
      %c0_310 = arith.constant 0 : index
      %423 = vector.load %arg11[%422, %c256_309, %c0_310] : memref<13x416x128xbf16, #tpu.memory_space<vmem>>, vector<1x96x128xbf16>
      %424 = vector.shape_cast %423 : vector<1x96x128xbf16> to vector<96x128xbf16>
      %c1_i32_311 = arith.constant 1 : i32
      %425 = arith.addi %64, %c1_i32_311 : i32
      %c1_i32_312 = arith.constant 1 : i32
      %426 = arith.addi %425, %c1_i32_312 : i32
      %427 = arith.index_cast %426 : i32 to index
      %c256_313 = arith.constant 256 : index
      %c0_314 = arith.constant 0 : index
      %428 = vector.load %arg11[%427, %c256_313, %c0_314] : memref<13x416x128xbf16, #tpu.memory_space<vmem>>, vector<1x96x128xbf16>
      %429 = vector.shape_cast %428 : vector<1x96x128xbf16> to vector<96x128xbf16>
      %c1_i32_315 = arith.constant 1 : i32
      %430 = arith.addi %64, %c1_i32_315 : i32
      %c2_i32_316 = arith.constant 2 : i32
      %431 = arith.addi %430, %c2_i32_316 : i32
      %432 = arith.index_cast %431 : i32 to index
      %c256_317 = arith.constant 256 : index
      %c0_318 = arith.constant 0 : index
      %433 = vector.load %arg11[%432, %c256_317, %c0_318] : memref<13x416x128xbf16, #tpu.memory_space<vmem>>, vector<1x96x128xbf16>
      %434 = vector.shape_cast %433 : vector<1x96x128xbf16> to vector<96x128xbf16>
      %435 = tpu.concatenate %424, %429, %434 in 0 : vector<96x128xbf16>, vector<96x128xbf16>, vector<96x128xbf16> -> vector<288x128xbf16>
      %cst_319 = arith.constant dense<0.000000e+00> : vector<64x128xf32>
      %436 = tpu.matmul %62, %435, %cst_319 {dimension_numbers = #tpu.dot_dimension_numbers<[1], [0], [0], [1], [0, 0, 1, 1], [], []>} : vector<64x288xbf16>, vector<288x128xbf16>, vector<64x128xf32> -> vector<64x128xf32>
      %437 = arith.maximumf %419, %436 : vector<64x128xf32>
      %c1_i32_320 = arith.constant 1 : i32
      %438 = arith.addi %64, %c1_i32_320 : i32
      %c0_i32_321 = arith.constant 0 : i32
      %439 = arith.addi %438, %c0_i32_321 : i32
      %440 = arith.index_cast %439 : i32 to index
      %c288_322 = arith.constant 288 : index
      %c0_323 = arith.constant 0 : index
      %441 = vector.load %arg11[%440, %c288_322, %c0_323] : memref<13x416x128xbf16, #tpu.memory_space<vmem>>, vector<1x96x128xbf16>
      %442 = vector.shape_cast %441 : vector<1x96x128xbf16> to vector<96x128xbf16>
      %c1_i32_324 = arith.constant 1 : i32
      %443 = arith.addi %64, %c1_i32_324 : i32
      %c1_i32_325 = arith.constant 1 : i32
      %444 = arith.addi %443, %c1_i32_325 : i32
      %445 = arith.index_cast %444 : i32 to index
      %c288_326 = arith.constant 288 : index
      %c0_327 = arith.constant 0 : index
      %446 = vector.load %arg11[%445, %c288_326, %c0_327] : memref<13x416x128xbf16, #tpu.memory_space<vmem>>, vector<1x96x128xbf16>
      %447 = vector.shape_cast %446 : vector<1x96x128xbf16> to vector<96x128xbf16>
      %c1_i32_328 = arith.constant 1 : i32
      %448 = arith.addi %64, %c1_i32_328 : i32
      %c2_i32_329 = arith.constant 2 : i32
      %449 = arith.addi %448, %c2_i32_329 : i32
      %450 = arith.index_cast %449 : i32 to index
      %c288_330 = arith.constant 288 : index
      %c0_331 = arith.constant 0 : index
      %451 = vector.load %arg11[%450, %c288_330, %c0_331] : memref<13x416x128xbf16, #tpu.memory_space<vmem>>, vector<1x96x128xbf16>
      %452 = vector.shape_cast %451 : vector<1x96x128xbf16> to vector<96x128xbf16>
      %453 = tpu.concatenate %442, %447, %452 in 0 : vector<96x128xbf16>, vector<96x128xbf16>, vector<96x128xbf16> -> vector<288x128xbf16>
      %cst_332 = arith.constant dense<0.000000e+00> : vector<64x128xf32>
      %454 = tpu.matmul %62, %453, %cst_332 {dimension_numbers = #tpu.dot_dimension_numbers<[1], [0], [0], [1], [0, 0, 1, 1], [], []>} : vector<64x288xbf16>, vector<288x128xbf16>, vector<64x128xf32> -> vector<64x128xf32>
      %455 = arith.maximumf %437, %454 : vector<64x128xf32>
      %456 = vector.broadcast %63 : vector<64x1xf32> to vector<64x128xf32>
      %457 = arith.addf %455, %456 : vector<64x128xf32>
      %cst_333 = arith.constant 0.000000e+00 : f32
      %458 = vector.broadcast %cst_333 : f32 to vector<64x128xf32>
      %459 = arith.maximumf %457, %458 : vector<64x128xf32>
      %460 = arith.truncf %459 : vector<64x128xf32> to vector<64x128xbf16>
      %461 = arith.index_cast %arg13 : i32 to index
      %c256_334 = arith.constant 256 : index
      %c0_335 = arith.constant 0 : index
      %462 = vector.load %arg12[%461, %c256_334, %c0_335] : memref<5x320x128xbf16, #tpu.memory_space<vmem>>, vector<1x64x128xbf16>
      %463 = vector.shape_cast %462 : vector<1x64x128xbf16> to vector<64x128xbf16>
      %464 = vector.shape_cast %460 : vector<64x128xbf16> to vector<1x64x128xbf16>
      tpu.vector_store %arg12[%461, %c256_334, %c0_335], %464 {strides = array<i32>} : memref<5x320x128xbf16, #tpu.memory_space<vmem>>, vector<1x64x128xbf16>,
    }
    %c5_i32_24 = arith.constant 5 : i32
    %c0_25 = arith.constant 0 : index
    %c0_26 = arith.constant 0 : index
    %c0_27 = arith.constant 0 : index
    %23 = vector.load %arg5[%c0_25, %c0_26, %c0_27] : memref<5x128x320xbf16, #tpu.memory_space<vmem>>, vector<1x128x320xbf16>
    %24 = vector.shape_cast %23 : vector<1x128x320xbf16> to vector<128x320xbf16>
    %c0_28 = arith.constant 0 : index
    %c0_29 = arith.constant 0 : index
    %c0_30 = arith.constant 0 : index
    %25 = vector.load %arg12[%c0_28, %c0_29, %c0_30] : memref<5x320x128xbf16, #tpu.memory_space<vmem>>, vector<1x320x128xbf16>
    %26 = vector.shape_cast %25 : vector<1x320x128xbf16> to vector<320x128xbf16>
    %cst = arith.constant dense<0.000000e+00> : vector<128x128xf32>
    %27 = tpu.matmul %24, %26, %cst {dimension_numbers = #tpu.dot_dimension_numbers<[1], [0], [0], [1], [0, 0, 1, 1], [], []>} : vector<128x320xbf16>, vector<320x128xbf16>, vector<128x128xf32> -> vector<128x128xf32>
    %c1 = arith.constant 1 : index
    %c0_31 = arith.constant 0 : index
    %c0_32 = arith.constant 0 : index
    %28 = vector.load %arg5[%c1, %c0_31, %c0_32] : memref<5x128x320xbf16, #tpu.memory_space<vmem>>, vector<1x128x320xbf16>
    %29 = vector.shape_cast %28 : vector<1x128x320xbf16> to vector<128x320xbf16>
    %c1_33 = arith.constant 1 : index
    %c0_34 = arith.constant 0 : index
    %c0_35 = arith.constant 0 : index
    %30 = vector.load %arg12[%c1_33, %c0_34, %c0_35] : memref<5x320x128xbf16, #tpu.memory_space<vmem>>, vector<1x320x128xbf16>
    %31 = vector.shape_cast %30 : vector<1x320x128xbf16> to vector<320x128xbf16>
    %cst_36 = arith.constant dense<0.000000e+00> : vector<128x128xf32>
    %32 = tpu.matmul %29, %31, %cst_36 {dimension_numbers = #tpu.dot_dimension_numbers<[1], [0], [0], [1], [0, 0, 1, 1], [], []>} : vector<128x320xbf16>, vector<320x128xbf16>, vector<128x128xf32> -> vector<128x128xf32>
    %33 = arith.addf %27, %32 : vector<128x128xf32>
    %c2 = arith.constant 2 : index
    %c0_37 = arith.constant 0 : index
    %c0_38 = arith.constant 0 : index
    %34 = vector.load %arg5[%c2, %c0_37, %c0_38] : memref<5x128x320xbf16, #tpu.memory_space<vmem>>, vector<1x128x320xbf16>
    %35 = vector.shape_cast %34 : vector<1x128x320xbf16> to vector<128x320xbf16>
    %c2_39 = arith.constant 2 : index
    %c0_40 = arith.constant 0 : index
    %c0_41 = arith.constant 0 : index
    %36 = vector.load %arg12[%c2_39, %c0_40, %c0_41] : memref<5x320x128xbf16, #tpu.memory_space<vmem>>, vector<1x320x128xbf16>
    %37 = vector.shape_cast %36 : vector<1x320x128xbf16> to vector<320x128xbf16>
    %cst_42 = arith.constant dense<0.000000e+00> : vector<128x128xf32>
    %38 = tpu.matmul %35, %37, %cst_42 {dimension_numbers = #tpu.dot_dimension_numbers<[1], [0], [0], [1], [0, 0, 1, 1], [], []>} : vector<128x320xbf16>, vector<320x128xbf16>, vector<128x128xf32> -> vector<128x128xf32>
    %39 = arith.addf %33, %38 : vector<128x128xf32>
    %c3 = arith.constant 3 : index
    %c0_43 = arith.constant 0 : index
    %c0_44 = arith.constant 0 : index
    %40 = vector.load %arg5[%c3, %c0_43, %c0_44] : memref<5x128x320xbf16, #tpu.memory_space<vmem>>, vector<1x128x320xbf16>
    %41 = vector.shape_cast %40 : vector<1x128x320xbf16> to vector<128x320xbf16>
    %c3_45 = arith.constant 3 : index
    %c0_46 = arith.constant 0 : index
    %c0_47 = arith.constant 0 : index
    %42 = vector.load %arg12[%c3_45, %c0_46, %c0_47] : memref<5x320x128xbf16, #tpu.memory_space<vmem>>, vector<1x320x128xbf16>
    %43 = vector.shape_cast %42 : vector<1x320x128xbf16> to vector<320x128xbf16>
    %cst_48 = arith.constant dense<0.000000e+00> : vector<128x128xf32>
    %44 = tpu.matmul %41, %43, %cst_48 {dimension_numbers = #tpu.dot_dimension_numbers<[1], [0], [0], [1], [0, 0, 1, 1], [], []>} : vector<128x320xbf16>, vector<320x128xbf16>, vector<128x128xf32> -> vector<128x128xf32>
    %45 = arith.addf %39, %44 : vector<128x128xf32>
    %c4 = arith.constant 4 : index
    %c0_49 = arith.constant 0 : index
    %c0_50 = arith.constant 0 : index
    %46 = vector.load %arg5[%c4, %c0_49, %c0_50] : memref<5x128x320xbf16, #tpu.memory_space<vmem>>, vector<1x128x320xbf16>
    %47 = vector.shape_cast %46 : vector<1x128x320xbf16> to vector<128x320xbf16>
    %c4_51 = arith.constant 4 : index
    %c0_52 = arith.constant 0 : index
    %c0_53 = arith.constant 0 : index
    %48 = vector.load %arg12[%c4_51, %c0_52, %c0_53] : memref<5x320x128xbf16, #tpu.memory_space<vmem>>, vector<1x320x128xbf16>
    %49 = vector.shape_cast %48 : vector<1x320x128xbf16> to vector<320x128xbf16>
    %cst_54 = arith.constant dense<0.000000e+00> : vector<128x128xf32>
    %50 = tpu.matmul %47, %49, %cst_54 {dimension_numbers = #tpu.dot_dimension_numbers<[1], [0], [0], [1], [0, 0, 1, 1], [], []>} : vector<128x320xbf16>, vector<320x128xbf16>, vector<128x128xf32> -> vector<128x128xf32>
    %51 = arith.addf %45, %50 : vector<128x128xf32>
    %c0_55 = arith.constant 0 : index
    %c0_56 = arith.constant 0 : index
    %52 = vector.load %arg6[%c0_55, %c0_56] : memref<128x1xf32, #tpu.memory_space<vmem>>, vector<128x1xf32>
    %53 = vector.broadcast %52 : vector<128x1xf32> to vector<128x128xf32>
    %54 = arith.addf %51, %53 : vector<128x128xf32>
    %c0_57 = arith.constant 0 : index
    %c0_58 = arith.constant 0 : index
    %55 = vector.load %arg7[%c0_57, %c0_58] : memref<16x128xbf16, #tpu.memory_space<vmem>>, vector<16x128xbf16>
    %56 = arith.truncf %54 : vector<128x128xf32> to vector<128x128xbf16>
    %cst_59 = arith.constant dense<0.000000e+00> : vector<16x128xf32>
    %57 = tpu.matmul %55, %56, %cst_59 {dimension_numbers = #tpu.dot_dimension_numbers<[1], [0], [0], [1], [0, 0, 1, 1], [], []>} : vector<16x128xbf16>, vector<128x128xbf16>, vector<16x128xf32> -> vector<16x128xf32>
    %c0_60 = arith.constant 0 : index
    %c0_61 = arith.constant 0 : index
    %58 = vector.load %arg8[%c0_60, %c0_61] : memref<16x1xf32, #tpu.memory_space<vmem>>, vector<16x1xf32>
    %59 = vector.broadcast %58 : vector<16x1xf32> to vector<16x128xf32>
    %60 = arith.addf %57, %59 : vector<16x128xf32>
    %c0_62 = arith.constant 0 : index
    %c0_63 = arith.constant 0 : index
    %61 = vector.load %arg9[%c0_62, %c0_63] : memref<16x128xf32, #tpu.memory_space<vmem>>, vector<16x128xf32>
    tpu.vector_store %arg9[%c0_62, %c0_63], %60 {strides = array<i32>} : memref<16x128xf32, #tpu.memory_space<vmem>>, vector<16x128xf32>,
    return
  }
  func.func @transform_0(%arg0: i32) -> (i32, i32) {
    %c0_i32 = arith.constant 0 : i32
    %c0_i32_0 = arith.constant 0 : i32
    return %c0_i32, %arg0 : i32, i32
  }
  func.func @transform_1(%arg0: i32) -> (i32, i32, i32) {
    %c0_i32 = arith.constant 0 : i32
    %c0_i32_0 = arith.constant 0 : i32
    %c0_i32_1 = arith.constant 0 : i32
    %c0_i32_2 = arith.constant 0 : i32
    return %c0_i32, %c0_i32_0, %c0_i32_1 : i32, i32, i32
  }
  func.func @transform_2(%arg0: i32) -> (i32, i32) {
    %c0_i32 = arith.constant 0 : i32
    %c0_i32_0 = arith.constant 0 : i32
    %c0_i32_1 = arith.constant 0 : i32
    return %c0_i32, %c0_i32_0 : i32, i32
  }
  func.func @transform_3(%arg0: i32) -> (i32, i32) {
    %c0_i32 = arith.constant 0 : i32
    %c0_i32_0 = arith.constant 0 : i32
    %c0_i32_1 = arith.constant 0 : i32
    return %c0_i32, %c0_i32_0 : i32, i32
  }
  func.func @transform_4(%arg0: i32) -> (i32, i32, i32) {
    %c0_i32 = arith.constant 0 : i32
    %c0_i32_0 = arith.constant 0 : i32
    %c0_i32_1 = arith.constant 0 : i32
    %c0_i32_2 = arith.constant 0 : i32
    return %c0_i32, %c0_i32_0, %c0_i32_1 : i32, i32, i32
  }
  func.func @transform_5(%arg0: i32) -> (i32, i32) {
    %c0_i32 = arith.constant 0 : i32
    %c0_i32_0 = arith.constant 0 : i32
    %c0_i32_1 = arith.constant 0 : i32
    return %c0_i32, %c0_i32_0 : i32, i32
  }
  func.func @transform_6(%arg0: i32) -> (i32, i32) {
    %c0_i32 = arith.constant 0 : i32
    %c0_i32_0 = arith.constant 0 : i32
    %c0_i32_1 = arith.constant 0 : i32
    return %c0_i32, %c0_i32_0 : i32, i32
  }
  func.func @transform_7(%arg0: i32) -> (i32, i32) {
    %c0_i32 = arith.constant 0 : i32
    %c0_i32_0 = arith.constant 0 : i32
    %c0_i32_1 = arith.constant 0 : i32
    return %c0_i32, %c0_i32_0 : i32, i32
  }
  func.func @transform_8(%arg0: i32) -> (i32, i32) {
    %c0_i32 = arith.constant 0 : i32
    %c0_i32_0 = arith.constant 0 : i32
    return %c0_i32, %arg0 : i32, i32
  }
}

</mosaic_0001>

<llo_original>
// kernel: conv_mnist_forward.1
$region0: #{conv_mnist_forward.1}
  #allocation0 [shape = 'u32[]', space=smem, size = 0x4, offset = 0x4, fixed_abs, tag = 'smem constant byte address 0x4 - core index']
  #allocation1 [shape = 'u32[144,128]{1,0:T(1,128)}', space=vmem, size = 0x12000, scoped, tag = 'internal scratch']
  #allocation2 [shape = 'bf16[896,128]{1,0:T(16,128)(2,1)}', space=vmem, size = 0x38000, scoped, tag = 'scratch operand']
  #allocation3 [shape = 'bf16[13,416,128]{2,1,0:T(16,128)(2,1)}', space=vmem, size = 0x152000, scoped, tag = 'scratch operand']
  #allocation4 [shape = 'bf16[5,320,128]{2,1,0:T(16,128)(2,1)}', space=vmem, size = 0x64000, scoped, tag = 'scratch operand']
  %s0 = inlined_call_operand.vmem [shape: f32[896,128], index: 0, kind: input, shape index: {}]
  %s1 = inlined_call_operand.vmem [shape: bf16[2,416,96], index: 1, kind: input, shape index: {}]
  %s2 = inlined_call_operand.vmem [shape: bf16[64,288], index: 2, kind: input, shape index: {}]
  %s3 = inlined_call_operand.vmem [shape: f32[64,1], index: 3, kind: input, shape index: {}]
  %s4 = inlined_call_operand.vmem [shape: bf16[5,128,320], index: 4, kind: input, shape index: {}]
  %s5 = inlined_call_operand.vmem [shape: f32[128,1], index: 5, kind: input, shape index: {}]
  %s6 = inlined_call_operand.vmem [shape: bf16[16,128], index: 6, kind: input, shape index: {}]
  %s7 = inlined_call_operand.vmem [shape: f32[16,1], index: 7, kind: input, shape index: {}]
  %s8 = inlined_call_operand.vmem [shape: f32[16,128], index: 8, kind: output, shape index: {}]
  %s9 = sld [smem:[#allocation0]]
  $region56: #{conv_mnist_forward.1} parent=0
    _
  %s11 = ssub.s32 1, %s9
  %s12 = scalar_select 0, %s11, %s9
  // Predicated region
  $region2: #{conv_mnist_forward.1} parent=0 // pred_check
    _
  $region3: #{conv_mnist_forward.1} parent=0 // pred_check_branch
    %14 = sbr.rel (0) target = $region5
  $region4: #{conv_mnist_forward.1} parent=0 // pred_region
    _
  $region5: #{conv_mnist_forward.1} parent=0 // pred_fallthru
    _
  // Predicated region
  $region6: #{conv_mnist_forward.1} parent=0 // pred_check
    _
  $region7: #{conv_mnist_forward.1} parent=0 // pred_check_branch
    %16 = sbr.rel (0) target = $region9
  $region8: #{conv_mnist_forward.1} parent=0 // pred_region
    _
  $region9: #{conv_mnist_forward.1} parent=0 // pred_fallthru
    _
  // Predicated region
  $region10: #{conv_mnist_forward.1} parent=0 // pred_check
    _
  $region11: #{conv_mnist_forward.1} parent=0 // pred_check_branch
    %18 = sbr.rel (0) target = $region13
  $region12: #{conv_mnist_forward.1} parent=0 // pred_region
    _
  $region13: #{conv_mnist_forward.1} parent=0 // pred_fallthru
    _
  // Predicated region
  $region14: #{conv_mnist_forward.1} parent=0 // pred_check
    _
  $region15: #{conv_mnist_forward.1} parent=0 // pred_check_branch
    %20 = sbr.rel (0) target = $region17
  $region16: #{conv_mnist_forward.1} parent=0 // pred_region
    _
  $region17: #{conv_mnist_forward.1} parent=0 // pred_fallthru
    _
  // Predicated region
  $region18: #{conv_mnist_forward.1} parent=0 // pred_check
    _
  $region19: #{conv_mnist_forward.1} parent=0 // pred_check_branch
    %22 = sbr.rel (0) target = $region21
  $region20: #{conv_mnist_forward.1} parent=0 // pred_region
    _
  $region21: #{conv_mnist_forward.1} parent=0 // pred_fallthru
    _
  // Predicated region
  $region22: #{conv_mnist_forward.1} parent=0 // pred_check
    _
  $region23: #{conv_mnist_forward.1} parent=0 // pred_check_branch
    %24 = sbr.rel (0) target = $region25
  $region24: #{conv_mnist_forward.1} parent=0 // pred_region
    _
  $region25: #{conv_mnist_forward.1} parent=0 // pred_fallthru
    _
  // Predicated region
  $region26: #{conv_mnist_forward.1} parent=0 // pred_check
    _
  $region27: #{conv_mnist_forward.1} parent=0 // pred_check_branch
    %26 = sbr.rel (0) target = $region29
  $region28: #{conv_mnist_forward.1} parent=0 // pred_region
    _
  $region29: #{conv_mnist_forward.1} parent=0 // pred_fallthru
    _
  // Predicated region
  $region30: #{conv_mnist_forward.1} parent=0 // pred_check
    _
  $region31: #{conv_mnist_forward.1} parent=0 // pred_check_branch
    %28 = sbr.rel (0) target = $region33
  $region32: #{conv_mnist_forward.1} parent=0 // pred_region
    _
  $region33: #{conv_mnist_forward.1} parent=0 // pred_fallthru
    _
  %v30 = vld [vmem:[%s0] sm:$0xff]
  %v31 = vld [vmem:[%s0 + $0x8] sm:$0xff]
  %v32 = vld [vmem:[%s0 + $0x10] sm:$0xff]
  %v33 = vld [vmem:[%s0 + $0x18] sm:$0xff]
  %v34 = vld [vmem:[%s0 + $0x20] sm:$0xff]
  %v35 = vld [vmem:[%s0 + $0x28] sm:$0xff]
  %v36 = vld [vmem:[%s0 + $0x30] sm:$0xff]
  %v37 = vld [vmem:[%s0 + $0x38] sm:$0xff]
  %v38 = vld [vmem:[%s0 + $0x40] sm:$0xff]
  %v39 = vld [vmem:[%s0 + $0x48] sm:$0xff]
  %v40 = vld [vmem:[%s0 + $0x50] sm:$0xff]
  %v41 = vld [vmem:[%s0 + $0x58] sm:$0xff]
  %v42 = vld [vmem:[%s0 + $0x60] sm:$0xff]
  %v43 = vld [vmem:[%s0 + $0x68] sm:$0xff]
  %v44 = vld [vmem:[%s0 + $0x70] sm:$0xff]
  %v45 = vld [vmem:[%s0 + $0x78] sm:$0xff]
  %v46 = vpack.c.bf16 %v31, %v30
  %v47 = vpack.c.bf16 %v33, %v32
  %v48 = vpack.c.bf16 %v35, %v34
  %v49 = vpack.c.bf16 %v37, %v36
  %v50 = vpack.c.bf16 %v39, %v38
  %v51 = vpack.c.bf16 %v41, %v40
  %v52 = vpack.c.bf16 %v43, %v42
  %v53 = vpack.c.bf16 %v45, %v44
  %54 = vst [vmem:[#allocation2] sm:$0xff] %v46
  %55 = vst [vmem:[#allocation2 + $0x8] sm:$0xff] %v47
  %56 = vst [vmem:[#allocation2 + $0x10] sm:$0xff] %v48
  %57 = vst [vmem:[#allocation2 + $0x18] sm:$0xff] %v49
  %58 = vst [vmem:[#allocation2 + $0x20] sm:$0xff] %v50
  %59 = vst [vmem:[#allocation2 + $0x28] sm:$0xff] %v51
  %60 = vst [vmem:[#allocation2 + $0x30] sm:$0xff] %v52
  %61 = vst [vmem:[#allocation2 + $0x38] sm:$0xff] %v53
  %v62 = vld [vmem:[%s0 + $0x80] sm:$0xff]
  %v63 = vld [vmem:[%s0 + $0x88] sm:$0xff]
  %v64 = vld [vmem:[%s0 + $0x90] sm:$0xff]
  %v65 = vld [vmem:[%s0 + $0x98] sm:$0xff]
  %v66 = vld [vmem:[%s0 + $0xa0] sm:$0xff]
  %v67 = vld [vmem:[%s0 + $0xa8] sm:$0xff]
  %v68 = vld [vmem:[%s0 + $0xb0] sm:$0xff]
  %v69 = vld [vmem:[%s0 + $0xb8] sm:$0xff]
  %v70 = vld [vmem:[%s0 + $0xc0] sm:$0xff]
  %v71 = vld [vmem:[%s0 + $0xc8] sm:$0xff]
  %v72 = vld [vmem:[%s0 + $0xd0] sm:$0xff]
  %v73 = vld [vmem:[%s0 + $0xd8] sm:$0xff]
  %v74 = vld [vmem:[%s0 + $0xe0] sm:$0xff]
  %v75 = vld [vmem:[%s0 + $0xe8] sm:$0xff]
  %v76 = vld [vmem:[%s0 + $0xf0] sm:$0xff]
  %v77 = vld [vmem:[%s0 + $0xf8] sm:$0xff]
  %v78 = vpack.c.bf16 %v63, %v62
  %v79 = vpack.c.bf16 %v65, %v64
  %v80 = vpack.c.bf16 %v67, %v66
  %v81 = vpack.c.bf16 %v69, %v68
  %v82 = vpack.c.bf16 %v71, %v70
  %v83 = vpack.c.bf16 %v73, %v72
  %v84 = vpack.c.bf16 %v75, %v74
  %v85 = vpack.c.bf16 %v77, %v76
  %86 = vst [vmem:[#allocation2 + $0x40] sm:$0xff] %v78
  %87 = vst [vmem:[#allocation2 + $0x48] sm:$0xff] %v79
  %88 = vst [vmem:[#allocation2 + $0x50] sm:$0xff] %v80
  %89 = vst [vmem:[#allocation2 + $0x58] sm:$0xff] %v81
  %90 = vst [vmem:[#allocation2 + $0x60] sm:$0xff] %v82
  %91 = vst [vmem:[#allocation2 + $0x68] sm:$0xff] %v83
  %92 = vst [vmem:[#allocation2 + $0x70] sm:$0xff] %v84
  %93 = vst [vmem:[#allocation2 + $0x78] sm:$0xff] %v85
  %v94 = vld [vmem:[%s0 + $0x100] sm:$0xff]
  %v95 = vld [vmem:[%s0 + $0x108] sm:$0xff]
  %v96 = vld [vmem:[%s0 + $0x110] sm:$0xff]
  %v97 = vld [vmem:[%s0 + $0x118] sm:$0xff]
  %v98 = vld [vmem:[%s0 + $0x120] sm:$0xff]
  %v99 = vld [vmem:[%s0 + $0x128] sm:$0xff]
  %v100 = vld [vmem:[%s0 + $0x130] sm:$0xff]
  %v101 = vld [vmem:[%s0 + $0x138] sm:$0xff]
  %v102 = vld [vmem:[%s0 + $0x140] sm:$0xff]
  %v103 = vld [vmem:[%s0 + $0x148] sm:$0xff]
  %v104 = vld [vmem:[%s0 + $0x150] sm:$0xff]
  %v105 = vld [vmem:[%s0 + $0x158] sm:$0xff]
  %v106 = vld [vmem:[%s0 + $0x160] sm:$0xff]
  %v107 = vld [vmem:[%s0 + $0x168] sm:$0xff]
  %v108 = vld [vmem:[%s0 + $0x170] sm:$0xff]
  %v109 = vld [vmem:[%s0 + $0x178] sm:$0xff]
  %v110 = vpack.c.bf16 %v95, %v94
  %v111 = vpack.c.bf16 %v97, %v96
  %v112 = vpack.c.bf16 %v99, %v98
  %v113 = vpack.c.bf16 %v101, %v100
  %v114 = vpack.c.bf16 %v103, %v102
  %v115 = vpack.c.bf16 %v105, %v104
  %v116 = vpack.c.bf16 %v107, %v106
  %v117 = vpack.c.bf16 %v109, %v108
  %118 = vst [vmem:[#allocation2 + $0x80] sm:$0xff] %v110
  %119 = vst [vmem:[#allocation2 + $0x88] sm:$0xff] %v111
  %120 = vst [vmem:[#allocation2 + $0x90] sm:$0xff] %v112
  %121 = vst [vmem:[#allocation2 + $0x98] sm:$0xff] %v113
  %122 = vst [vmem:[#allocation2 + $0xa0] sm:$0xff] %v114
  %123 = vst [vmem:[#allocation2 + $0xa8] sm:$0xff] %v115
  %124 = vst [vmem:[#allocation2 + $0xb0] sm:$0xff] %v116
  %125 = vst [vmem:[#allocation2 + $0xb8] sm:$0xff] %v117
  %v126 = vld [vmem:[%s0 + $0x180] sm:$0xff]
  %v127 = vld [vmem:[%s0 + $0x188] sm:$0xff]
  %v128 = vld [vmem:[%s0 + $0x190] sm:$0xff]
  %v129 = vld [vmem:[%s0 + $0x198] sm:$0xff]
  %v130 = vld [vmem:[%s0 + $0x1a0] sm:$0xff]
  %v131 = vld [vmem:[%s0 + $0x1a8] sm:$0xff]
  %v132 = vld [vmem:[%s0 + $0x1b0] sm:$0xff]
  %v133 = vld [vmem:[%s0 + $0x1b8] sm:$0xff]
  %v134 = vld [vmem:[%s0 + $0x1c0] sm:$0xff]
  %v135 = vld [vmem:[%s0 + $0x1c8] sm:$0xff]
  %v136 = vld [vmem:[%s0 + $0x1d0] sm:$0xff]
  %v137 = vld [vmem:[%s0 + $0x1d8] sm:$0xff]
  %v138 = vld [vmem:[%s0 + $0x1e0] sm:$0xff]
  %v139 = vld [vmem:[%s0 + $0x1e8] sm:$0xff]
  %v140 = vld [vmem:[%s0 + $0x1f0] sm:$0xff]
  %v141 = vld [vmem:[%s0 + $0x1f8] sm:$0xff]
  %v142 = vpack.c.bf16 %v127, %v126
  %v143 = vpack.c.bf16 %v129, %v128
  %v144 = vpack.c.bf16 %v131, %v130
  %v145 = vpack.c.bf16 %v133, %v132
  %v146 = vpack.c.bf16 %v135, %v134
  %v147 = vpack.c.bf16 %v137, %v136
  %v148 = vpack.c.bf16 %v139, %v138
  %v149 = vpack.c.bf16 %v141, %v140
  %150 = vst [vmem:[#allocation2 + $0xc0] sm:$0xff] %v142
  %151 = vst [vmem:[#allocation2 + $0xc8] sm:$0xff] %v143
  %152 = vst [vmem:[#allocation2 + $0xd0] sm:$0xff] %v144
  %153 = vst [vmem:[#allocation2 + $0xd8] sm:$0xff] %v145
  %154 = vst [vmem:[#allocation2 + $0xe0] sm:$0xff] %v146
  %155 = vst [vmem:[#allocation2 + $0xe8] sm:$0xff] %v147
  %156 = vst [vmem:[#allocation2 + $0xf0] sm:$0xff] %v148
  %157 = vst [vmem:[#allocation2 + $0xf8] sm:$0xff] %v149
  %v158 = vld [vmem:[%s0 + $0x200] sm:$0xff]
  %v159 = vld [vmem:[%s0 + $0x208] sm:$0xff]
  %v160 = vld [vmem:[%s0 + $0x210] sm:$0xff]
  %v161 = vld [vmem:[%s0 + $0x218] sm:$0xff]
  %v162 = vld [vmem:[%s0 + $0x220] sm:$0xff]
  %v163 = vld [vmem:[%s0 + $0x228] sm:$0xff]
  %v164 = vld [vmem:[%s0 + $0x230] sm:$0xff]
  %v165 = vld [vmem:[%s0 + $0x238] sm:$0xff]
  %v166 = vld [vmem:[%s0 + $0x240] sm:$0xff]
  %v167 = vld [vmem:[%s0 + $0x248] sm:$0xff]
  %v168 = vld [vmem:[%s0 + $0x250] sm:$0xff]
  %v169 = vld [vmem:[%s0 + $0x258] sm:$0xff]
  %v170 = vld [vmem:[%s0 + $0x260] sm:$0xff]
  %v171 = vld [vmem:[%s0 + $0x268] sm:$0xff]
  %v172 = vld [vmem:[%s0 + $0x270] sm:$0xff]
  %v173 = vld [vmem:[%s0 + $0x278] sm:$0xff]
  %v174 = vpack.c.bf16 %v159, %v158
  %v175 = vpack.c.bf16 %v161, %v160
  %v176 = vpack.c.bf16 %v163, %v162
  %v177 = vpack.c.bf16 %v165, %v164
  %v178 = vpack.c.bf16 %v167, %v166
  %v179 = vpack.c.bf16 %v169, %v168
  %v180 = vpack.c.bf16 %v171, %v170
  %v181 = vpack.c.bf16 %v173, %v172
  %182 = vst [vmem:[#allocation2 + $0x100] sm:$0xff] %v174
  %183 = vst [vmem:[#allocation2 + $0x108] sm:$0xff] %v175
  %184 = vst [vmem:[#allocation2 + $0x110] sm:$0xff] %v176
  %185 = vst [vmem:[#allocation2 + $0x118] sm:$0xff] %v177
  %186 = vst [vmem:[#allocation2 + $0x120] sm:$0xff] %v178
  %187 = vst [vmem:[#allocation2 + $0x128] sm:$0xff] %v179
  %188 = vst [vmem:[#allocation2 + $0x130] sm:$0xff] %v180
  %189 = vst [vmem:[#allocation2 + $0x138] sm:$0xff] %v181
  %v190 = vld [vmem:[%s0 + $0x280] sm:$0xff]
  %v191 = vld [vmem:[%s0 + $0x288] sm:$0xff]
  %v192 = vld [vmem:[%s0 + $0x290] sm:$0xff]
  %v193 = vld [vmem:[%s0 + $0x298] sm:$0xff]
  %v194 = vld [vmem:[%s0 + $0x2a0] sm:$0xff]
  %v195 = vld [vmem:[%s0 + $0x2a8] sm:$0xff]
  %v196 = vld [vmem:[%s0 + $0x2b0] sm:$0xff]
  %v197 = vld [vmem:[%s0 + $0x2b8] sm:$0xff]
  %v198 = vld [vmem:[%s0 + $0x2c0] sm:$0xff]
  %v199 = vld [vmem:[%s0 + $0x2c8] sm:$0xff]
  %v200 = vld [vmem:[%s0 + $0x2d0] sm:$0xff]
  %v201 = vld [vmem:[%s0 + $0x2d8] sm:$0xff]
  %v202 = vld [vmem:[%s0 + $0x2e0] sm:$0xff]
  %v203 = vld [vmem:[%s0 + $0x2e8] sm:$0xff]
  %v204 = vld [vmem:[%s0 + $0x2f0] sm:$0xff]
  %v205 = vld [vmem:[%s0 + $0x2f8] sm:$0xff]
  %v206 = vpack.c.bf16 %v191, %v190
  %v207 = vpack.c.bf16 %v193, %v192
  %v208 = vpack.c.bf16 %v195, %v194
  %v209 = vpack.c.bf16 %v197, %v196
  %v210 = vpack.c.bf16 %v199, %v198
  %v211 = vpack.c.bf16 %v201, %v200
  %v212 = vpack.c.bf16 %v203, %v202
  %v213 = vpack.c.bf16 %v205, %v204
  %214 = vst [vmem:[#allocation2 + $0x140] sm:$0xff] %v206
  %215 = vst [vmem:[#allocation2 + $0x148] sm:$0xff] %v207
  %216 = vst [vmem:[#allocation2 + $0x150] sm:$0xff] %v208
  %217 = vst [vmem:[#allocation2 + $0x158] sm:$0xff] %v209
  %218 = vst [vmem:[#allocation2 + $0x160] sm:$0xff] %v210
  %219 = vst [vmem:[#allocation2 + $0x168] sm:$0xff] %v211
  %220 = vst [vmem:[#allocation2 + $0x170] sm:$0xff] %v212
  %221 = vst [vmem:[#allocation2 + $0x178] sm:$0xff] %v213
  %v222 = vld [vmem:[%s0 + $0x300] sm:$0xff]
  %v223 = vld [vmem:[%s0 + $0x308] sm:$0xff]
  %v224 = vld [vmem:[%s0 + $0x310] sm:$0xff]
  %v225 = vld [vmem:[%s0 + $0x318] sm:$0xff]
  %v226 = vld [vmem:[%s0 + $0x320] sm:$0xff]
  %v227 = vld [vmem:[%s0 + $0x328] sm:$0xff]
  %v228 = vld [vmem:[%s0 + $0x330] sm:$0xff]
  %v229 = vld [vmem:[%s0 + $0x338] sm:$0xff]
  %v230 = vld [vmem:[%s0 + $0x340] sm:$0xff]
  %v231 = vld [vmem:[%s0 + $0x348] sm:$0xff]
  %v232 = vld [vmem:[%s0 + $0x350] sm:$0xff]
  %v233 = vld [vmem:[%s0 + $0x358] sm:$0xff]
  %v234 = vld [vmem:[%s0 + $0x360] sm:$0xff]
  %v235 = vld [vmem:[%s0 + $0x368] sm:$0xff]
  %v236 = vld [vmem:[%s0 + $0x370] sm:$0xff]
  %v237 = vld [vmem:[%s0 + $0x378] sm:$0xff]
  %v238 = vpack.c.bf16 %v223, %v222
  %v239 = vpack.c.bf16 %v225, %v224
  %v240 = vpack.c.bf16 %v227, %v226
  %v241 = vpack.c.bf16 %v229, %v228
  %v242 = vpack.c.bf16 %v231, %v230
  %v243 = vpack.c.bf16 %v233, %v232
  %v244 = vpack.c.bf16 %v235, %v234
  %v245 = vpack.c.bf16 %v237, %v236
  %246 = vst [vmem:[#allocation2 + $0x180] sm:$0xff] %v238
  %247 = vst [vmem:[#allocation2 + $0x188] sm:$0xff] %v239
  %248 = vst [vmem:[#allocation2 + $0x190] sm:$0xff] %v240
  %249 = vst [vmem:[#allocation2 + $0x198] sm:$0xff] %v241
  %250 = vst [vmem:[#allocation2 + $0x1a0] sm:$0xff] %v242
  %251 = vst [vmem:[#allocation2 + $0x1a8] sm:$0xff] %v243
  %252 = vst [vmem:[#allocation2 + $0x1b0] sm:$0xff] %v244
  %253 = vst [vmem:[#allocation2 + $0x1b8] sm:$0xff] %v245
  loop: start=0, step=1, limit=13
  $region34: #{conv_mnist_forward.1} parent=0 // loop_pre_header
    _
  $region35: #{conv_mnist_forward.1} parent=0 // loop_header
    %s255 = sphi 0, %s259
    %p256 = scmp.ge.s32.totalorder %s255, 13
  $region36: #{conv_mnist_forward.1} parent=0 // loop_header_branch
    %258 = sbr.rel (%p256) target = $region40
  $region37: #{conv_mnist_forward.1} parent=0 // loop_body
    %s260 = smul.u32 %s255, 64
    %s261 = sadd.s32 %s260, 32
    %s262 = sshra.s32 %s260, 4
    %s263 = sand.u32 %s260, 15
    %s264 = smul.addr %s262, 8
    %s265 = scalar_lea.vmem [#allocation2], %s264
    %v266 = vld [vmem:[%s265] sm:$0xff]
    %v267 = vld [vmem:[%s265 + $0x8] sm:$0xff]
    %v268 = vld [vmem:[%s265 + $0x10] sm:$0xff]
    %v269 = vld [vmem:[%s265 + $0x18] sm:$0xff]
    %v270 = vld [vmem:[%s265 + $0x20] sm:$0xff]
    %v271 = vld [vmem:[%s265 + $0x28] sm:$0xff]
    %s272 = sshra.s32 %s261, 4
    %s273 = sand.u32 %s261, 15
    %s274 = smul.addr %s272, 8
    %s275 = scalar_lea.vmem [#allocation2], %s274
    %v276 = vld [vmem:[%s275] sm:$0xff]
    %v277 = vld [vmem:[%s275 + $0x8] sm:$0xff]
    %v278 = vld [vmem:[%s275 + $0x10] sm:$0xff]
    %v279 = vld [vmem:[%s275 + $0x18] sm:$0xff]
    %v280 = vld [vmem:[%s275 + $0x20] sm:$0xff]
    %v281 = vld [vmem:[%s275 + $0x28] sm:$0xff]
    %v282 = vld [vmem:[%s1] sm:$0xf]
    %v283 = vld [vmem:[%s1 + $0x4] sm:$0xf]
    %v284 = vld [vmem:[%s1 + $0x8] sm:$0xf]
    %v285 = vld [vmem:[%s1 + $0xc] sm:$0xf]
    %v286 = vld [vmem:[%s1 + $0x10] sm:$0xf]
    %v287 = vld [vmem:[%s1 + $0x14] sm:$0xf]
    %v288 = vld [vmem:[%s1 + $0x18] sm:$0xf]
    %v289 = vld [vmem:[%s1 + $0x1c] sm:$0xf]
    %v290 = vld [vmem:[%s1 + $0x20] sm:$0xf]
    %v291 = vld [vmem:[%s1 + $0x24] sm:$0xf]
    %v292 = vld [vmem:[%s1 + $0x28] sm:$0xf]
    %v293 = vld [vmem:[%s1 + $0x2c] sm:$0xf]
    %v294 = vld [vmem:[%s1 + $0x30] sm:$0xf]
    %v295 = vld [vmem:[%s1 + $0x34] sm:$0xf]
    %v296 = vld [vmem:[%s1 + $0x38] sm:$0xf]
    %v297 = vld [vmem:[%s1 + $0x3c] sm:$0xf]
    %v298 = vld [vmem:[%s1 + $0x40] sm:$0xf]
    %v299 = vld [vmem:[%s1 + $0x44] sm:$0xf]
    %v300 = vld [vmem:[%s1 + $0x48] sm:$0xf]
    %v301 = vld [vmem:[%s1 + $0x4c] sm:$0xf]
    %v302 = vld [vmem:[%s1 + $0x50] sm:$0xf]
    %v303 = vld [vmem:[%s1 + $0x54] sm:$0xf]
    %v304 = vld [vmem:[%s1 + $0x58] sm:$0xf]
    %v305 = vld [vmem:[%s1 + $0x5c] sm:$0xf]
    %v306 = vld [vmem:[%s1 + $0x60] sm:$0xf]
    %v307 = vld [vmem:[%s1 + $0x64] sm:$0xf]
    %v308 = vld [vmem:[%s1 + $0x68] sm:$0xf]
    %v309 = vld [vmem:[%s1 + $0x6c] sm:$0xf]
    %v310 = vld [vmem:[%s1 + $0x70] sm:$0xf]
    %v311 = vld [vmem:[%s1 + $0x74] sm:$0xf]
    %v312 = vld [vmem:[%s1 + $0x78] sm:$0xf]
    %v313 = vld [vmem:[%s1 + $0x7c] sm:$0xf]
    %v314 = vld [vmem:[%s1 + $0x80] sm:$0xf]
    %v315 = vld [vmem:[%s1 + $0x84] sm:$0xf]
    %v316 = vld [vmem:[%s1 + $0x88] sm:$0xf]
    %v317 = vld [vmem:[%s1 + $0x8c] sm:$0xf]
    %v318 = vld [vmem:[%s1 + $0x90] sm:$0xf]
    %v319 = vld [vmem:[%s1 + $0x94] sm:$0xf]
    %v320 = vld [vmem:[%s1 + $0x98] sm:$0xf]
    %v321 = vld [vmem:[%s1 + $0x9c] sm:$0xf]
    %v322 = vld [vmem:[%s1 + $0xa0] sm:$0xf]
    %v323 = vld [vmem:[%s1 + $0xa4] sm:$0xf]
    %v324 = vld [vmem:[%s1 + $0xa8] sm:$0xf]
    %v325 = vld [vmem:[%s1 + $0xac] sm:$0xf]
    %v326 = vld [vmem:[%s1 + $0xb0] sm:$0xf]
    %v327 = vld [vmem:[%s1 + $0xb4] sm:$0xf]
    %v328 = vld [vmem:[%s1 + $0xb8] sm:$0xf]
    %v329 = vld [vmem:[%s1 + $0xbc] sm:$0xf]
    %v330 = vld [vmem:[%s1 + $0xc0] sm:$0xf]
    %v331 = vld [vmem:[%s1 + $0xc4] sm:$0xf]
    %v332 = vld [vmem:[%s1 + $0xc8] sm:$0xf]
    %v333 = vld [vmem:[%s1 + $0xcc] sm:$0xf]
    %v386 = vunpack.c.l.b16 %v282
    %v387 = vunpack.c.l.b16 %v283
    %v388 = vunpack.c.l.b16 %v284
    %v389 = vunpack.c.l.b16 %v285
    %v390 = vunpack.c.l.b16 %v286
    %v391 = vunpack.c.l.b16 %v287
    %v392 = vunpack.c.l.b16 %v288
    %v393 = vunpack.c.l.b16 %v289
    %v394 = vunpack.c.l.b16 %v290
    %v395 = vunpack.c.l.b16 %v291
    %v396 = vunpack.c.l.b16 %v292
    %v397 = vunpack.c.l.b16 %v293
    %v398 = vunpack.c.l.b16 %v294
    %v399 = vunpack.c.l.b16 %v295
    %v400 = vunpack.c.l.b16 %v296
    %v401 = vunpack.c.l.b16 %v297
    %v402 = vunpack.c.l.b16 %v298
    %v403 = vunpack.c.l.b16 %v299
    %v404 = vunpack.c.l.b16 %v300
    %v405 = vunpack.c.l.b16 %v301
    %v406 = vunpack.c.l.b16 %v302
    %v407 = vunpack.c.l.b16 %v303
    %v408 = vunpack.c.l.b16 %v304
    %v409 = vunpack.c.l.b16 %v305
    %v410 = vunpack.c.l.b16 %v306
    %v411 = vunpack.c.l.b16 %v307
    %v412 = vunpack.c.l.b16 %v308
    %v413 = vunpack.c.l.b16 %v309
    %v414 = vunpack.c.l.b16 %v310
    %v415 = vunpack.c.l.b16 %v311
    %v416 = vunpack.c.l.b16 %v312
    %v417 = vunpack.c.l.b16 %v313
    %v418 = vunpack.c.l.b16 %v314
    %v419 = vunpack.c.l.b16 %v315
    %v420 = vunpack.c.l.b16 %v316
    %v421 = vunpack.c.l.b16 %v317
    %v422 = vunpack.c.l.b16 %v318
    %v423 = vunpack.c.l.b16 %v319
    %v424 = vunpack.c.l.b16 %v320
    %v425 = vunpack.c.l.b16 %v321
    %v426 = vunpack.c.l.b16 %v322
    %v427 = vunpack.c.l.b16 %v323
    %v428 = vunpack.c.l.b16 %v324
    %v429 = vunpack.c.l.b16 %v325
    %v430 = vunpack.c.l.b16 %v326
    %v431 = vunpack.c.l.b16 %v327
    %v432 = vunpack.c.l.b16 %v328
    %v433 = vunpack.c.l.b16 %v329
    %v434 = vunpack.c.l.b16 %v330
    %v435 = vunpack.c.l.b16 %v331
    %v436 = vunpack.c.l.b16 %v332
    %v437 = vunpack.c.l.b16 %v333
    %v438 = vpack.c.b16 %v387, %v386
    %v439 = vpack.c.b16 %v389, %v388
    %v440 = vpack.c.b16 %v391, %v390
    %v441 = vpack.c.b16 %v393, %v392
    %v442 = vpack.c.b16 %v395, %v394
    %v443 = vpack.c.b16 %v397, %v396
    %v444 = vpack.c.b16 %v399, %v398
    %v445 = vpack.c.b16 %v401, %v400
    %v446 = vpack.c.b16 %v403, %v402
    %v447 = vpack.c.b16 %v405, %v404
    %v448 = vpack.c.b16 %v407, %v406
    %v449 = vpack.c.b16 %v409, %v408
    %v450 = vpack.c.b16 %v411, %v410
    %v451 = vpack.c.b16 %v413, %v412
    %v452 = vpack.c.b16 %v415, %v414
    %v453 = vpack.c.b16 %v417, %v416
    %v454 = vpack.c.b16 %v419, %v418
    %v455 = vpack.c.b16 %v421, %v420
    %v456 = vpack.c.b16 %v423, %v422
    %v457 = vpack.c.b16 %v425, %v424
    %v458 = vpack.c.b16 %v427, %v426
    %v459 = vpack.c.b16 %v429, %v428
    %v460 = vpack.c.b16 %v431, %v430
    %v461 = vpack.c.b16 %v433, %v432
    %v462 = vpack.c.b16 %v435, %v434
    %v463 = vpack.c.b16 %v437, %v436
    %vm464 = vcmask 785408
    %v466 = vsel %vm464, %v438, 0
    %v469 = vsel %vm464, %v439, 0
    %v472 = vsel %vm464, %v440, 0
    %v475 = vsel %vm464, %v441, 0
    %v478 = vsel %vm464, %v442, 0
    %v481 = vsel %vm464, %v443, 0
    %v484 = vsel %vm464, %v444, 0
    %v487 = vsel %vm464, %v445, 0
    %v490 = vsel %vm464, %v446, 0
    %v493 = vsel %vm464, %v447, 0
    %v496 = vsel %vm464, %v448, 0
    %v499 = vsel %vm464, %v449, 0
    %v502 = vsel %vm464, %v450, 0
    %v505 = vsel %vm464, %v451, 0
    %v508 = vsel %vm464, %v452, 0
    %v511 = vsel %vm464, %v453, 0
    %v514 = vsel %vm464, %v454, 0
    %v517 = vsel %vm464, %v455, 0
    %v520 = vsel %vm464, %v456, 0
    %v523 = vsel %vm464, %v457, 0
    %v526 = vsel %vm464, %v458, 0
    %v529 = vsel %vm464, %v459, 0
    %v532 = vsel %vm464, %v460, 0
    %v535 = vsel %vm464, %v461, 0
    %v538 = vsel %vm464, %v462, 0
    %v541 = vsel %vm464, %v463, 0
    %543 = vmatprep.subr.bf16.mxu0 0
    %544 = vmatpush1.bf16.msra.mxu0 %v266
    %545 = vmatprep.subr.bf16.mxu0 0
    %546 = vmatpush1.bf16.msra.mxu0 %v267
    %547 = vmatprep.subr.bf16.mxu0 0
    %548 = vmatpush1.bf16.msra.mxu0 %v268
    %549 = vmatprep.subr.bf16.mxu0 0
    %550 = vmatpush1.bf16.msra.mxu0 %v269
    %551 = vmatprep.subr.bf16.mxu0 0
    %552 = vmatpush1.bf16.msra.mxu0 %v270
    %553 = vmatprep.subr.bf16.mxu0 0
    %554 = vmatpush1.bf16.msra.mxu0 %v271
    %555 = vmatprep.subr.bf16.mxu0 0
    %556 = vmatpush1.bf16.msra.mxu0 0
    %557 = vmatprep.subr.bf16.mxu0 0
    %558 = vmatpush1.bf16.msra.mxu0 0
    %559 = vmatprep.subr.bf16.mxu0 0
    %560 = vmatpush1.bf16.msra.mxu0 0
    %561 = vmatprep.subr.bf16.mxu0 0
    %562 = vmatpush1.bf16.msra.mxu0 0
    %563 = vmatprep.subr.bf16.mxu0 0
    %564 = vmatpush1.bf16.msra.mxu0 0
    %565 = vmatprep.subr.bf16.mxu0 0
    %566 = vmatpush1.bf16.msra.mxu0 0
    %567 = vmatprep.subr.bf16.mxu0 0
    %568 = vmatpush1.bf16.msra.mxu0 0
    %569 = vmatprep.subr.bf16.mxu0 0
    %570 = vmatpush1.bf16.msra.mxu0 0
    %571 = vmatprep.subr.bf16.mxu0 0
    %572 = vmatpush1.bf16.msra.mxu0 0
    %573 = vmatprep.subr.bf16.mxu0 0
    %574 = vmatpush1.bf16.msra.mxu0 0
    %575 = vmatprep.mubr.bf16.mxu0 0
    %576 = vmatmul.mubr.bf16.gmra.mrb[0].mxu0 %v466
    %v577 = vpop.f32.mrb[0].mxu0
    %v578 = vadd.f32 0.0, %v577
    %v579 = vpop.f32.mrb[0].mxu0
    %v580 = vpop.f32.mrb[0].mxu0
    %v581 = vadd.f32 0.0, %v580
    %v582 = vpop.f32.mrb[0].mxu0
    %583 = vmatprep.mubr.bf16.mxu0 0
    %584 = vmatmul.mubr.bf16.gmra.mrb[0].mxu0 %v469
    %v585 = vpop.f32.mrb[0].mxu0
    %v586 = vadd.f32 0.0, %v585
    %v587 = vpop.f32.mrb[0].mxu0
    %v588 = vpop.f32.mrb[0].mxu0
    %v589 = vadd.f32 0.0, %v588
    %v590 = vpop.f32.mrb[0].mxu0
    %591 = vmatprep.mubr.bf16.mxu0 0
    %592 = vmatmul.mubr.bf16.gmra.mrb[0].mxu0 %v472
    %v593 = vpop.f32.mrb[0].mxu0
    %v594 = vadd.f32 0.0, %v593
    %v595 = vpop.f32.mrb[0].mxu0
    %v596 = vpop.f32.mrb[0].mxu0
    %v597 = vadd.f32 0.0, %v596
    %v598 = vpop.f32.mrb[0].mxu0
    %599 = vmatprep.mubr.bf16.mxu0 0
    %600 = vmatmul.mubr.bf16.gmra.mrb[0].mxu0 %v475
    %v601 = vpop.f32.mrb[0].mxu0
    %v602 = vadd.f32 0.0, %v601
    %v603 = vpop.f32.mrb[0].mxu0
    %v604 = vpop.f32.mrb[0].mxu0
    %v605 = vadd.f32 0.0, %v604
    %v606 = vpop.f32.mrb[0].mxu0
    %607 = vmatprep.mubr.bf16.mxu0 0
    %608 = vmatmul.mubr.bf16.gmra.mrb[0].mxu0 %v478
    %v609 = vpop.f32.mrb[0].mxu0
    %v610 = vadd.f32 0.0, %v609
    %v611 = vpop.f32.mrb[0].mxu0
    %v612 = vpop.f32.mrb[0].mxu0
    %v613 = vadd.f32 0.0, %v612
    %v614 = vpop.f32.mrb[0].mxu0
    %615 = vmatprep.mubr.bf16.mxu0 0
    %616 = vmatmul.mubr.bf16.gmra.mrb[0].mxu0 %v481
    %v617 = vpop.f32.mrb[0].mxu0
    %v618 = vadd.f32 0.0, %v617
    %v619 = vpop.f32.mrb[0].mxu0
    %v620 = vpop.f32.mrb[0].mxu0
    %v621 = vadd.f32 0.0, %v620
    %v622 = vpop.f32.mrb[0].mxu0
    %623 = vmatprep.mubr.bf16.mxu0 0
    %624 = vmatmul.mubr.bf16.gmra.mrb[0].mxu0 %v484
    %v625 = vpop.f32.mrb[0].mxu0
    %v626 = vadd.f32 0.0, %v625
    %v627 = vpop.f32.mrb[0].mxu0
    %v628 = vpop.f32.mrb[0].mxu0
    %v629 = vadd.f32 0.0, %v628
    %v630 = vpop.f32.mrb[0].mxu0
    %631 = vmatprep.mubr.bf16.mxu0 0
    %632 = vmatmul.mubr.bf16.gmra.mrb[0].mxu0 %v487
    %v633 = vpop.f32.mrb[0].mxu0
    %v634 = vadd.f32 0.0, %v633
    %v635 = vpop.f32.mrb[0].mxu0
    %v636 = vpop.f32.mrb[0].mxu0
    %v637 = vadd.f32 0.0, %v636
    %v638 = vpop.f32.mrb[0].mxu0
    %639 = vmatprep.mubr.bf16.mxu0 0
    %640 = vmatmul.mubr.bf16.gmra.mrb[0].mxu0 %v490
    %v641 = vpop.f32.mrb[0].mxu0
    %v642 = vadd.f32 0.0, %v641
    %v643 = vpop.f32.mrb[0].mxu0
    %v644 = vpop.f32.mrb[0].mxu0
    %v645 = vadd.f32 0.0, %v644
    %v646 = vpop.f32.mrb[0].mxu0
    %647 = vmatprep.mubr.bf16.mxu0 0
    %648 = vmatmul.mubr.bf16.gmra.mrb[0].mxu0 %v493
    %v649 = vpop.f32.mrb[0].mxu0
    %v650 = vadd.f32 0.0, %v649
    %v651 = vpop.f32.mrb[0].mxu0
    %v652 = vpop.f32.mrb[0].mxu0
    %v653 = vadd.f32 0.0, %v652
    %v654 = vpop.f32.mrb[0].mxu0
    %655 = vmatprep.mubr.bf16.mxu0 0
    %656 = vmatmul.mubr.bf16.gmra.mrb[0].mxu0 %v496
    %v657 = vpop.f32.mrb[0].mxu0
    %v658 = vadd.f32 0.0, %v657
    %v659 = vpop.f32.mrb[0].mxu0
    %v660 = vpop.f32.mrb[0].mxu0
    %v661 = vadd.f32 0.0, %v660
    %v662 = vpop.f32.mrb[0].mxu0
    %663 = vmatprep.mubr.bf16.mxu0 0
    %664 = vmatmul.mubr.bf16.gmra.mrb[0].mxu0 %v499
    %v665 = vpop.f32.mrb[0].mxu0
    %v666 = vadd.f32 0.0, %v665
    %v667 = vpop.f32.mrb[0].mxu0
    %v668 = vpop.f32.mrb[0].mxu0
    %v669 = vadd.f32 0.0, %v668
    %v670 = vpop.f32.mrb[0].mxu0
    %671 = vmatprep.mubr.bf16.mxu0 0
    %672 = vmatmul.mubr.bf16.gmra.mrb[0].mxu0 %v502
    %v673 = vpop.f32.mrb[0].mxu0
    %v674 = vadd.f32 0.0, %v673
    %v675 = vpop.f32.mrb[0].mxu0
    %v676 = vpop.f32.mrb[0].mxu0
    %v677 = vadd.f32 0.0, %v676
    %v678 = vpop.f32.mrb[0].mxu0
    %679 = vmatprep.mubr.bf16.mxu0 0
    %680 = vmatmul.mubr.bf16.gmra.mrb[0].mxu0 %v505
    %v681 = vpop.f32.mrb[0].mxu0
    %v682 = vadd.f32 0.0, %v681
    %v683 = vpop.f32.mrb[0].mxu0
    %v684 = vpop.f32.mrb[0].mxu0
    %v685 = vadd.f32 0.0, %v684
    %v686 = vpop.f32.mrb[0].mxu0
    %687 = vmatprep.mubr.bf16.mxu0 0
    %688 = vmatmul.mubr.bf16.gmra.mrb[0].mxu0 %v508
    %v689 = vpop.f32.mrb[0].mxu0
    %v690 = vadd.f32 0.0, %v689
    %v691 = vpop.f32.mrb[0].mxu0
    %v692 = vpop.f32.mrb[0].mxu0
    %v693 = vadd.f32 0.0, %v692
    %v694 = vpop.f32.mrb[0].mxu0
    %695 = vmatprep.mubr.bf16.mxu0 0
    %696 = vmatmul.mubr.bf16.gmra.mrb[0].mxu0 %v511
    %v697 = vpop.f32.mrb[0].mxu0
    %v698 = vadd.f32 0.0, %v697
    %v699 = vpop.f32.mrb[0].mxu0
    %v700 = vpop.f32.mrb[0].mxu0
    %v701 = vadd.f32 0.0, %v700
    %v702 = vpop.f32.mrb[0].mxu0
    %703 = vmatprep.mubr.bf16.mxu0 0
    %704 = vmatmul.mubr.bf16.gmra.mrb[0].mxu0 %v514
    %v705 = vpop.f32.mrb[0].mxu0
    %v706 = vadd.f32 0.0, %v705
    %v707 = vpop.f32.mrb[0].mxu0
    %v708 = vpop.f32.mrb[0].mxu0
    %v709 = vadd.f32 0.0, %v708
    %v710 = vpop.f32.mrb[0].mxu0
    %711 = vmatprep.mubr.bf16.mxu0 0
    %712 = vmatmul.mubr.bf16.gmra.mrb[0].mxu0 %v517
    %v713 = vpop.f32.mrb[0].mxu0
    %v714 = vadd.f32 0.0, %v713
    %v715 = vpop.f32.mrb[0].mxu0
    %v716 = vpop.f32.mrb[0].mxu0
    %v717 = vadd.f32 0.0, %v716
    %v718 = vpop.f32.mrb[0].mxu0
    %719 = vmatprep.mubr.bf16.mxu0 0
    %720 = vmatmul.mubr.bf16.gmra.mrb[0].mxu0 %v520
    %v721 = vpop.f32.mrb[0].mxu0
    %v722 = vadd.f32 0.0, %v721
    %v723 = vpop.f32.mrb[0].mxu0
    %v724 = vpop.f32.mrb[0].mxu0
    %v725 = vadd.f32 0.0, %v724
    %v726 = vpop.f32.mrb[0].mxu0
    %727 = vmatprep.mubr.bf16.mxu0 0
    %728 = vmatmul.mubr.bf16.gmra.mrb[0].mxu0 %v523
    %v729 = vpop.f32.mrb[0].mxu0
    %v730 = vadd.f32 0.0, %v729
    %v731 = vpop.f32.mrb[0].mxu0
    %v732 = vpop.f32.mrb[0].mxu0
    %v733 = vadd.f32 0.0, %v732
    %v734 = vpop.f32.mrb[0].mxu0
    %735 = vmatprep.mubr.bf16.mxu0 0
    %736 = vmatmul.mubr.bf16.gmra.mrb[0].mxu0 %v526
    %v737 = vpop.f32.mrb[0].mxu0
    %v738 = vadd.f32 0.0, %v737
    %v739 = vpop.f32.mrb[0].mxu0
    %v740 = vpop.f32.mrb[0].mxu0
    %v741 = vadd.f32 0.0, %v740
    %v742 = vpop.f32.mrb[0].mxu0
    %743 = vmatprep.mubr.bf16.mxu0 0
    %744 = vmatmul.mubr.bf16.gmra.mrb[0].mxu0 %v529
    %v745 = vpop.f32.mrb[0].mxu0
    %v746 = vadd.f32 0.0, %v745
    %v747 = vpop.f32.mrb[0].mxu0
    %v748 = vpop.f32.mrb[0].mxu0
    %v749 = vadd.f32 0.0, %v748
    %v750 = vpop.f32.mrb[0].mxu0
    %751 = vmatprep.mubr.bf16.mxu0 0
    %752 = vmatmul.mubr.bf16.gmra.mrb[0].mxu0 %v532
    %v753 = vpop.f32.mrb[0].mxu0
    %v754 = vadd.f32 0.0, %v753
    %v755 = vpop.f32.mrb[0].mxu0
    %v756 = vpop.f32.mrb[0].mxu0
    %v757 = vadd.f32 0.0, %v756
    %v758 = vpop.f32.mrb[0].mxu0
    %759 = vmatprep.mubr.bf16.mxu0 0
    %760 = vmatmul.mubr.bf16.gmra.mrb[0].mxu0 %v535
    %v761 = vpop.f32.mrb[0].mxu0
    %v762 = vadd.f32 0.0, %v761
    %v763 = vpop.f32.mrb[0].mxu0
    %v764 = vpop.f32.mrb[0].mxu0
    %v765 = vadd.f32 0.0, %v764
    %v766 = vpop.f32.mrb[0].mxu0
    %767 = vmatprep.mubr.bf16.mxu0 0
    %768 = vmatmul.mubr.bf16.gmra.mrb[0].mxu0 %v538
    %v769 = vpop.f32.mrb[0].mxu0
    %v770 = vadd.f32 0.0, %v769
    %v771 = vpop.f32.mrb[0].mxu0
    %v772 = vpop.f32.mrb[0].mxu0
    %v773 = vadd.f32 0.0, %v772
    %v774 = vpop.f32.mrb[0].mxu0
    %775 = vmatprep.mubr.bf16.mxu0 0
    %776 = vmatmul.mubr.bf16.gmra.mrb[0].mxu0 %v541
    %v777 = vpop.f32.mrb[0].mxu0
    %v778 = vadd.f32 0.0, %v777
    %v779 = vpop.f32.mrb[0].mxu0
    %v780 = vpop.f32.mrb[0].mxu0
    %v781 = vadd.f32 0.0, %v780
    %v782 = vpop.f32.mrb[0].mxu0
    %783 = vdwg.mxu0
    %s784 = scalar_lea.vmem %s1, 208
    %v785 = vld [vmem:[%s784] sm:$0xf]
    %v786 = vld [vmem:[%s784 + $0x4] sm:$0xf]
    %v787 = vld [vmem:[%s784 + $0x8] sm:$0xf]
    %v788 = vld [vmem:[%s784 + $0xc] sm:$0xf]
    %v789 = vld [vmem:[%s784 + $0x10] sm:$0xf]
    %v790 = vld [vmem:[%s784 + $0x14] sm:$0xf]
    %v791 = vld [vmem:[%s784 + $0x18] sm:$0xf]
    %v792 = vld [vmem:[%s784 + $0x1c] sm:$0xf]
    %v793 = vld [vmem:[%s784 + $0x20] sm:$0xf]
    %v794 = vld [vmem:[%s784 + $0x24] sm:$0xf]
    %v795 = vld [vmem:[%s784 + $0x28] sm:$0xf]
    %v796 = vld [vmem:[%s784 + $0x2c] sm:$0xf]
    %v797 = vld [vmem:[%s784 + $0x30] sm:$0xf]
    %v798 = vld [vmem:[%s784 + $0x34] sm:$0xf]
    %v799 = vld [vmem:[%s784 + $0x38] sm:$0xf]
    %v800 = vld [vmem:[%s784 + $0x3c] sm:$0xf]
    %v801 = vld [vmem:[%s784 + $0x40] sm:$0xf]
    %v802 = vld [vmem:[%s784 + $0x44] sm:$0xf]
    %v803 = vld [vmem:[%s784 + $0x48] sm:$0xf]
    %v804 = vld [vmem:[%s784 + $0x4c] sm:$0xf]
    %v805 = vld [vmem:[%s784 + $0x50] sm:$0xf]
    %v806 = vld [vmem:[%s784 + $0x54] sm:$0xf]
    %v807 = vld [vmem:[%s784 + $0x58] sm:$0xf]
    %v808 = vld [vmem:[%s784 + $0x5c] sm:$0xf]
    %v809 = vld [vmem:[%s784 + $0x60] sm:$0xf]
    %v810 = vld [vmem:[%s784 + $0x64] sm:$0xf]
    %v811 = vld [vmem:[%s784 + $0x68] sm:$0xf]
    %v812 = vld [vmem:[%s784 + $0x6c] sm:$0xf]
    %v813 = vld [vmem:[%s784 + $0x70] sm:$0xf]
    %v814 = vld [vmem:[%s784 + $0x74] sm:$0xf]
    %v815 = vld [vmem:[%s784 + $0x78] sm:$0xf]
    %v816 = vld [vmem:[%s784 + $0x7c] sm:$0xf]
    %v817 = vld [vmem:[%s784 + $0x80] sm:$0xf]
    %v818 = vld [vmem:[%s784 + $0x84] sm:$0xf]
    %v819 = vld [vmem:[%s784 + $0x88] sm:$0xf]
    %v820 = vld [vmem:[%s784 + $0x8c] sm:$0xf]
    %v821 = vld [vmem:[%s784 + $0x90] sm:$0xf]
    %v822 = vld [vmem:[%s784 + $0x94] sm:$0xf]
    %v823 = vld [vmem:[%s784 + $0x98] sm:$0xf]
    %v824 = vld [vmem:[%s784 + $0x9c] sm:$0xf]
    %v825 = vld [vmem:[%s784 + $0xa0] sm:$0xf]
    %v826 = vld [vmem:[%s784 + $0xa4] sm:$0xf]
    %v827 = vld [vmem:[%s784 + $0xa8] sm:$0xf]
    %v828 = vld [vmem:[%s784 + $0xac] sm:$0xf]
    %v829 = vld [vmem:[%s784 + $0xb0] sm:$0xf]
    %v830 = vld [vmem:[%s784 + $0xb4] sm:$0xf]
    %v831 = vld [vmem:[%s784 + $0xb8] sm:$0xf]
    %v832 = vld [vmem:[%s784 + $0xbc] sm:$0xf]
    %v833 = vld [vmem:[%s784 + $0xc0] sm:$0xf]
    %v834 = vld [vmem:[%s784 + $0xc4] sm:$0xf]
    %v835 = vld [vmem:[%s784 + $0xc8] sm:$0xf]
    %v836 = vld [vmem:[%s784 + $0xcc] sm:$0xf]
    %v889 = vunpack.c.l.b16 %v785
    %v890 = vunpack.c.l.b16 %v786
    %v891 = vunpack.c.l.b16 %v787
    %v892 = vunpack.c.l.b16 %v788
    %v893 = vunpack.c.l.b16 %v789
    %v894 = vunpack.c.l.b16 %v790
    %v895 = vunpack.c.l.b16 %v791
    %v896 = vunpack.c.l.b16 %v792
    %v897 = vunpack.c.l.b16 %v793
    %v898 = vunpack.c.l.b16 %v794
    %v899 = vunpack.c.l.b16 %v795
    %v900 = vunpack.c.l.b16 %v796
    %v901 = vunpack.c.l.b16 %v797
    %v902 = vunpack.c.l.b16 %v798
    %v903 = vunpack.c.l.b16 %v799
    %v904 = vunpack.c.l.b16 %v800
    %v905 = vunpack.c.l.b16 %v801
    %v906 = vunpack.c.l.b16 %v802
    %v907 = vunpack.c.l.b16 %v803
    %v908 = vunpack.c.l.b16 %v804
    %v909 = vunpack.c.l.b16 %v805
    %v910 = vunpack.c.l.b16 %v806
    %v911 = vunpack.c.l.b16 %v807
    %v912 = vunpack.c.l.b16 %v808
    %v913 = vunpack.c.l.b16 %v809
    %v914 = vunpack.c.l.b16 %v810
    %v915 = vunpack.c.l.b16 %v811
    %v916 = vunpack.c.l.b16 %v812
    %v917 = vunpack.c.l.b16 %v813
    %v918 = vunpack.c.l.b16 %v814
    %v919 = vunpack.c.l.b16 %v815
    %v920 = vunpack.c.l.b16 %v816
    %v921 = vunpack.c.l.b16 %v817
    %v922 = vunpack.c.l.b16 %v818
    %v923 = vunpack.c.l.b16 %v819
    %v924 = vunpack.c.l.b16 %v820
    %v925 = vunpack.c.l.b16 %v821
    %v926 = vunpack.c.l.b16 %v822
    %v927 = vunpack.c.l.b16 %v823
    %v928 = vunpack.c.l.b16 %v824
    %v929 = vunpack.c.l.b16 %v825
    %v930 = vunpack.c.l.b16 %v826
    %v931 = vunpack.c.l.b16 %v827
    %v932 = vunpack.c.l.b16 %v828
    %v933 = vunpack.c.l.b16 %v829
    %v934 = vunpack.c.l.b16 %v830
    %v935 = vunpack.c.l.b16 %v831
    %v936 = vunpack.c.l.b16 %v832
    %v937 = vunpack.c.l.b16 %v833
    %v938 = vunpack.c.l.b16 %v834
    %v939 = vunpack.c.l.b16 %v835
    %v940 = vunpack.c.l.b16 %v836
    %v941 = vpack.c.b16 %v890, %v889
    %v942 = vpack.c.b16 %v892, %v891
    %v943 = vpack.c.b16 %v894, %v893
    %v944 = vpack.c.b16 %v896, %v895
    %v945 = vpack.c.b16 %v898, %v897
    %v946 = vpack.c.b16 %v900, %v899
    %v947 = vpack.c.b16 %v902, %v901
    %v948 = vpack.c.b16 %v904, %v903
    %v949 = vpack.c.b16 %v906, %v905
    %v950 = vpack.c.b16 %v908, %v907
    %v951 = vpack.c.b16 %v910, %v909
    %v952 = vpack.c.b16 %v912, %v911
    %v953 = vpack.c.b16 %v914, %v913
    %v954 = vpack.c.b16 %v916, %v915
    %v955 = vpack.c.b16 %v918, %v917
    %v956 = vpack.c.b16 %v920, %v919
    %v957 = vpack.c.b16 %v922, %v921
    %v958 = vpack.c.b16 %v924, %v923
    %v959 = vpack.c.b16 %v926, %v925
    %v960 = vpack.c.b16 %v928, %v927
    %v961 = vpack.c.b16 %v930, %v929
    %v962 = vpack.c.b16 %v932, %v931
    %v963 = vpack.c.b16 %v934, %v933
    %v964 = vpack.c.b16 %v936, %v935
    %v965 = vpack.c.b16 %v938, %v937
    %v966 = vpack.c.b16 %v940, %v939
    %v968 = vsel %vm464, %v941, 0
    %v971 = vsel %vm464, %v942, 0
    %v974 = vsel %vm464, %v943, 0
    %v977 = vsel %vm464, %v944, 0
    %v980 = vsel %vm464, %v945, 0
    %v983 = vsel %vm464, %v946, 0
    %v986 = vsel %vm464, %v947, 0
    %v989 = vsel %vm464, %v948, 0
    %v992 = vsel %vm464, %v949, 0
    %v995 = vsel %vm464, %v950, 0
    %v998 = vsel %vm464, %v951, 0
    %v1001 = vsel %vm464, %v952, 0
    %v1004 = vsel %vm464, %v953, 0
    %v1007 = vsel %vm464, %v954, 0
    %v1010 = vsel %vm464, %v955, 0
    %v1013 = vsel %vm464, %v956, 0
    %v1016 = vsel %vm464, %v957, 0
    %v1019 = vsel %vm464, %v958, 0
    %v1022 = vsel %vm464, %v959, 0
    %v1025 = vsel %vm464, %v960, 0
    %v1028 = vsel %vm464, %v961, 0
    %v1031 = vsel %vm464, %v962, 0
    %v1034 = vsel %vm464, %v963, 0
    %v1037 = vsel %vm464, %v964, 0
    %v1040 = vsel %vm464, %v965, 0
    %v1043 = vsel %vm464, %v966, 0
    %1045 = vmatprep.subr.bf16.mxu0 0
    %1046 = vmatpush1.bf16.msra.mxu0 %v266
    %1047 = vmatprep.subr.bf16.mxu0 0
    %1048 = vmatpush1.bf16.msra.mxu0 %v267
    %1049 = vmatprep.subr.bf16.mxu0 0
    %1050 = vmatpush1.bf16.msra.mxu0 %v268
    %1051 = vmatprep.subr.bf16.mxu0 0
    %1052 = vmatpush1.bf16.msra.mxu0 %v269
    %1053 = vmatprep.subr.bf16.mxu0 0
    %1054 = vmatpush1.bf16.msra.mxu0 %v270
    %1055 = vmatprep.subr.bf16.mxu0 0
    %1056 = vmatpush1.bf16.msra.mxu0 %v271
    %1057 = vmatprep.subr.bf16.mxu0 0
    %1058 = vmatpush1.bf16.msra.mxu0 0
    %1059 = vmatprep.subr.bf16.mxu0 0
    %1060 = vmatpush1.bf16.msra.mxu0 0
    %1061 = vmatprep.subr.bf16.mxu0 0
    %1062 = vmatpush1.bf16.msra.mxu0 0
    %1063 = vmatprep.subr.bf16.mxu0 0
    %1064 = vmatpush1.bf16.msra.mxu0 0
    %1065 = vmatprep.subr.bf16.mxu0 0
    %1066 = vmatpush1.bf16.msra.mxu0 0
    %1067 = vmatprep.subr.bf16.mxu0 0
    %1068 = vmatpush1.bf16.msra.mxu0 0
    %1069 = vmatprep.subr.bf16.mxu0 0
    %1070 = vmatpush1.bf16.msra.mxu0 0
    %1071 = vmatprep.subr.bf16.mxu0 0
    %1072 = vmatpush1.bf16.msra.mxu0 0
    %1073 = vmatprep.subr.bf16.mxu0 0
    %1074 = vmatpush1.bf16.msra.mxu0 0
    %1075 = vmatprep.subr.bf16.mxu0 0
    %1076 = vmatpush1.bf16.msra.mxu0 0
    %1077 = vmatprep.mubr.bf16.mxu0 0
    %1078 = vmatmul.mubr.bf16.gmra.mrb[0].mxu0 %v968
    %v1079 = vpop.f32.mrb[0].mxu0
    %v1080 = vadd.f32 0.0, %v1079
    %v1081 = vpop.f32.mrb[0].mxu0
    %v1082 = vpop.f32.mrb[0].mxu0
    %v1083 = vadd.f32 0.0, %v1082
    %v1084 = vpop.f32.mrb[0].mxu0
    %1085 = vmatprep.mubr.bf16.mxu0 0
    %1086 = vmatmul.mubr.bf16.gmra.mrb[0].mxu0 %v971
    %v1087 = vpop.f32.mrb[0].mxu0
    %v1088 = vadd.f32 0.0, %v1087
    %v1089 = vpop.f32.mrb[0].mxu0
    %v1090 = vpop.f32.mrb[0].mxu0
    %v1091 = vadd.f32 0.0, %v1090
    %v1092 = vpop.f32.mrb[0].mxu0
    %1093 = vmatprep.mubr.bf16.mxu0 0
    %1094 = vmatmul.mubr.bf16.gmra.mrb[0].mxu0 %v974
    %v1095 = vpop.f32.mrb[0].mxu0
    %v1096 = vadd.f32 0.0, %v1095
    %v1097 = vpop.f32.mrb[0].mxu0
    %v1098 = vpop.f32.mrb[0].mxu0
    %v1099 = vadd.f32 0.0, %v1098
    %v1100 = vpop.f32.mrb[0].mxu0
    %1101 = vmatprep.mubr.bf16.mxu0 0
    %1102 = vmatmul.mubr.bf16.gmra.mrb[0].mxu0 %v977
    %v1103 = vpop.f32.mrb[0].mxu0
    %v1104 = vadd.f32 0.0, %v1103
    %v1105 = vpop.f32.mrb[0].mxu0
    %v1106 = vpop.f32.mrb[0].mxu0
    %v1107 = vadd.f32 0.0, %v1106
    %v1108 = vpop.f32.mrb[0].mxu0
    %1109 = vmatprep.mubr.bf16.mxu0 0
    %1110 = vmatmul.mubr.bf16.gmra.mrb[0].mxu0 %v980
    %v1111 = vpop.f32.mrb[0].mxu0
    %v1112 = vadd.f32 0.0, %v1111
    %v1113 = vpop.f32.mrb[0].mxu0
    %v1114 = vpop.f32.mrb[0].mxu0
    %v1115 = vadd.f32 0.0, %v1114
    %v1116 = vpop.f32.mrb[0].mxu0
    %1117 = vmatprep.mubr.bf16.mxu0 0
    %1118 = vmatmul.mubr.bf16.gmra.mrb[0].mxu0 %v983
    %v1119 = vpop.f32.mrb[0].mxu0
    %v1120 = vadd.f32 0.0, %v1119
    %v1121 = vpop.f32.mrb[0].mxu0
    %v1122 = vpop.f32.mrb[0].mxu0
    %v1123 = vadd.f32 0.0, %v1122
    %v1124 = vpop.f32.mrb[0].mxu0
    %1125 = vmatprep.mubr.bf16.mxu0 0
    %1126 = vmatmul.mubr.bf16.gmra.mrb[0].mxu0 %v986
    %v1127 = vpop.f32.mrb[0].mxu0
    %v1128 = vadd.f32 0.0, %v1127
    %v1129 = vpop.f32.mrb[0].mxu0
    %v1130 = vpop.f32.mrb[0].mxu0
    %v1131 = vadd.f32 0.0, %v1130
    %v1132 = vpop.f32.mrb[0].mxu0
    %1133 = vmatprep.mubr.bf16.mxu0 0
    %1134 = vmatmul.mubr.bf16.gmra.mrb[0].mxu0 %v989
    %v1135 = vpop.f32.mrb[0].mxu0
    %v1136 = vadd.f32 0.0, %v1135
    %v1137 = vpop.f32.mrb[0].mxu0
    %v1138 = vpop.f32.mrb[0].mxu0
    %v1139 = vadd.f32 0.0, %v1138
    %v1140 = vpop.f32.mrb[0].mxu0
    %1141 = vmatprep.mubr.bf16.mxu0 0
    %1142 = vmatmul.mubr.bf16.gmra.mrb[0].mxu0 %v992
    %v1143 = vpop.f32.mrb[0].mxu0
    %v1144 = vadd.f32 0.0, %v1143
    %v1145 = vpop.f32.mrb[0].mxu0
    %v1146 = vpop.f32.mrb[0].mxu0
    %v1147 = vadd.f32 0.0, %v1146
    %v1148 = vpop.f32.mrb[0].mxu0
    %1149 = vmatprep.mubr.bf16.mxu0 0
    %1150 = vmatmul.mubr.bf16.gmra.mrb[0].mxu0 %v995
    %v1151 = vpop.f32.mrb[0].mxu0
    %v1152 = vadd.f32 0.0, %v1151
    %v1153 = vpop.f32.mrb[0].mxu0
    %v1154 = vpop.f32.mrb[0].mxu0
    %v1155 = vadd.f32 0.0, %v1154
    %v1156 = vpop.f32.mrb[0].mxu0
    %1157 = vmatprep.mubr.bf16.mxu0 0
    %1158 = vmatmul.mubr.bf16.gmra.mrb[0].mxu0 %v998
    %v1159 = vpop.f32.mrb[0].mxu0
    %v1160 = vadd.f32 0.0, %v1159
    %v1161 = vpop.f32.mrb[0].mxu0
    %v1162 = vpop.f32.mrb[0].mxu0
    %v1163 = vadd.f32 0.0, %v1162
    %v1164 = vpop.f32.mrb[0].mxu0
    %1165 = vmatprep.mubr.bf16.mxu0 0
    %1166 = vmatmul.mubr.bf16.gmra.mrb[0].mxu0 %v1001
    %v1167 = vpop.f32.mrb[0].mxu0
    %v1168 = vadd.f32 0.0, %v1167
    %v1169 = vpop.f32.mrb[0].mxu0
    %v1170 = vpop.f32.mrb[0].mxu0
    %v1171 = vadd.f32 0.0, %v1170
    %v1172 = vpop.f32.mrb[0].mxu0
    %1173 = vmatprep.mubr.bf16.mxu0 0
    %1174 = vmatmul.mubr.bf16.gmra.mrb[0].mxu0 %v1004
    %v1175 = vpop.f32.mrb[0].mxu0
    %v1176 = vadd.f32 0.0, %v1175
    %v1177 = vpop.f32.mrb[0].mxu0
    %v1178 = vpop.f32.mrb[0].mxu0
    %v1179 = vadd.f32 0.0, %v1178
    %v1180 = vpop.f32.mrb[0].mxu0
    %1181 = vmatprep.mubr.bf16.mxu0 0
    %1182 = vmatmul.mubr.bf16.gmra.mrb[0].mxu0 %v1007
    %v1183 = vpop.f32.mrb[0].mxu0
    %v1184 = vadd.f32 0.0, %v1183
    %v1185 = vpop.f32.mrb[0].mxu0
    %v1186 = vpop.f32.mrb[0].mxu0
    %v1187 = vadd.f32 0.0, %v1186
    %v1188 = vpop.f32.mrb[0].mxu0
    %1189 = vmatprep.mubr.bf16.mxu0 0
    %1190 = vmatmul.mubr.bf16.gmra.mrb[0].mxu0 %v1010
    %v1191 = vpop.f32.mrb[0].mxu0
    %v1192 = vadd.f32 0.0, %v1191
    %v1193 = vpop.f32.mrb[0].mxu0
    %v1194 = vpop.f32.mrb[0].mxu0
    %v1195 = vadd.f32 0.0, %v1194
    %v1196 = vpop.f32.mrb[0].mxu0
    %1197 = vmatprep.mubr.bf16.mxu0 0
    %1198 = vmatmul.mubr.bf16.gmra.mrb[0].mxu0 %v1013
    %v1199 = vpop.f32.mrb[0].mxu0
    %v1200 = vadd.f32 0.0, %v1199
    %v1201 = vpop.f32.mrb[0].mxu0
    %v1202 = vpop.f32.mrb[0].mxu0
    %v1203 = vadd.f32 0.0, %v1202
    %v1204 = vpop.f32.mrb[0].mxu0
    %1205 = vmatprep.mubr.bf16.mxu0 0
    %1206 = vmatmul.mubr.bf16.gmra.mrb[0].mxu0 %v1016
    %v1207 = vpop.f32.mrb[0].mxu0
    %v1208 = vadd.f32 0.0, %v1207
    %v1209 = vpop.f32.mrb[0].mxu0
    %v1210 = vpop.f32.mrb[0].mxu0
    %v1211 = vadd.f32 0.0, %v1210
    %v1212 = vpop.f32.mrb[0].mxu0
    %1213 = vmatprep.mubr.bf16.mxu0 0
    %1214 = vmatmul.mubr.bf16.gmra.mrb[0].mxu0 %v1019
    %v1215 = vpop.f32.mrb[0].mxu0
    %v1216 = vadd.f32 0.0, %v1215
    %v1217 = vpop.f32.mrb[0].mxu0
    %v1218 = vpop.f32.mrb[0].mxu0
    %v1219 = vadd.f32 0.0, %v1218
    %v1220 = vpop.f32.mrb[0].mxu0
    %1221 = vmatprep.mubr.bf16.mxu0 0
    %1222 = vmatmul.mubr.bf16.gmra.mrb[0].mxu0 %v1022
    %v1223 = vpop.f32.mrb[0].mxu0
    %v1224 = vadd.f32 0.0, %v1223
    %v1225 = vpop.f32.mrb[0].mxu0
    %v1226 = vpop.f32.mrb[0].mxu0
    %v1227 = vadd.f32 0.0, %v1226
    %v1228 = vpop.f32.mrb[0].mxu0
    %1229 = vmatprep.mubr.bf16.mxu0 0
    %1230 = vmatmul.mubr.bf16.gmra.mrb[0].mxu0 %v1025
    %v1231 = vpop.f32.mrb[0].mxu0
    %v1232 = vadd.f32 0.0, %v1231
    %v1233 = vpop.f32.mrb[0].mxu0
    %v1234 = vpop.f32.mrb[0].mxu0
    %v1235 = vadd.f32 0.0, %v1234
    %v1236 = vpop.f32.mrb[0].mxu0
    %1237 = vmatprep.mubr.bf16.mxu0 0
    %1238 = vmatmul.mubr.bf16.gmra.mrb[0].mxu0 %v1028
    %v1239 = vpop.f32.mrb[0].mxu0
    %v1240 = vadd.f32 0.0, %v1239
    %v1241 = vpop.f32.mrb[0].mxu0
    %v1242 = vpop.f32.mrb[0].mxu0
    %v1243 = vadd.f32 0.0, %v1242
    %v1244 = vpop.f32.mrb[0].mxu0
    %1245 = vmatprep.mubr.bf16.mxu0 0
    %1246 = vmatmul.mubr.bf16.gmra.mrb[0].mxu0 %v1031
    %v1247 = vpop.f32.mrb[0].mxu0
    %v1248 = vadd.f32 0.0, %v1247
    %v1249 = vpop.f32.mrb[0].mxu0
    %v1250 = vpop.f32.mrb[0].mxu0
    %v1251 = vadd.f32 0.0, %v1250
    %v1252 = vpop.f32.mrb[0].mxu0
    %1253 = vmatprep.mubr.bf16.mxu0 0
    %1254 = vmatmul.mubr.bf16.gmra.mrb[0].mxu0 %v1034
    %v1255 = vpop.f32.mrb[0].mxu0
    %v1256 = vadd.f32 0.0, %v1255
    %v1257 = vpop.f32.mrb[0].mxu0
    %v1258 = vpop.f32.mrb[0].mxu0
    %v1259 = vadd.f32 0.0, %v1258
    %v1260 = vpop.f32.mrb[0].mxu0
    %1261 = vmatprep.mubr.bf16.mxu0 0
    %1262 = vmatmul.mubr.bf16.gmra.mrb[0].mxu0 %v1037
    %v1263 = vpop.f32.mrb[0].mxu0
    %v1264 = vadd.f32 0.0, %v1263
    %v1265 = vpop.f32.mrb[0].mxu0
    %v1266 = vpop.f32.mrb[0].mxu0
    %v1267 = vadd.f32 0.0, %v1266
    %v1268 = vpop.f32.mrb[0].mxu0
    %1269 = vmatprep.mubr.bf16.mxu0 0
    %1270 = vmatmul.mubr.bf16.gmra.mrb[0].mxu0 %v1040
    %v1271 = vpop.f32.mrb[0].mxu0
    %v1272 = vadd.f32 0.0, %v1271
    %v1273 = vpop.f32.mrb[0].mxu0
    %v1274 = vpop.f32.mrb[0].mxu0
    %v1275 = vadd.f32 0.0, %v1274
    %v1276 = vpop.f32.mrb[0].mxu0
    %1277 = vmatprep.mubr.bf16.mxu0 0
    %1278 = vmatmul.mubr.bf16.gmra.mrb[0].mxu0 %v1043
    %v1279 = vpop.f32.mrb[0].mxu0
    %v1280 = vadd.f32 0.0, %v1279
    %v1281 = vpop.f32.mrb[0].mxu0
    %v1282 = vpop.f32.mrb[0].mxu0
    %v1283 = vadd.f32 0.0, %v1282
    %v1284 = vpop.f32.mrb[0].mxu0
    %1285 = vdwg.mxu0
    %v1286 = vmax.f32 %v578, %v1080
    %v1287 = vmax.f32 %v581, %v1083
    %v1288 = vmax.f32 %v586, %v1088
    %v1289 = vmax.f32 %v589, %v1091
    %v1290 = vmax.f32 %v594, %v1096
    %v1291 = vmax.f32 %v597, %v1099
    %v1292 = vmax.f32 %v602, %v1104
    %v1293 = vmax.f32 %v605, %v1107
    %v1294 = vmax.f32 %v610, %v1112
    %v1295 = vmax.f32 %v613, %v1115
    %v1296 = vmax.f32 %v618, %v1120
    %v1297 = vmax.f32 %v621, %v1123
    %v1298 = vmax.f32 %v626, %v1128
    %v1299 = vmax.f32 %v629, %v1131
    %v1300 = vmax.f32 %v634, %v1136
    %v1301 = vmax.f32 %v637, %v1139
    %v1302 = vmax.f32 %v642, %v1144
    %v1303 = vmax.f32 %v645, %v1147
    %v1304 = vmax.f32 %v650, %v1152
    %v1305 = vmax.f32 %v653, %v1155
    %v1306 = vmax.f32 %v658, %v1160
    %v1307 = vmax.f32 %v661, %v1163
    %v1308 = vmax.f32 %v666, %v1168
    %v1309 = vmax.f32 %v669, %v1171
    %v1310 = vmax.f32 %v674, %v1176
    %v1311 = vmax.f32 %v677, %v1179
    %v1312 = vmax.f32 %v682, %v1184
    %v1313 = vmax.f32 %v685, %v1187
    %v1314 = vmax.f32 %v690, %v1192
    %v1315 = vmax.f32 %v693, %v1195
    %v1316 = vmax.f32 %v698, %v1200
    %v1317 = vmax.f32 %v701, %v1203
    %v1318 = vmax.f32 %v706, %v1208
    %v1319 = vmax.f32 %v709, %v1211
    %v1320 = vmax.f32 %v714, %v1216
    %v1321 = vmax.f32 %v717, %v1219
    %v1322 = vmax.f32 %v722, %v1224
    %v1323 = vmax.f32 %v725, %v1227
    %v1324 = vmax.f32 %v730, %v1232
    %v1325 = vmax.f32 %v733, %v1235
    %v1326 = vmax.f32 %v738, %v1240
    %v1327 = vmax.f32 %v741, %v1243
    %v1328 = vmax.f32 %v746, %v1248
    %v1329 = vmax.f32 %v749, %v1251
    %v1330 = vmax.f32 %v754, %v1256
    %v1331 = vmax.f32 %v757, %v1259
    %v1332 = vmax.f32 %v762, %v1264
    %v1333 = vmax.f32 %v765, %v1267
    %v1334 = vmax.f32 %v770, %v1272
    %v1335 = vmax.f32 %v773, %v1275
    %v1336 = vmax.f32 %v778, %v1280
    %v1337 = vmax.f32 %v781, %v1283
    %1338 = vmatprep.subr.bf16.mxu0 0
    %1339 = vmatpush1.bf16.msra.mxu0 %v276
    %1340 = vmatprep.subr.bf16.mxu0 0
    %1341 = vmatpush1.bf16.msra.mxu0 %v277
    %1342 = vmatprep.subr.bf16.mxu0 0
    %1343 = vmatpush1.bf16.msra.mxu0 %v278
    %1344 = vmatprep.subr.bf16.mxu0 0
    %1345 = vmatpush1.bf16.msra.mxu0 %v279
    %1346 = vmatprep.subr.bf16.mxu0 0
    %1347 = vmatpush1.bf16.msra.mxu0 %v280
    %1348 = vmatprep.subr.bf16.mxu0 0
    %1349 = vmatpush1.bf16.msra.mxu0 %v281
    %1350 = vmatprep.subr.bf16.mxu0 0
    %1351 = vmatpush1.bf16.msra.mxu0 0
    %1352 = vmatprep.subr.bf16.mxu0 0
    %1353 = vmatpush1.bf16.msra.mxu0 0
    %1354 = vmatprep.subr.bf16.mxu0 0
    %1355 = vmatpush1.bf16.msra.mxu0 0
    %1356 = vmatprep.subr.bf16.mxu0 0
    %1357 = vmatpush1.bf16.msra.mxu0 0
    %1358 = vmatprep.subr.bf16.mxu0 0
    %1359 = vmatpush1.bf16.msra.mxu0 0
    %1360 = vmatprep.subr.bf16.mxu0 0
    %1361 = vmatpush1.bf16.msra.mxu0 0
    %1362 = vmatprep.subr.bf16.mxu0 0
    %1363 = vmatpush1.bf16.msra.mxu0 0
    %1364 = vmatprep.subr.bf16.mxu0 0
    %1365 = vmatpush1.bf16.msra.mxu0 0
    %1366 = vmatprep.subr.bf16.mxu0 0
    %1367 = vmatpush1.bf16.msra.mxu0 0
    %1368 = vmatprep.subr.bf16.mxu0 0
    %1369 = vmatpush1.bf16.msra.mxu0 0
    %1370 = vmatprep.mubr.bf16.mxu0 0
    %1371 = vmatmul.mubr.bf16.gmra.mrb[0].mxu0 %v466
    %v1372 = vpop.f32.mrb[0].mxu0
    %v1373 = vadd.f32 0.0, %v1372
    %v1374 = vpop.f32.mrb[0].mxu0
    %v1375 = vpop.f32.mrb[0].mxu0
    %v1376 = vadd.f32 0.0, %v1375
    %v1377 = vpop.f32.mrb[0].mxu0
    %1378 = vmatprep.mubr.bf16.mxu0 0
    %1379 = vmatmul.mubr.bf16.gmra.mrb[0].mxu0 %v469
    %v1380 = vpop.f32.mrb[0].mxu0
    %v1381 = vadd.f32 0.0, %v1380
    %v1382 = vpop.f32.mrb[0].mxu0
    %v1383 = vpop.f32.mrb[0].mxu0
    %v1384 = vadd.f32 0.0, %v1383
    %v1385 = vpop.f32.mrb[0].mxu0
    %1386 = vmatprep.mubr.bf16.mxu0 0
    %1387 = vmatmul.mubr.bf16.gmra.mrb[0].mxu0 %v472
    %v1388 = vpop.f32.mrb[0].mxu0
    %v1389 = vadd.f32 0.0, %v1388
    %v1390 = vpop.f32.mrb[0].mxu0
    %v1391 = vpop.f32.mrb[0].mxu0
    %v1392 = vadd.f32 0.0, %v1391
    %v1393 = vpop.f32.mrb[0].mxu0
    %1394 = vmatprep.mubr.bf16.mxu0 0
    %1395 = vmatmul.mubr.bf16.gmra.mrb[0].mxu0 %v475
    %v1396 = vpop.f32.mrb[0].mxu0
    %v1397 = vadd.f32 0.0, %v1396
    %v1398 = vpop.f32.mrb[0].mxu0
    %v1399 = vpop.f32.mrb[0].mxu0
    %v1400 = vadd.f32 0.0, %v1399
    %v1401 = vpop.f32.mrb[0].mxu0
    %1402 = vmatprep.mubr.bf16.mxu0 0
    %1403 = vmatmul.mubr.bf16.gmra.mrb[0].mxu0 %v478
    %v1404 = vpop.f32.mrb[0].mxu0
    %v1405 = vadd.f32 0.0, %v1404
    %v1406 = vpop.f32.mrb[0].mxu0
    %v1407 = vpop.f32.mrb[0].mxu0
    %v1408 = vadd.f32 0.0, %v1407
    %v1409 = vpop.f32.mrb[0].mxu0
    %1410 = vmatprep.mubr.bf16.mxu0 0
    %1411 = vmatmul.mubr.bf16.gmra.mrb[0].mxu0 %v481
    %v1412 = vpop.f32.mrb[0].mxu0
    %v1413 = vadd.f32 0.0, %v1412
    %v1414 = vpop.f32.mrb[0].mxu0
    %v1415 = vpop.f32.mrb[0].mxu0
    %v1416 = vadd.f32 0.0, %v1415
    %v1417 = vpop.f32.mrb[0].mxu0
    %1418 = vmatprep.mubr.bf16.mxu0 0
    %1419 = vmatmul.mubr.bf16.gmra.mrb[0].mxu0 %v484
    %v1420 = vpop.f32.mrb[0].mxu0
    %v1421 = vadd.f32 0.0, %v1420
    %v1422 = vpop.f32.mrb[0].mxu0
    %v1423 = vpop.f32.mrb[0].mxu0
    %v1424 = vadd.f32 0.0, %v1423
    %v1425 = vpop.f32.mrb[0].mxu0
    %1426 = vmatprep.mubr.bf16.mxu0 0
    %1427 = vmatmul.mubr.bf16.gmra.mrb[0].mxu0 %v487
    %v1428 = vpop.f32.mrb[0].mxu0
    %v1429 = vadd.f32 0.0, %v1428
    %v1430 = vpop.f32.mrb[0].mxu0
    %v1431 = vpop.f32.mrb[0].mxu0
    %v1432 = vadd.f32 0.0, %v1431
    %v1433 = vpop.f32.mrb[0].mxu0
    %1434 = vmatprep.mubr.bf16.mxu0 0
    %1435 = vmatmul.mubr.bf16.gmra.mrb[0].mxu0 %v490
    %v1436 = vpop.f32.mrb[0].mxu0
    %v1437 = vadd.f32 0.0, %v1436
    %v1438 = vpop.f32.mrb[0].mxu0
    %v1439 = vpop.f32.mrb[0].mxu0
    %v1440 = vadd.f32 0.0, %v1439
    %v1441 = vpop.f32.mrb[0].mxu0
    %1442 = vmatprep.mubr.bf16.mxu0 0
    %1443 = vmatmul.mubr.bf16.gmra.mrb[0].mxu0 %v493
    %v1444 = vpop.f32.mrb[0].mxu0
    %v1445 = vadd.f32 0.0, %v1444
    %v1446 = vpop.f32.mrb[0].mxu0
    %v1447 = vpop.f32.mrb[0].mxu0
    %v1448 = vadd.f32 0.0, %v1447
    %v1449 = vpop.f32.mrb[0].mxu0
    %1450 = vmatprep.mubr.bf16.mxu0 0
    %1451 = vmatmul.mubr.bf16.gmra.mrb[0].mxu0 %v496
    %v1452 = vpop.f32.mrb[0].mxu0
    %v1453 = vadd.f32 0.0, %v1452
    %v1454 = vpop.f32.mrb[0].mxu0
    %v1455 = vpop.f32.mrb[0].mxu0
    %v1456 = vadd.f32 0.0, %v1455
    %v1457 = vpop.f32.mrb[0].mxu0
    %1458 = vmatprep.mubr.bf16.mxu0 0
    %1459 = vmatmul.mubr.bf16.gmra.mrb[0].mxu0 %v499
    %v1460 = vpop.f32.mrb[0].mxu0
    %v1461 = vadd.f32 0.0, %v1460
    %v1462 = vpop.f32.mrb[0].mxu0
    %v1463 = vpop.f32.mrb[0].mxu0
    %v1464 = vadd.f32 0.0, %v1463
    %v1465 = vpop.f32.mrb[0].mxu0
    %1466 = vmatprep.mubr.bf16.mxu0 0
    %1467 = vmatmul.mubr.bf16.gmra.mrb[0].mxu0 %v502
    %v1468 = vpop.f32.mrb[0].mxu0
    %v1469 = vadd.f32 0.0, %v1468
    %v1470 = vpop.f32.mrb[0].mxu0
    %v1471 = vpop.f32.mrb[0].mxu0
    %v1472 = vadd.f32 0.0, %v1471
    %v1473 = vpop.f32.mrb[0].mxu0
    %1474 = vmatprep.mubr.bf16.mxu0 0
    %1475 = vmatmul.mubr.bf16.gmra.mrb[0].mxu0 %v505
    %v1476 = vpop.f32.mrb[0].mxu0
    %v1477 = vadd.f32 0.0, %v1476
    %v1478 = vpop.f32.mrb[0].mxu0
    %v1479 = vpop.f32.mrb[0].mxu0
    %v1480 = vadd.f32 0.0, %v1479
    %v1481 = vpop.f32.mrb[0].mxu0
    %1482 = vmatprep.mubr.bf16.mxu0 0
    %1483 = vmatmul.mubr.bf16.gmra.mrb[0].mxu0 %v508
    %v1484 = vpop.f32.mrb[0].mxu0
    %v1485 = vadd.f32 0.0, %v1484
    %v1486 = vpop.f32.mrb[0].mxu0
    %v1487 = vpop.f32.mrb[0].mxu0
    %v1488 = vadd.f32 0.0, %v1487
    %v1489 = vpop.f32.mrb[0].mxu0
    %1490 = vmatprep.mubr.bf16.mxu0 0
    %1491 = vmatmul.mubr.bf16.gmra.mrb[0].mxu0 %v511
    %v1492 = vpop.f32.mrb[0].mxu0
    %v1493 = vadd.f32 0.0, %v1492
    %v1494 = vpop.f32.mrb[0].mxu0
    %v1495 = vpop.f32.mrb[0].mxu0
    %v1496 = vadd.f32 0.0, %v1495
    %v1497 = vpop.f32.mrb[0].mxu0
    %1498 = vmatprep.mubr.bf16.mxu0 0
    %1499 = vmatmul.mubr.bf16.gmra.mrb[0].mxu0 %v514
    %v1500 = vpop.f32.mrb[0].mxu0
    %v1501 = vadd.f32 0.0, %v1500
    %v1502 = vpop.f32.mrb[0].mxu0
    %v1503 = vpop.f32.mrb[0].mxu0
    %v1504 = vadd.f32 0.0, %v1503
    %v1505 = vpop.f32.mrb[0].mxu0
    %1506 = vmatprep.mubr.bf16.mxu0 0
    %1507 = vmatmul.mubr.bf16.gmra.mrb[0].mxu0 %v517
    %v1508 = vpop.f32.mrb[0].mxu0
    %v1509 = vadd.f32 0.0, %v1508
    %v1510 = vpop.f32.mrb[0].mxu0
    %v1511 = vpop.f32.mrb[0].mxu0
    %v1512 = vadd.f32 0.0, %v1511
    %v1513 = vpop.f32.mrb[0].mxu0
    %1514 = vmatprep.mubr.bf16.mxu0 0
    %1515 = vmatmul.mubr.bf16.gmra.mrb[0].mxu0 %v520
    %v1516 = vpop.f32.mrb[0].mxu0
    %v1517 = vadd.f32 0.0, %v1516
    %v1518 = vpop.f32.mrb[0].mxu0
    %v1519 = vpop.f32.mrb[0].mxu0
    %v1520 = vadd.f32 0.0, %v1519
    %v1521 = vpop.f32.mrb[0].mxu0
    %1522 = vmatprep.mubr.bf16.mxu0 0
    %1523 = vmatmul.mubr.bf16.gmra.mrb[0].mxu0 %v523
    %v1524 = vpop.f32.mrb[0].mxu0
    %v1525 = vadd.f32 0.0, %v1524
    %v1526 = vpop.f32.mrb[0].mxu0
    %v1527 = vpop.f32.mrb[0].mxu0
    %v1528 = vadd.f32 0.0, %v1527
    %v1529 = vpop.f32.mrb[0].mxu0
    %1530 = vmatprep.mubr.bf16.mxu0 0
    %1531 = vmatmul.mubr.bf16.gmra.mrb[0].mxu0 %v526
    %v1532 = vpop.f32.mrb[0].mxu0
    %v1533 = vadd.f32 0.0, %v1532
    %v1534 = vpop.f32.mrb[0].mxu0
    %v1535 = vpop.f32.mrb[0].mxu0
    %v1536 = vadd.f32 0.0, %v1535
    %v1537 = vpop.f32.mrb[0].mxu0
    %1538 = vmatprep.mubr.bf16.mxu0 0
    %1539 = vmatmul.mubr.bf16.gmra.mrb[0].mxu0 %v529
    %v1540 = vpop.f32.mrb[0].mxu0
    %v1541 = vadd.f32 0.0, %v1540
    %v1542 = vpop.f32.mrb[0].mxu0
    %v1543 = vpop.f32.mrb[0].mxu0
    %v1544 = vadd.f32 0.0, %v1543
    %v1545 = vpop.f32.mrb[0].mxu0
    %1546 = vmatprep.mubr.bf16.mxu0 0
    %1547 = vmatmul.mubr.bf16.gmra.mrb[0].mxu0 %v532
    %v1548 = vpop.f32.mrb[0].mxu0
    %v1549 = vadd.f32 0.0, %v1548
    %v1550 = vpop.f32.mrb[0].mxu0
    %v1551 = vpop.f32.mrb[0].mxu0
    %v1552 = vadd.f32 0.0, %v1551
    %v1553 = vpop.f32.mrb[0].mxu0
    %1554 = vmatprep.mubr.bf16.mxu0 0
    %1555 = vmatmul.mubr.bf16.gmra.mrb[0].mxu0 %v535
    %v1556 = vpop.f32.mrb[0].mxu0
    %v1557 = vadd.f32 0.0, %v1556
    %v1558 = vpop.f32.mrb[0].mxu0
    %v1559 = vpop.f32.mrb[0].mxu0
    %v1560 = vadd.f32 0.0, %v1559
    %v1561 = vpop.f32.mrb[0].mxu0
    %1562 = vmatprep.mubr.bf16.mxu0 0
    %1563 = vmatmul.mubr.bf16.gmra.mrb[0].mxu0 %v538
    %v1564 = vpop.f32.mrb[0].mxu0
    %v1565 = vadd.f32 0.0, %v1564
    %v1566 = vpop.f32.mrb[0].mxu0
    %v1567 = vpop.f32.mrb[0].mxu0
    %v1568 = vadd.f32 0.0, %v1567
    %v1569 = vpop.f32.mrb[0].mxu0
    %1570 = vmatprep.mubr.bf16.mxu0 0
    %1571 = vmatmul.mubr.bf16.gmra.mrb[0].mxu0 %v541
    %v1572 = vpop.f32.mrb[0].mxu0
    %v1573 = vadd.f32 0.0, %v1572
    %v1574 = vpop.f32.mrb[0].mxu0
    %v1575 = vpop.f32.mrb[0].mxu0
    %v1576 = vadd.f32 0.0, %v1575
    %v1577 = vpop.f32.mrb[0].mxu0
    %1578 = vdwg.mxu0
    %v1579 = vmax.f32 %v1286, %v1373
    %v1580 = vmax.f32 %v1287, %v1376
    %v1581 = vmax.f32 %v1288, %v1381
    %v1582 = vmax.f32 %v1289, %v1384
    %v1583 = vmax.f32 %v1290, %v1389
    %v1584 = vmax.f32 %v1291, %v1392
    %v1585 = vmax.f32 %v1292, %v1397
    %v1586 = vmax.f32 %v1293, %v1400
    %v1587 = vmax.f32 %v1294, %v1405
    %v1588 = vmax.f32 %v1295, %v1408
    %v1589 = vmax.f32 %v1296, %v1413
    %v1590 = vmax.f32 %v1297, %v1416
    %v1591 = vmax.f32 %v1298, %v1421
    %v1592 = vmax.f32 %v1299, %v1424
    %v1593 = vmax.f32 %v1300, %v1429
    %v1594 = vmax.f32 %v1301, %v1432
    %v1595 = vmax.f32 %v1302, %v1437
    %v1596 = vmax.f32 %v1303, %v1440
    %v1597 = vmax.f32 %v1304, %v1445
    %v1598 = vmax.f32 %v1305, %v1448
    %v1599 = vmax.f32 %v1306, %v1453
    %v1600 = vmax.f32 %v1307, %v1456
    %v1601 = vmax.f32 %v1308, %v1461
    %v1602 = vmax.f32 %v1309, %v1464
    %v1603 = vmax.f32 %v1310, %v1469
    %v1604 = vmax.f32 %v1311, %v1472
    %v1605 = vmax.f32 %v1312, %v1477
    %v1606 = vmax.f32 %v1313, %v1480
    %v1607 = vmax.f32 %v1314, %v1485
    %v1608 = vmax.f32 %v1315, %v1488
    %v1609 = vmax.f32 %v1316, %v1493
    %v1610 = vmax.f32 %v1317, %v1496
    %v1611 = vmax.f32 %v1318, %v1501
    %v1612 = vmax.f32 %v1319, %v1504
    %v1613 = vmax.f32 %v1320, %v1509
    %v1614 = vmax.f32 %v1321, %v1512
    %v1615 = vmax.f32 %v1322, %v1517
    %v1616 = vmax.f32 %v1323, %v1520
    %v1617 = vmax.f32 %v1324, %v1525
    %v1618 = vmax.f32 %v1325, %v1528
    %v1619 = vmax.f32 %v1326, %v1533
    %v1620 = vmax.f32 %v1327, %v1536
    %v1621 = vmax.f32 %v1328, %v1541
    %v1622 = vmax.f32 %v1329, %v1544
    %v1623 = vmax.f32 %v1330, %v1549
    %v1624 = vmax.f32 %v1331, %v1552
    %v1625 = vmax.f32 %v1332, %v1557
    %v1626 = vmax.f32 %v1333, %v1560
    %v1627 = vmax.f32 %v1334, %v1565
    %v1628 = vmax.f32 %v1335, %v1568
    %v1629 = vmax.f32 %v1336, %v1573
    %v1630 = vmax.f32 %v1337, %v1576
    %1631 = vmatprep.subr.bf16.mxu0 0
    %1632 = vmatpush1.bf16.msra.mxu0 %v276
    %1633 = vmatprep.subr.bf16.mxu0 0
    %1634 = vmatpush1.bf16.msra.mxu0 %v277
    %1635 = vmatprep.subr.bf16.mxu0 0
    %1636 = vmatpush1.bf16.msra.mxu0 %v278
    %1637 = vmatprep.subr.bf16.mxu0 0
    %1638 = vmatpush1.bf16.msra.mxu0 %v279
    %1639 = vmatprep.subr.bf16.mxu0 0
    %1640 = vmatpush1.bf16.msra.mxu0 %v280
    %1641 = vmatprep.subr.bf16.mxu0 0
    %1642 = vmatpush1.bf16.msra.mxu0 %v281
    %1643 = vmatprep.subr.bf16.mxu0 0
    %1644 = vmatpush1.bf16.msra.mxu0 0
    %1645 = vmatprep.subr.bf16.mxu0 0
    %1646 = vmatpush1.bf16.msra.mxu0 0
    %1647 = vmatprep.subr.bf16.mxu0 0
    %1648 = vmatpush1.bf16.msra.mxu0 0
    %1649 = vmatprep.subr.bf16.mxu0 0
    %1650 = vmatpush1.bf16.msra.mxu0 0
    %1651 = vmatprep.subr.bf16.mxu0 0
    %1652 = vmatpush1.bf16.msra.mxu0 0
    %1653 = vmatprep.subr.bf16.mxu0 0
    %1654 = vmatpush1.bf16.msra.mxu0 0
    %1655 = vmatprep.subr.bf16.mxu0 0
    %1656 = vmatpush1.bf16.msra.mxu0 0
    %1657 = vmatprep.subr.bf16.mxu0 0
    %1658 = vmatpush1.bf16.msra.mxu0 0
    %1659 = vmatprep.subr.bf16.mxu0 0
    %1660 = vmatpush1.bf16.msra.mxu0 0
    %1661 = vmatprep.subr.bf16.mxu0 0
    %1662 = vmatpush1.bf16.msra.mxu0 0
    %1663 = vmatprep.mubr.bf16.mxu0 0
    %1664 = vmatmul.mubr.bf16.gmra.mrb[0].mxu0 %v968
    %v1665 = vpop.f32.mrb[0].mxu0
    %v1666 = vadd.f32 0.0, %v1665
    %v1667 = vpop.f32.mrb[0].mxu0
    %v1668 = vpop.f32.mrb[0].mxu0
    %v1669 = vadd.f32 0.0, %v1668
    %v1670 = vpop.f32.mrb[0].mxu0
    %1671 = vmatprep.mubr.bf16.mxu0 0
    %1672 = vmatmul.mubr.bf16.gmra.mrb[0].mxu0 %v971
    %v1673 = vpop.f32.mrb[0].mxu0
    %v1674 = vadd.f32 0.0, %v1673
    %v1675 = vpop.f32.mrb[0].mxu0
    %v1676 = vpop.f32.mrb[0].mxu0
    %v1677 = vadd.f32 0.0, %v1676
    %v1678 = vpop.f32.mrb[0].mxu0
    %1679 = vmatprep.mubr.bf16.mxu0 0
    %1680 = vmatmul.mubr.bf16.gmra.mrb[0].mxu0 %v974
    %v1681 = vpop.f32.mrb[0].mxu0
    %v1682 = vadd.f32 0.0, %v1681
    %v1683 = vpop.f32.mrb[0].mxu0
    %v1684 = vpop.f32.mrb[0].mxu0
    %v1685 = vadd.f32 0.0, %v1684
    %v1686 = vpop.f32.mrb[0].mxu0
    %1687 = vmatprep.mubr.bf16.mxu0 0
    %1688 = vmatmul.mubr.bf16.gmra.mrb[0].mxu0 %v977
    %v1689 = vpop.f32.mrb[0].mxu0
    %v1690 = vadd.f32 0.0, %v1689
    %v1691 = vpop.f32.mrb[0].mxu0
    %v1692 = vpop.f32.mrb[0].mxu0
    %v1693 = vadd.f32 0.0, %v1692
    %v1694 = vpop.f32.mrb[0].mxu0
    %1695 = vmatprep.mubr.bf16.mxu0 0
    %1696 = vmatmul.mubr.bf16.gmra.mrb[0].mxu0 %v980
    %v1697 = vpop.f32.mrb[0].mxu0
    %v1698 = vadd.f32 0.0, %v1697
    %v1699 = vpop.f32.mrb[0].mxu0
    %v1700 = vpop.f32.mrb[0].mxu0
    %v1701 = vadd.f32 0.0, %v1700
    %v1702 = vpop.f32.mrb[0].mxu0
    %1703 = vmatprep.mubr.bf16.mxu0 0
    %1704 = vmatmul.mubr.bf16.gmra.mrb[0].mxu0 %v983
    %v1705 = vpop.f32.mrb[0].mxu0
    %v1706 = vadd.f32 0.0, %v1705
    %v1707 = vpop.f32.mrb[0].mxu0
    %v1708 = vpop.f32.mrb[0].mxu0
    %v1709 = vadd.f32 0.0, %v1708
    %v1710 = vpop.f32.mrb[0].mxu0
    %1711 = vmatprep.mubr.bf16.mxu0 0
    %1712 = vmatmul.mubr.bf16.gmra.mrb[0].mxu0 %v986
    %v1713 = vpop.f32.mrb[0].mxu0
    %v1714 = vadd.f32 0.0, %v1713
    %v1715 = vpop.f32.mrb[0].mxu0
    %v1716 = vpop.f32.mrb[0].mxu0
    %v1717 = vadd.f32 0.0, %v1716
    %v1718 = vpop.f32.mrb[0].mxu0
    %1719 = vmatprep.mubr.bf16.mxu0 0
    %1720 = vmatmul.mubr.bf16.gmra.mrb[0].mxu0 %v989
    %v1721 = vpop.f32.mrb[0].mxu0
    %v1722 = vadd.f32 0.0, %v1721
    %v1723 = vpop.f32.mrb[0].mxu0
    %v1724 = vpop.f32.mrb[0].mxu0
    %v1725 = vadd.f32 0.0, %v1724
    %v1726 = vpop.f32.mrb[0].mxu0
    %1727 = vmatprep.mubr.bf16.mxu0 0
    %1728 = vmatmul.mubr.bf16.gmra.mrb[0].mxu0 %v992
    %v1729 = vpop.f32.mrb[0].mxu0
    %v1730 = vadd.f32 0.0, %v1729
    %v1731 = vpop.f32.mrb[0].mxu0
    %v1732 = vpop.f32.mrb[0].mxu0
    %v1733 = vadd.f32 0.0, %v1732
    %v1734 = vpop.f32.mrb[0].mxu0
    %1735 = vmatprep.mubr.bf16.mxu0 0
    %1736 = vmatmul.mubr.bf16.gmra.mrb[0].mxu0 %v995
    %v1737 = vpop.f32.mrb[0].mxu0
    %v1738 = vadd.f32 0.0, %v1737
    %v1739 = vpop.f32.mrb[0].mxu0
    %v1740 = vpop.f32.mrb[0].mxu0
    %v1741 = vadd.f32 0.0, %v1740
    %v1742 = vpop.f32.mrb[0].mxu0
    %1743 = vmatprep.mubr.bf16.mxu0 0
    %1744 = vmatmul.mubr.bf16.gmra.mrb[0].mxu0 %v998
    %v1745 = vpop.f32.mrb[0].mxu0
    %v1746 = vadd.f32 0.0, %v1745
    %v1747 = vpop.f32.mrb[0].mxu0
    %v1748 = vpop.f32.mrb[0].mxu0
    %v1749 = vadd.f32 0.0, %v1748
    %v1750 = vpop.f32.mrb[0].mxu0
    %1751 = vmatprep.mubr.bf16.mxu0 0
    %1752 = vmatmul.mubr.bf16.gmra.mrb[0].mxu0 %v1001
    %v1753 = vpop.f32.mrb[0].mxu0
    %v1754 = vadd.f32 0.0, %v1753
    %v1755 = vpop.f32.mrb[0].mxu0
    %v1756 = vpop.f32.mrb[0].mxu0
    %v1757 = vadd.f32 0.0, %v1756
    %v1758 = vpop.f32.mrb[0].mxu0
    %1759 = vmatprep.mubr.bf16.mxu0 0
    %1760 = vmatmul.mubr.bf16.gmra.mrb[0].mxu0 %v1004
    %v1761 = vpop.f32.mrb[0].mxu0
    %v1762 = vadd.f32 0.0, %v1761
    %v1763 = vpop.f32.mrb[0].mxu0
    %v1764 = vpop.f32.mrb[0].mxu0
    %v1765 = vadd.f32 0.0, %v1764
    %v1766 = vpop.f32.mrb[0].mxu0
    %1767 = vmatprep.mubr.bf16.mxu0 0
    %1768 = vmatmul.mubr.bf16.gmra.mrb[0].mxu0 %v1007
    %v1769 = vpop.f32.mrb[0].mxu0
    %v1770 = vadd.f32 0.0, %v1769
    %v1771 = vpop.f32.mrb[0].mxu0
    %v1772 = vpop.f32.mrb[0].mxu0
    %v1773 = vadd.f32 0.0, %v1772
    %v1774 = vpop.f32.mrb[0].mxu0
    %1775 = vmatprep.mubr.bf16.mxu0 0
    %1776 = vmatmul.mubr.bf16.gmra.mrb[0].mxu0 %v1010
    %v1777 = vpop.f32.mrb[0].mxu0
    %v1778 = vadd.f32 0.0, %v1777
    %v1779 = vpop.f32.mrb[0].mxu0
    %v1780 = vpop.f32.mrb[0].mxu0
    %v1781 = vadd.f32 0.0, %v1780
    %v1782 = vpop.f32.mrb[0].mxu0
    %1783 = vmatprep.mubr.bf16.mxu0 0
    %1784 = vmatmul.mubr.bf16.gmra.mrb[0].mxu0 %v1013
    %v1785 = vpop.f32.mrb[0].mxu0
    %v1786 = vadd.f32 0.0, %v1785
    %v1787 = vpop.f32.mrb[0].mxu0
    %v1788 = vpop.f32.mrb[0].mxu0
    %v1789 = vadd.f32 0.0, %v1788
    %v1790 = vpop.f32.mrb[0].mxu0
    %1791 = vmatprep.mubr.bf16.mxu0 0
    %1792 = vmatmul.mubr.bf16.gmra.mrb[0].mxu0 %v1016
    %v1793 = vpop.f32.mrb[0].mxu0
    %v1794 = vadd.f32 0.0, %v1793
    %v1795 = vpop.f32.mrb[0].mxu0
    %v1796 = vpop.f32.mrb[0].mxu0
    %v1797 = vadd.f32 0.0, %v1796
    %v1798 = vpop.f32.mrb[0].mxu0
    %1799 = vmatprep.mubr.bf16.mxu0 0
    %1800 = vmatmul.mubr.bf16.gmra.mrb[0].mxu0 %v1019
    %v1801 = vpop.f32.mrb[0].mxu0
    %v1802 = vadd.f32 0.0, %v1801
    %v1803 = vpop.f32.mrb[0].mxu0
    %v1804 = vpop.f32.mrb[0].mxu0
    %v1805 = vadd.f32 0.0, %v1804
    %v1806 = vpop.f32.mrb[0].mxu0
    %1807 = vmatprep.mubr.bf16.mxu0 0
    %1808 = vmatmul.mubr.bf16.gmra.mrb[0].mxu0 %v1022
    %v1809 = vpop.f32.mrb[0].mxu0
    %v1810 = vadd.f32 0.0, %v1809
    %v1811 = vpop.f32.mrb[0].mxu0
    %v1812 = vpop.f32.mrb[0].mxu0
    %v1813 = vadd.f32 0.0, %v1812
    %v1814 = vpop.f32.mrb[0].mxu0
    %1815 = vmatprep.mubr.bf16.mxu0 0
    %1816 = vmatmul.mubr.bf16.gmra.mrb[0].mxu0 %v1025
    %v1817 = vpop.f32.mrb[0].mxu0
    %v1818 = vadd.f32 0.0, %v1817
    %v1819 = vpop.f32.mrb[0].mxu0
    %v1820 = vpop.f32.mrb[0].mxu0
    %v1821 = vadd.f32 0.0, %v1820
    %v1822 = vpop.f32.mrb[0].mxu0
    %1823 = vmatprep.mubr.bf16.mxu0 0
    %1824 = vmatmul.mubr.bf16.gmra.mrb[0].mxu0 %v1028
    %v1825 = vpop.f32.mrb[0].mxu0
    %v1826 = vadd.f32 0.0, %v1825
    %v1827 = vpop.f32.mrb[0].mxu0
    %v1828 = vpop.f32.mrb[0].mxu0
    %v1829 = vadd.f32 0.0, %v1828
    %v1830 = vpop.f32.mrb[0].mxu0
    %1831 = vmatprep.mubr.bf16.mxu0 0
    %1832 = vmatmul.mubr.bf16.gmra.mrb[0].mxu0 %v1031
    %v1833 = vpop.f32.mrb[0].mxu0
    %v1834 = vadd.f32 0.0, %v1833
    %v1835 = vpop.f32.mrb[0].mxu0
    %v1836 = vpop.f32.mrb[0].mxu0
    %v1837 = vadd.f32 0.0, %v1836
    %v1838 = vpop.f32.mrb[0].mxu0
    %1839 = vmatprep.mubr.bf16.mxu0 0
    %1840 = vmatmul.mubr.bf16.gmra.mrb[0].mxu0 %v1034
    %v1841 = vpop.f32.mrb[0].mxu0
    %v1842 = vadd.f32 0.0, %v1841
    %v1843 = vpop.f32.mrb[0].mxu0
    %v1844 = vpop.f32.mrb[0].mxu0
    %v1845 = vadd.f32 0.0, %v1844
    %v1846 = vpop.f32.mrb[0].mxu0
    %1847 = vmatprep.mubr.bf16.mxu0 0
    %1848 = vmatmul.mubr.bf16.gmra.mrb[0].mxu0 %v1037
    %v1849 = vpop.f32.mrb[0].mxu0
    %v1850 = vadd.f32 0.0, %v1849
    %v1851 = vpop.f32.mrb[0].mxu0
    %v1852 = vpop.f32.mrb[0].mxu0
    %v1853 = vadd.f32 0.0, %v1852
    %v1854 = vpop.f32.mrb[0].mxu0
    %1855 = vmatprep.mubr.bf16.mxu0 0
    %1856 = vmatmul.mubr.bf16.gmra.mrb[0].mxu0 %v1040
    %v1857 = vpop.f32.mrb[0].mxu0
    %v1858 = vadd.f32 0.0, %v1857
    %v1859 = vpop.f32.mrb[0].mxu0
    %v1860 = vpop.f32.mrb[0].mxu0
    %v1861 = vadd.f32 0.0, %v1860
    %v1862 = vpop.f32.mrb[0].mxu0
    %1863 = vmatprep.mubr.bf16.mxu0 0
    %1864 = vmatmul.mubr.bf16.gmra.mrb[0].mxu0 %v1043
    %v1865 = vpop.f32.mrb[0].mxu0
    %v1866 = vadd.f32 0.0, %v1865
    %v1867 = vpop.f32.mrb[0].mxu0
    %v1868 = vpop.f32.mrb[0].mxu0
    %v1869 = vadd.f32 0.0, %v1868
    %v1870 = vpop.f32.mrb[0].mxu0
    %1871 = vdwg.mxu0
    %v1872 = vmax.f32 %v1579, %v1666
    %v1873 = vmax.f32 %v1580, %v1669
    %v1874 = vmax.f32 %v1581, %v1674
    %v1875 = vmax.f32 %v1582, %v1677
    %v1876 = vmax.f32 %v1583, %v1682
    %v1877 = vmax.f32 %v1584, %v1685
    %v1878 = vmax.f32 %v1585, %v1690
    %v1879 = vmax.f32 %v1586, %v1693
    %v1880 = vmax.f32 %v1587, %v1698
    %v1881 = vmax.f32 %v1588, %v1701
    %v1882 = vmax.f32 %v1589, %v1706
    %v1883 = vmax.f32 %v1590, %v1709
    %v1884 = vmax.f32 %v1591, %v1714
    %v1885 = vmax.f32 %v1592, %v1717
    %v1886 = vmax.f32 %v1593, %v1722
    %v1887 = vmax.f32 %v1594, %v1725
    %v1888 = vmax.f32 %v1595, %v1730
    %v1889 = vmax.f32 %v1596, %v1733
    %v1890 = vmax.f32 %v1597, %v1738
    %v1891 = vmax.f32 %v1598, %v1741
    %v1892 = vmax.f32 %v1599, %v1746
    %v1893 = vmax.f32 %v1600, %v1749
    %v1894 = vmax.f32 %v1601, %v1754
    %v1895 = vmax.f32 %v1602, %v1757
    %v1896 = vmax.f32 %v1603, %v1762
    %v1897 = vmax.f32 %v1604, %v1765
    %v1898 = vmax.f32 %v1605, %v1770
    %v1899 = vmax.f32 %v1606, %v1773
    %v1900 = vmax.f32 %v1607, %v1778
    %v1901 = vmax.f32 %v1608, %v1781
    %v1902 = vmax.f32 %v1609, %v1786
    %v1903 = vmax.f32 %v1610, %v1789
    %v1904 = vmax.f32 %v1611, %v1794
    %v1905 = vmax.f32 %v1612, %v1797
    %v1906 = vmax.f32 %v1613, %v1802
    %v1907 = vmax.f32 %v1614, %v1805
    %v1908 = vmax.f32 %v1615, %v1810
    %v1909 = vmax.f32 %v1616, %v1813
    %v1910 = vmax.f32 %v1617, %v1818
    %v1911 = vmax.f32 %v1618, %v1821
    %v1912 = vmax.f32 %v1619, %v1826
    %v1913 = vmax.f32 %v1620, %v1829
    %v1914 = vmax.f32 %v1621, %v1834
    %v1915 = vmax.f32 %v1622, %v1837
    %v1916 = vmax.f32 %v1623, %v1842
    %v1917 = vmax.f32 %v1624, %v1845
    %v1918 = vmax.f32 %v1625, %v1850
    %v1919 = vmax.f32 %v1626, %v1853
    %v1920 = vmax.f32 %v1627, %v1858
    %v1921 = vmax.f32 %v1628, %v1861
    %v1922 = vmax.f32 %v1629, %v1866
    %v1923 = vmax.f32 %v1630, %v1869
    %v1924 = vmax.f32 %v1872, 0.0
    %v1925 = vmax.f32 %v1873, 0.0
    %v1926 = vmax.f32 %v1874, 0.0
    %v1927 = vmax.f32 %v1875, 0.0
    %v1928 = vmax.f32 %v1876, 0.0
    %v1929 = vmax.f32 %v1877, 0.0
    %v1930 = vmax.f32 %v1878, 0.0
    %v1931 = vmax.f32 %v1879, 0.0
    %v1932 = vmax.f32 %v1880, 0.0
    %v1933 = vmax.f32 %v1881, 0.0
    %v1934 = vmax.f32 %v1882, 0.0
    %v1935 = vmax.f32 %v1883, 0.0
    %v1936 = vmax.f32 %v1884, 0.0
    %v1937 = vmax.f32 %v1885, 0.0
    %v1938 = vmax.f32 %v1886, 0.0
    %v1939 = vmax.f32 %v1887, 0.0
    %v1940 = vmax.f32 %v1888, 0.0
    %v1941 = vmax.f32 %v1889, 0.0
    %v1942 = vmax.f32 %v1890, 0.0
    %v1943 = vmax.f32 %v1891, 0.0
    %v1944 = vmax.f32 %v1892, 0.0
    %v1945 = vmax.f32 %v1893, 0.0
    %v1946 = vmax.f32 %v1894, 0.0
    %v1947 = vmax.f32 %v1895, 0.0
    %v1948 = vmax.f32 %v1896, 0.0
    %v1949 = vmax.f32 %v1897, 0.0
    %v1950 = vmax.f32 %v1898, 0.0
    %v1951 = vmax.f32 %v1899, 0.0
    %v1952 = vmax.f32 %v1900, 0.0
    %v1953 = vmax.f32 %v1901, 0.0
    %v1954 = vmax.f32 %v1902, 0.0
    %v1955 = vmax.f32 %v1903, 0.0
    %v1956 = vmax.f32 %v1904, 0.0
    %v1957 = vmax.f32 %v1905, 0.0
    %v1958 = vmax.f32 %v1906, 0.0
    %v1959 = vmax.f32 %v1907, 0.0
    %v1960 = vmax.f32 %v1908, 0.0
    %v1961 = vmax.f32 %v1909, 0.0
    %v1962 = vmax.f32 %v1910, 0.0
    %v1963 = vmax.f32 %v1911, 0.0
    %v1964 = vmax.f32 %v1912, 0.0
    %v1965 = vmax.f32 %v1913, 0.0
    %v1966 = vmax.f32 %v1914, 0.0
    %v1967 = vmax.f32 %v1915, 0.0
    %v1968 = vmax.f32 %v1916, 0.0
    %v1969 = vmax.f32 %v1917, 0.0
    %v1970 = vmax.f32 %v1918, 0.0
    %v1971 = vmax.f32 %v1919, 0.0
    %v1972 = vmax.f32 %v1920, 0.0
    %v1973 = vmax.f32 %v1921, 0.0
    %v1974 = vmax.f32 %v1922, 0.0
    %v1975 = vmax.f32 %v1923, 0.0
    %v1976 = vpack.c.bf16 %v1925, %v1924
    %v1977 = vpack.c.bf16 %v1927, %v1926
    %v1978 = vpack.c.bf16 %v1929, %v1928
    %v1979 = vpack.c.bf16 %v1931, %v1930
    %v1980 = vpack.c.bf16 %v1933, %v1932
    %v1981 = vpack.c.bf16 %v1935, %v1934
    %v1982 = vpack.c.bf16 %v1937, %v1936
    %v1983 = vpack.c.bf16 %v1939, %v1938
    %v1984 = vpack.c.bf16 %v1941, %v1940
    %v1985 = vpack.c.bf16 %v1943, %v1942
    %v1986 = vpack.c.bf16 %v1945, %v1944
    %v1987 = vpack.c.bf16 %v1947, %v1946
    %v1988 = vpack.c.bf16 %v1949, %v1948
    %v1989 = vpack.c.bf16 %v1951, %v1950
    %v1990 = vpack.c.bf16 %v1953, %v1952
    %v1991 = vpack.c.bf16 %v1955, %v1954
    %v1992 = vpack.c.bf16 %v1957, %v1956
    %v1993 = vpack.c.bf16 %v1959, %v1958
    %v1994 = vpack.c.bf16 %v1961, %v1960
    %v1995 = vpack.c.bf16 %v1963, %v1962
    %v1996 = vpack.c.bf16 %v1965, %v1964
    %v1997 = vpack.c.bf16 %v1967, %v1966
    %v1998 = vpack.c.bf16 %v1969, %v1968
    %v1999 = vpack.c.bf16 %v1971, %v1970
    %v2000 = vpack.c.bf16 %v1973, %v1972
    %v2001 = vpack.c.bf16 %v1975, %v1974
    %s2002 = smul.u32 %s255, 26
    %s2003 = smul.addr %s2002, 8
    %s2004 = scalar_lea.vmem [#allocation3], %s2003
    %2005 = vst [vmem:[%s2004] sm:$0xff] %v1976
    %2006 = vst [vmem:[%s2004 + $0x8] sm:$0xff] %v1977
    %2007 = vst [vmem:[%s2004 + $0x10] sm:$0xff] %v1978
    %2008 = vst [vmem:[%s2004 + $0x18] sm:$0xff] %v1979
    %2009 = vst [vmem:[%s2004 + $0x20] sm:$0xff] %v1980
    %2010 = vst [vmem:[%s2004 + $0x28] sm:$0xff] %v1981
    %2011 = vst [vmem:[%s2004 + $0x30] sm:$0xff] %v1982
    %2012 = vst [vmem:[%s2004 + $0x38] sm:$0xff] %v1983
    %2013 = vst [vmem:[%s2004 + $0x40] sm:$0xff] %v1984
    %2014 = vst [vmem:[%s2004 + $0x48] sm:$0xff] %v1985
    %2015 = vst [vmem:[%s2004 + $0x50] sm:$0xff] %v1986
    %2016 = vst [vmem:[%s2004 + $0x58] sm:$0xff] %v1987
    %2017 = vst [vmem:[%s2004 + $0x60] sm:$0xff] %v1988
    %2018 = vst [vmem:[%s2004 + $0x68] sm:$0xff] %v1989
    %2019 = vst [vmem:[%s2004 + $0x70] sm:$0xff] %v1990
    %2020 = vst [vmem:[%s2004 + $0x78] sm:$0xff] %v1991
    %2021 = vst [vmem:[%s2004 + $0x80] sm:$0xff] %v1992
    %2022 = vst [vmem:[%s2004 + $0x88] sm:$0xff] %v1993
    %2023 = vst [vmem:[%s2004 + $0x90] sm:$0xff] %v1994
    %2024 = vst [vmem:[%s2004 + $0x98] sm:$0xff] %v1995
    %2025 = vst [vmem:[%s2004 + $0xa0] sm:$0xff] %v1996
    %2026 = vst [vmem:[%s2004 + $0xa8] sm:$0xff] %v1997
    %2027 = vst [vmem:[%s2004 + $0xb0] sm:$0xff] %v1998
    %2028 = vst [vmem:[%s2004 + $0xb8] sm:$0xff] %v1999
    %2029 = vst [vmem:[%s2004 + $0xc0] sm:$0xff] %v2000
    %2030 = vst [vmem:[%s2004 + $0xc8] sm:$0xff] %v2001
  $region38: #{conv_mnist_forward.1} parent=0 // loop_footer
    %s259 = sadd.s32 1, %s255
  $region39: #{conv_mnist_forward.1} parent=0 // loop_footer_branch
    %254 = sbr.rel target = $region35
  $region40: #{conv_mnist_forward.1} parent=0 // loop_exit
    _
  loop: start=0, step=1, limit=5
  $region41: #{conv_mnist_forward.1} parent=0 // loop_pre_header
    _
  $region42: #{conv_mnist_forward.1} parent=0 // loop_header
    %s2032 = sphi 0, %s2036
    %p2033 = scmp.ge.s32.totalorder %s2032, 5
  $region43: #{conv_mnist_forward.1} parent=0 // loop_header_branch
    %2035 = sbr.rel (%p2033) target = $region47
  $region44: #{conv_mnist_forward.1} parent=0 // loop_body
    %v2037 = vld [vmem:[%s2] sm:$0xff]
    %v2038 = vld [vmem:[%s2 + $0x8] sm:$0xf]
    %v2039 = vld [vmem:[%s2 + $0xc] sm:$0xff]
    %v2040 = vld [vmem:[%s2 + $0x14] sm:$0xf]
    %v2041 = vld [vmem:[%s2 + $0x18] sm:$0xff]
    %v2042 = vld [vmem:[%s2 + $0x20] sm:$0xf]
    %v2043 = vld [vmem:[%s2 + $0x24] sm:$0xff]
    %v2044 = vld [vmem:[%s2 + $0x2c] sm:$0xf]
    %v2045 = vld [vmem:[%s2 + $0x30] sm:$0xff]
    %v2046 = vld [vmem:[%s2 + $0x38] sm:$0xf]
    %v2047 = vld [vmem:[%s2 + $0x3c] sm:$0xff]
    %v2048 = vld [vmem:[%s2 + $0x44] sm:$0xf]
    %v2049 = vld [vmem:[%s2 + $0x48] sm:$0xff]
    %v2050 = vld [vmem:[%s2 + $0x50] sm:$0xf]
    %v2051 = vld [vmem:[%s2 + $0x54] sm:$0xff]
    %v2052 = vld [vmem:[%s2 + $0x5c] sm:$0xf]
    %v2053 = vld [vmem:[%s3] sm:$0xff]
    %v2054 = vld [vmem:[%s3 + $0x8] sm:$0xff]
    %v2055 = vld [vmem:[%s3 + $0x10] sm:$0xff]
    %v2056 = vld [vmem:[%s3 + $0x18] sm:$0xff]
    %v2057 = vld [vmem:[%s3 + $0x20] sm:$0xff]
    %v2058 = vld [vmem:[%s3 + $0x28] sm:$0xff]
    %v2059 = vld [vmem:[%s3 + $0x30] sm:$0xff]
    %v2060 = vld [vmem:[%s3 + $0x38] sm:$0xff]
    %s2061 = smul.u32 %s2032, 2
    %s2062 = smul.u32 %s2061, 26
    %s2063 = smul.addr %s2062, 8
    %s2064 = scalar_lea.vmem [#allocation3], %s2063
    %v2065 = vld [vmem:[%s2064] sm:$0xff]
    %v2066 = vld [vmem:[%s2064 + $0x8] sm:$0xff]
    %v2067 = vld [vmem:[%s2064 + $0x10] sm:$0xff]
    %v2068 = vld [vmem:[%s2064 + $0x18] sm:$0xff]
    %v2069 = vld [vmem:[%s2064 + $0x20] sm:$0xff]
    %v2070 = vld [vmem:[%s2064 + $0x28] sm:$0xff]
    %s2071 = sadd.s32 %s2061, 1
    %s2072 = smul.u32 %s2071, 26
    %s2073 = smul.addr %s2072, 8
    %s2074 = scalar_lea.vmem [#allocation3], %s2073
    %v2075 = vld [vmem:[%s2074] sm:$0xff]
    %v2076 = vld [vmem:[%s2074 + $0x8] sm:$0xff]
    %v2077 = vld [vmem:[%s2074 + $0x10] sm:$0xff]
    %v2078 = vld [vmem:[%s2074 + $0x18] sm:$0xff]
    %v2079 = vld [vmem:[%s2074 + $0x20] sm:$0xff]
    %v2080 = vld [vmem:[%s2074 + $0x28] sm:$0xff]
    %s2081 = sadd.s32 %s2061, 2
    %s2082 = smul.u32 %s2081, 26
    %s2083 = smul.addr %s2082, 8
    %s2084 = scalar_lea.vmem [#allocation3], %s2083
    %v2085 = vld [vmem:[%s2084] sm:$0xff]
    %v2086 = vld [vmem:[%s2084 + $0x8] sm:$0xff]
    %v2087 = vld [vmem:[%s2084 + $0x10] sm:$0xff]
    %v2088 = vld [vmem:[%s2084 + $0x18] sm:$0xff]
    %v2089 = vld [vmem:[%s2084 + $0x20] sm:$0xff]
    %v2090 = vld [vmem:[%s2084 + $0x28] sm:$0xff]
    %v2107 = vunpack.c.l.b16 %v2037
    %v2108 = vunpack.c.h.b16 %v2037
    %v2109 = vunpack.c.l.b16 %v2038
    %v2110 = vunpack.c.l.b16 %v2039
    %v2111 = vunpack.c.h.b16 %v2039
    %v2112 = vunpack.c.l.b16 %v2040
    %v2113 = vunpack.c.l.b16 %v2041
    %v2114 = vunpack.c.h.b16 %v2041
    %v2115 = vunpack.c.l.b16 %v2042
    %v2116 = vunpack.c.l.b16 %v2043
    %v2117 = vunpack.c.h.b16 %v2043
    %v2118 = vunpack.c.l.b16 %v2044
    %v2119 = vunpack.c.l.b16 %v2045
    %v2120 = vunpack.c.h.b16 %v2045
    %v2121 = vunpack.c.l.b16 %v2046
    %v2122 = vunpack.c.l.b16 %v2047
    %v2123 = vunpack.c.h.b16 %v2047
    %v2124 = vunpack.c.l.b16 %v2048
    %v2125 = vunpack.c.l.b16 %v2049
    %v2126 = vunpack.c.h.b16 %v2049
    %v2127 = vunpack.c.l.b16 %v2050
    %v2128 = vunpack.c.l.b16 %v2051
    %v2129 = vunpack.c.h.b16 %v2051
    %v2130 = vunpack.c.l.b16 %v2052
    %v2131 = vpack.c.b16 %v2110, %v2107
    %v2132 = vpack.c.b16 %v2111, %v2108
    %v2133 = vpack.c.b16 %v2112, %v2109
    %v2134 = vpack.c.b16 %v2116, %v2113
    %v2135 = vpack.c.b16 %v2117, %v2114
    %v2136 = vpack.c.b16 %v2118, %v2115
    %v2137 = vpack.c.b16 %v2122, %v2119
    %v2138 = vpack.c.b16 %v2123, %v2120
    %v2139 = vpack.c.b16 %v2124, %v2121
    %v2140 = vpack.c.b16 %v2128, %v2125
    %v2141 = vpack.c.b16 %v2129, %v2126
    %v2142 = vpack.c.b16 %v2130, %v2127
    %vm2151 = vcmask 261120
    %v2153 = vsel %vm2151, %v2133, 0
    %v2156 = vsel %vm2151, %v2136, 0
    %v2159 = vsel %vm2151, %v2139, 0
    %v2162 = vsel %vm2151, %v2142, 0
    %2164 = vmatprep.subr.bf16.mxu0 0
    %2165 = vmatpush1.bf16.msra.mxu0 %v2065
    %2166 = vmatprep.subr.bf16.mxu0 0
    %2167 = vmatpush1.bf16.msra.mxu0 %v2066
    %2168 = vmatprep.subr.bf16.mxu0 0
    %2169 = vmatpush1.bf16.msra.mxu0 %v2067
    %2170 = vmatprep.subr.bf16.mxu0 0
    %2171 = vmatpush1.bf16.msra.mxu0 %v2068
    %2172 = vmatprep.subr.bf16.mxu0 0
    %2173 = vmatpush1.bf16.msra.mxu0 %v2069
    %2174 = vmatprep.subr.bf16.mxu0 0
    %2175 = vmatpush1.bf16.msra.mxu0 %v2070
    %2176 = vmatprep.subr.bf16.mxu0 0
    %2177 = vmatpush1.bf16.msra.mxu0 %v2075
    %2178 = vmatprep.subr.bf16.mxu0 0
    %2179 = vmatpush1.bf16.msra.mxu0 %v2076
    %2180 = vmatprep.subr.bf16.mxu0 0
    %2181 = vmatpush1.bf16.msra.mxu0 %v2077
    %2182 = vmatprep.subr.bf16.mxu0 0
    %2183 = vmatpush1.bf16.msra.mxu0 %v2078
    %2184 = vmatprep.subr.bf16.mxu0 0
    %2185 = vmatpush1.bf16.msra.mxu0 %v2079
    %2186 = vmatprep.subr.bf16.mxu0 0
    %2187 = vmatpush1.bf16.msra.mxu0 %v2080
    %2188 = vmatprep.subr.bf16.mxu0 0
    %2189 = vmatpush1.bf16.msra.mxu0 %v2085
    %2190 = vmatprep.subr.bf16.mxu0 0
    %2191 = vmatpush1.bf16.msra.mxu0 %v2086
    %2192 = vmatprep.subr.bf16.mxu0 0
    %2193 = vmatpush1.bf16.msra.mxu0 %v2087
    %2194 = vmatprep.subr.bf16.mxu0 0
    %2195 = vmatpush1.bf16.msra.mxu0 %v2088
    %2196 = vmatprep.mubr.bf16.mxu0 %v2132
    %2197 = vmatmul.mubr.bf16.gmra.mrb[0].mxu0 %v2131
    %v2198 = vpop.f32.mrb[0].mxu0
    %v2199 = vadd.f32 0.0, %v2198
    %v2200 = vpop.f32.mrb[0].mxu0
    %v2201 = vpop.f32.mrb[0].mxu0
    %v2202 = vadd.f32 0.0, %v2201
    %v2203 = vpop.f32.mrb[0].mxu0
    %2204 = vmatprep.mubr.bf16.mxu0 %v2135
    %2205 = vmatmul.mubr.bf16.gmra.mrb[0].mxu0 %v2134
    %v2206 = vpop.f32.mrb[0].mxu0
    %v2207 = vadd.f32 0.0, %v2206
    %v2208 = vpop.f32.mrb[0].mxu0
    %v2209 = vpop.f32.mrb[0].mxu0
    %v2210 = vadd.f32 0.0, %v2209
    %v2211 = vpop.f32.mrb[0].mxu0
    %2212 = vmatprep.mubr.bf16.mxu0 %v2138
    %2213 = vmatmul.mubr.bf16.gmra.mrb[0].mxu0 %v2137
    %v2214 = vpop.f32.mrb[0].mxu0
    %v2215 = vadd.f32 0.0, %v2214
    %v2216 = vpop.f32.mrb[0].mxu0
    %v2217 = vpop.f32.mrb[0].mxu0
    %v2218 = vadd.f32 0.0, %v2217
    %v2219 = vpop.f32.mrb[0].mxu0
    %2220 = vmatprep.mubr.bf16.mxu0 %v2141
    %2221 = vmatmul.mubr.bf16.gmra.mrb[0].mxu0 %v2140
    %v2222 = vpop.f32.mrb[0].mxu0
    %v2223 = vadd.f32 0.0, %v2222
    %v2224 = vpop.f32.mrb[0].mxu0
    %v2225 = vpop.f32.mrb[0].mxu0
    %v2226 = vadd.f32 0.0, %v2225
    %v2227 = vpop.f32.mrb[0].mxu0
    %2228 = vdwg.mxu0
    %2229 = vmatprep.subr.bf16.mxu0 0
    %2230 = vmatpush1.bf16.msra.mxu0 %v2089
    %2231 = vmatprep.subr.bf16.mxu0 0
    %2232 = vmatpush1.bf16.msra.mxu0 %v2090
    %2233 = vmatprep.subr.bf16.mxu0 0
    %2234 = vmatpush1.bf16.msra.mxu0 0
    %2235 = vmatprep.subr.bf16.mxu0 0
    %2236 = vmatpush1.bf16.msra.mxu0 0
    %2237 = vmatprep.subr.bf16.mxu0 0
    %2238 = vmatpush1.bf16.msra.mxu0 0
    %2239 = vmatprep.subr.bf16.mxu0 0
    %2240 = vmatpush1.bf16.msra.mxu0 0
    %2241 = vmatprep.subr.bf16.mxu0 0
    %2242 = vmatpush1.bf16.msra.mxu0 0
    %2243 = vmatprep.subr.bf16.mxu0 0
    %2244 = vmatpush1.bf16.msra.mxu0 0
    %2245 = vmatprep.subr.bf16.mxu0 0
    %2246 = vmatpush1.bf16.msra.mxu0 0
    %2247 = vmatprep.subr.bf16.mxu0 0
    %2248 = vmatpush1.bf16.msra.mxu0 0
    %2249 = vmatprep.subr.bf16.mxu0 0
    %2250 = vmatpush1.bf16.msra.mxu0 0
    %2251 = vmatprep.subr.bf16.mxu0 0
    %2252 = vmatpush1.bf16.msra.mxu0 0
    %2253 = vmatprep.subr.bf16.mxu0 0
    %2254 = vmatpush1.bf16.msra.mxu0 0
    %2255 = vmatprep.subr.bf16.mxu0 0
    %2256 = vmatpush1.bf16.msra.mxu0 0
    %2257 = vmatprep.subr.bf16.mxu0 0
    %2258 = vmatpush1.bf16.msra.mxu0 0
    %2259 = vmatprep.subr.bf16.mxu0 0
    %2260 = vmatpush1.bf16.msra.mxu0 0
    %2261 = vmatprep.mubr.bf16.mxu0 0
    %2262 = vmatmul.mubr.bf16.gmra.mrb[0].mxu0 %v2153
    %v2263 = vpop.f32.mrb[0].mxu0
    %v2264 = vadd.f32 %v2199, %v2263
    %v2265 = vpop.f32.mrb[0].mxu0
    %v2266 = vpop.f32.mrb[0].mxu0
    %v2267 = vadd.f32 %v2202, %v2266
    %v2268 = vpop.f32.mrb[0].mxu0
    %2269 = vmatprep.mubr.bf16.mxu0 0
    %2270 = vmatmul.mubr.bf16.gmra.mrb[0].mxu0 %v2156
    %v2271 = vpop.f32.mrb[0].mxu0
    %v2272 = vadd.f32 %v2207, %v2271
    %v2273 = vpop.f32.mrb[0].mxu0
    %v2274 = vpop.f32.mrb[0].mxu0
    %v2275 = vadd.f32 %v2210, %v2274
    %v2276 = vpop.f32.mrb[0].mxu0
    %2277 = vmatprep.mubr.bf16.mxu0 0
    %2278 = vmatmul.mubr.bf16.gmra.mrb[0].mxu0 %v2159
    %v2279 = vpop.f32.mrb[0].mxu0
    %v2280 = vadd.f32 %v2215, %v2279
    %v2281 = vpop.f32.mrb[0].mxu0
    %v2282 = vpop.f32.mrb[0].mxu0
    %v2283 = vadd.f32 %v2218, %v2282
    %v2284 = vpop.f32.mrb[0].mxu0
    %2285 = vmatprep.mubr.bf16.mxu0 0
    %2286 = vmatmul.mubr.bf16.gmra.mrb[0].mxu0 %v2162
    %v2287 = vpop.f32.mrb[0].mxu0
    %v2288 = vadd.f32 %v2223, %v2287
    %v2289 = vpop.f32.mrb[0].mxu0
    %v2290 = vpop.f32.mrb[0].mxu0
    %v2291 = vadd.f32 %v2226, %v2290
    %v2292 = vpop.f32.mrb[0].mxu0
    %2293 = vdwg.mxu0
    %v2294 = vld [vmem:[%s2064 + $0x10] sm:$0xff]
    %v2295 = vld [vmem:[%s2064 + $0x18] sm:$0xff]
    %v2296 = vld [vmem:[%s2064 + $0x20] sm:$0xff]
    %v2297 = vld [vmem:[%s2064 + $0x28] sm:$0xff]
    %v2298 = vld [vmem:[%s2064 + $0x30] sm:$0xff]
    %v2299 = vld [vmem:[%s2064 + $0x38] sm:$0xff]
    %v2300 = vld [vmem:[%s2074 + $0x10] sm:$0xff]
    %v2301 = vld [vmem:[%s2074 + $0x18] sm:$0xff]
    %v2302 = vld [vmem:[%s2074 + $0x20] sm:$0xff]
    %v2303 = vld [vmem:[%s2074 + $0x28] sm:$0xff]
    %v2304 = vld [vmem:[%s2074 + $0x30] sm:$0xff]
    %v2305 = vld [vmem:[%s2074 + $0x38] sm:$0xff]
    %v2306 = vld [vmem:[%s2084 + $0x10] sm:$0xff]
    %v2307 = vld [vmem:[%s2084 + $0x18] sm:$0xff]
    %v2308 = vld [vmem:[%s2084 + $0x20] sm:$0xff]
    %v2309 = vld [vmem:[%s2084 + $0x28] sm:$0xff]
    %v2310 = vld [vmem:[%s2084 + $0x30] sm:$0xff]
    %v2311 = vld [vmem:[%s2084 + $0x38] sm:$0xff]
    %2312 = vmatprep.subr.bf16.mxu0 0
    %2313 = vmatpush1.bf16.msra.mxu0 %v2294
    %2314 = vmatprep.subr.bf16.mxu0 0
    %2315 = vmatpush1.bf16.msra.mxu0 %v2295
    %2316 = vmatprep.subr.bf16.mxu0 0
    %2317 = vmatpush1.bf16.msra.mxu0 %v2296
    %2318 = vmatprep.subr.bf16.mxu0 0
    %2319 = vmatpush1.bf16.msra.mxu0 %v2297
    %2320 = vmatprep.subr.bf16.mxu0 0
    %2321 = vmatpush1.bf16.msra.mxu0 %v2298
    %2322 = vmatprep.subr.bf16.mxu0 0
    %2323 = vmatpush1.bf16.msra.mxu0 %v2299
    %2324 = vmatprep.subr.bf16.mxu0 0
    %2325 = vmatpush1.bf16.msra.mxu0 %v2300
    %2326 = vmatprep.subr.bf16.mxu0 0
    %2327 = vmatpush1.bf16.msra.mxu0 %v2301
    %2328 = vmatprep.subr.bf16.mxu0 0
    %2329 = vmatpush1.bf16.msra.mxu0 %v2302
    %2330 = vmatprep.subr.bf16.mxu0 0
    %2331 = vmatpush1.bf16.msra.mxu0 %v2303
    %2332 = vmatprep.subr.bf16.mxu0 0
    %2333 = vmatpush1.bf16.msra.mxu0 %v2304
    %2334 = vmatprep.subr.bf16.mxu0 0
    %2335 = vmatpush1.bf16.msra.mxu0 %v2305
    %2336 = vmatprep.subr.bf16.mxu0 0
    %2337 = vmatpush1.bf16.msra.mxu0 %v2306
    %2338 = vmatprep.subr.bf16.mxu0 0
    %2339 = vmatpush1.bf16.msra.mxu0 %v2307
    %2340 = vmatprep.subr.bf16.mxu0 0
    %2341 = vmatpush1.bf16.msra.mxu0 %v2308
    %2342 = vmatprep.subr.bf16.mxu0 0
    %2343 = vmatpush1.bf16.msra.mxu0 %v2309
    %2344 = vmatprep.mubr.bf16.mxu0 %v2132
    %2345 = vmatmul.mubr.bf16.gmra.mrb[0].mxu0 %v2131
    %v2346 = vpop.f32.mrb[0].mxu0
    %v2347 = vadd.f32 0.0, %v2346
    %v2348 = vpop.f32.mrb[0].mxu0
    %v2349 = vpop.f32.mrb[0].mxu0
    %v2350 = vadd.f32 0.0, %v2349
    %v2351 = vpop.f32.mrb[0].mxu0
    %2352 = vmatprep.mubr.bf16.mxu0 %v2135
    %2353 = vmatmul.mubr.bf16.gmra.mrb[0].mxu0 %v2134
    %v2354 = vpop.f32.mrb[0].mxu0
    %v2355 = vadd.f32 0.0, %v2354
    %v2356 = vpop.f32.mrb[0].mxu0
    %v2357 = vpop.f32.mrb[0].mxu0
    %v2358 = vadd.f32 0.0, %v2357
    %v2359 = vpop.f32.mrb[0].mxu0
    %2360 = vmatprep.mubr.bf16.mxu0 %v2138
    %2361 = vmatmul.mubr.bf16.gmra.mrb[0].mxu0 %v2137
    %v2362 = vpop.f32.mrb[0].mxu0
    %v2363 = vadd.f32 0.0, %v2362
    %v2364 = vpop.f32.mrb[0].mxu0
    %v2365 = vpop.f32.mrb[0].mxu0
    %v2366 = vadd.f32 0.0, %v2365
    %v2367 = vpop.f32.mrb[0].mxu0
    %2368 = vmatprep.mubr.bf16.mxu0 %v2141
    %2369 = vmatmul.mubr.bf16.gmra.mrb[0].mxu0 %v2140
    %v2370 = vpop.f32.mrb[0].mxu0
    %v2371 = vadd.f32 0.0, %v2370
    %v2372 = vpop.f32.mrb[0].mxu0
    %v2373 = vpop.f32.mrb[0].mxu0
    %v2374 = vadd.f32 0.0, %v2373
    %v2375 = vpop.f32.mrb[0].mxu0
    %2376 = vdwg.mxu0
    %2377 = vmatprep.subr.bf16.mxu0 0
    %2378 = vmatpush1.bf16.msra.mxu0 %v2310
    %2379 = vmatprep.subr.bf16.mxu0 0
    %2380 = vmatpush1.bf16.msra.mxu0 %v2311
    %2381 = vmatprep.subr.bf16.mxu0 0
    %2382 = vmatpush1.bf16.msra.mxu0 0
    %2383 = vmatprep.subr.bf16.mxu0 0
    %2384 = vmatpush1.bf16.msra.mxu0 0
    %2385 = vmatprep.subr.bf16.mxu0 0
    %2386 = vmatpush1.bf16.msra.mxu0 0
    %2387 = vmatprep.subr.bf16.mxu0 0
    %2388 = vmatpush1.bf16.msra.mxu0 0
    %2389 = vmatprep.subr.bf16.mxu0 0
    %2390 = vmatpush1.bf16.msra.mxu0 0
    %2391 = vmatprep.subr.bf16.mxu0 0
    %2392 = vmatpush1.bf16.msra.mxu0 0
    %2393 = vmatprep.subr.bf16.mxu0 0
    %2394 = vmatpush1.bf16.msra.mxu0 0
    %2395 = vmatprep.subr.bf16.mxu0 0
    %2396 = vmatpush1.bf16.msra.mxu0 0
    %2397 = vmatprep.subr.bf16.mxu0 0
    %2398 = vmatpush1.bf16.msra.mxu0 0
    %2399 = vmatprep.subr.bf16.mxu0 0
    %2400 = vmatpush1.bf16.msra.mxu0 0
    %2401 = vmatprep.subr.bf16.mxu0 0
    %2402 = vmatpush1.bf16.msra.mxu0 0
    %2403 = vmatprep.subr.bf16.mxu0 0
    %2404 = vmatpush1.bf16.msra.mxu0 0
    %2405 = vmatprep.subr.bf16.mxu0 0
    %2406 = vmatpush1.bf16.msra.mxu0 0
    %2407 = vmatprep.subr.bf16.mxu0 0
    %2408 = vmatpush1.bf16.msra.mxu0 0
    %2409 = vmatprep.mubr.bf16.mxu0 0
    %2410 = vmatmul.mubr.bf16.gmra.mrb[0].mxu0 %v2153
    %v2411 = vpop.f32.mrb[0].mxu0
    %v2412 = vadd.f32 %v2347, %v2411
    %v2413 = vpop.f32.mrb[0].mxu0
    %v2414 = vpop.f32.mrb[0].mxu0
    %v2415 = vadd.f32 %v2350, %v2414
    %v2416 = vpop.f32.mrb[0].mxu0
    %2417 = vmatprep.mubr.bf16.mxu0 0
    %2418 = vmatmul.mubr.bf16.gmra.mrb[0].mxu0 %v2156
    %v2419 = vpop.f32.mrb[0].mxu0
    %v2420 = vadd.f32 %v2355, %v2419
    %v2421 = vpop.f32.mrb[0].mxu0
    %v2422 = vpop.f32.mrb[0].mxu0
    %v2423 = vadd.f32 %v2358, %v2422
    %v2424 = vpop.f32.mrb[0].mxu0
    %2425 = vmatprep.mubr.bf16.mxu0 0
    %2426 = vmatmul.mubr.bf16.gmra.mrb[0].mxu0 %v2159
    %v2427 = vpop.f32.mrb[0].mxu0
    %v2428 = vadd.f32 %v2363, %v2427
    %v2429 = vpop.f32.mrb[0].mxu0
    %v2430 = vpop.f32.mrb[0].mxu0
    %v2431 = vadd.f32 %v2366, %v2430
    %v2432 = vpop.f32.mrb[0].mxu0
    %2433 = vmatprep.mubr.bf16.mxu0 0
    %2434 = vmatmul.mubr.bf16.gmra.mrb[0].mxu0 %v2162
    %v2435 = vpop.f32.mrb[0].mxu0
    %v2436 = vadd.f32 %v2371, %v2435
    %v2437 = vpop.f32.mrb[0].mxu0
    %v2438 = vpop.f32.mrb[0].mxu0
    %v2439 = vadd.f32 %v2374, %v2438
    %v2440 = vpop.f32.mrb[0].mxu0
    %2441 = vdwg.mxu0
    %v2442 = vmax.f32 %v2264, %v2412
    %v2443 = vmax.f32 %v2267, %v2415
    %v2444 = vmax.f32 %v2272, %v2420
    %v2445 = vmax.f32 %v2275, %v2423
    %v2446 = vmax.f32 %v2280, %v2428
    %v2447 = vmax.f32 %v2283, %v2431
    %v2448 = vmax.f32 %v2288, %v2436
    %v2449 = vmax.f32 %v2291, %v2439
    %s2450 = sadd.s32 %s2061, 3
    %s2451 = smul.u32 %s2450, 26
    %s2452 = smul.addr %s2451, 8
    %s2453 = scalar_lea.vmem [#allocation3], %s2452
    %v2454 = vld [vmem:[%s2453] sm:$0xff]
    %v2455 = vld [vmem:[%s2453 + $0x8] sm:$0xff]
    %v2456 = vld [vmem:[%s2453 + $0x10] sm:$0xff]
    %v2457 = vld [vmem:[%s2453 + $0x18] sm:$0xff]
    %v2458 = vld [vmem:[%s2453 + $0x20] sm:$0xff]
    %v2459 = vld [vmem:[%s2453 + $0x28] sm:$0xff]
    %2460 = vmatprep.subr.bf16.mxu0 0
    %2461 = vmatpush1.bf16.msra.mxu0 %v2075
    %2462 = vmatprep.subr.bf16.mxu0 0
    %2463 = vmatpush1.bf16.msra.mxu0 %v2076
    %2464 = vmatprep.subr.bf16.mxu0 0
    %2465 = vmatpush1.bf16.msra.mxu0 %v2077
    %2466 = vmatprep.subr.bf16.mxu0 0
    %2467 = vmatpush1.bf16.msra.mxu0 %v2078
    %2468 = vmatprep.subr.bf16.mxu0 0
    %2469 = vmatpush1.bf16.msra.mxu0 %v2079
    %2470 = vmatprep.subr.bf16.mxu0 0
    %2471 = vmatpush1.bf16.msra.mxu0 %v2080
    %2472 = vmatprep.subr.bf16.mxu0 0
    %2473 = vmatpush1.bf16.msra.mxu0 %v2085
    %2474 = vmatprep.subr.bf16.mxu0 0
    %2475 = vmatpush1.bf16.msra.mxu0 %v2086
    %2476 = vmatprep.subr.bf16.mxu0 0
    %2477 = vmatpush1.bf16.msra.mxu0 %v2087
    %2478 = vmatprep.subr.bf16.mxu0 0
    %2479 = vmatpush1.bf16.msra.mxu0 %v2088
    %2480 = vmatprep.subr.bf16.mxu0 0
    %2481 = vmatpush1.bf16.msra.mxu0 %v2089
    %2482 = vmatprep.subr.bf16.mxu0 0
    %2483 = vmatpush1.bf16.msra.mxu0 %v2090
    %2484 = vmatprep.subr.bf16.mxu0 0
    %2485 = vmatpush1.bf16.msra.mxu0 %v2454
    %2486 = vmatprep.subr.bf16.mxu0 0
    %2487 = vmatpush1.bf16.msra.mxu0 %v2455
    %2488 = vmatprep.subr.bf16.mxu0 0
    %2489 = vmatpush1.bf16.msra.mxu0 %v2456
    %2490 = vmatprep.subr.bf16.mxu0 0
    %2491 = vmatpush1.bf16.msra.mxu0 %v2457
    %2492 = vmatprep.mubr.bf16.mxu0 %v2132
    %2493 = vmatmul.mubr.bf16.gmra.mrb[0].mxu0 %v2131
    %v2494 = vpop.f32.mrb[0].mxu0
    %v2495 = vadd.f32 0.0, %v2494
    %v2496 = vpop.f32.mrb[0].mxu0
    %v2497 = vpop.f32.mrb[0].mxu0
    %v2498 = vadd.f32 0.0, %v2497
    %v2499 = vpop.f32.mrb[0].mxu0
    %2500 = vmatprep.mubr.bf16.mxu0 %v2135
    %2501 = vmatmul.mubr.bf16.gmra.mrb[0].mxu0 %v2134
    %v2502 = vpop.f32.mrb[0].mxu0
    %v2503 = vadd.f32 0.0, %v2502
    %v2504 = vpop.f32.mrb[0].mxu0
    %v2505 = vpop.f32.mrb[0].mxu0
    %v2506 = vadd.f32 0.0, %v2505
    %v2507 = vpop.f32.mrb[0].mxu0
    %2508 = vmatprep.mubr.bf16.mxu0 %v2138
    %2509 = vmatmul.mubr.bf16.gmra.mrb[0].mxu0 %v2137
    %v2510 = vpop.f32.mrb[0].mxu0
    %v2511 = vadd.f32 0.0, %v2510
    %v2512 = vpop.f32.mrb[0].mxu0
    %v2513 = vpop.f32.mrb[0].mxu0
    %v2514 = vadd.f32 0.0, %v2513
    %v2515 = vpop.f32.mrb[0].mxu0
    %2516 = vmatprep.mubr.bf16.mxu0 %v2141
    %2517 = vmatmul.mubr.bf16.gmra.mrb[0].mxu0 %v2140
    %v2518 = vpop.f32.mrb[0].mxu0
    %v2519 = vadd.f32 0.0, %v2518
    %v2520 = vpop.f32.mrb[0].mxu0
    %v2521 = vpop.f32.mrb[0].mxu0
    %v2522 = vadd.f32 0.0, %v2521
    %v2523 = vpop.f32.mrb[0].mxu0
    %2524 = vdwg.mxu0
    %2525 = vmatprep.subr.bf16.mxu0 0
    %2526 = vmatpush1.bf16.msra.mxu0 %v2458
    %2527 = vmatprep.subr.bf16.mxu0 0
    %2528 = vmatpush1.bf16.msra.mxu0 %v2459
    %2529 = vmatprep.subr.bf16.mxu0 0
    %2530 = vmatpush1.bf16.msra.mxu0 0
    %2531 = vmatprep.subr.bf16.mxu0 0
    %2532 = vmatpush1.bf16.msra.mxu0 0
    %2533 = vmatprep.subr.bf16.mxu0 0
    %2534 = vmatpush1.bf16.msra.mxu0 0
    %2535 = vmatprep.subr.bf16.mxu0 0
    %2536 = vmatpush1.bf16.msra.mxu0 0
    %2537 = vmatprep.subr.bf16.mxu0 0
    %2538 = vmatpush1.bf16.msra.mxu0 0
    %2539 = vmatprep.subr.bf16.mxu0 0
    %2540 = vmatpush1.bf16.msra.mxu0 0
    %2541 = vmatprep.subr.bf16.mxu0 0
    %2542 = vmatpush1.bf16.msra.mxu0 0
    %2543 = vmatprep.subr.bf16.mxu0 0
    %2544 = vmatpush1.bf16.msra.mxu0 0
    %2545 = vmatprep.subr.bf16.mxu0 0
    %2546 = vmatpush1.bf16.msra.mxu0 0
    %2547 = vmatprep.subr.bf16.mxu0 0
    %2548 = vmatpush1.bf16.msra.mxu0 0
    %2549 = vmatprep.subr.bf16.mxu0 0
    %2550 = vmatpush1.bf16.msra.mxu0 0
    %2551 = vmatprep.subr.bf16.mxu0 0
    %2552 = vmatpush1.bf16.msra.mxu0 0
    %2553 = vmatprep.subr.bf16.mxu0 0
    %2554 = vmatpush1.bf16.msra.mxu0 0
    %2555 = vmatprep.subr.bf16.mxu0 0
    %2556 = vmatpush1.bf16.msra.mxu0 0
    %2557 = vmatprep.mubr.bf16.mxu0 0
    %2558 = vmatmul.mubr.bf16.gmra.mrb[0].mxu0 %v2153
    %v2559 = vpop.f32.mrb[0].mxu0
    %v2560 = vadd.f32 %v2495, %v2559
    %v2561 = vpop.f32.mrb[0].mxu0
    %v2562 = vpop.f32.mrb[0].mxu0
    %v2563 = vadd.f32 %v2498, %v2562
    %v2564 = vpop.f32.mrb[0].mxu0
    %2565 = vmatprep.mubr.bf16.mxu0 0
    %2566 = vmatmul.mubr.bf16.gmra.mrb[0].mxu0 %v2156
    %v2567 = vpop.f32.mrb[0].mxu0
    %v2568 = vadd.f32 %v2503, %v2567
    %v2569 = vpop.f32.mrb[0].mxu0
    %v2570 = vpop.f32.mrb[0].mxu0
    %v2571 = vadd.f32 %v2506, %v2570
    %v2572 = vpop.f32.mrb[0].mxu0
    %2573 = vmatprep.mubr.bf16.mxu0 0
    %2574 = vmatmul.mubr.bf16.gmra.mrb[0].mxu0 %v2159
    %v2575 = vpop.f32.mrb[0].mxu0
    %v2576 = vadd.f32 %v2511, %v2575
    %v2577 = vpop.f32.mrb[0].mxu0
    %v2578 = vpop.f32.mrb[0].mxu0
    %v2579 = vadd.f32 %v2514, %v2578
    %v2580 = vpop.f32.mrb[0].mxu0
    %2581 = vmatprep.mubr.bf16.mxu0 0
    %2582 = vmatmul.mubr.bf16.gmra.mrb[0].mxu0 %v2162
    %v2583 = vpop.f32.mrb[0].mxu0
    %v2584 = vadd.f32 %v2519, %v2583
    %v2585 = vpop.f32.mrb[0].mxu0
    %v2586 = vpop.f32.mrb[0].mxu0
    %v2587 = vadd.f32 %v2522, %v2586
    %v2588 = vpop.f32.mrb[0].mxu0
    %2589 = vdwg.mxu0
    %v2590 = vmax.f32 %v2442, %v2560
    %v2591 = vmax.f32 %v2443, %v2563
    %v2592 = vmax.f32 %v2444, %v2568
    %v2593 = vmax.f32 %v2445, %v2571
    %v2594 = vmax.f32 %v2446, %v2576
    %v2595 = vmax.f32 %v2447, %v2579
    %v2596 = vmax.f32 %v2448, %v2584
    %v2597 = vmax.f32 %v2449, %v2587
    %v2598 = vld [vmem:[%s2453 + $0x10] sm:$0xff]
    %v2599 = vld [vmem:[%s2453 + $0x18] sm:$0xff]
    %v2600 = vld [vmem:[%s2453 + $0x20] sm:$0xff]
    %v2601 = vld [vmem:[%s2453 + $0x28] sm:$0xff]
    %v2602 = vld [vmem:[%s2453 + $0x30] sm:$0xff]
    %v2603 = vld [vmem:[%s2453 + $0x38] sm:$0xff]
    %2604 = vmatprep.subr.bf16.mxu0 0
    %2605 = vmatpush1.bf16.msra.mxu0 %v2300
    %2606 = vmatprep.subr.bf16.mxu0 0
    %2607 = vmatpush1.bf16.msra.mxu0 %v2301
    %2608 = vmatprep.subr.bf16.mxu0 0
    %2609 = vmatpush1.bf16.msra.mxu0 %v2302
    %2610 = vmatprep.subr.bf16.mxu0 0
    %2611 = vmatpush1.bf16.msra.mxu0 %v2303
    %2612 = vmatprep.subr.bf16.mxu0 0
    %2613 = vmatpush1.bf16.msra.mxu0 %v2304
    %2614 = vmatprep.subr.bf16.mxu0 0
    %2615 = vmatpush1.bf16.msra.mxu0 %v2305
    %2616 = vmatprep.subr.bf16.mxu0 0
    %2617 = vmatpush1.bf16.msra.mxu0 %v2306
    %2618 = vmatprep.subr.bf16.mxu0 0
    %2619 = vmatpush1.bf16.msra.mxu0 %v2307
    %2620 = vmatprep.subr.bf16.mxu0 0
    %2621 = vmatpush1.bf16.msra.mxu0 %v2308
    %2622 = vmatprep.subr.bf16.mxu0 0
    %2623 = vmatpush1.bf16.msra.mxu0 %v2309
    %2624 = vmatprep.subr.bf16.mxu0 0
    %2625 = vmatpush1.bf16.msra.mxu0 %v2310
    %2626 = vmatprep.subr.bf16.mxu0 0
    %2627 = vmatpush1.bf16.msra.mxu0 %v2311
    %2628 = vmatprep.subr.bf16.mxu0 0
    %2629 = vmatpush1.bf16.msra.mxu0 %v2598
    %2630 = vmatprep.subr.bf16.mxu0 0
    %2631 = vmatpush1.bf16.msra.mxu0 %v2599
    %2632 = vmatprep.subr.bf16.mxu0 0
    %2633 = vmatpush1.bf16.msra.mxu0 %v2600
    %2634 = vmatprep.subr.bf16.mxu0 0
    %2635 = vmatpush1.bf16.msra.mxu0 %v2601
    %2636 = vmatprep.mubr.bf16.mxu0 %v2132
    %2637 = vmatmul.mubr.bf16.gmra.mrb[0].mxu0 %v2131
    %v2638 = vpop.f32.mrb[0].mxu0
    %v2639 = vadd.f32 0.0, %v2638
    %v2640 = vpop.f32.mrb[0].mxu0
    %v2641 = vpop.f32.mrb[0].mxu0
    %v2642 = vadd.f32 0.0, %v2641
    %v2643 = vpop.f32.mrb[0].mxu0
    %2644 = vmatprep.mubr.bf16.mxu0 %v2135
    %2645 = vmatmul.mubr.bf16.gmra.mrb[0].mxu0 %v2134
    %v2646 = vpop.f32.mrb[0].mxu0
    %v2647 = vadd.f32 0.0, %v2646
    %v2648 = vpop.f32.mrb[0].mxu0
    %v2649 = vpop.f32.mrb[0].mxu0
    %v2650 = vadd.f32 0.0, %v2649
    %v2651 = vpop.f32.mrb[0].mxu0
    %2652 = vmatprep.mubr.bf16.mxu0 %v2138
    %2653 = vmatmul.mubr.bf16.gmra.mrb[0].mxu0 %v2137
    %v2654 = vpop.f32.mrb[0].mxu0
    %v2655 = vadd.f32 0.0, %v2654
    %v2656 = vpop.f32.mrb[0].mxu0
    %v2657 = vpop.f32.mrb[0].mxu0
    %v2658 = vadd.f32 0.0, %v2657
    %v2659 = vpop.f32.mrb[0].mxu0
    %2660 = vmatprep.mubr.bf16.mxu0 %v2141
    %2661 = vmatmul.mubr.bf16.gmra.mrb[0].mxu0 %v2140
    %v2662 = vpop.f32.mrb[0].mxu0
    %v2663 = vadd.f32 0.0, %v2662
    %v2664 = vpop.f32.mrb[0].mxu0
    %v2665 = vpop.f32.mrb[0].mxu0
    %v2666 = vadd.f32 0.0, %v2665
    %v2667 = vpop.f32.mrb[0].mxu0
    %2668 = vdwg.mxu0
    %2669 = vmatprep.subr.bf16.mxu0 0
    %2670 = vmatpush1.bf16.msra.mxu0 %v2602
    %2671 = vmatprep.subr.bf16.mxu0 0
    %2672 = vmatpush1.bf16.msra.mxu0 %v2603
    %2673 = vmatprep.subr.bf16.mxu0 0
    %2674 = vmatpush1.bf16.msra.mxu0 0
    %2675 = vmatprep.subr.bf16.mxu0 0
    %2676 = vmatpush1.bf16.msra.mxu0 0
    %2677 = vmatprep.subr.bf16.mxu0 0
    %2678 = vmatpush1.bf16.msra.mxu0 0
    %2679 = vmatprep.subr.bf16.mxu0 0
    %2680 = vmatpush1.bf16.msra.mxu0 0
    %2681 = vmatprep.subr.bf16.mxu0 0
    %2682 = vmatpush1.bf16.msra.mxu0 0
    %2683 = vmatprep.subr.bf16.mxu0 0
    %2684 = vmatpush1.bf16.msra.mxu0 0
    %2685 = vmatprep.subr.bf16.mxu0 0
    %2686 = vmatpush1.bf16.msra.mxu0 0
    %2687 = vmatprep.subr.bf16.mxu0 0
    %2688 = vmatpush1.bf16.msra.mxu0 0
    %2689 = vmatprep.subr.bf16.mxu0 0
    %2690 = vmatpush1.bf16.msra.mxu0 0
    %2691 = vmatprep.subr.bf16.mxu0 0
    %2692 = vmatpush1.bf16.msra.mxu0 0
    %2693 = vmatprep.subr.bf16.mxu0 0
    %2694 = vmatpush1.bf16.msra.mxu0 0
    %2695 = vmatprep.subr.bf16.mxu0 0
    %2696 = vmatpush1.bf16.msra.mxu0 0
    %2697 = vmatprep.subr.bf16.mxu0 0
    %2698 = vmatpush1.bf16.msra.mxu0 0
    %2699 = vmatprep.subr.bf16.mxu0 0
    %2700 = vmatpush1.bf16.msra.mxu0 0
    %2701 = vmatprep.mubr.bf16.mxu0 0
    %2702 = vmatmul.mubr.bf16.gmra.mrb[0].mxu0 %v2153
    %v2703 = vpop.f32.mrb[0].mxu0
    %v2704 = vadd.f32 %v2639, %v2703
    %v2705 = vpop.f32.mrb[0].mxu0
    %v2706 = vpop.f32.mrb[0].mxu0
    %v2707 = vadd.f32 %v2642, %v2706
    %v2708 = vpop.f32.mrb[0].mxu0
    %2709 = vmatprep.mubr.bf16.mxu0 0
    %2710 = vmatmul.mubr.bf16.gmra.mrb[0].mxu0 %v2156
    %v2711 = vpop.f32.mrb[0].mxu0
    %v2712 = vadd.f32 %v2647, %v2711
    %v2713 = vpop.f32.mrb[0].mxu0
    %v2714 = vpop.f32.mrb[0].mxu0
    %v2715 = vadd.f32 %v2650, %v2714
    %v2716 = vpop.f32.mrb[0].mxu0
    %2717 = vmatprep.mubr.bf16.mxu0 0
    %2718 = vmatmul.mubr.bf16.gmra.mrb[0].mxu0 %v2159
    %v2719 = vpop.f32.mrb[0].mxu0
    %v2720 = vadd.f32 %v2655, %v2719
    %v2721 = vpop.f32.mrb[0].mxu0
    %v2722 = vpop.f32.mrb[0].mxu0
    %v2723 = vadd.f32 %v2658, %v2722
    %v2724 = vpop.f32.mrb[0].mxu0
    %2725 = vmatprep.mubr.bf16.mxu0 0
    %2726 = vmatmul.mubr.bf16.gmra.mrb[0].mxu0 %v2162
    %v2727 = vpop.f32.mrb[0].mxu0
    %v2728 = vadd.f32 %v2663, %v2727
    %v2729 = vpop.f32.mrb[0].mxu0
    %v2730 = vpop.f32.mrb[0].mxu0
    %v2731 = vadd.f32 %v2666, %v2730
    %v2732 = vpop.f32.mrb[0].mxu0
    %2733 = vdwg.mxu0
    %v2734 = vmax.f32 %v2590, %v2704
    %v2735 = vmax.f32 %v2591, %v2707
    %v2736 = vmax.f32 %v2592, %v2712
    %v2737 = vmax.f32 %v2593, %v2715
    %v2738 = vmax.f32 %v2594, %v2720
    %v2739 = vmax.f32 %v2595, %v2723
    %v2740 = vmax.f32 %v2596, %v2728
    %v2741 = vmax.f32 %v2597, %v2731
    %2743 = vset.pattern.permute.xlu0 0
    %2744 = vperm.xlu0 %2743, %v2053
    %v2745 = vpop.permute.xlu0 %2744
    %2748 = vset.pattern.permute.xlu0 0
    %2749 = vperm.xlu0 %2748, %v2054
    %v2750 = vpop.permute.xlu0 %2749
    %2753 = vset.pattern.permute.xlu0 0
    %2754 = vperm.xlu0 %2753, %v2055
    %v2755 = vpop.permute.xlu0 %2754
    %2758 = vset.pattern.permute.xlu0 0
    %2759 = vperm.xlu0 %2758, %v2056
    %v2760 = vpop.permute.xlu0 %2759
    %2763 = vset.pattern.permute.xlu0 0
    %2764 = vperm.xlu0 %2763, %v2057
    %v2765 = vpop.permute.xlu0 %2764
    %2768 = vset.pattern.permute.xlu0 0
    %2769 = vperm.xlu0 %2768, %v2058
    %v2770 = vpop.permute.xlu0 %2769
    %2773 = vset.pattern.permute.xlu0 0
    %2774 = vperm.xlu0 %2773, %v2059
    %v2775 = vpop.permute.xlu0 %2774
    %2778 = vset.pattern.permute.xlu0 0
    %2779 = vperm.xlu0 %2778, %v2060
    %v2780 = vpop.permute.xlu0 %2779
    %v2782 = vadd.f32 %v2734, %v2745
    %v2783 = vadd.f32 %v2735, %v2750
    %v2784 = vadd.f32 %v2736, %v2755
    %v2785 = vadd.f32 %v2737, %v2760
    %v2786 = vadd.f32 %v2738, %v2765
    %v2787 = vadd.f32 %v2739, %v2770
    %v2788 = vadd.f32 %v2740, %v2775
    %v2789 = vadd.f32 %v2741, %v2780
    %v2790 = vmax.f32 %v2782, 0.0
    %v2791 = vmax.f32 %v2783, 0.0
    %v2792 = vmax.f32 %v2784, 0.0
    %v2793 = vmax.f32 %v2785, 0.0
    %v2794 = vmax.f32 %v2786, 0.0
    %v2795 = vmax.f32 %v2787, 0.0
    %v2796 = vmax.f32 %v2788, 0.0
    %v2797 = vmax.f32 %v2789, 0.0
    %v2798 = vpack.c.bf16 %v2791, %v2790
    %v2799 = vpack.c.bf16 %v2793, %v2792
    %v2800 = vpack.c.bf16 %v2795, %v2794
    %v2801 = vpack.c.bf16 %v2797, %v2796
    %s2802 = smul.u32 %s2032, 20
    %s2803 = smul.addr %s2802, 8
    %s2804 = scalar_lea.vmem [#allocation4], %s2803
    %2805 = vst [vmem:[%s2804] sm:$0xff] %v2798
    %2806 = vst [vmem:[%s2804 + $0x8] sm:$0xff] %v2799
    %2807 = vst [vmem:[%s2804 + $0x10] sm:$0xff] %v2800
    %2808 = vst [vmem:[%s2804 + $0x18] sm:$0xff] %v2801
    %v2809 = vld [vmem:[%s2064 + $0x20] sm:$0xff]
    %v2810 = vld [vmem:[%s2064 + $0x28] sm:$0xff]
    %v2811 = vld [vmem:[%s2064 + $0x30] sm:$0xff]
    %v2812 = vld [vmem:[%s2064 + $0x38] sm:$0xff]
    %v2813 = vld [vmem:[%s2064 + $0x40] sm:$0xff]
    %v2814 = vld [vmem:[%s2064 + $0x48] sm:$0xff]
    %v2815 = vld [vmem:[%s2074 + $0x20] sm:$0xff]
    %v2816 = vld [vmem:[%s2074 + $0x28] sm:$0xff]
    %v2817 = vld [vmem:[%s2074 + $0x30] sm:$0xff]
    %v2818 = vld [vmem:[%s2074 + $0x38] sm:$0xff]
    %v2819 = vld [vmem:[%s2074 + $0x40] sm:$0xff]
    %v2820 = vld [vmem:[%s2074 + $0x48] sm:$0xff]
    %v2821 = vld [vmem:[%s2084 + $0x20] sm:$0xff]
    %v2822 = vld [vmem:[%s2084 + $0x28] sm:$0xff]
    %v2823 = vld [vmem:[%s2084 + $0x30] sm:$0xff]
    %v2824 = vld [vmem:[%s2084 + $0x38] sm:$0xff]
    %v2825 = vld [vmem:[%s2084 + $0x40] sm:$0xff]
    %v2826 = vld [vmem:[%s2084 + $0x48] sm:$0xff]
    %2827 = vmatprep.subr.bf16.mxu0 0
    %2828 = vmatpush1.bf16.msra.mxu0 %v2809
    %2829 = vmatprep.subr.bf16.mxu0 0
    %2830 = vmatpush1.bf16.msra.mxu0 %v2810
    %2831 = vmatprep.subr.bf16.mxu0 0
    %2832 = vmatpush1.bf16.msra.mxu0 %v2811
    %2833 = vmatprep.subr.bf16.mxu0 0
    %2834 = vmatpush1.bf16.msra.mxu0 %v2812
    %2835 = vmatprep.subr.bf16.mxu0 0
    %2836 = vmatpush1.bf16.msra.mxu0 %v2813
    %2837 = vmatprep.subr.bf16.mxu0 0
    %2838 = vmatpush1.bf16.msra.mxu0 %v2814
    %2839 = vmatprep.subr.bf16.mxu0 0
    %2840 = vmatpush1.bf16.msra.mxu0 %v2815
    %2841 = vmatprep.subr.bf16.mxu0 0
    %2842 = vmatpush1.bf16.msra.mxu0 %v2816
    %2843 = vmatprep.subr.bf16.mxu0 0
    %2844 = vmatpush1.bf16.msra.mxu0 %v2817
    %2845 = vmatprep.subr.bf16.mxu0 0
    %2846 = vmatpush1.bf16.msra.mxu0 %v2818
    %2847 = vmatprep.subr.bf16.mxu0 0
    %2848 = vmatpush1.bf16.msra.mxu0 %v2819
    %2849 = vmatprep.subr.bf16.mxu0 0
    %2850 = vmatpush1.bf16.msra.mxu0 %v2820
    %2851 = vmatprep.subr.bf16.mxu0 0
    %2852 = vmatpush1.bf16.msra.mxu0 %v2821
    %2853 = vmatprep.subr.bf16.mxu0 0
    %2854 = vmatpush1.bf16.msra.mxu0 %v2822
    %2855 = vmatprep.subr.bf16.mxu0 0
    %2856 = vmatpush1.bf16.msra.mxu0 %v2823
    %2857 = vmatprep.subr.bf16.mxu0 0
    %2858 = vmatpush1.bf16.msra.mxu0 %v2824
    %2859 = vmatprep.mubr.bf16.mxu0 %v2132
    %2860 = vmatmul.mubr.bf16.gmra.mrb[0].mxu0 %v2131
    %v2861 = vpop.f32.mrb[0].mxu0
    %v2862 = vadd.f32 0.0, %v2861
    %v2863 = vpop.f32.mrb[0].mxu0
    %v2864 = vpop.f32.mrb[0].mxu0
    %v2865 = vadd.f32 0.0, %v2864
    %v2866 = vpop.f32.mrb[0].mxu0
    %2867 = vmatprep.mubr.bf16.mxu0 %v2135
    %2868 = vmatmul.mubr.bf16.gmra.mrb[0].mxu0 %v2134
    %v2869 = vpop.f32.mrb[0].mxu0
    %v2870 = vadd.f32 0.0, %v2869
    %v2871 = vpop.f32.mrb[0].mxu0
    %v2872 = vpop.f32.mrb[0].mxu0
    %v2873 = vadd.f32 0.0, %v2872
    %v2874 = vpop.f32.mrb[0].mxu0
    %2875 = vmatprep.mubr.bf16.mxu0 %v2138
    %2876 = vmatmul.mubr.bf16.gmra.mrb[0].mxu0 %v2137
    %v2877 = vpop.f32.mrb[0].mxu0
    %v2878 = vadd.f32 0.0, %v2877
    %v2879 = vpop.f32.mrb[0].mxu0
    %v2880 = vpop.f32.mrb[0].mxu0
    %v2881 = vadd.f32 0.0, %v2880
    %v2882 = vpop.f32.mrb[0].mxu0
    %2883 = vmatprep.mubr.bf16.mxu0 %v2141
    %2884 = vmatmul.mubr.bf16.gmra.mrb[0].mxu0 %v2140
    %v2885 = vpop.f32.mrb[0].mxu0
    %v2886 = vadd.f32 0.0, %v2885
    %v2887 = vpop.f32.mrb[0].mxu0
    %v2888 = vpop.f32.mrb[0].mxu0
    %v2889 = vadd.f32 0.0, %v2888
    %v2890 = vpop.f32.mrb[0].mxu0
    %2891 = vdwg.mxu0
    %2892 = vmatprep.subr.bf16.mxu0 0
    %2893 = vmatpush1.bf16.msra.mxu0 %v2825
    %2894 = vmatprep.subr.bf16.mxu0 0
    %2895 = vmatpush1.bf16.msra.mxu0 %v2826
    %2896 = vmatprep.subr.bf16.mxu0 0
    %2897 = vmatpush1.bf16.msra.mxu0 0
    %2898 = vmatprep.subr.bf16.mxu0 0
    %2899 = vmatpush1.bf16.msra.mxu0 0
    %2900 = vmatprep.subr.bf16.mxu0 0
    %2901 = vmatpush1.bf16.msra.mxu0 0
    %2902 = vmatprep.subr.bf16.mxu0 0
    %2903 = vmatpush1.bf16.msra.mxu0 0
    %2904 = vmatprep.subr.bf16.mxu0 0
    %2905 = vmatpush1.bf16.msra.mxu0 0
    %2906 = vmatprep.subr.bf16.mxu0 0
    %2907 = vmatpush1.bf16.msra.mxu0 0
    %2908 = vmatprep.subr.bf16.mxu0 0
    %2909 = vmatpush1.bf16.msra.mxu0 0
    %2910 = vmatprep.subr.bf16.mxu0 0
    %2911 = vmatpush1.bf16.msra.mxu0 0
    %2912 = vmatprep.subr.bf16.mxu0 0
    %2913 = vmatpush1.bf16.msra.mxu0 0
    %2914 = vmatprep.subr.bf16.mxu0 0
    %2915 = vmatpush1.bf16.msra.mxu0 0
    %2916 = vmatprep.subr.bf16.mxu0 0
    %2917 = vmatpush1.bf16.msra.mxu0 0
    %2918 = vmatprep.subr.bf16.mxu0 0
    %2919 = vmatpush1.bf16.msra.mxu0 0
    %2920 = vmatprep.subr.bf16.mxu0 0
    %2921 = vmatpush1.bf16.msra.mxu0 0
    %2922 = vmatprep.subr.bf16.mxu0 0
    %2923 = vmatpush1.bf16.msra.mxu0 0
    %2924 = vmatprep.mubr.bf16.mxu0 0
    %2925 = vmatmul.mubr.bf16.gmra.mrb[0].mxu0 %v2153
    %v2926 = vpop.f32.mrb[0].mxu0
    %v2927 = vadd.f32 %v2862, %v2926
    %v2928 = vpop.f32.mrb[0].mxu0
    %v2929 = vpop.f32.mrb[0].mxu0
    %v2930 = vadd.f32 %v2865, %v2929
    %v2931 = vpop.f32.mrb[0].mxu0
    %2932 = vmatprep.mubr.bf16.mxu0 0
    %2933 = vmatmul.mubr.bf16.gmra.mrb[0].mxu0 %v2156
    %v2934 = vpop.f32.mrb[0].mxu0
    %v2935 = vadd.f32 %v2870, %v2934
    %v2936 = vpop.f32.mrb[0].mxu0
    %v2937 = vpop.f32.mrb[0].mxu0
    %v2938 = vadd.f32 %v2873, %v2937
    %v2939 = vpop.f32.mrb[0].mxu0
    %2940 = vmatprep.mubr.bf16.mxu0 0
    %2941 = vmatmul.mubr.bf16.gmra.mrb[0].mxu0 %v2159
    %v2942 = vpop.f32.mrb[0].mxu0
    %v2943 = vadd.f32 %v2878, %v2942
    %v2944 = vpop.f32.mrb[0].mxu0
    %v2945 = vpop.f32.mrb[0].mxu0
    %v2946 = vadd.f32 %v2881, %v2945
    %v2947 = vpop.f32.mrb[0].mxu0
    %2948 = vmatprep.mubr.bf16.mxu0 0
    %2949 = vmatmul.mubr.bf16.gmra.mrb[0].mxu0 %v2162
    %v2950 = vpop.f32.mrb[0].mxu0
    %v2951 = vadd.f32 %v2886, %v2950
    %v2952 = vpop.f32.mrb[0].mxu0
    %v2953 = vpop.f32.mrb[0].mxu0
    %v2954 = vadd.f32 %v2889, %v2953
    %v2955 = vpop.f32.mrb[0].mxu0
    %2956 = vdwg.mxu0
    %v2957 = vld [vmem:[%s2064 + $0x30] sm:$0xff]
    %v2958 = vld [vmem:[%s2064 + $0x38] sm:$0xff]
    %v2959 = vld [vmem:[%s2064 + $0x40] sm:$0xff]
    %v2960 = vld [vmem:[%s2064 + $0x48] sm:$0xff]
    %v2961 = vld [vmem:[%s2064 + $0x50] sm:$0xff]
    %v2962 = vld [vmem:[%s2064 + $0x58] sm:$0xff]
    %v2963 = vld [vmem:[%s2074 + $0x30] sm:$0xff]
    %v2964 = vld [vmem:[%s2074 + $0x38] sm:$0xff]
    %v2965 = vld [vmem:[%s2074 + $0x40] sm:$0xff]
    %v2966 = vld [vmem:[%s2074 + $0x48] sm:$0xff]
    %v2967 = vld [vmem:[%s2074 + $0x50] sm:$0xff]
    %v2968 = vld [vmem:[%s2074 + $0x58] sm:$0xff]
    %v2969 = vld [vmem:[%s2084 + $0x30] sm:$0xff]
    %v2970 = vld [vmem:[%s2084 + $0x38] sm:$0xff]
    %v2971 = vld [vmem:[%s2084 + $0x40] sm:$0xff]
    %v2972 = vld [vmem:[%s2084 + $0x48] sm:$0xff]
    %v2973 = vld [vmem:[%s2084 + $0x50] sm:$0xff]
    %v2974 = vld [vmem:[%s2084 + $0x58] sm:$0xff]
    %2975 = vmatprep.subr.bf16.mxu0 0
    %2976 = vmatpush1.bf16.msra.mxu0 %v2957
    %2977 = vmatprep.subr.bf16.mxu0 0
    %2978 = vmatpush1.bf16.msra.mxu0 %v2958
    %2979 = vmatprep.subr.bf16.mxu0 0
    %2980 = vmatpush1.bf16.msra.mxu0 %v2959
    %2981 = vmatprep.subr.bf16.mxu0 0
    %2982 = vmatpush1.bf16.msra.mxu0 %v2960
    %2983 = vmatprep.subr.bf16.mxu0 0
    %2984 = vmatpush1.bf16.msra.mxu0 %v2961
    %2985 = vmatprep.subr.bf16.mxu0 0
    %2986 = vmatpush1.bf16.msra.mxu0 %v2962
    %2987 = vmatprep.subr.bf16.mxu0 0
    %2988 = vmatpush1.bf16.msra.mxu0 %v2963
    %2989 = vmatprep.subr.bf16.mxu0 0
    %2990 = vmatpush1.bf16.msra.mxu0 %v2964
    %2991 = vmatprep.subr.bf16.mxu0 0
    %2992 = vmatpush1.bf16.msra.mxu0 %v2965
    %2993 = vmatprep.subr.bf16.mxu0 0
    %2994 = vmatpush1.bf16.msra.mxu0 %v2966
    %2995 = vmatprep.subr.bf16.mxu0 0
    %2996 = vmatpush1.bf16.msra.mxu0 %v2967
    %2997 = vmatprep.subr.bf16.mxu0 0
    %2998 = vmatpush1.bf16.msra.mxu0 %v2968
    %2999 = vmatprep.subr.bf16.mxu0 0
    %3000 = vmatpush1.bf16.msra.mxu0 %v2969
    %3001 = vmatprep.subr.bf16.mxu0 0
    %3002 = vmatpush1.bf16.msra.mxu0 %v2970
    %3003 = vmatprep.subr.bf16.mxu0 0
    %3004 = vmatpush1.bf16.msra.mxu0 %v2971
    %3005 = vmatprep.subr.bf16.mxu0 0
    %3006 = vmatpush1.bf16.msra.mxu0 %v2972
    %3007 = vmatprep.mubr.bf16.mxu0 %v2132
    %3008 = vmatmul.mubr.bf16.gmra.mrb[0].mxu0 %v2131
    %v3009 = vpop.f32.mrb[0].mxu0
    %v3010 = vadd.f32 0.0, %v3009
    %v3011 = vpop.f32.mrb[0].mxu0
    %v3012 = vpop.f32.mrb[0].mxu0
    %v3013 = vadd.f32 0.0, %v3012
    %v3014 = vpop.f32.mrb[0].mxu0
    %3015 = vmatprep.mubr.bf16.mxu0 %v2135
    %3016 = vmatmul.mubr.bf16.gmra.mrb[0].mxu0 %v2134
    %v3017 = vpop.f32.mrb[0].mxu0
    %v3018 = vadd.f32 0.0, %v3017
    %v3019 = vpop.f32.mrb[0].mxu0
    %v3020 = vpop.f32.mrb[0].mxu0
    %v3021 = vadd.f32 0.0, %v3020
    %v3022 = vpop.f32.mrb[0].mxu0
    %3023 = vmatprep.mubr.bf16.mxu0 %v2138
    %3024 = vmatmul.mubr.bf16.gmra.mrb[0].mxu0 %v2137
    %v3025 = vpop.f32.mrb[0].mxu0
    %v3026 = vadd.f32 0.0, %v3025
    %v3027 = vpop.f32.mrb[0].mxu0
    %v3028 = vpop.f32.mrb[0].mxu0
    %v3029 = vadd.f32 0.0, %v3028
    %v3030 = vpop.f32.mrb[0].mxu0
    %3031 = vmatprep.mubr.bf16.mxu0 %v2141
    %3032 = vmatmul.mubr.bf16.gmra.mrb[0].mxu0 %v2140
    %v3033 = vpop.f32.mrb[0].mxu0
    %v3034 = vadd.f32 0.0, %v3033
    %v3035 = vpop.f32.mrb[0].mxu0
    %v3036 = vpop.f32.mrb[0].mxu0
    %v3037 = vadd.f32 0.0, %v3036
    %v3038 = vpop.f32.mrb[0].mxu0
    %3039 = vdwg.mxu0
    %3040 = vmatprep.subr.bf16.mxu0 0
    %3041 = vmatpush1.bf16.msra.mxu0 %v2973
    %3042 = vmatprep.subr.bf16.mxu0 0
    %3043 = vmatpush1.bf16.msra.mxu0 %v2974
    %3044 = vmatprep.subr.bf16.mxu0 0
    %3045 = vmatpush1.bf16.msra.mxu0 0
    %3046 = vmatprep.subr.bf16.mxu0 0
    %3047 = vmatpush1.bf16.msra.mxu0 0
    %3048 = vmatprep.subr.bf16.mxu0 0
    %3049 = vmatpush1.bf16.msra.mxu0 0
    %3050 = vmatprep.subr.bf16.mxu0 0
    %3051 = vmatpush1.bf16.msra.mxu0 0
    %3052 = vmatprep.subr.bf16.mxu0 0
    %3053 = vmatpush1.bf16.msra.mxu0 0
    %3054 = vmatprep.subr.bf16.mxu0 0
    %3055 = vmatpush1.bf16.msra.mxu0 0
    %3056 = vmatprep.subr.bf16.mxu0 0
    %3057 = vmatpush1.bf16.msra.mxu0 0
    %3058 = vmatprep.subr.bf16.mxu0 0
    %3059 = vmatpush1.bf16.msra.mxu0 0
    %3060 = vmatprep.subr.bf16.mxu0 0
    %3061 = vmatpush1.bf16.msra.mxu0 0
    %3062 = vmatprep.subr.bf16.mxu0 0
    %3063 = vmatpush1.bf16.msra.mxu0 0
    %3064 = vmatprep.subr.bf16.mxu0 0
    %3065 = vmatpush1.bf16.msra.mxu0 0
    %3066 = vmatprep.subr.bf16.mxu0 0
    %3067 = vmatpush1.bf16.msra.mxu0 0
    %3068 = vmatprep.subr.bf16.mxu0 0
    %3069 = vmatpush1.bf16.msra.mxu0 0
    %3070 = vmatprep.subr.bf16.mxu0 0
    %3071 = vmatpush1.bf16.msra.mxu0 0
    %3072 = vmatprep.mubr.bf16.mxu0 0
    %3073 = vmatmul.mubr.bf16.gmra.mrb[0].mxu0 %v2153
    %v3074 = vpop.f32.mrb[0].mxu0
    %v3075 = vadd.f32 %v3010, %v3074
    %v3076 = vpop.f32.mrb[0].mxu0
    %v3077 = vpop.f32.mrb[0].mxu0
    %v3078 = vadd.f32 %v3013, %v3077
    %v3079 = vpop.f32.mrb[0].mxu0
    %3080 = vmatprep.mubr.bf16.mxu0 0
    %3081 = vmatmul.mubr.bf16.gmra.mrb[0].mxu0 %v2156
    %v3082 = vpop.f32.mrb[0].mxu0
    %v3083 = vadd.f32 %v3018, %v3082
    %v3084 = vpop.f32.mrb[0].mxu0
    %v3085 = vpop.f32.mrb[0].mxu0
    %v3086 = vadd.f32 %v3021, %v3085
    %v3087 = vpop.f32.mrb[0].mxu0
    %3088 = vmatprep.mubr.bf16.mxu0 0
    %3089 = vmatmul.mubr.bf16.gmra.mrb[0].mxu0 %v2159
    %v3090 = vpop.f32.mrb[0].mxu0
    %v3091 = vadd.f32 %v3026, %v3090
    %v3092 = vpop.f32.mrb[0].mxu0
    %v3093 = vpop.f32.mrb[0].mxu0
    %v3094 = vadd.f32 %v3029, %v3093
    %v3095 = vpop.f32.mrb[0].mxu0
    %3096 = vmatprep.mubr.bf16.mxu0 0
    %3097 = vmatmul.mubr.bf16.gmra.mrb[0].mxu0 %v2162
    %v3098 = vpop.f32.mrb[0].mxu0
    %v3099 = vadd.f32 %v3034, %v3098
    %v3100 = vpop.f32.mrb[0].mxu0
    %v3101 = vpop.f32.mrb[0].mxu0
    %v3102 = vadd.f32 %v3037, %v3101
    %v3103 = vpop.f32.mrb[0].mxu0
    %3104 = vdwg.mxu0
    %v3105 = vmax.f32 %v2927, %v3075
    %v3106 = vmax.f32 %v2930, %v3078
    %v3107 = vmax.f32 %v2935, %v3083
    %v3108 = vmax.f32 %v2938, %v3086
    %v3109 = vmax.f32 %v2943, %v3091
    %v3110 = vmax.f32 %v2946, %v3094
    %v3111 = vmax.f32 %v2951, %v3099
    %v3112 = vmax.f32 %v2954, %v3102
    %v3113 = vld [vmem:[%s2453 + $0x20] sm:$0xff]
    %v3114 = vld [vmem:[%s2453 + $0x28] sm:$0xff]
    %v3115 = vld [vmem:[%s2453 + $0x30] sm:$0xff]
    %v3116 = vld [vmem:[%s2453 + $0x38] sm:$0xff]
    %v3117 = vld [vmem:[%s2453 + $0x40] sm:$0xff]
    %v3118 = vld [vmem:[%s2453 + $0x48] sm:$0xff]
    %3119 = vmatprep.subr.bf16.mxu0 0
    %3120 = vmatpush1.bf16.msra.mxu0 %v2815
    %3121 = vmatprep.subr.bf16.mxu0 0
    %3122 = vmatpush1.bf16.msra.mxu0 %v2816
    %3123 = vmatprep.subr.bf16.mxu0 0
    %3124 = vmatpush1.bf16.msra.mxu0 %v2817
    %3125 = vmatprep.subr.bf16.mxu0 0
    %3126 = vmatpush1.bf16.msra.mxu0 %v2818
    %3127 = vmatprep.subr.bf16.mxu0 0
    %3128 = vmatpush1.bf16.msra.mxu0 %v2819
    %3129 = vmatprep.subr.bf16.mxu0 0
    %3130 = vmatpush1.bf16.msra.mxu0 %v2820
    %3131 = vmatprep.subr.bf16.mxu0 0
    %3132 = vmatpush1.bf16.msra.mxu0 %v2821
    %3133 = vmatprep.subr.bf16.mxu0 0
    %3134 = vmatpush1.bf16.msra.mxu0 %v2822
    %3135 = vmatprep.subr.bf16.mxu0 0
    %3136 = vmatpush1.bf16.msra.mxu0 %v2823
    %3137 = vmatprep.subr.bf16.mxu0 0
    %3138 = vmatpush1.bf16.msra.mxu0 %v2824
    %3139 = vmatprep.subr.bf16.mxu0 0
    %3140 = vmatpush1.bf16.msra.mxu0 %v2825
    %3141 = vmatprep.subr.bf16.mxu0 0
    %3142 = vmatpush1.bf16.msra.mxu0 %v2826
    %3143 = vmatprep.subr.bf16.mxu0 0
    %3144 = vmatpush1.bf16.msra.mxu0 %v3113
    %3145 = vmatprep.subr.bf16.mxu0 0
    %3146 = vmatpush1.bf16.msra.mxu0 %v3114
    %3147 = vmatprep.subr.bf16.mxu0 0
    %3148 = vmatpush1.bf16.msra.mxu0 %v3115
    %3149 = vmatprep.subr.bf16.mxu0 0
    %3150 = vmatpush1.bf16.msra.mxu0 %v3116
    %3151 = vmatprep.mubr.bf16.mxu0 %v2132
    %3152 = vmatmul.mubr.bf16.gmra.mrb[0].mxu0 %v2131
    %v3153 = vpop.f32.mrb[0].mxu0
    %v3154 = vadd.f32 0.0, %v3153
    %v3155 = vpop.f32.mrb[0].mxu0
    %v3156 = vpop.f32.mrb[0].mxu0
    %v3157 = vadd.f32 0.0, %v3156
    %v3158 = vpop.f32.mrb[0].mxu0
    %3159 = vmatprep.mubr.bf16.mxu0 %v2135
    %3160 = vmatmul.mubr.bf16.gmra.mrb[0].mxu0 %v2134
    %v3161 = vpop.f32.mrb[0].mxu0
    %v3162 = vadd.f32 0.0, %v3161
    %v3163 = vpop.f32.mrb[0].mxu0
    %v3164 = vpop.f32.mrb[0].mxu0
    %v3165 = vadd.f32 0.0, %v3164
    %v3166 = vpop.f32.mrb[0].mxu0
    %3167 = vmatprep.mubr.bf16.mxu0 %v2138
    %3168 = vmatmul.mubr.bf16.gmra.mrb[0].mxu0 %v2137
    %v3169 = vpop.f32.mrb[0].mxu0
    %v3170 = vadd.f32 0.0, %v3169
    %v3171 = vpop.f32.mrb[0].mxu0
    %v3172 = vpop.f32.mrb[0].mxu0
    %v3173 = vadd.f32 0.0, %v3172
    %v3174 = vpop.f32.mrb[0].mxu0
    %3175 = vmatprep.mubr.bf16.mxu0 %v2141
    %3176 = vmatmul.mubr.bf16.gmra.mrb[0].mxu0 %v2140
    %v3177 = vpop.f32.mrb[0].mxu0
    %v3178 = vadd.f32 0.0, %v3177
    %v3179 = vpop.f32.mrb[0].mxu0
    %v3180 = vpop.f32.mrb[0].mxu0
    %v3181 = vadd.f32 0.0, %v3180
    %v3182 = vpop.f32.mrb[0].mxu0
    %3183 = vdwg.mxu0
    %3184 = vmatprep.subr.bf16.mxu0 0
    %3185 = vmatpush1.bf16.msra.mxu0 %v3117
    %3186 = vmatprep.subr.bf16.mxu0 0
    %3187 = vmatpush1.bf16.msra.mxu0 %v3118
    %3188 = vmatprep.subr.bf16.mxu0 0
    %3189 = vmatpush1.bf16.msra.mxu0 0
    %3190 = vmatprep.subr.bf16.mxu0 0
    %3191 = vmatpush1.bf16.msra.mxu0 0
    %3192 = vmatprep.subr.bf16.mxu0 0
    %3193 = vmatpush1.bf16.msra.mxu0 0
    %3194 = vmatprep.subr.bf16.mxu0 0
    %3195 = vmatpush1.bf16.msra.mxu0 0
    %3196 = vmatprep.subr.bf16.mxu0 0
    %3197 = vmatpush1.bf16.msra.mxu0 0
    %3198 = vmatprep.subr.bf16.mxu0 0
    %3199 = vmatpush1.bf16.msra.mxu0 0
    %3200 = vmatprep.subr.bf16.mxu0 0
    %3201 = vmatpush1.bf16.msra.mxu0 0
    %3202 = vmatprep.subr.bf16.mxu0 0
    %3203 = vmatpush1.bf16.msra.mxu0 0
    %3204 = vmatprep.subr.bf16.mxu0 0
    %3205 = vmatpush1.bf16.msra.mxu0 0
    %3206 = vmatprep.subr.bf16.mxu0 0
    %3207 = vmatpush1.bf16.msra.mxu0 0
    %3208 = vmatprep.subr.bf16.mxu0 0
    %3209 = vmatpush1.bf16.msra.mxu0 0
    %3210 = vmatprep.subr.bf16.mxu0 0
    %3211 = vmatpush1.bf16.msra.mxu0 0
    %3212 = vmatprep.subr.bf16.mxu0 0
    %3213 = vmatpush1.bf16.msra.mxu0 0
    %3214 = vmatprep.subr.bf16.mxu0 0
    %3215 = vmatpush1.bf16.msra.mxu0 0
    %3216 = vmatprep.mubr.bf16.mxu0 0
    %3217 = vmatmul.mubr.bf16.gmra.mrb[0].mxu0 %v2153
    %v3218 = vpop.f32.mrb[0].mxu0
    %v3219 = vadd.f32 %v3154, %v3218
    %v3220 = vpop.f32.mrb[0].mxu0
    %v3221 = vpop.f32.mrb[0].mxu0
    %v3222 = vadd.f32 %v3157, %v3221
    %v3223 = vpop.f32.mrb[0].mxu0
    %3224 = vmatprep.mubr.bf16.mxu0 0
    %3225 = vmatmul.mubr.bf16.gmra.mrb[0].mxu0 %v2156
    %v3226 = vpop.f32.mrb[0].mxu0
    %v3227 = vadd.f32 %v3162, %v3226
    %v3228 = vpop.f32.mrb[0].mxu0
    %v3229 = vpop.f32.mrb[0].mxu0
    %v3230 = vadd.f32 %v3165, %v3229
    %v3231 = vpop.f32.mrb[0].mxu0
    %3232 = vmatprep.mubr.bf16.mxu0 0
    %3233 = vmatmul.mubr.bf16.gmra.mrb[0].mxu0 %v2159
    %v3234 = vpop.f32.mrb[0].mxu0
    %v3235 = vadd.f32 %v3170, %v3234
    %v3236 = vpop.f32.mrb[0].mxu0
    %v3237 = vpop.f32.mrb[0].mxu0
    %v3238 = vadd.f32 %v3173, %v3237
    %v3239 = vpop.f32.mrb[0].mxu0
    %3240 = vmatprep.mubr.bf16.mxu0 0
    %3241 = vmatmul.mubr.bf16.gmra.mrb[0].mxu0 %v2162
    %v3242 = vpop.f32.mrb[0].mxu0
    %v3243 = vadd.f32 %v3178, %v3242
    %v3244 = vpop.f32.mrb[0].mxu0
    %v3245 = vpop.f32.mrb[0].mxu0
    %v3246 = vadd.f32 %v3181, %v3245
    %v3247 = vpop.f32.mrb[0].mxu0
    %3248 = vdwg.mxu0
    %v3249 = vmax.f32 %v3105, %v3219
    %v3250 = vmax.f32 %v3106, %v3222
    %v3251 = vmax.f32 %v3107, %v3227
    %v3252 = vmax.f32 %v3108, %v3230
    %v3253 = vmax.f32 %v3109, %v3235
    %v3254 = vmax.f32 %v3110, %v3238
    %v3255 = vmax.f32 %v3111, %v3243
    %v3256 = vmax.f32 %v3112, %v3246
    %v3257 = vld [vmem:[%s2453 + $0x30] sm:$0xff]
    %v3258 = vld [vmem:[%s2453 + $0x38] sm:$0xff]
    %v3259 = vld [vmem:[%s2453 + $0x40] sm:$0xff]
    %v3260 = vld [vmem:[%s2453 + $0x48] sm:$0xff]
    %v3261 = vld [vmem:[%s2453 + $0x50] sm:$0xff]
    %v3262 = vld [vmem:[%s2453 + $0x58] sm:$0xff]
    %3263 = vmatprep.subr.bf16.mxu0 0
    %3264 = vmatpush1.bf16.msra.mxu0 %v2963
    %3265 = vmatprep.subr.bf16.mxu0 0
    %3266 = vmatpush1.bf16.msra.mxu0 %v2964
    %3267 = vmatprep.subr.bf16.mxu0 0
    %3268 = vmatpush1.bf16.msra.mxu0 %v2965
    %3269 = vmatprep.subr.bf16.mxu0 0
    %3270 = vmatpush1.bf16.msra.mxu0 %v2966
    %3271 = vmatprep.subr.bf16.mxu0 0
    %3272 = vmatpush1.bf16.msra.mxu0 %v2967
    %3273 = vmatprep.subr.bf16.mxu0 0
    %3274 = vmatpush1.bf16.msra.mxu0 %v2968
    %3275 = vmatprep.subr.bf16.mxu0 0
    %3276 = vmatpush1.bf16.msra.mxu0 %v2969
    %3277 = vmatprep.subr.bf16.mxu0 0
    %3278 = vmatpush1.bf16.msra.mxu0 %v2970
    %3279 = vmatprep.subr.bf16.mxu0 0
    %3280 = vmatpush1.bf16.msra.mxu0 %v2971
    %3281 = vmatprep.subr.bf16.mxu0 0
    %3282 = vmatpush1.bf16.msra.mxu0 %v2972
    %3283 = vmatprep.subr.bf16.mxu0 0
    %3284 = vmatpush1.bf16.msra.mxu0 %v2973
    %3285 = vmatprep.subr.bf16.mxu0 0
    %3286 = vmatpush1.bf16.msra.mxu0 %v2974
    %3287 = vmatprep.subr.bf16.mxu0 0
    %3288 = vmatpush1.bf16.msra.mxu0 %v3257
    %3289 = vmatprep.subr.bf16.mxu0 0
    %3290 = vmatpush1.bf16.msra.mxu0 %v3258
    %3291 = vmatprep.subr.bf16.mxu0 0
    %3292 = vmatpush1.bf16.msra.mxu0 %v3259
    %3293 = vmatprep.subr.bf16.mxu0 0
    %3294 = vmatpush1.bf16.msra.mxu0 %v3260
    %3295 = vmatprep.mubr.bf16.mxu0 %v2132
    %3296 = vmatmul.mubr.bf16.gmra.mrb[0].mxu0 %v2131
    %v3297 = vpop.f32.mrb[0].mxu0
    %v3298 = vadd.f32 0.0, %v3297
    %v3299 = vpop.f32.mrb[0].mxu0
    %v3300 = vpop.f32.mrb[0].mxu0
    %v3301 = vadd.f32 0.0, %v3300
    %v3302 = vpop.f32.mrb[0].mxu0
    %3303 = vmatprep.mubr.bf16.mxu0 %v2135
    %3304 = vmatmul.mubr.bf16.gmra.mrb[0].mxu0 %v2134
    %v3305 = vpop.f32.mrb[0].mxu0
    %v3306 = vadd.f32 0.0, %v3305
    %v3307 = vpop.f32.mrb[0].mxu0
    %v3308 = vpop.f32.mrb[0].mxu0
    %v3309 = vadd.f32 0.0, %v3308
    %v3310 = vpop.f32.mrb[0].mxu0
    %3311 = vmatprep.mubr.bf16.mxu0 %v2138
    %3312 = vmatmul.mubr.bf16.gmra.mrb[0].mxu0 %v2137
    %v3313 = vpop.f32.mrb[0].mxu0
    %v3314 = vadd.f32 0.0, %v3313
    %v3315 = vpop.f32.mrb[0].mxu0
    %v3316 = vpop.f32.mrb[0].mxu0
    %v3317 = vadd.f32 0.0, %v3316
    %v3318 = vpop.f32.mrb[0].mxu0
    %3319 = vmatprep.mubr.bf16.mxu0 %v2141
    %3320 = vmatmul.mubr.bf16.gmra.mrb[0].mxu0 %v2140
    %v3321 = vpop.f32.mrb[0].mxu0
    %v3322 = vadd.f32 0.0, %v3321
    %v3323 = vpop.f32.mrb[0].mxu0
    %v3324 = vpop.f32.mrb[0].mxu0
    %v3325 = vadd.f32 0.0, %v3324
    %v3326 = vpop.f32.mrb[0].mxu0
    %3327 = vdwg.mxu0
    %3328 = vmatprep.subr.bf16.mxu0 0
    %3329 = vmatpush1.bf16.msra.mxu0 %v3261
    %3330 = vmatprep.subr.bf16.mxu0 0
    %3331 = vmatpush1.bf16.msra.mxu0 %v3262
    %3332 = vmatprep.subr.bf16.mxu0 0
    %3333 = vmatpush1.bf16.msra.mxu0 0
    %3334 = vmatprep.subr.bf16.mxu0 0
    %3335 = vmatpush1.bf16.msra.mxu0 0
    %3336 = vmatprep.subr.bf16.mxu0 0
    %3337 = vmatpush1.bf16.msra.mxu0 0
    %3338 = vmatprep.subr.bf16.mxu0 0
    %3339 = vmatpush1.bf16.msra.mxu0 0
    %3340 = vmatprep.subr.bf16.mxu0 0
    %3341 = vmatpush1.bf16.msra.mxu0 0
    %3342 = vmatprep.subr.bf16.mxu0 0
    %3343 = vmatpush1.bf16.msra.mxu0 0
    %3344 = vmatprep.subr.bf16.mxu0 0
    %3345 = vmatpush1.bf16.msra.mxu0 0
    %3346 = vmatprep.subr.bf16.mxu0 0
    %3347 = vmatpush1.bf16.msra.mxu0 0
    %3348 = vmatprep.subr.bf16.mxu0 0
    %3349 = vmatpush1.bf16.msra.mxu0 0
    %3350 = vmatprep.subr.bf16.mxu0 0
    %3351 = vmatpush1.bf16.msra.mxu0 0
    %3352 = vmatprep.subr.bf16.mxu0 0
    %3353 = vmatpush1.bf16.msra.mxu0 0
    %3354 = vmatprep.subr.bf16.mxu0 0
    %3355 = vmatpush1.bf16.msra.mxu0 0
    %3356 = vmatprep.subr.bf16.mxu0 0
    %3357 = vmatpush1.bf16.msra.mxu0 0
    %3358 = vmatprep.subr.bf16.mxu0 0
    %3359 = vmatpush1.bf16.msra.mxu0 0
    %3360 = vmatprep.mubr.bf16.mxu0 0
    %3361 = vmatmul.mubr.bf16.gmra.mrb[0].mxu0 %v2153
    %v3362 = vpop.f32.mrb[0].mxu0
    %v3363 = vadd.f32 %v3298, %v3362
    %v3364 = vpop.f32.mrb[0].mxu0
    %v3365 = vpop.f32.mrb[0].mxu0
    %v3366 = vadd.f32 %v3301, %v3365
    %v3367 = vpop.f32.mrb[0].mxu0
    %3368 = vmatprep.mubr.bf16.mxu0 0
    %3369 = vmatmul.mubr.bf16.gmra.mrb[0].mxu0 %v2156
    %v3370 = vpop.f32.mrb[0].mxu0
    %v3371 = vadd.f32 %v3306, %v3370
    %v3372 = vpop.f32.mrb[0].mxu0
    %v3373 = vpop.f32.mrb[0].mxu0
    %v3374 = vadd.f32 %v3309, %v3373
    %v3375 = vpop.f32.mrb[0].mxu0
    %3376 = vmatprep.mubr.bf16.mxu0 0
    %3377 = vmatmul.mubr.bf16.gmra.mrb[0].mxu0 %v2159
    %v3378 = vpop.f32.mrb[0].mxu0
    %v3379 = vadd.f32 %v3314, %v3378
    %v3380 = vpop.f32.mrb[0].mxu0
    %v3381 = vpop.f32.mrb[0].mxu0
    %v3382 = vadd.f32 %v3317, %v3381
    %v3383 = vpop.f32.mrb[0].mxu0
    %3384 = vmatprep.mubr.bf16.mxu0 0
    %3385 = vmatmul.mubr.bf16.gmra.mrb[0].mxu0 %v2162
    %v3386 = vpop.f32.mrb[0].mxu0
    %v3387 = vadd.f32 %v3322, %v3386
    %v3388 = vpop.f32.mrb[0].mxu0
    %v3389 = vpop.f32.mrb[0].mxu0
    %v3390 = vadd.f32 %v3325, %v3389
    %v3391 = vpop.f32.mrb[0].mxu0
    %3392 = vdwg.mxu0
    %v3393 = vmax.f32 %v3249, %v3363
    %v3394 = vmax.f32 %v3250, %v3366
    %v3395 = vmax.f32 %v3251, %v3371
    %v3396 = vmax.f32 %v3252, %v3374
    %v3397 = vmax.f32 %v3253, %v3379
    %v3398 = vmax.f32 %v3254, %v3382
    %v3399 = vmax.f32 %v3255, %v3387
    %v3400 = vmax.f32 %v3256, %v3390
    %v3401 = vadd.f32 %v3393, %v2745
    %v3402 = vadd.f32 %v3394, %v2750
    %v3403 = vadd.f32 %v3395, %v2755
    %v3404 = vadd.f32 %v3396, %v2760
    %v3405 = vadd.f32 %v3397, %v2765
    %v3406 = vadd.f32 %v3398, %v2770
    %v3407 = vadd.f32 %v3399, %v2775
    %v3408 = vadd.f32 %v3400, %v2780
    %v3409 = vmax.f32 %v3401, 0.0
    %v3410 = vmax.f32 %v3402, 0.0
    %v3411 = vmax.f32 %v3403, 0.0
    %v3412 = vmax.f32 %v3404, 0.0
    %v3413 = vmax.f32 %v3405, 0.0
    %v3414 = vmax.f32 %v3406, 0.0
    %v3415 = vmax.f32 %v3407, 0.0
    %v3416 = vmax.f32 %v3408, 0.0
    %v3417 = vpack.c.bf16 %v3410, %v3409
    %v3418 = vpack.c.bf16 %v3412, %v3411
    %v3419 = vpack.c.bf16 %v3414, %v3413
    %v3420 = vpack.c.bf16 %v3416, %v3415
    %3421 = vst [vmem:[%s2804 + $0x20] sm:$0xff] %v3417
    %3422 = vst [vmem:[%s2804 + $0x28] sm:$0xff] %v3418
    %3423 = vst [vmem:[%s2804 + $0x30] sm:$0xff] %v3419
    %3424 = vst [vmem:[%s2804 + $0x38] sm:$0xff] %v3420
    %v3425 = vld [vmem:[%s2064 + $0x40] sm:$0xff]
    %v3426 = vld [vmem:[%s2064 + $0x48] sm:$0xff]
    %v3427 = vld [vmem:[%s2064 + $0x50] sm:$0xff]
    %v3428 = vld [vmem:[%s2064 + $0x58] sm:$0xff]
    %v3429 = vld [vmem:[%s2064 + $0x60] sm:$0xff]
    %v3430 = vld [vmem:[%s2064 + $0x68] sm:$0xff]
    %v3431 = vld [vmem:[%s2074 + $0x40] sm:$0xff]
    %v3432 = vld [vmem:[%s2074 + $0x48] sm:$0xff]
    %v3433 = vld [vmem:[%s2074 + $0x50] sm:$0xff]
    %v3434 = vld [vmem:[%s2074 + $0x58] sm:$0xff]
    %v3435 = vld [vmem:[%s2074 + $0x60] sm:$0xff]
    %v3436 = vld [vmem:[%s2074 + $0x68] sm:$0xff]
    %v3437 = vld [vmem:[%s2084 + $0x40] sm:$0xff]
    %v3438 = vld [vmem:[%s2084 + $0x48] sm:$0xff]
    %v3439 = vld [vmem:[%s2084 + $0x50] sm:$0xff]
    %v3440 = vld [vmem:[%s2084 + $0x58] sm:$0xff]
    %v3441 = vld [vmem:[%s2084 + $0x60] sm:$0xff]
    %v3442 = vld [vmem:[%s2084 + $0x68] sm:$0xff]
    %3443 = vmatprep.subr.bf16.mxu0 0
    %3444 = vmatpush1.bf16.msra.mxu0 %v3425
    %3445 = vmatprep.subr.bf16.mxu0 0
    %3446 = vmatpush1.bf16.msra.mxu0 %v3426
    %3447 = vmatprep.subr.bf16.mxu0 0
    %3448 = vmatpush1.bf16.msra.mxu0 %v3427
    %3449 = vmatprep.subr.bf16.mxu0 0
    %3450 = vmatpush1.bf16.msra.mxu0 %v3428
    %3451 = vmatprep.subr.bf16.mxu0 0
    %3452 = vmatpush1.bf16.msra.mxu0 %v3429
    %3453 = vmatprep.subr.bf16.mxu0 0
    %3454 = vmatpush1.bf16.msra.mxu0 %v3430
    %3455 = vmatprep.subr.bf16.mxu0 0
    %3456 = vmatpush1.bf16.msra.mxu0 %v3431
    %3457 = vmatprep.subr.bf16.mxu0 0
    %3458 = vmatpush1.bf16.msra.mxu0 %v3432
    %3459 = vmatprep.subr.bf16.mxu0 0
    %3460 = vmatpush1.bf16.msra.mxu0 %v3433
    %3461 = vmatprep.subr.bf16.mxu0 0
    %3462 = vmatpush1.bf16.msra.mxu0 %v3434
    %3463 = vmatprep.subr.bf16.mxu0 0
    %3464 = vmatpush1.bf16.msra.mxu0 %v3435
    %3465 = vmatprep.subr.bf16.mxu0 0
    %3466 = vmatpush1.bf16.msra.mxu0 %v3436
    %3467 = vmatprep.subr.bf16.mxu0 0
    %3468 = vmatpush1.bf16.msra.mxu0 %v3437
    %3469 = vmatprep.subr.bf16.mxu0 0
    %3470 = vmatpush1.bf16.msra.mxu0 %v3438
    %3471 = vmatprep.subr.bf16.mxu0 0
    %3472 = vmatpush1.bf16.msra.mxu0 %v3439
    %3473 = vmatprep.subr.bf16.mxu0 0
    %3474 = vmatpush1.bf16.msra.mxu0 %v3440
    %3475 = vmatprep.mubr.bf16.mxu0 %v2132
    %3476 = vmatmul.mubr.bf16.gmra.mrb[0].mxu0 %v2131
    %v3477 = vpop.f32.mrb[0].mxu0
    %v3478 = vadd.f32 0.0, %v3477
    %v3479 = vpop.f32.mrb[0].mxu0
    %v3480 = vpop.f32.mrb[0].mxu0
    %v3481 = vadd.f32 0.0, %v3480
    %v3482 = vpop.f32.mrb[0].mxu0
    %3483 = vmatprep.mubr.bf16.mxu0 %v2135
    %3484 = vmatmul.mubr.bf16.gmra.mrb[0].mxu0 %v2134
    %v3485 = vpop.f32.mrb[0].mxu0
    %v3486 = vadd.f32 0.0, %v3485
    %v3487 = vpop.f32.mrb[0].mxu0
    %v3488 = vpop.f32.mrb[0].mxu0
    %v3489 = vadd.f32 0.0, %v3488
    %v3490 = vpop.f32.mrb[0].mxu0
    %3491 = vmatprep.mubr.bf16.mxu0 %v2138
    %3492 = vmatmul.mubr.bf16.gmra.mrb[0].mxu0 %v2137
    %v3493 = vpop.f32.mrb[0].mxu0
    %v3494 = vadd.f32 0.0, %v3493
    %v3495 = vpop.f32.mrb[0].mxu0
    %v3496 = vpop.f32.mrb[0].mxu0
    %v3497 = vadd.f32 0.0, %v3496
    %v3498 = vpop.f32.mrb[0].mxu0
    %3499 = vmatprep.mubr.bf16.mxu0 %v2141
    %3500 = vmatmul.mubr.bf16.gmra.mrb[0].mxu0 %v2140
    %v3501 = vpop.f32.mrb[0].mxu0
    %v3502 = vadd.f32 0.0, %v3501
    %v3503 = vpop.f32.mrb[0].mxu0
    %v3504 = vpop.f32.mrb[0].mxu0
    %v3505 = vadd.f32 0.0, %v3504
    %v3506 = vpop.f32.mrb[0].mxu0
    %3507 = vdwg.mxu0
    %3508 = vmatprep.subr.bf16.mxu0 0
    %3509 = vmatpush1.bf16.msra.mxu0 %v3441
    %3510 = vmatprep.subr.bf16.mxu0 0
    %3511 = vmatpush1.bf16.msra.mxu0 %v3442
    %3512 = vmatprep.subr.bf16.mxu0 0
    %3513 = vmatpush1.bf16.msra.mxu0 0
    %3514 = vmatprep.subr.bf16.mxu0 0
    %3515 = vmatpush1.bf16.msra.mxu0 0
    %3516 = vmatprep.subr.bf16.mxu0 0
    %3517 = vmatpush1.bf16.msra.mxu0 0
    %3518 = vmatprep.subr.bf16.mxu0 0
    %3519 = vmatpush1.bf16.msra.mxu0 0
    %3520 = vmatprep.subr.bf16.mxu0 0
    %3521 = vmatpush1.bf16.msra.mxu0 0
    %3522 = vmatprep.subr.bf16.mxu0 0
    %3523 = vmatpush1.bf16.msra.mxu0 0
    %3524 = vmatprep.subr.bf16.mxu0 0
    %3525 = vmatpush1.bf16.msra.mxu0 0
    %3526 = vmatprep.subr.bf16.mxu0 0
    %3527 = vmatpush1.bf16.msra.mxu0 0
    %3528 = vmatprep.subr.bf16.mxu0 0
    %3529 = vmatpush1.bf16.msra.mxu0 0
    %3530 = vmatprep.subr.bf16.mxu0 0
    %3531 = vmatpush1.bf16.msra.mxu0 0
    %3532 = vmatprep.subr.bf16.mxu0 0
    %3533 = vmatpush1.bf16.msra.mxu0 0
    %3534 = vmatprep.subr.bf16.mxu0 0
    %3535 = vmatpush1.bf16.msra.mxu0 0
    %3536 = vmatprep.subr.bf16.mxu0 0
    %3537 = vmatpush1.bf16.msra.mxu0 0
    %3538 = vmatprep.subr.bf16.mxu0 0
    %3539 = vmatpush1.bf16.msra.mxu0 0
    %3540 = vmatprep.mubr.bf16.mxu0 0
    %3541 = vmatmul.mubr.bf16.gmra.mrb[0].mxu0 %v2153
    %v3542 = vpop.f32.mrb[0].mxu0
    %v3543 = vadd.f32 %v3478, %v3542
    %v3544 = vpop.f32.mrb[0].mxu0
    %v3545 = vpop.f32.mrb[0].mxu0
    %v3546 = vadd.f32 %v3481, %v3545
    %v3547 = vpop.f32.mrb[0].mxu0
    %3548 = vmatprep.mubr.bf16.mxu0 0
    %3549 = vmatmul.mubr.bf16.gmra.mrb[0].mxu0 %v2156
    %v3550 = vpop.f32.mrb[0].mxu0
    %v3551 = vadd.f32 %v3486, %v3550
    %v3552 = vpop.f32.mrb[0].mxu0
    %v3553 = vpop.f32.mrb[0].mxu0
    %v3554 = vadd.f32 %v3489, %v3553
    %v3555 = vpop.f32.mrb[0].mxu0
    %3556 = vmatprep.mubr.bf16.mxu0 0
    %3557 = vmatmul.mubr.bf16.gmra.mrb[0].mxu0 %v2159
    %v3558 = vpop.f32.mrb[0].mxu0
    %v3559 = vadd.f32 %v3494, %v3558
    %v3560 = vpop.f32.mrb[0].mxu0
    %v3561 = vpop.f32.mrb[0].mxu0
    %v3562 = vadd.f32 %v3497, %v3561
    %v3563 = vpop.f32.mrb[0].mxu0
    %3564 = vmatprep.mubr.bf16.mxu0 0
    %3565 = vmatmul.mubr.bf16.gmra.mrb[0].mxu0 %v2162
    %v3566 = vpop.f32.mrb[0].mxu0
    %v3567 = vadd.f32 %v3502, %v3566
    %v3568 = vpop.f32.mrb[0].mxu0
    %v3569 = vpop.f32.mrb[0].mxu0
    %v3570 = vadd.f32 %v3505, %v3569
    %v3571 = vpop.f32.mrb[0].mxu0
    %3572 = vdwg.mxu0
    %v3573 = vld [vmem:[%s2064 + $0x50] sm:$0xff]
    %v3574 = vld [vmem:[%s2064 + $0x58] sm:$0xff]
    %v3575 = vld [vmem:[%s2064 + $0x60] sm:$0xff]
    %v3576 = vld [vmem:[%s2064 + $0x68] sm:$0xff]
    %v3577 = vld [vmem:[%s2064 + $0x70] sm:$0xff]
    %v3578 = vld [vmem:[%s2064 + $0x78] sm:$0xff]
    %v3579 = vld [vmem:[%s2074 + $0x50] sm:$0xff]
    %v3580 = vld [vmem:[%s2074 + $0x58] sm:$0xff]
    %v3581 = vld [vmem:[%s2074 + $0x60] sm:$0xff]
    %v3582 = vld [vmem:[%s2074 + $0x68] sm:$0xff]
    %v3583 = vld [vmem:[%s2074 + $0x70] sm:$0xff]
    %v3584 = vld [vmem:[%s2074 + $0x78] sm:$0xff]
    %v3585 = vld [vmem:[%s2084 + $0x50] sm:$0xff]
    %v3586 = vld [vmem:[%s2084 + $0x58] sm:$0xff]
    %v3587 = vld [vmem:[%s2084 + $0x60] sm:$0xff]
    %v3588 = vld [vmem:[%s2084 + $0x68] sm:$0xff]
    %v3589 = vld [vmem:[%s2084 + $0x70] sm:$0xff]
    %v3590 = vld [vmem:[%s2084 + $0x78] sm:$0xff]
    %3591 = vmatprep.subr.bf16.mxu0 0
    %3592 = vmatpush1.bf16.msra.mxu0 %v3573
    %3593 = vmatprep.subr.bf16.mxu0 0
    %3594 = vmatpush1.bf16.msra.mxu0 %v3574
    %3595 = vmatprep.subr.bf16.mxu0 0
    %3596 = vmatpush1.bf16.msra.mxu0 %v3575
    %3597 = vmatprep.subr.bf16.mxu0 0
    %3598 = vmatpush1.bf16.msra.mxu0 %v3576
    %3599 = vmatprep.subr.bf16.mxu0 0
    %3600 = vmatpush1.bf16.msra.mxu0 %v3577
    %3601 = vmatprep.subr.bf16.mxu0 0
    %3602 = vmatpush1.bf16.msra.mxu0 %v3578
    %3603 = vmatprep.subr.bf16.mxu0 0
    %3604 = vmatpush1.bf16.msra.mxu0 %v3579
    %3605 = vmatprep.subr.bf16.mxu0 0
    %3606 = vmatpush1.bf16.msra.mxu0 %v3580
    %3607 = vmatprep.subr.bf16.mxu0 0
    %3608 = vmatpush1.bf16.msra.mxu0 %v3581
    %3609 = vmatprep.subr.bf16.mxu0 0
    %3610 = vmatpush1.bf16.msra.mxu0 %v3582
    %3611 = vmatprep.subr.bf16.mxu0 0
    %3612 = vmatpush1.bf16.msra.mxu0 %v3583
    %3613 = vmatprep.subr.bf16.mxu0 0
    %3614 = vmatpush1.bf16.msra.mxu0 %v3584
    %3615 = vmatprep.subr.bf16.mxu0 0
    %3616 = vmatpush1.bf16.msra.mxu0 %v3585
    %3617 = vmatprep.subr.bf16.mxu0 0
    %3618 = vmatpush1.bf16.msra.mxu0 %v3586
    %3619 = vmatprep.subr.bf16.mxu0 0
    %3620 = vmatpush1.bf16.msra.mxu0 %v3587
    %3621 = vmatprep.subr.bf16.mxu0 0
    %3622 = vmatpush1.bf16.msra.mxu0 %v3588
    %3623 = vmatprep.mubr.bf16.mxu0 %v2132
    %3624 = vmatmul.mubr.bf16.gmra.mrb[0].mxu0 %v2131
    %v3625 = vpop.f32.mrb[0].mxu0
    %v3626 = vadd.f32 0.0, %v3625
    %v3627 = vpop.f32.mrb[0].mxu0
    %v3628 = vpop.f32.mrb[0].mxu0
    %v3629 = vadd.f32 0.0, %v3628
    %v3630 = vpop.f32.mrb[0].mxu0
    %3631 = vmatprep.mubr.bf16.mxu0 %v2135
    %3632 = vmatmul.mubr.bf16.gmra.mrb[0].mxu0 %v2134
    %v3633 = vpop.f32.mrb[0].mxu0
    %v3634 = vadd.f32 0.0, %v3633
    %v3635 = vpop.f32.mrb[0].mxu0
    %v3636 = vpop.f32.mrb[0].mxu0
    %v3637 = vadd.f32 0.0, %v3636
    %v3638 = vpop.f32.mrb[0].mxu0
    %3639 = vmatprep.mubr.bf16.mxu0 %v2138
    %3640 = vmatmul.mubr.bf16.gmra.mrb[0].mxu0 %v2137
    %v3641 = vpop.f32.mrb[0].mxu0
    %v3642 = vadd.f32 0.0, %v3641
    %v3643 = vpop.f32.mrb[0].mxu0
    %v3644 = vpop.f32.mrb[0].mxu0
    %v3645 = vadd.f32 0.0, %v3644
    %v3646 = vpop.f32.mrb[0].mxu0
    %3647 = vmatprep.mubr.bf16.mxu0 %v2141
    %3648 = vmatmul.mubr.bf16.gmra.mrb[0].mxu0 %v2140
    %v3649 = vpop.f32.mrb[0].mxu0
    %v3650 = vadd.f32 0.0, %v3649
    %v3651 = vpop.f32.mrb[0].mxu0
    %v3652 = vpop.f32.mrb[0].mxu0
    %v3653 = vadd.f32 0.0, %v3652
    %v3654 = vpop.f32.mrb[0].mxu0
    %3655 = vdwg.mxu0
    %3656 = vmatprep.subr.bf16.mxu0 0
    %3657 = vmatpush1.bf16.msra.mxu0 %v3589
    %3658 = vmatprep.subr.bf16.mxu0 0
    %3659 = vmatpush1.bf16.msra.mxu0 %v3590
    %3660 = vmatprep.subr.bf16.mxu0 0
    %3661 = vmatpush1.bf16.msra.mxu0 0
    %3662 = vmatprep.subr.bf16.mxu0 0
    %3663 = vmatpush1.bf16.msra.mxu0 0
    %3664 = vmatprep.subr.bf16.mxu0 0
    %3665 = vmatpush1.bf16.msra.mxu0 0
    %3666 = vmatprep.subr.bf16.mxu0 0
    %3667 = vmatpush1.bf16.msra.mxu0 0
    %3668 = vmatprep.subr.bf16.mxu0 0
    %3669 = vmatpush1.bf16.msra.mxu0 0
    %3670 = vmatprep.subr.bf16.mxu0 0
    %3671 = vmatpush1.bf16.msra.mxu0 0
    %3672 = vmatprep.subr.bf16.mxu0 0
    %3673 = vmatpush1.bf16.msra.mxu0 0
    %3674 = vmatprep.subr.bf16.mxu0 0
    %3675 = vmatpush1.bf16.msra.mxu0 0
    %3676 = vmatprep.subr.bf16.mxu0 0
    %3677 = vmatpush1.bf16.msra.mxu0 0
    %3678 = vmatprep.subr.bf16.mxu0 0
    %3679 = vmatpush1.bf16.msra.mxu0 0
    %3680 = vmatprep.subr.bf16.mxu0 0
    %3681 = vmatpush1.bf16.msra.mxu0 0
    %3682 = vmatprep.subr.bf16.mxu0 0
    %3683 = vmatpush1.bf16.msra.mxu0 0
    %3684 = vmatprep.subr.bf16.mxu0 0
    %3685 = vmatpush1.bf16.msra.mxu0 0
    %3686 = vmatprep.subr.bf16.mxu0 0
    %3687 = vmatpush1.bf16.msra.mxu0 0
    %3688 = vmatprep.mubr.bf16.mxu0 0
    %3689 = vmatmul.mubr.bf16.gmra.mrb[0].mxu0 %v2153
    %v3690 = vpop.f32.mrb[0].mxu0
    %v3691 = vadd.f32 %v3626, %v3690
    %v3692 = vpop.f32.mrb[0].mxu0
    %v3693 = vpop.f32.mrb[0].mxu0
    %v3694 = vadd.f32 %v3629, %v3693
    %v3695 = vpop.f32.mrb[0].mxu0
    %3696 = vmatprep.mubr.bf16.mxu0 0
    %3697 = vmatmul.mubr.bf16.gmra.mrb[0].mxu0 %v2156
    %v3698 = vpop.f32.mrb[0].mxu0
    %v3699 = vadd.f32 %v3634, %v3698
    %v3700 = vpop.f32.mrb[0].mxu0
    %v3701 = vpop.f32.mrb[0].mxu0
    %v3702 = vadd.f32 %v3637, %v3701
    %v3703 = vpop.f32.mrb[0].mxu0
    %3704 = vmatprep.mubr.bf16.mxu0 0
    %3705 = vmatmul.mubr.bf16.gmra.mrb[0].mxu0 %v2159
    %v3706 = vpop.f32.mrb[0].mxu0
    %v3707 = vadd.f32 %v3642, %v3706
    %v3708 = vpop.f32.mrb[0].mxu0
    %v3709 = vpop.f32.mrb[0].mxu0
    %v3710 = vadd.f32 %v3645, %v3709
    %v3711 = vpop.f32.mrb[0].mxu0
    %3712 = vmatprep.mubr.bf16.mxu0 0
    %3713 = vmatmul.mubr.bf16.gmra.mrb[0].mxu0 %v2162
    %v3714 = vpop.f32.mrb[0].mxu0
    %v3715 = vadd.f32 %v3650, %v3714
    %v3716 = vpop.f32.mrb[0].mxu0
    %v3717 = vpop.f32.mrb[0].mxu0
    %v3718 = vadd.f32 %v3653, %v3717
    %v3719 = vpop.f32.mrb[0].mxu0
    %3720 = vdwg.mxu0
    %v3721 = vmax.f32 %v3543, %v3691
    %v3722 = vmax.f32 %v3546, %v3694
    %v3723 = vmax.f32 %v3551, %v3699
    %v3724 = vmax.f32 %v3554, %v3702
    %v3725 = vmax.f32 %v3559, %v3707
    %v3726 = vmax.f32 %v3562, %v3710
    %v3727 = vmax.f32 %v3567, %v3715
    %v3728 = vmax.f32 %v3570, %v3718
    %v3729 = vld [vmem:[%s2453 + $0x40] sm:$0xff]
    %v3730 = vld [vmem:[%s2453 + $0x48] sm:$0xff]
    %v3731 = vld [vmem:[%s2453 + $0x50] sm:$0xff]
    %v3732 = vld [vmem:[%s2453 + $0x58] sm:$0xff]
    %v3733 = vld [vmem:[%s2453 + $0x60] sm:$0xff]
    %v3734 = vld [vmem:[%s2453 + $0x68] sm:$0xff]
    %3735 = vmatprep.subr.bf16.mxu0 0
    %3736 = vmatpush1.bf16.msra.mxu0 %v3431
    %3737 = vmatprep.subr.bf16.mxu0 0
    %3738 = vmatpush1.bf16.msra.mxu0 %v3432
    %3739 = vmatprep.subr.bf16.mxu0 0
    %3740 = vmatpush1.bf16.msra.mxu0 %v3433
    %3741 = vmatprep.subr.bf16.mxu0 0
    %3742 = vmatpush1.bf16.msra.mxu0 %v3434
    %3743 = vmatprep.subr.bf16.mxu0 0
    %3744 = vmatpush1.bf16.msra.mxu0 %v3435
    %3745 = vmatprep.subr.bf16.mxu0 0
    %3746 = vmatpush1.bf16.msra.mxu0 %v3436
    %3747 = vmatprep.subr.bf16.mxu0 0
    %3748 = vmatpush1.bf16.msra.mxu0 %v3437
    %3749 = vmatprep.subr.bf16.mxu0 0
    %3750 = vmatpush1.bf16.msra.mxu0 %v3438
    %3751 = vmatprep.subr.bf16.mxu0 0
    %3752 = vmatpush1.bf16.msra.mxu0 %v3439
    %3753 = vmatprep.subr.bf16.mxu0 0
    %3754 = vmatpush1.bf16.msra.mxu0 %v3440
    %3755 = vmatprep.subr.bf16.mxu0 0
    %3756 = vmatpush1.bf16.msra.mxu0 %v3441
    %3757 = vmatprep.subr.bf16.mxu0 0
    %3758 = vmatpush1.bf16.msra.mxu0 %v3442
    %3759 = vmatprep.subr.bf16.mxu0 0
    %3760 = vmatpush1.bf16.msra.mxu0 %v3729
    %3761 = vmatprep.subr.bf16.mxu0 0
    %3762 = vmatpush1.bf16.msra.mxu0 %v3730
    %3763 = vmatprep.subr.bf16.mxu0 0
    %3764 = vmatpush1.bf16.msra.mxu0 %v3731
    %3765 = vmatprep.subr.bf16.mxu0 0
    %3766 = vmatpush1.bf16.msra.mxu0 %v3732
    %3767 = vmatprep.mubr.bf16.mxu0 %v2132
    %3768 = vmatmul.mubr.bf16.gmra.mrb[0].mxu0 %v2131
    %v3769 = vpop.f32.mrb[0].mxu0
    %v3770 = vadd.f32 0.0, %v3769
    %v3771 = vpop.f32.mrb[0].mxu0
    %v3772 = vpop.f32.mrb[0].mxu0
    %v3773 = vadd.f32 0.0, %v3772
    %v3774 = vpop.f32.mrb[0].mxu0
    %3775 = vmatprep.mubr.bf16.mxu0 %v2135
    %3776 = vmatmul.mubr.bf16.gmra.mrb[0].mxu0 %v2134
    %v3777 = vpop.f32.mrb[0].mxu0
    %v3778 = vadd.f32 0.0, %v3777
    %v3779 = vpop.f32.mrb[0].mxu0
    %v3780 = vpop.f32.mrb[0].mxu0
    %v3781 = vadd.f32 0.0, %v3780
    %v3782 = vpop.f32.mrb[0].mxu0
    %3783 = vmatprep.mubr.bf16.mxu0 %v2138
    %3784 = vmatmul.mubr.bf16.gmra.mrb[0].mxu0 %v2137
    %v3785 = vpop.f32.mrb[0].mxu0
    %v3786 = vadd.f32 0.0, %v3785
    %v3787 = vpop.f32.mrb[0].mxu0
    %v3788 = vpop.f32.mrb[0].mxu0
    %v3789 = vadd.f32 0.0, %v3788
    %v3790 = vpop.f32.mrb[0].mxu0
    %3791 = vmatprep.mubr.bf16.mxu0 %v2141
    %3792 = vmatmul.mubr.bf16.gmra.mrb[0].mxu0 %v2140
    %v3793 = vpop.f32.mrb[0].mxu0
    %v3794 = vadd.f32 0.0, %v3793
    %v3795 = vpop.f32.mrb[0].mxu0
    %v3796 = vpop.f32.mrb[0].mxu0
    %v3797 = vadd.f32 0.0, %v3796
    %v3798 = vpop.f32.mrb[0].mxu0
    %3799 = vdwg.mxu0
    %3800 = vmatprep.subr.bf16.mxu0 0
    %3801 = vmatpush1.bf16.msra.mxu0 %v3733
    %3802 = vmatprep.subr.bf16.mxu0 0
    %3803 = vmatpush1.bf16.msra.mxu0 %v3734
    %3804 = vmatprep.subr.bf16.mxu0 0
    %3805 = vmatpush1.bf16.msra.mxu0 0
    %3806 = vmatprep.subr.bf16.mxu0 0
    %3807 = vmatpush1.bf16.msra.mxu0 0
    %3808 = vmatprep.subr.bf16.mxu0 0
    %3809 = vmatpush1.bf16.msra.mxu0 0
    %3810 = vmatprep.subr.bf16.mxu0 0
    %3811 = vmatpush1.bf16.msra.mxu0 0
    %3812 = vmatprep.subr.bf16.mxu0 0
    %3813 = vmatpush1.bf16.msra.mxu0 0
    %3814 = vmatprep.subr.bf16.mxu0 0
    %3815 = vmatpush1.bf16.msra.mxu0 0
    %3816 = vmatprep.subr.bf16.mxu0 0
    %3817 = vmatpush1.bf16.msra.mxu0 0
    %3818 = vmatprep.subr.bf16.mxu0 0
    %3819 = vmatpush1.bf16.msra.mxu0 0
    %3820 = vmatprep.subr.bf16.mxu0 0
    %3821 = vmatpush1.bf16.msra.mxu0 0
    %3822 = vmatprep.subr.bf16.mxu0 0
    %3823 = vmatpush1.bf16.msra.mxu0 0
    %3824 = vmatprep.subr.bf16.mxu0 0
    %3825 = vmatpush1.bf16.msra.mxu0 0
    %3826 = vmatprep.subr.bf16.mxu0 0
    %3827 = vmatpush1.bf16.msra.mxu0 0
    %3828 = vmatprep.subr.bf16.mxu0 0
    %3829 = vmatpush1.bf16.msra.mxu0 0
    %3830 = vmatprep.subr.bf16.mxu0 0
    %3831 = vmatpush1.bf16.msra.mxu0 0
    %3832 = vmatprep.mubr.bf16.mxu0 0
    %3833 = vmatmul.mubr.bf16.gmra.mrb[0].mxu0 %v2153
    %v3834 = vpop.f32.mrb[0].mxu0
    %v3835 = vadd.f32 %v3770, %v3834
    %v3836 = vpop.f32.mrb[0].mxu0
    %v3837 = vpop.f32.mrb[0].mxu0
    %v3838 = vadd.f32 %v3773, %v3837
    %v3839 = vpop.f32.mrb[0].mxu0
    %3840 = vmatprep.mubr.bf16.mxu0 0
    %3841 = vmatmul.mubr.bf16.gmra.mrb[0].mxu0 %v2156
    %v3842 = vpop.f32.mrb[0].mxu0
    %v3843 = vadd.f32 %v3778, %v3842
    %v3844 = vpop.f32.mrb[0].mxu0
    %v3845 = vpop.f32.mrb[0].mxu0
    %v3846 = vadd.f32 %v3781, %v3845
    %v3847 = vpop.f32.mrb[0].mxu0
    %3848 = vmatprep.mubr.bf16.mxu0 0
    %3849 = vmatmul.mubr.bf16.gmra.mrb[0].mxu0 %v2159
    %v3850 = vpop.f32.mrb[0].mxu0
    %v3851 = vadd.f32 %v3786, %v3850
    %v3852 = vpop.f32.mrb[0].mxu0
    %v3853 = vpop.f32.mrb[0].mxu0
    %v3854 = vadd.f32 %v3789, %v3853
    %v3855 = vpop.f32.mrb[0].mxu0
    %3856 = vmatprep.mubr.bf16.mxu0 0
    %3857 = vmatmul.mubr.bf16.gmra.mrb[0].mxu0 %v2162
    %v3858 = vpop.f32.mrb[0].mxu0
    %v3859 = vadd.f32 %v3794, %v3858
    %v3860 = vpop.f32.mrb[0].mxu0
    %v3861 = vpop.f32.mrb[0].mxu0
    %v3862 = vadd.f32 %v3797, %v3861
    %v3863 = vpop.f32.mrb[0].mxu0
    %3864 = vdwg.mxu0
    %v3865 = vmax.f32 %v3721, %v3835
    %v3866 = vmax.f32 %v3722, %v3838
    %v3867 = vmax.f32 %v3723, %v3843
    %v3868 = vmax.f32 %v3724, %v3846
    %v3869 = vmax.f32 %v3725, %v3851
    %v3870 = vmax.f32 %v3726, %v3854
    %v3871 = vmax.f32 %v3727, %v3859
    %v3872 = vmax.f32 %v3728, %v3862
    %v3873 = vld [vmem:[%s2453 + $0x50] sm:$0xff]
    %v3874 = vld [vmem:[%s2453 + $0x58] sm:$0xff]
    %v3875 = vld [vmem:[%s2453 + $0x60] sm:$0xff]
    %v3876 = vld [vmem:[%s2453 + $0x68] sm:$0xff]
    %v3877 = vld [vmem:[%s2453 + $0x70] sm:$0xff]
    %v3878 = vld [vmem:[%s2453 + $0x78] sm:$0xff]
    %3879 = vmatprep.subr.bf16.mxu0 0
    %3880 = vmatpush1.bf16.msra.mxu0 %v3579
    %3881 = vmatprep.subr.bf16.mxu0 0
    %3882 = vmatpush1.bf16.msra.mxu0 %v3580
    %3883 = vmatprep.subr.bf16.mxu0 0
    %3884 = vmatpush1.bf16.msra.mxu0 %v3581
    %3885 = vmatprep.subr.bf16.mxu0 0
    %3886 = vmatpush1.bf16.msra.mxu0 %v3582
    %3887 = vmatprep.subr.bf16.mxu0 0
    %3888 = vmatpush1.bf16.msra.mxu0 %v3583
    %3889 = vmatprep.subr.bf16.mxu0 0
    %3890 = vmatpush1.bf16.msra.mxu0 %v3584
    %3891 = vmatprep.subr.bf16.mxu0 0
    %3892 = vmatpush1.bf16.msra.mxu0 %v3585
    %3893 = vmatprep.subr.bf16.mxu0 0
    %3894 = vmatpush1.bf16.msra.mxu0 %v3586
    %3895 = vmatprep.subr.bf16.mxu0 0
    %3896 = vmatpush1.bf16.msra.mxu0 %v3587
    %3897 = vmatprep.subr.bf16.mxu0 0
    %3898 = vmatpush1.bf16.msra.mxu0 %v3588
    %3899 = vmatprep.subr.bf16.mxu0 0
    %3900 = vmatpush1.bf16.msra.mxu0 %v3589
    %3901 = vmatprep.subr.bf16.mxu0 0
    %3902 = vmatpush1.bf16.msra.mxu0 %v3590
    %3903 = vmatprep.subr.bf16.mxu0 0
    %3904 = vmatpush1.bf16.msra.mxu0 %v3873
    %3905 = vmatprep.subr.bf16.mxu0 0
    %3906 = vmatpush1.bf16.msra.mxu0 %v3874
    %3907 = vmatprep.subr.bf16.mxu0 0
    %3908 = vmatpush1.bf16.msra.mxu0 %v3875
    %3909 = vmatprep.subr.bf16.mxu0 0
    %3910 = vmatpush1.bf16.msra.mxu0 %v3876
    %3911 = vmatprep.mubr.bf16.mxu0 %v2132
    %3912 = vmatmul.mubr.bf16.gmra.mrb[0].mxu0 %v2131
    %v3913 = vpop.f32.mrb[0].mxu0
    %v3914 = vadd.f32 0.0, %v3913
    %v3915 = vpop.f32.mrb[0].mxu0
    %v3916 = vpop.f32.mrb[0].mxu0
    %v3917 = vadd.f32 0.0, %v3916
    %v3918 = vpop.f32.mrb[0].mxu0
    %3919 = vmatprep.mubr.bf16.mxu0 %v2135
    %3920 = vmatmul.mubr.bf16.gmra.mrb[0].mxu0 %v2134
    %v3921 = vpop.f32.mrb[0].mxu0
    %v3922 = vadd.f32 0.0, %v3921
    %v3923 = vpop.f32.mrb[0].mxu0
    %v3924 = vpop.f32.mrb[0].mxu0
    %v3925 = vadd.f32 0.0, %v3924
    %v3926 = vpop.f32.mrb[0].mxu0
    %3927 = vmatprep.mubr.bf16.mxu0 %v2138
    %3928 = vmatmul.mubr.bf16.gmra.mrb[0].mxu0 %v2137
    %v3929 = vpop.f32.mrb[0].mxu0
    %v3930 = vadd.f32 0.0, %v3929
    %v3931 = vpop.f32.mrb[0].mxu0
    %v3932 = vpop.f32.mrb[0].mxu0
    %v3933 = vadd.f32 0.0, %v3932
    %v3934 = vpop.f32.mrb[0].mxu0
    %3935 = vmatprep.mubr.bf16.mxu0 %v2141
    %3936 = vmatmul.mubr.bf16.gmra.mrb[0].mxu0 %v2140
    %v3937 = vpop.f32.mrb[0].mxu0
    %v3938 = vadd.f32 0.0, %v3937
    %v3939 = vpop.f32.mrb[0].mxu0
    %v3940 = vpop.f32.mrb[0].mxu0
    %v3941 = vadd.f32 0.0, %v3940
    %v3942 = vpop.f32.mrb[0].mxu0
    %3943 = vdwg.mxu0
    %3944 = vmatprep.subr.bf16.mxu0 0
    %3945 = vmatpush1.bf16.msra.mxu0 %v3877
    %3946 = vmatprep.subr.bf16.mxu0 0
    %3947 = vmatpush1.bf16.msra.mxu0 %v3878
    %3948 = vmatprep.subr.bf16.mxu0 0
    %3949 = vmatpush1.bf16.msra.mxu0 0
    %3950 = vmatprep.subr.bf16.mxu0 0
    %3951 = vmatpush1.bf16.msra.mxu0 0
    %3952 = vmatprep.subr.bf16.mxu0 0
    %3953 = vmatpush1.bf16.msra.mxu0 0
    %3954 = vmatprep.subr.bf16.mxu0 0
    %3955 = vmatpush1.bf16.msra.mxu0 0
    %3956 = vmatprep.subr.bf16.mxu0 0
    %3957 = vmatpush1.bf16.msra.mxu0 0
    %3958 = vmatprep.subr.bf16.mxu0 0
    %3959 = vmatpush1.bf16.msra.mxu0 0
    %3960 = vmatprep.subr.bf16.mxu0 0
    %3961 = vmatpush1.bf16.msra.mxu0 0
    %3962 = vmatprep.subr.bf16.mxu0 0
    %3963 = vmatpush1.bf16.msra.mxu0 0
    %3964 = vmatprep.subr.bf16.mxu0 0
    %3965 = vmatpush1.bf16.msra.mxu0 0
    %3966 = vmatprep.subr.bf16.mxu0 0
    %3967 = vmatpush1.bf16.msra.mxu0 0
    %3968 = vmatprep.subr.bf16.mxu0 0
    %3969 = vmatpush1.bf16.msra.mxu0 0
    %3970 = vmatprep.subr.bf16.mxu0 0
    %3971 = vmatpush1.bf16.msra.mxu0 0
    %3972 = vmatprep.subr.bf16.mxu0 0
    %3973 = vmatpush1.bf16.msra.mxu0 0
    %3974 = vmatprep.subr.bf16.mxu0 0
    %3975 = vmatpush1.bf16.msra.mxu0 0
    %3976 = vmatprep.mubr.bf16.mxu0 0
    %3977 = vmatmul.mubr.bf16.gmra.mrb[0].mxu0 %v2153
    %v3978 = vpop.f32.mrb[0].mxu0
    %v3979 = vadd.f32 %v3914, %v3978
    %v3980 = vpop.f32.mrb[0].mxu0
    %v3981 = vpop.f32.mrb[0].mxu0
    %v3982 = vadd.f32 %v3917, %v3981
    %v3983 = vpop.f32.mrb[0].mxu0
    %3984 = vmatprep.mubr.bf16.mxu0 0
    %3985 = vmatmul.mubr.bf16.gmra.mrb[0].mxu0 %v2156
    %v3986 = vpop.f32.mrb[0].mxu0
    %v3987 = vadd.f32 %v3922, %v3986
    %v3988 = vpop.f32.mrb[0].mxu0
    %v3989 = vpop.f32.mrb[0].mxu0
    %v3990 = vadd.f32 %v3925, %v3989
    %v3991 = vpop.f32.mrb[0].mxu0
    %3992 = vmatprep.mubr.bf16.mxu0 0
    %3993 = vmatmul.mubr.bf16.gmra.mrb[0].mxu0 %v2159
    %v3994 = vpop.f32.mrb[0].mxu0
    %v3995 = vadd.f32 %v3930, %v3994
    %v3996 = vpop.f32.mrb[0].mxu0
    %v3997 = vpop.f32.mrb[0].mxu0
    %v3998 = vadd.f32 %v3933, %v3997
    %v3999 = vpop.f32.mrb[0].mxu0
    %4000 = vmatprep.mubr.bf16.mxu0 0
    %4001 = vmatmul.mubr.bf16.gmra.mrb[0].mxu0 %v2162
    %v4002 = vpop.f32.mrb[0].mxu0
    %v4003 = vadd.f32 %v3938, %v4002
    %v4004 = vpop.f32.mrb[0].mxu0
    %v4005 = vpop.f32.mrb[0].mxu0
    %v4006 = vadd.f32 %v3941, %v4005
    %v4007 = vpop.f32.mrb[0].mxu0
    %4008 = vdwg.mxu0
    %v4009 = vmax.f32 %v3865, %v3979
    %v4010 = vmax.f32 %v3866, %v3982
    %v4011 = vmax.f32 %v3867, %v3987
    %v4012 = vmax.f32 %v3868, %v3990
    %v4013 = vmax.f32 %v3869, %v3995
    %v4014 = vmax.f32 %v3870, %v3998
    %v4015 = vmax.f32 %v3871, %v4003
    %v4016 = vmax.f32 %v3872, %v4006
    %v4017 = vadd.f32 %v4009, %v2745
    %v4018 = vadd.f32 %v4010, %v2750
    %v4019 = vadd.f32 %v4011, %v2755
    %v4020 = vadd.f32 %v4012, %v2760
    %v4021 = vadd.f32 %v4013, %v2765
    %v4022 = vadd.f32 %v4014, %v2770
    %v4023 = vadd.f32 %v4015, %v2775
    %v4024 = vadd.f32 %v4016, %v2780
    %v4025 = vmax.f32 %v4017, 0.0
    %v4026 = vmax.f32 %v4018, 0.0
    %v4027 = vmax.f32 %v4019, 0.0
    %v4028 = vmax.f32 %v4020, 0.0
    %v4029 = vmax.f32 %v4021, 0.0
    %v4030 = vmax.f32 %v4022, 0.0
    %v4031 = vmax.f32 %v4023, 0.0
    %v4032 = vmax.f32 %v4024, 0.0
    %v4033 = vpack.c.bf16 %v4026, %v4025
    %v4034 = vpack.c.bf16 %v4028, %v4027
    %v4035 = vpack.c.bf16 %v4030, %v4029
    %v4036 = vpack.c.bf16 %v4032, %v4031
    %4037 = vst [vmem:[%s2804 + $0x40] sm:$0xff] %v4033
    %4038 = vst [vmem:[%s2804 + $0x48] sm:$0xff] %v4034
    %4039 = vst [vmem:[%s2804 + $0x50] sm:$0xff] %v4035
    %4040 = vst [vmem:[%s2804 + $0x58] sm:$0xff] %v4036
    %v4041 = vld [vmem:[%s2064 + $0x60] sm:$0xff]
    %v4042 = vld [vmem:[%s2064 + $0x68] sm:$0xff]
    %v4043 = vld [vmem:[%s2064 + $0x70] sm:$0xff]
    %v4044 = vld [vmem:[%s2064 + $0x78] sm:$0xff]
    %v4045 = vld [vmem:[%s2064 + $0x80] sm:$0xff]
    %v4046 = vld [vmem:[%s2064 + $0x88] sm:$0xff]
    %v4047 = vld [vmem:[%s2074 + $0x60] sm:$0xff]
    %v4048 = vld [vmem:[%s2074 + $0x68] sm:$0xff]
    %v4049 = vld [vmem:[%s2074 + $0x70] sm:$0xff]
    %v4050 = vld [vmem:[%s2074 + $0x78] sm:$0xff]
    %v4051 = vld [vmem:[%s2074 + $0x80] sm:$0xff]
    %v4052 = vld [vmem:[%s2074 + $0x88] sm:$0xff]
    %v4053 = vld [vmem:[%s2084 + $0x60] sm:$0xff]
    %v4054 = vld [vmem:[%s2084 + $0x68] sm:$0xff]
    %v4055 = vld [vmem:[%s2084 + $0x70] sm:$0xff]
    %v4056 = vld [vmem:[%s2084 + $0x78] sm:$0xff]
    %v4057 = vld [vmem:[%s2084 + $0x80] sm:$0xff]
    %v4058 = vld [vmem:[%s2084 + $0x88] sm:$0xff]
    %4059 = vmatprep.subr.bf16.mxu0 0
    %4060 = vmatpush1.bf16.msra.mxu0 %v4041
    %4061 = vmatprep.subr.bf16.mxu0 0
    %4062 = vmatpush1.bf16.msra.mxu0 %v4042
    %4063 = vmatprep.subr.bf16.mxu0 0
    %4064 = vmatpush1.bf16.msra.mxu0 %v4043
    %4065 = vmatprep.subr.bf16.mxu0 0
    %4066 = vmatpush1.bf16.msra.mxu0 %v4044
    %4067 = vmatprep.subr.bf16.mxu0 0
    %4068 = vmatpush1.bf16.msra.mxu0 %v4045
    %4069 = vmatprep.subr.bf16.mxu0 0
    %4070 = vmatpush1.bf16.msra.mxu0 %v4046
    %4071 = vmatprep.subr.bf16.mxu0 0
    %4072 = vmatpush1.bf16.msra.mxu0 %v4047
    %4073 = vmatprep.subr.bf16.mxu0 0
    %4074 = vmatpush1.bf16.msra.mxu0 %v4048
    %4075 = vmatprep.subr.bf16.mxu0 0
    %4076 = vmatpush1.bf16.msra.mxu0 %v4049
    %4077 = vmatprep.subr.bf16.mxu0 0
    %4078 = vmatpush1.bf16.msra.mxu0 %v4050
    %4079 = vmatprep.subr.bf16.mxu0 0
    %4080 = vmatpush1.bf16.msra.mxu0 %v4051
    %4081 = vmatprep.subr.bf16.mxu0 0
    %4082 = vmatpush1.bf16.msra.mxu0 %v4052
    %4083 = vmatprep.subr.bf16.mxu0 0
    %4084 = vmatpush1.bf16.msra.mxu0 %v4053
    %4085 = vmatprep.subr.bf16.mxu0 0
    %4086 = vmatpush1.bf16.msra.mxu0 %v4054
    %4087 = vmatprep.subr.bf16.mxu0 0
    %4088 = vmatpush1.bf16.msra.mxu0 %v4055
    %4089 = vmatprep.subr.bf16.mxu0 0
    %4090 = vmatpush1.bf16.msra.mxu0 %v4056
    %4091 = vmatprep.mubr.bf16.mxu0 %v2132
    %4092 = vmatmul.mubr.bf16.gmra.mrb[0].mxu0 %v2131
    %v4093 = vpop.f32.mrb[0].mxu0
    %v4094 = vadd.f32 0.0, %v4093
    %v4095 = vpop.f32.mrb[0].mxu0
    %v4096 = vpop.f32.mrb[0].mxu0
    %v4097 = vadd.f32 0.0, %v4096
    %v4098 = vpop.f32.mrb[0].mxu0
    %4099 = vmatprep.mubr.bf16.mxu0 %v2135
    %4100 = vmatmul.mubr.bf16.gmra.mrb[0].mxu0 %v2134
    %v4101 = vpop.f32.mrb[0].mxu0
    %v4102 = vadd.f32 0.0, %v4101
    %v4103 = vpop.f32.mrb[0].mxu0
    %v4104 = vpop.f32.mrb[0].mxu0
    %v4105 = vadd.f32 0.0, %v4104
    %v4106 = vpop.f32.mrb[0].mxu0
    %4107 = vmatprep.mubr.bf16.mxu0 %v2138
    %4108 = vmatmul.mubr.bf16.gmra.mrb[0].mxu0 %v2137
    %v4109 = vpop.f32.mrb[0].mxu0
    %v4110 = vadd.f32 0.0, %v4109
    %v4111 = vpop.f32.mrb[0].mxu0
    %v4112 = vpop.f32.mrb[0].mxu0
    %v4113 = vadd.f32 0.0, %v4112
    %v4114 = vpop.f32.mrb[0].mxu0
    %4115 = vmatprep.mubr.bf16.mxu0 %v2141
    %4116 = vmatmul.mubr.bf16.gmra.mrb[0].mxu0 %v2140
    %v4117 = vpop.f32.mrb[0].mxu0
    %v4118 = vadd.f32 0.0, %v4117
    %v4119 = vpop.f32.mrb[0].mxu0
    %v4120 = vpop.f32.mrb[0].mxu0
    %v4121 = vadd.f32 0.0, %v4120
    %v4122 = vpop.f32.mrb[0].mxu0
    %4123 = vdwg.mxu0
    %4124 = vmatprep.subr.bf16.mxu0 0
    %4125 = vmatpush1.bf16.msra.mxu0 %v4057
    %4126 = vmatprep.subr.bf16.mxu0 0
    %4127 = vmatpush1.bf16.msra.mxu0 %v4058
    %4128 = vmatprep.subr.bf16.mxu0 0
    %4129 = vmatpush1.bf16.msra.mxu0 0
    %4130 = vmatprep.subr.bf16.mxu0 0
    %4131 = vmatpush1.bf16.msra.mxu0 0
    %4132 = vmatprep.subr.bf16.mxu0 0
    %4133 = vmatpush1.bf16.msra.mxu0 0
    %4134 = vmatprep.subr.bf16.mxu0 0
    %4135 = vmatpush1.bf16.msra.mxu0 0
    %4136 = vmatprep.subr.bf16.mxu0 0
    %4137 = vmatpush1.bf16.msra.mxu0 0
    %4138 = vmatprep.subr.bf16.mxu0 0
    %4139 = vmatpush1.bf16.msra.mxu0 0
    %4140 = vmatprep.subr.bf16.mxu0 0
    %4141 = vmatpush1.bf16.msra.mxu0 0
    %4142 = vmatprep.subr.bf16.mxu0 0
    %4143 = vmatpush1.bf16.msra.mxu0 0
    %4144 = vmatprep.subr.bf16.mxu0 0
    %4145 = vmatpush1.bf16.msra.mxu0 0
    %4146 = vmatprep.subr.bf16.mxu0 0
    %4147 = vmatpush1.bf16.msra.mxu0 0
    %4148 = vmatprep.subr.bf16.mxu0 0
    %4149 = vmatpush1.bf16.msra.mxu0 0
    %4150 = vmatprep.subr.bf16.mxu0 0
    %4151 = vmatpush1.bf16.msra.mxu0 0
    %4152 = vmatprep.subr.bf16.mxu0 0
    %4153 = vmatpush1.bf16.msra.mxu0 0
    %4154 = vmatprep.subr.bf16.mxu0 0
    %4155 = vmatpush1.bf16.msra.mxu0 0
    %4156 = vmatprep.mubr.bf16.mxu0 0
    %4157 = vmatmul.mubr.bf16.gmra.mrb[0].mxu0 %v2153
    %v4158 = vpop.f32.mrb[0].mxu0
    %v4159 = vadd.f32 %v4094, %v4158
    %v4160 = vpop.f32.mrb[0].mxu0
    %v4161 = vpop.f32.mrb[0].mxu0
    %v4162 = vadd.f32 %v4097, %v4161
    %v4163 = vpop.f32.mrb[0].mxu0
    %4164 = vmatprep.mubr.bf16.mxu0 0
    %4165 = vmatmul.mubr.bf16.gmra.mrb[0].mxu0 %v2156
    %v4166 = vpop.f32.mrb[0].mxu0
    %v4167 = vadd.f32 %v4102, %v4166
    %v4168 = vpop.f32.mrb[0].mxu0
    %v4169 = vpop.f32.mrb[0].mxu0
    %v4170 = vadd.f32 %v4105, %v4169
    %v4171 = vpop.f32.mrb[0].mxu0
    %4172 = vmatprep.mubr.bf16.mxu0 0
    %4173 = vmatmul.mubr.bf16.gmra.mrb[0].mxu0 %v2159
    %v4174 = vpop.f32.mrb[0].mxu0
    %v4175 = vadd.f32 %v4110, %v4174
    %v4176 = vpop.f32.mrb[0].mxu0
    %v4177 = vpop.f32.mrb[0].mxu0
    %v4178 = vadd.f32 %v4113, %v4177
    %v4179 = vpop.f32.mrb[0].mxu0
    %4180 = vmatprep.mubr.bf16.mxu0 0
    %4181 = vmatmul.mubr.bf16.gmra.mrb[0].mxu0 %v2162
    %v4182 = vpop.f32.mrb[0].mxu0
    %v4183 = vadd.f32 %v4118, %v4182
    %v4184 = vpop.f32.mrb[0].mxu0
    %v4185 = vpop.f32.mrb[0].mxu0
    %v4186 = vadd.f32 %v4121, %v4185
    %v4187 = vpop.f32.mrb[0].mxu0
    %4188 = vdwg.mxu0
    %v4189 = vld [vmem:[%s2064 + $0x70] sm:$0xff]
    %v4190 = vld [vmem:[%s2064 + $0x78] sm:$0xff]
    %v4191 = vld [vmem:[%s2064 + $0x80] sm:$0xff]
    %v4192 = vld [vmem:[%s2064 + $0x88] sm:$0xff]
    %v4193 = vld [vmem:[%s2064 + $0x90] sm:$0xff]
    %v4194 = vld [vmem:[%s2064 + $0x98] sm:$0xff]
    %v4195 = vld [vmem:[%s2074 + $0x70] sm:$0xff]
    %v4196 = vld [vmem:[%s2074 + $0x78] sm:$0xff]
    %v4197 = vld [vmem:[%s2074 + $0x80] sm:$0xff]
    %v4198 = vld [vmem:[%s2074 + $0x88] sm:$0xff]
    %v4199 = vld [vmem:[%s2074 + $0x90] sm:$0xff]
    %v4200 = vld [vmem:[%s2074 + $0x98] sm:$0xff]
    %v4201 = vld [vmem:[%s2084 + $0x70] sm:$0xff]
    %v4202 = vld [vmem:[%s2084 + $0x78] sm:$0xff]
    %v4203 = vld [vmem:[%s2084 + $0x80] sm:$0xff]
    %v4204 = vld [vmem:[%s2084 + $0x88] sm:$0xff]
    %v4205 = vld [vmem:[%s2084 + $0x90] sm:$0xff]
    %v4206 = vld [vmem:[%s2084 + $0x98] sm:$0xff]
    %4207 = vmatprep.subr.bf16.mxu0 0
    %4208 = vmatpush1.bf16.msra.mxu0 %v4189
    %4209 = vmatprep.subr.bf16.mxu0 0
    %4210 = vmatpush1.bf16.msra.mxu0 %v4190
    %4211 = vmatprep.subr.bf16.mxu0 0
    %4212 = vmatpush1.bf16.msra.mxu0 %v4191
    %4213 = vmatprep.subr.bf16.mxu0 0
    %4214 = vmatpush1.bf16.msra.mxu0 %v4192
    %4215 = vmatprep.subr.bf16.mxu0 0
    %4216 = vmatpush1.bf16.msra.mxu0 %v4193
    %4217 = vmatprep.subr.bf16.mxu0 0
    %4218 = vmatpush1.bf16.msra.mxu0 %v4194
    %4219 = vmatprep.subr.bf16.mxu0 0
    %4220 = vmatpush1.bf16.msra.mxu0 %v4195
    %4221 = vmatprep.subr.bf16.mxu0 0
    %4222 = vmatpush1.bf16.msra.mxu0 %v4196
    %4223 = vmatprep.subr.bf16.mxu0 0
    %4224 = vmatpush1.bf16.msra.mxu0 %v4197
    %4225 = vmatprep.subr.bf16.mxu0 0
    %4226 = vmatpush1.bf16.msra.mxu0 %v4198
    %4227 = vmatprep.subr.bf16.mxu0 0
    %4228 = vmatpush1.bf16.msra.mxu0 %v4199
    %4229 = vmatprep.subr.bf16.mxu0 0
    %4230 = vmatpush1.bf16.msra.mxu0 %v4200
    %4231 = vmatprep.subr.bf16.mxu0 0
    %4232 = vmatpush1.bf16.msra.mxu0 %v4201
    %4233 = vmatprep.subr.bf16.mxu0 0
    %4234 = vmatpush1.bf16.msra.mxu0 %v4202
    %4235 = vmatprep.subr.bf16.mxu0 0
    %4236 = vmatpush1.bf16.msra.mxu0 %v4203
    %4237 = vmatprep.subr.bf16.mxu0 0
    %4238 = vmatpush1.bf16.msra.mxu0 %v4204
    %4239 = vmatprep.mubr.bf16.mxu0 %v2132
    %4240 = vmatmul.mubr.bf16.gmra.mrb[0].mxu0 %v2131
    %v4241 = vpop.f32.mrb[0].mxu0
    %v4242 = vadd.f32 0.0, %v4241
    %v4243 = vpop.f32.mrb[0].mxu0
    %v4244 = vpop.f32.mrb[0].mxu0
    %v4245 = vadd.f32 0.0, %v4244
    %v4246 = vpop.f32.mrb[0].mxu0
    %4247 = vmatprep.mubr.bf16.mxu0 %v2135
    %4248 = vmatmul.mubr.bf16.gmra.mrb[0].mxu0 %v2134
    %v4249 = vpop.f32.mrb[0].mxu0
    %v4250 = vadd.f32 0.0, %v4249
    %v4251 = vpop.f32.mrb[0].mxu0
    %v4252 = vpop.f32.mrb[0].mxu0
    %v4253 = vadd.f32 0.0, %v4252
    %v4254 = vpop.f32.mrb[0].mxu0
    %4255 = vmatprep.mubr.bf16.mxu0 %v2138
    %4256 = vmatmul.mubr.bf16.gmra.mrb[0].mxu0 %v2137
    %v4257 = vpop.f32.mrb[0].mxu0
    %v4258 = vadd.f32 0.0, %v4257
    %v4259 = vpop.f32.mrb[0].mxu0
    %v4260 = vpop.f32.mrb[0].mxu0
    %v4261 = vadd.f32 0.0, %v4260
    %v4262 = vpop.f32.mrb[0].mxu0
    %4263 = vmatprep.mubr.bf16.mxu0 %v2141
    %4264 = vmatmul.mubr.bf16.gmra.mrb[0].mxu0 %v2140
    %v4265 = vpop.f32.mrb[0].mxu0
    %v4266 = vadd.f32 0.0, %v4265
    %v4267 = vpop.f32.mrb[0].mxu0
    %v4268 = vpop.f32.mrb[0].mxu0
    %v4269 = vadd.f32 0.0, %v4268
    %v4270 = vpop.f32.mrb[0].mxu0
    %4271 = vdwg.mxu0
    %4272 = vmatprep.subr.bf16.mxu0 0
    %4273 = vmatpush1.bf16.msra.mxu0 %v4205
    %4274 = vmatprep.subr.bf16.mxu0 0
    %4275 = vmatpush1.bf16.msra.mxu0 %v4206
    %4276 = vmatprep.subr.bf16.mxu0 0
    %4277 = vmatpush1.bf16.msra.mxu0 0
    %4278 = vmatprep.subr.bf16.mxu0 0
    %4279 = vmatpush1.bf16.msra.mxu0 0
    %4280 = vmatprep.subr.bf16.mxu0 0
    %4281 = vmatpush1.bf16.msra.mxu0 0
    %4282 = vmatprep.subr.bf16.mxu0 0
    %4283 = vmatpush1.bf16.msra.mxu0 0
    %4284 = vmatprep.subr.bf16.mxu0 0
    %4285 = vmatpush1.bf16.msra.mxu0 0
    %4286 = vmatprep.subr.bf16.mxu0 0
    %4287 = vmatpush1.bf16.msra.mxu0 0
    %4288 = vmatprep.subr.bf16.mxu0 0
    %4289 = vmatpush1.bf16.msra.mxu0 0
    %4290 = vmatprep.subr.bf16.mxu0 0
    %4291 = vmatpush1.bf16.msra.mxu0 0
    %4292 = vmatprep.subr.bf16.mxu0 0
    %4293 = vmatpush1.bf16.msra.mxu0 0
    %4294 = vmatprep.subr.bf16.mxu0 0
    %4295 = vmatpush1.bf16.msra.mxu0 0
    %4296 = vmatprep.subr.bf16.mxu0 0
    %4297 = vmatpush1.bf16.msra.mxu0 0
    %4298 = vmatprep.subr.bf16.mxu0 0
    %4299 = vmatpush1.bf16.msra.mxu0 0
    %4300 = vmatprep.subr.bf16.mxu0 0
    %4301 = vmatpush1.bf16.msra.mxu0 0
    %4302 = vmatprep.subr.bf16.mxu0 0
    %4303 = vmatpush1.bf16.msra.mxu0 0
    %4304 = vmatprep.mubr.bf16.mxu0 0
    %4305 = vmatmul.mubr.bf16.gmra.mrb[0].mxu0 %v2153
    %v4306 = vpop.f32.mrb[0].mxu0
    %v4307 = vadd.f32 %v4242, %v4306
    %v4308 = vpop.f32.mrb[0].mxu0
    %v4309 = vpop.f32.mrb[0].mxu0
    %v4310 = vadd.f32 %v4245, %v4309
    %v4311 = vpop.f32.mrb[0].mxu0
    %4312 = vmatprep.mubr.bf16.mxu0 0
    %4313 = vmatmul.mubr.bf16.gmra.mrb[0].mxu0 %v2156
    %v4314 = vpop.f32.mrb[0].mxu0
    %v4315 = vadd.f32 %v4250, %v4314
    %v4316 = vpop.f32.mrb[0].mxu0
    %v4317 = vpop.f32.mrb[0].mxu0
    %v4318 = vadd.f32 %v4253, %v4317
    %v4319 = vpop.f32.mrb[0].mxu0
    %4320 = vmatprep.mubr.bf16.mxu0 0
    %4321 = vmatmul.mubr.bf16.gmra.mrb[0].mxu0 %v2159
    %v4322 = vpop.f32.mrb[0].mxu0
    %v4323 = vadd.f32 %v4258, %v4322
    %v4324 = vpop.f32.mrb[0].mxu0
    %v4325 = vpop.f32.mrb[0].mxu0
    %v4326 = vadd.f32 %v4261, %v4325
    %v4327 = vpop.f32.mrb[0].mxu0
    %4328 = vmatprep.mubr.bf16.mxu0 0
    %4329 = vmatmul.mubr.bf16.gmra.mrb[0].mxu0 %v2162
    %v4330 = vpop.f32.mrb[0].mxu0
    %v4331 = vadd.f32 %v4266, %v4330
    %v4332 = vpop.f32.mrb[0].mxu0
    %v4333 = vpop.f32.mrb[0].mxu0
    %v4334 = vadd.f32 %v4269, %v4333
    %v4335 = vpop.f32.mrb[0].mxu0
    %4336 = vdwg.mxu0
    %v4337 = vmax.f32 %v4159, %v4307
    %v4338 = vmax.f32 %v4162, %v4310
    %v4339 = vmax.f32 %v4167, %v4315
    %v4340 = vmax.f32 %v4170, %v4318
    %v4341 = vmax.f32 %v4175, %v4323
    %v4342 = vmax.f32 %v4178, %v4326
    %v4343 = vmax.f32 %v4183, %v4331
    %v4344 = vmax.f32 %v4186, %v4334
    %v4345 = vld [vmem:[%s2453 + $0x60] sm:$0xff]
    %v4346 = vld [vmem:[%s2453 + $0x68] sm:$0xff]
    %v4347 = vld [vmem:[%s2453 + $0x70] sm:$0xff]
    %v4348 = vld [vmem:[%s2453 + $0x78] sm:$0xff]
    %v4349 = vld [vmem:[%s2453 + $0x80] sm:$0xff]
    %v4350 = vld [vmem:[%s2453 + $0x88] sm:$0xff]
    %4351 = vmatprep.subr.bf16.mxu0 0
    %4352 = vmatpush1.bf16.msra.mxu0 %v4047
    %4353 = vmatprep.subr.bf16.mxu0 0
    %4354 = vmatpush1.bf16.msra.mxu0 %v4048
    %4355 = vmatprep.subr.bf16.mxu0 0
    %4356 = vmatpush1.bf16.msra.mxu0 %v4049
    %4357 = vmatprep.subr.bf16.mxu0 0
    %4358 = vmatpush1.bf16.msra.mxu0 %v4050
    %4359 = vmatprep.subr.bf16.mxu0 0
    %4360 = vmatpush1.bf16.msra.mxu0 %v4051
    %4361 = vmatprep.subr.bf16.mxu0 0
    %4362 = vmatpush1.bf16.msra.mxu0 %v4052
    %4363 = vmatprep.subr.bf16.mxu0 0
    %4364 = vmatpush1.bf16.msra.mxu0 %v4053
    %4365 = vmatprep.subr.bf16.mxu0 0
    %4366 = vmatpush1.bf16.msra.mxu0 %v4054
    %4367 = vmatprep.subr.bf16.mxu0 0
    %4368 = vmatpush1.bf16.msra.mxu0 %v4055
    %4369 = vmatprep.subr.bf16.mxu0 0
    %4370 = vmatpush1.bf16.msra.mxu0 %v4056
    %4371 = vmatprep.subr.bf16.mxu0 0
    %4372 = vmatpush1.bf16.msra.mxu0 %v4057
    %4373 = vmatprep.subr.bf16.mxu0 0
    %4374 = vmatpush1.bf16.msra.mxu0 %v4058
    %4375 = vmatprep.subr.bf16.mxu0 0
    %4376 = vmatpush1.bf16.msra.mxu0 %v4345
    %4377 = vmatprep.subr.bf16.mxu0 0
    %4378 = vmatpush1.bf16.msra.mxu0 %v4346
    %4379 = vmatprep.subr.bf16.mxu0 0
    %4380 = vmatpush1.bf16.msra.mxu0 %v4347
    %4381 = vmatprep.subr.bf16.mxu0 0
    %4382 = vmatpush1.bf16.msra.mxu0 %v4348
    %4383 = vmatprep.mubr.bf16.mxu0 %v2132
    %4384 = vmatmul.mubr.bf16.gmra.mrb[0].mxu0 %v2131
    %v4385 = vpop.f32.mrb[0].mxu0
    %v4386 = vadd.f32 0.0, %v4385
    %v4387 = vpop.f32.mrb[0].mxu0
    %v4388 = vpop.f32.mrb[0].mxu0
    %v4389 = vadd.f32 0.0, %v4388
    %v4390 = vpop.f32.mrb[0].mxu0
    %4391 = vmatprep.mubr.bf16.mxu0 %v2135
    %4392 = vmatmul.mubr.bf16.gmra.mrb[0].mxu0 %v2134
    %v4393 = vpop.f32.mrb[0].mxu0
    %v4394 = vadd.f32 0.0, %v4393
    %v4395 = vpop.f32.mrb[0].mxu0
    %v4396 = vpop.f32.mrb[0].mxu0
    %v4397 = vadd.f32 0.0, %v4396
    %v4398 = vpop.f32.mrb[0].mxu0
    %4399 = vmatprep.mubr.bf16.mxu0 %v2138
    %4400 = vmatmul.mubr.bf16.gmra.mrb[0].mxu0 %v2137
    %v4401 = vpop.f32.mrb[0].mxu0
    %v4402 = vadd.f32 0.0, %v4401
    %v4403 = vpop.f32.mrb[0].mxu0
    %v4404 = vpop.f32.mrb[0].mxu0
    %v4405 = vadd.f32 0.0, %v4404
    %v4406 = vpop.f32.mrb[0].mxu0
    %4407 = vmatprep.mubr.bf16.mxu0 %v2141
    %4408 = vmatmul.mubr.bf16.gmra.mrb[0].mxu0 %v2140
    %v4409 = vpop.f32.mrb[0].mxu0
    %v4410 = vadd.f32 0.0, %v4409
    %v4411 = vpop.f32.mrb[0].mxu0
    %v4412 = vpop.f32.mrb[0].mxu0
    %v4413 = vadd.f32 0.0, %v4412
    %v4414 = vpop.f32.mrb[0].mxu0
    %4415 = vdwg.mxu0
    %4416 = vmatprep.subr.bf16.mxu0 0
    %4417 = vmatpush1.bf16.msra.mxu0 %v4349
    %4418 = vmatprep.subr.bf16.mxu0 0
    %4419 = vmatpush1.bf16.msra.mxu0 %v4350
    %4420 = vmatprep.subr.bf16.mxu0 0
    %4421 = vmatpush1.bf16.msra.mxu0 0
    %4422 = vmatprep.subr.bf16.mxu0 0
    %4423 = vmatpush1.bf16.msra.mxu0 0
    %4424 = vmatprep.subr.bf16.mxu0 0
    %4425 = vmatpush1.bf16.msra.mxu0 0
    %4426 = vmatprep.subr.bf16.mxu0 0
    %4427 = vmatpush1.bf16.msra.mxu0 0
    %4428 = vmatprep.subr.bf16.mxu0 0
    %4429 = vmatpush1.bf16.msra.mxu0 0
    %4430 = vmatprep.subr.bf16.mxu0 0
    %4431 = vmatpush1.bf16.msra.mxu0 0
    %4432 = vmatprep.subr.bf16.mxu0 0
    %4433 = vmatpush1.bf16.msra.mxu0 0
    %4434 = vmatprep.subr.bf16.mxu0 0
    %4435 = vmatpush1.bf16.msra.mxu0 0
    %4436 = vmatprep.subr.bf16.mxu0 0
    %4437 = vmatpush1.bf16.msra.mxu0 0
    %4438 = vmatprep.subr.bf16.mxu0 0
    %4439 = vmatpush1.bf16.msra.mxu0 0
    %4440 = vmatprep.subr.bf16.mxu0 0
    %4441 = vmatpush1.bf16.msra.mxu0 0
    %4442 = vmatprep.subr.bf16.mxu0 0
    %4443 = vmatpush1.bf16.msra.mxu0 0
    %4444 = vmatprep.subr.bf16.mxu0 0
    %4445 = vmatpush1.bf16.msra.mxu0 0
    %4446 = vmatprep.subr.bf16.mxu0 0
    %4447 = vmatpush1.bf16.msra.mxu0 0
    %4448 = vmatprep.mubr.bf16.mxu0 0
    %4449 = vmatmul.mubr.bf16.gmra.mrb[0].mxu0 %v2153
    %v4450 = vpop.f32.mrb[0].mxu0
    %v4451 = vadd.f32 %v4386, %v4450
    %v4452 = vpop.f32.mrb[0].mxu0
    %v4453 = vpop.f32.mrb[0].mxu0
    %v4454 = vadd.f32 %v4389, %v4453
    %v4455 = vpop.f32.mrb[0].mxu0
    %4456 = vmatprep.mubr.bf16.mxu0 0
    %4457 = vmatmul.mubr.bf16.gmra.mrb[0].mxu0 %v2156
    %v4458 = vpop.f32.mrb[0].mxu0
    %v4459 = vadd.f32 %v4394, %v4458
    %v4460 = vpop.f32.mrb[0].mxu0
    %v4461 = vpop.f32.mrb[0].mxu0
    %v4462 = vadd.f32 %v4397, %v4461
    %v4463 = vpop.f32.mrb[0].mxu0
    %4464 = vmatprep.mubr.bf16.mxu0 0
    %4465 = vmatmul.mubr.bf16.gmra.mrb[0].mxu0 %v2159
    %v4466 = vpop.f32.mrb[0].mxu0
    %v4467 = vadd.f32 %v4402, %v4466
    %v4468 = vpop.f32.mrb[0].mxu0
    %v4469 = vpop.f32.mrb[0].mxu0
    %v4470 = vadd.f32 %v4405, %v4469
    %v4471 = vpop.f32.mrb[0].mxu0
    %4472 = vmatprep.mubr.bf16.mxu0 0
    %4473 = vmatmul.mubr.bf16.gmra.mrb[0].mxu0 %v2162
    %v4474 = vpop.f32.mrb[0].mxu0
    %v4475 = vadd.f32 %v4410, %v4474
    %v4476 = vpop.f32.mrb[0].mxu0
    %v4477 = vpop.f32.mrb[0].mxu0
    %v4478 = vadd.f32 %v4413, %v4477
    %v4479 = vpop.f32.mrb[0].mxu0
    %4480 = vdwg.mxu0
    %v4481 = vmax.f32 %v4337, %v4451
    %v4482 = vmax.f32 %v4338, %v4454
    %v4483 = vmax.f32 %v4339, %v4459
    %v4484 = vmax.f32 %v4340, %v4462
    %v4485 = vmax.f32 %v4341, %v4467
    %v4486 = vmax.f32 %v4342, %v4470
    %v4487 = vmax.f32 %v4343, %v4475
    %v4488 = vmax.f32 %v4344, %v4478
    %v4489 = vld [vmem:[%s2453 + $0x70] sm:$0xff]
    %v4490 = vld [vmem:[%s2453 + $0x78] sm:$0xff]
    %v4491 = vld [vmem:[%s2453 + $0x80] sm:$0xff]
    %v4492 = vld [vmem:[%s2453 + $0x88] sm:$0xff]
    %v4493 = vld [vmem:[%s2453 + $0x90] sm:$0xff]
    %v4494 = vld [vmem:[%s2453 + $0x98] sm:$0xff]
    %4495 = vmatprep.subr.bf16.mxu0 0
    %4496 = vmatpush1.bf16.msra.mxu0 %v4195
    %4497 = vmatprep.subr.bf16.mxu0 0
    %4498 = vmatpush1.bf16.msra.mxu0 %v4196
    %4499 = vmatprep.subr.bf16.mxu0 0
    %4500 = vmatpush1.bf16.msra.mxu0 %v4197
    %4501 = vmatprep.subr.bf16.mxu0 0
    %4502 = vmatpush1.bf16.msra.mxu0 %v4198
    %4503 = vmatprep.subr.bf16.mxu0 0
    %4504 = vmatpush1.bf16.msra.mxu0 %v4199
    %4505 = vmatprep.subr.bf16.mxu0 0
    %4506 = vmatpush1.bf16.msra.mxu0 %v4200
    %4507 = vmatprep.subr.bf16.mxu0 0
    %4508 = vmatpush1.bf16.msra.mxu0 %v4201
    %4509 = vmatprep.subr.bf16.mxu0 0
    %4510 = vmatpush1.bf16.msra.mxu0 %v4202
    %4511 = vmatprep.subr.bf16.mxu0 0
    %4512 = vmatpush1.bf16.msra.mxu0 %v4203
    %4513 = vmatprep.subr.bf16.mxu0 0
    %4514 = vmatpush1.bf16.msra.mxu0 %v4204
    %4515 = vmatprep.subr.bf16.mxu0 0
    %4516 = vmatpush1.bf16.msra.mxu0 %v4205
    %4517 = vmatprep.subr.bf16.mxu0 0
    %4518 = vmatpush1.bf16.msra.mxu0 %v4206
    %4519 = vmatprep.subr.bf16.mxu0 0
    %4520 = vmatpush1.bf16.msra.mxu0 %v4489
    %4521 = vmatprep.subr.bf16.mxu0 0
    %4522 = vmatpush1.bf16.msra.mxu0 %v4490
    %4523 = vmatprep.subr.bf16.mxu0 0
    %4524 = vmatpush1.bf16.msra.mxu0 %v4491
    %4525 = vmatprep.subr.bf16.mxu0 0
    %4526 = vmatpush1.bf16.msra.mxu0 %v4492
    %4527 = vmatprep.mubr.bf16.mxu0 %v2132
    %4528 = vmatmul.mubr.bf16.gmra.mrb[0].mxu0 %v2131
    %v4529 = vpop.f32.mrb[0].mxu0
    %v4530 = vadd.f32 0.0, %v4529
    %v4531 = vpop.f32.mrb[0].mxu0
    %v4532 = vpop.f32.mrb[0].mxu0
    %v4533 = vadd.f32 0.0, %v4532
    %v4534 = vpop.f32.mrb[0].mxu0
    %4535 = vmatprep.mubr.bf16.mxu0 %v2135
    %4536 = vmatmul.mubr.bf16.gmra.mrb[0].mxu0 %v2134
    %v4537 = vpop.f32.mrb[0].mxu0
    %v4538 = vadd.f32 0.0, %v4537
    %v4539 = vpop.f32.mrb[0].mxu0
    %v4540 = vpop.f32.mrb[0].mxu0
    %v4541 = vadd.f32 0.0, %v4540
    %v4542 = vpop.f32.mrb[0].mxu0
    %4543 = vmatprep.mubr.bf16.mxu0 %v2138
    %4544 = vmatmul.mubr.bf16.gmra.mrb[0].mxu0 %v2137
    %v4545 = vpop.f32.mrb[0].mxu0
    %v4546 = vadd.f32 0.0, %v4545
    %v4547 = vpop.f32.mrb[0].mxu0
    %v4548 = vpop.f32.mrb[0].mxu0
    %v4549 = vadd.f32 0.0, %v4548
    %v4550 = vpop.f32.mrb[0].mxu0
    %4551 = vmatprep.mubr.bf16.mxu0 %v2141
    %4552 = vmatmul.mubr.bf16.gmra.mrb[0].mxu0 %v2140
    %v4553 = vpop.f32.mrb[0].mxu0
    %v4554 = vadd.f32 0.0, %v4553
    %v4555 = vpop.f32.mrb[0].mxu0
    %v4556 = vpop.f32.mrb[0].mxu0
    %v4557 = vadd.f32 0.0, %v4556
    %v4558 = vpop.f32.mrb[0].mxu0
    %4559 = vdwg.mxu0
    %4560 = vmatprep.subr.bf16.mxu0 0
    %4561 = vmatpush1.bf16.msra.mxu0 %v4493
    %4562 = vmatprep.subr.bf16.mxu0 0
    %4563 = vmatpush1.bf16.msra.mxu0 %v4494
    %4564 = vmatprep.subr.bf16.mxu0 0
    %4565 = vmatpush1.bf16.msra.mxu0 0
    %4566 = vmatprep.subr.bf16.mxu0 0
    %4567 = vmatpush1.bf16.msra.mxu0 0
    %4568 = vmatprep.subr.bf16.mxu0 0
    %4569 = vmatpush1.bf16.msra.mxu0 0
    %4570 = vmatprep.subr.bf16.mxu0 0
    %4571 = vmatpush1.bf16.msra.mxu0 0
    %4572 = vmatprep.subr.bf16.mxu0 0
    %4573 = vmatpush1.bf16.msra.mxu0 0
    %4574 = vmatprep.subr.bf16.mxu0 0
    %4575 = vmatpush1.bf16.msra.mxu0 0
    %4576 = vmatprep.subr.bf16.mxu0 0
    %4577 = vmatpush1.bf16.msra.mxu0 0
    %4578 = vmatprep.subr.bf16.mxu0 0
    %4579 = vmatpush1.bf16.msra.mxu0 0
    %4580 = vmatprep.subr.bf16.mxu0 0
    %4581 = vmatpush1.bf16.msra.mxu0 0
    %4582 = vmatprep.subr.bf16.mxu0 0
    %4583 = vmatpush1.bf16.msra.mxu0 0
    %4584 = vmatprep.subr.bf16.mxu0 0
    %4585 = vmatpush1.bf16.msra.mxu0 0
    %4586 = vmatprep.subr.bf16.mxu0 0
    %4587 = vmatpush1.bf16.msra.mxu0 0
    %4588 = vmatprep.subr.bf16.mxu0 0
    %4589 = vmatpush1.bf16.msra.mxu0 0
    %4590 = vmatprep.subr.bf16.mxu0 0
    %4591 = vmatpush1.bf16.msra.mxu0 0
    %4592 = vmatprep.mubr.bf16.mxu0 0
    %4593 = vmatmul.mubr.bf16.gmra.mrb[0].mxu0 %v2153
    %v4594 = vpop.f32.mrb[0].mxu0
    %v4595 = vadd.f32 %v4530, %v4594
    %v4596 = vpop.f32.mrb[0].mxu0
    %v4597 = vpop.f32.mrb[0].mxu0
    %v4598 = vadd.f32 %v4533, %v4597
    %v4599 = vpop.f32.mrb[0].mxu0
    %4600 = vmatprep.mubr.bf16.mxu0 0
    %4601 = vmatmul.mubr.bf16.gmra.mrb[0].mxu0 %v2156
    %v4602 = vpop.f32.mrb[0].mxu0
    %v4603 = vadd.f32 %v4538, %v4602
    %v4604 = vpop.f32.mrb[0].mxu0
    %v4605 = vpop.f32.mrb[0].mxu0
    %v4606 = vadd.f32 %v4541, %v4605
    %v4607 = vpop.f32.mrb[0].mxu0
    %4608 = vmatprep.mubr.bf16.mxu0 0
    %4609 = vmatmul.mubr.bf16.gmra.mrb[0].mxu0 %v2159
    %v4610 = vpop.f32.mrb[0].mxu0
    %v4611 = vadd.f32 %v4546, %v4610
    %v4612 = vpop.f32.mrb[0].mxu0
    %v4613 = vpop.f32.mrb[0].mxu0
    %v4614 = vadd.f32 %v4549, %v4613
    %v4615 = vpop.f32.mrb[0].mxu0
    %4616 = vmatprep.mubr.bf16.mxu0 0
    %4617 = vmatmul.mubr.bf16.gmra.mrb[0].mxu0 %v2162
    %v4618 = vpop.f32.mrb[0].mxu0
    %v4619 = vadd.f32 %v4554, %v4618
    %v4620 = vpop.f32.mrb[0].mxu0
    %v4621 = vpop.f32.mrb[0].mxu0
    %v4622 = vadd.f32 %v4557, %v4621
    %v4623 = vpop.f32.mrb[0].mxu0
    %4624 = vdwg.mxu0
    %v4625 = vmax.f32 %v4481, %v4595
    %v4626 = vmax.f32 %v4482, %v4598
    %v4627 = vmax.f32 %v4483, %v4603
    %v4628 = vmax.f32 %v4484, %v4606
    %v4629 = vmax.f32 %v4485, %v4611
    %v4630 = vmax.f32 %v4486, %v4614
    %v4631 = vmax.f32 %v4487, %v4619
    %v4632 = vmax.f32 %v4488, %v4622
    %v4633 = vadd.f32 %v4625, %v2745
    %v4634 = vadd.f32 %v4626, %v2750
    %v4635 = vadd.f32 %v4627, %v2755
    %v4636 = vadd.f32 %v4628, %v2760
    %v4637 = vadd.f32 %v4629, %v2765
    %v4638 = vadd.f32 %v4630, %v2770
    %v4639 = vadd.f32 %v4631, %v2775
    %v4640 = vadd.f32 %v4632, %v2780
    %v4641 = vmax.f32 %v4633, 0.0
    %v4642 = vmax.f32 %v4634, 0.0
    %v4643 = vmax.f32 %v4635, 0.0
    %v4644 = vmax.f32 %v4636, 0.0
    %v4645 = vmax.f32 %v4637, 0.0
    %v4646 = vmax.f32 %v4638, 0.0
    %v4647 = vmax.f32 %v4639, 0.0
    %v4648 = vmax.f32 %v4640, 0.0
    %v4649 = vpack.c.bf16 %v4642, %v4641
    %v4650 = vpack.c.bf16 %v4644, %v4643
    %v4651 = vpack.c.bf16 %v4646, %v4645
    %v4652 = vpack.c.bf16 %v4648, %v4647
    %4653 = vst [vmem:[%s2804 + $0x60] sm:$0xff] %v4649
    %4654 = vst [vmem:[%s2804 + $0x68] sm:$0xff] %v4650
    %4655 = vst [vmem:[%s2804 + $0x70] sm:$0xff] %v4651
    %4656 = vst [vmem:[%s2804 + $0x78] sm:$0xff] %v4652
    %v4657 = vld [vmem:[%s2064 + $0x80] sm:$0xff]
    %v4658 = vld [vmem:[%s2064 + $0x88] sm:$0xff]
    %v4659 = vld [vmem:[%s2064 + $0x90] sm:$0xff]
    %v4660 = vld [vmem:[%s2064 + $0x98] sm:$0xff]
    %v4661 = vld [vmem:[%s2064 + $0xa0] sm:$0xff]
    %v4662 = vld [vmem:[%s2064 + $0xa8] sm:$0xff]
    %v4663 = vld [vmem:[%s2074 + $0x80] sm:$0xff]
    %v4664 = vld [vmem:[%s2074 + $0x88] sm:$0xff]
    %v4665 = vld [vmem:[%s2074 + $0x90] sm:$0xff]
    %v4666 = vld [vmem:[%s2074 + $0x98] sm:$0xff]
    %v4667 = vld [vmem:[%s2074 + $0xa0] sm:$0xff]
    %v4668 = vld [vmem:[%s2074 + $0xa8] sm:$0xff]
    %v4669 = vld [vmem:[%s2084 + $0x80] sm:$0xff]
    %v4670 = vld [vmem:[%s2084 + $0x88] sm:$0xff]
    %v4671 = vld [vmem:[%s2084 + $0x90] sm:$0xff]
    %v4672 = vld [vmem:[%s2084 + $0x98] sm:$0xff]
    %v4673 = vld [vmem:[%s2084 + $0xa0] sm:$0xff]
    %v4674 = vld [vmem:[%s2084 + $0xa8] sm:$0xff]
    %4675 = vmatprep.subr.bf16.mxu0 0
    %4676 = vmatpush1.bf16.msra.mxu0 %v4657
    %4677 = vmatprep.subr.bf16.mxu0 0
    %4678 = vmatpush1.bf16.msra.mxu0 %v4658
    %4679 = vmatprep.subr.bf16.mxu0 0
    %4680 = vmatpush1.bf16.msra.mxu0 %v4659
    %4681 = vmatprep.subr.bf16.mxu0 0
    %4682 = vmatpush1.bf16.msra.mxu0 %v4660
    %4683 = vmatprep.subr.bf16.mxu0 0
    %4684 = vmatpush1.bf16.msra.mxu0 %v4661
    %4685 = vmatprep.subr.bf16.mxu0 0
    %4686 = vmatpush1.bf16.msra.mxu0 %v4662
    %4687 = vmatprep.subr.bf16.mxu0 0
    %4688 = vmatpush1.bf16.msra.mxu0 %v4663
    %4689 = vmatprep.subr.bf16.mxu0 0
    %4690 = vmatpush1.bf16.msra.mxu0 %v4664
    %4691 = vmatprep.subr.bf16.mxu0 0
    %4692 = vmatpush1.bf16.msra.mxu0 %v4665
    %4693 = vmatprep.subr.bf16.mxu0 0
    %4694 = vmatpush1.bf16.msra.mxu0 %v4666
    %4695 = vmatprep.subr.bf16.mxu0 0
    %4696 = vmatpush1.bf16.msra.mxu0 %v4667
    %4697 = vmatprep.subr.bf16.mxu0 0
    %4698 = vmatpush1.bf16.msra.mxu0 %v4668
    %4699 = vmatprep.subr.bf16.mxu0 0
    %4700 = vmatpush1.bf16.msra.mxu0 %v4669
    %4701 = vmatprep.subr.bf16.mxu0 0
    %4702 = vmatpush1.bf16.msra.mxu0 %v4670
    %4703 = vmatprep.subr.bf16.mxu0 0
    %4704 = vmatpush1.bf16.msra.mxu0 %v4671
    %4705 = vmatprep.subr.bf16.mxu0 0
    %4706 = vmatpush1.bf16.msra.mxu0 %v4672
    %4707 = vmatprep.mubr.bf16.mxu0 %v2132
    %4708 = vmatmul.mubr.bf16.gmra.mrb[0].mxu0 %v2131
    %v4709 = vpop.f32.mrb[0].mxu0
    %v4710 = vadd.f32 0.0, %v4709
    %v4711 = vpop.f32.mrb[0].mxu0
    %v4712 = vpop.f32.mrb[0].mxu0
    %v4713 = vadd.f32 0.0, %v4712
    %v4714 = vpop.f32.mrb[0].mxu0
    %4715 = vmatprep.mubr.bf16.mxu0 %v2135
    %4716 = vmatmul.mubr.bf16.gmra.mrb[0].mxu0 %v2134
    %v4717 = vpop.f32.mrb[0].mxu0
    %v4718 = vadd.f32 0.0, %v4717
    %v4719 = vpop.f32.mrb[0].mxu0
    %v4720 = vpop.f32.mrb[0].mxu0
    %v4721 = vadd.f32 0.0, %v4720
    %v4722 = vpop.f32.mrb[0].mxu0
    %4723 = vmatprep.mubr.bf16.mxu0 %v2138
    %4724 = vmatmul.mubr.bf16.gmra.mrb[0].mxu0 %v2137
    %v4725 = vpop.f32.mrb[0].mxu0
    %v4726 = vadd.f32 0.0, %v4725
    %v4727 = vpop.f32.mrb[0].mxu0
    %v4728 = vpop.f32.mrb[0].mxu0
    %v4729 = vadd.f32 0.0, %v4728
    %v4730 = vpop.f32.mrb[0].mxu0
    %4731 = vmatprep.mubr.bf16.mxu0 %v2141
    %4732 = vmatmul.mubr.bf16.gmra.mrb[0].mxu0 %v2140
    %v4733 = vpop.f32.mrb[0].mxu0
    %v4734 = vadd.f32 0.0, %v4733
    %v4735 = vpop.f32.mrb[0].mxu0
    %v4736 = vpop.f32.mrb[0].mxu0
    %v4737 = vadd.f32 0.0, %v4736
    %v4738 = vpop.f32.mrb[0].mxu0
    %4739 = vdwg.mxu0
    %4740 = vmatprep.subr.bf16.mxu0 0
    %4741 = vmatpush1.bf16.msra.mxu0 %v4673
    %4742 = vmatprep.subr.bf16.mxu0 0
    %4743 = vmatpush1.bf16.msra.mxu0 %v4674
    %4744 = vmatprep.subr.bf16.mxu0 0
    %4745 = vmatpush1.bf16.msra.mxu0 0
    %4746 = vmatprep.subr.bf16.mxu0 0
    %4747 = vmatpush1.bf16.msra.mxu0 0
    %4748 = vmatprep.subr.bf16.mxu0 0
    %4749 = vmatpush1.bf16.msra.mxu0 0
    %4750 = vmatprep.subr.bf16.mxu0 0
    %4751 = vmatpush1.bf16.msra.mxu0 0
    %4752 = vmatprep.subr.bf16.mxu0 0
    %4753 = vmatpush1.bf16.msra.mxu0 0
    %4754 = vmatprep.subr.bf16.mxu0 0
    %4755 = vmatpush1.bf16.msra.mxu0 0
    %4756 = vmatprep.subr.bf16.mxu0 0
    %4757 = vmatpush1.bf16.msra.mxu0 0
    %4758 = vmatprep.subr.bf16.mxu0 0
    %4759 = vmatpush1.bf16.msra.mxu0 0
    %4760 = vmatprep.subr.bf16.mxu0 0
    %4761 = vmatpush1.bf16.msra.mxu0 0
    %4762 = vmatprep.subr.bf16.mxu0 0
    %4763 = vmatpush1.bf16.msra.mxu0 0
    %4764 = vmatprep.subr.bf16.mxu0 0
    %4765 = vmatpush1.bf16.msra.mxu0 0
    %4766 = vmatprep.subr.bf16.mxu0 0
    %4767 = vmatpush1.bf16.msra.mxu0 0
    %4768 = vmatprep.subr.bf16.mxu0 0
    %4769 = vmatpush1.bf16.msra.mxu0 0
    %4770 = vmatprep.subr.bf16.mxu0 0
    %4771 = vmatpush1.bf16.msra.mxu0 0
    %4772 = vmatprep.mubr.bf16.mxu0 0
    %4773 = vmatmul.mubr.bf16.gmra.mrb[0].mxu0 %v2153
    %v4774 = vpop.f32.mrb[0].mxu0
    %v4775 = vadd.f32 %v4710, %v4774
    %v4776 = vpop.f32.mrb[0].mxu0
    %v4777 = vpop.f32.mrb[0].mxu0
    %v4778 = vadd.f32 %v4713, %v4777
    %v4779 = vpop.f32.mrb[0].mxu0
    %4780 = vmatprep.mubr.bf16.mxu0 0
    %4781 = vmatmul.mubr.bf16.gmra.mrb[0].mxu0 %v2156
    %v4782 = vpop.f32.mrb[0].mxu0
    %v4783 = vadd.f32 %v4718, %v4782
    %v4784 = vpop.f32.mrb[0].mxu0
    %v4785 = vpop.f32.mrb[0].mxu0
    %v4786 = vadd.f32 %v4721, %v4785
    %v4787 = vpop.f32.mrb[0].mxu0
    %4788 = vmatprep.mubr.bf16.mxu0 0
    %4789 = vmatmul.mubr.bf16.gmra.mrb[0].mxu0 %v2159
    %v4790 = vpop.f32.mrb[0].mxu0
    %v4791 = vadd.f32 %v4726, %v4790
    %v4792 = vpop.f32.mrb[0].mxu0
    %v4793 = vpop.f32.mrb[0].mxu0
    %v4794 = vadd.f32 %v4729, %v4793
    %v4795 = vpop.f32.mrb[0].mxu0
    %4796 = vmatprep.mubr.bf16.mxu0 0
    %4797 = vmatmul.mubr.bf16.gmra.mrb[0].mxu0 %v2162
    %v4798 = vpop.f32.mrb[0].mxu0
    %v4799 = vadd.f32 %v4734, %v4798
    %v4800 = vpop.f32.mrb[0].mxu0
    %v4801 = vpop.f32.mrb[0].mxu0
    %v4802 = vadd.f32 %v4737, %v4801
    %v4803 = vpop.f32.mrb[0].mxu0
    %4804 = vdwg.mxu0
    %v4805 = vld [vmem:[%s2064 + $0x90] sm:$0xff]
    %v4806 = vld [vmem:[%s2064 + $0x98] sm:$0xff]
    %v4807 = vld [vmem:[%s2064 + $0xa0] sm:$0xff]
    %v4808 = vld [vmem:[%s2064 + $0xa8] sm:$0xff]
    %v4809 = vld [vmem:[%s2064 + $0xb0] sm:$0xff]
    %v4810 = vld [vmem:[%s2064 + $0xb8] sm:$0xff]
    %v4811 = vld [vmem:[%s2074 + $0x90] sm:$0xff]
    %v4812 = vld [vmem:[%s2074 + $0x98] sm:$0xff]
    %v4813 = vld [vmem:[%s2074 + $0xa0] sm:$0xff]
    %v4814 = vld [vmem:[%s2074 + $0xa8] sm:$0xff]
    %v4815 = vld [vmem:[%s2074 + $0xb0] sm:$0xff]
    %v4816 = vld [vmem:[%s2074 + $0xb8] sm:$0xff]
    %v4817 = vld [vmem:[%s2084 + $0x90] sm:$0xff]
    %v4818 = vld [vmem:[%s2084 + $0x98] sm:$0xff]
    %v4819 = vld [vmem:[%s2084 + $0xa0] sm:$0xff]
    %v4820 = vld [vmem:[%s2084 + $0xa8] sm:$0xff]
    %v4821 = vld [vmem:[%s2084 + $0xb0] sm:$0xff]
    %v4822 = vld [vmem:[%s2084 + $0xb8] sm:$0xff]
    %4823 = vmatprep.subr.bf16.mxu0 0
    %4824 = vmatpush1.bf16.msra.mxu0 %v4805
    %4825 = vmatprep.subr.bf16.mxu0 0
    %4826 = vmatpush1.bf16.msra.mxu0 %v4806
    %4827 = vmatprep.subr.bf16.mxu0 0
    %4828 = vmatpush1.bf16.msra.mxu0 %v4807
    %4829 = vmatprep.subr.bf16.mxu0 0
    %4830 = vmatpush1.bf16.msra.mxu0 %v4808
    %4831 = vmatprep.subr.bf16.mxu0 0
    %4832 = vmatpush1.bf16.msra.mxu0 %v4809
    %4833 = vmatprep.subr.bf16.mxu0 0
    %4834 = vmatpush1.bf16.msra.mxu0 %v4810
    %4835 = vmatprep.subr.bf16.mxu0 0
    %4836 = vmatpush1.bf16.msra.mxu0 %v4811
    %4837 = vmatprep.subr.bf16.mxu0 0
    %4838 = vmatpush1.bf16.msra.mxu0 %v4812
    %4839 = vmatprep.subr.bf16.mxu0 0
    %4840 = vmatpush1.bf16.msra.mxu0 %v4813
    %4841 = vmatprep.subr.bf16.mxu0 0
    %4842 = vmatpush1.bf16.msra.mxu0 %v4814
    %4843 = vmatprep.subr.bf16.mxu0 0
    %4844 = vmatpush1.bf16.msra.mxu0 %v4815
    %4845 = vmatprep.subr.bf16.mxu0 0
    %4846 = vmatpush1.bf16.msra.mxu0 %v4816
    %4847 = vmatprep.subr.bf16.mxu0 0
    %4848 = vmatpush1.bf16.msra.mxu0 %v4817
    %4849 = vmatprep.subr.bf16.mxu0 0
    %4850 = vmatpush1.bf16.msra.mxu0 %v4818
    %4851 = vmatprep.subr.bf16.mxu0 0
    %4852 = vmatpush1.bf16.msra.mxu0 %v4819
    %4853 = vmatprep.subr.bf16.mxu0 0
    %4854 = vmatpush1.bf16.msra.mxu0 %v4820
    %4855 = vmatprep.mubr.bf16.mxu0 %v2132
    %4856 = vmatmul.mubr.bf16.gmra.mrb[0].mxu0 %v2131
    %v4857 = vpop.f32.mrb[0].mxu0
    %v4858 = vadd.f32 0.0, %v4857
    %v4859 = vpop.f32.mrb[0].mxu0
    %v4860 = vpop.f32.mrb[0].mxu0
    %v4861 = vadd.f32 0.0, %v4860
    %v4862 = vpop.f32.mrb[0].mxu0
    %4863 = vmatprep.mubr.bf16.mxu0 %v2135
    %4864 = vmatmul.mubr.bf16.gmra.mrb[0].mxu0 %v2134
    %v4865 = vpop.f32.mrb[0].mxu0
    %v4866 = vadd.f32 0.0, %v4865
    %v4867 = vpop.f32.mrb[0].mxu0
    %v4868 = vpop.f32.mrb[0].mxu0
    %v4869 = vadd.f32 0.0, %v4868
    %v4870 = vpop.f32.mrb[0].mxu0
    %4871 = vmatprep.mubr.bf16.mxu0 %v2138
    %4872 = vmatmul.mubr.bf16.gmra.mrb[0].mxu0 %v2137
    %v4873 = vpop.f32.mrb[0].mxu0
    %v4874 = vadd.f32 0.0, %v4873
    %v4875 = vpop.f32.mrb[0].mxu0
    %v4876 = vpop.f32.mrb[0].mxu0
    %v4877 = vadd.f32 0.0, %v4876
    %v4878 = vpop.f32.mrb[0].mxu0
    %4879 = vmatprep.mubr.bf16.mxu0 %v2141
    %4880 = vmatmul.mubr.bf16.gmra.mrb[0].mxu0 %v2140
    %v4881 = vpop.f32.mrb[0].mxu0
    %v4882 = vadd.f32 0.0, %v4881
    %v4883 = vpop.f32.mrb[0].mxu0
    %v4884 = vpop.f32.mrb[0].mxu0
    %v4885 = vadd.f32 0.0, %v4884
    %v4886 = vpop.f32.mrb[0].mxu0
    %4887 = vdwg.mxu0
    %4888 = vmatprep.subr.bf16.mxu0 0
    %4889 = vmatpush1.bf16.msra.mxu0 %v4821
    %4890 = vmatprep.subr.bf16.mxu0 0
    %4891 = vmatpush1.bf16.msra.mxu0 %v4822
    %4892 = vmatprep.subr.bf16.mxu0 0
    %4893 = vmatpush1.bf16.msra.mxu0 0
    %4894 = vmatprep.subr.bf16.mxu0 0
    %4895 = vmatpush1.bf16.msra.mxu0 0
    %4896 = vmatprep.subr.bf16.mxu0 0
    %4897 = vmatpush1.bf16.msra.mxu0 0
    %4898 = vmatprep.subr.bf16.mxu0 0
    %4899 = vmatpush1.bf16.msra.mxu0 0
    %4900 = vmatprep.subr.bf16.mxu0 0
    %4901 = vmatpush1.bf16.msra.mxu0 0
    %4902 = vmatprep.subr.bf16.mxu0 0
    %4903 = vmatpush1.bf16.msra.mxu0 0
    %4904 = vmatprep.subr.bf16.mxu0 0
    %4905 = vmatpush1.bf16.msra.mxu0 0
    %4906 = vmatprep.subr.bf16.mxu0 0
    %4907 = vmatpush1.bf16.msra.mxu0 0
    %4908 = vmatprep.subr.bf16.mxu0 0
    %4909 = vmatpush1.bf16.msra.mxu0 0
    %4910 = vmatprep.subr.bf16.mxu0 0
    %4911 = vmatpush1.bf16.msra.mxu0 0
    %4912 = vmatprep.subr.bf16.mxu0 0
    %4913 = vmatpush1.bf16.msra.mxu0 0
    %4914 = vmatprep.subr.bf16.mxu0 0
    %4915 = vmatpush1.bf16.msra.mxu0 0
    %4916 = vmatprep.subr.bf16.mxu0 0
    %4917 = vmatpush1.bf16.msra.mxu0 0
    %4918 = vmatprep.subr.bf16.mxu0 0
    %4919 = vmatpush1.bf16.msra.mxu0 0
    %4920 = vmatprep.mubr.bf16.mxu0 0
    %4921 = vmatmul.mubr.bf16.gmra.mrb[0].mxu0 %v2153
    %v4922 = vpop.f32.mrb[0].mxu0
    %v4923 = vadd.f32 %v4858, %v4922
    %v4924 = vpop.f32.mrb[0].mxu0
    %v4925 = vpop.f32.mrb[0].mxu0
    %v4926 = vadd.f32 %v4861, %v4925
    %v4927 = vpop.f32.mrb[0].mxu0
    %4928 = vmatprep.mubr.bf16.mxu0 0
    %4929 = vmatmul.mubr.bf16.gmra.mrb[0].mxu0 %v2156
    %v4930 = vpop.f32.mrb[0].mxu0
    %v4931 = vadd.f32 %v4866, %v4930
    %v4932 = vpop.f32.mrb[0].mxu0
    %v4933 = vpop.f32.mrb[0].mxu0
    %v4934 = vadd.f32 %v4869, %v4933
    %v4935 = vpop.f32.mrb[0].mxu0
    %4936 = vmatprep.mubr.bf16.mxu0 0
    %4937 = vmatmul.mubr.bf16.gmra.mrb[0].mxu0 %v2159
    %v4938 = vpop.f32.mrb[0].mxu0
    %v4939 = vadd.f32 %v4874, %v4938
    %v4940 = vpop.f32.mrb[0].mxu0
    %v4941 = vpop.f32.mrb[0].mxu0
    %v4942 = vadd.f32 %v4877, %v4941
    %v4943 = vpop.f32.mrb[0].mxu0
    %4944 = vmatprep.mubr.bf16.mxu0 0
    %4945 = vmatmul.mubr.bf16.gmra.mrb[0].mxu0 %v2162
    %v4946 = vpop.f32.mrb[0].mxu0
    %v4947 = vadd.f32 %v4882, %v4946
    %v4948 = vpop.f32.mrb[0].mxu0
    %v4949 = vpop.f32.mrb[0].mxu0
    %v4950 = vadd.f32 %v4885, %v4949
    %v4951 = vpop.f32.mrb[0].mxu0
    %4952 = vdwg.mxu0
    %v4953 = vmax.f32 %v4775, %v4923
    %v4954 = vmax.f32 %v4778, %v4926
    %v4955 = vmax.f32 %v4783, %v4931
    %v4956 = vmax.f32 %v4786, %v4934
    %v4957 = vmax.f32 %v4791, %v4939
    %v4958 = vmax.f32 %v4794, %v4942
    %v4959 = vmax.f32 %v4799, %v4947
    %v4960 = vmax.f32 %v4802, %v4950
    %v4961 = vld [vmem:[%s2453 + $0x80] sm:$0xff]
    %v4962 = vld [vmem:[%s2453 + $0x88] sm:$0xff]
    %v4963 = vld [vmem:[%s2453 + $0x90] sm:$0xff]
    %v4964 = vld [vmem:[%s2453 + $0x98] sm:$0xff]
    %v4965 = vld [vmem:[%s2453 + $0xa0] sm:$0xff]
    %v4966 = vld [vmem:[%s2453 + $0xa8] sm:$0xff]
    %4967 = vmatprep.subr.bf16.mxu0 0
    %4968 = vmatpush1.bf16.msra.mxu0 %v4663
    %4969 = vmatprep.subr.bf16.mxu0 0
    %4970 = vmatpush1.bf16.msra.mxu0 %v4664
    %4971 = vmatprep.subr.bf16.mxu0 0
    %4972 = vmatpush1.bf16.msra.mxu0 %v4665
    %4973 = vmatprep.subr.bf16.mxu0 0
    %4974 = vmatpush1.bf16.msra.mxu0 %v4666
    %4975 = vmatprep.subr.bf16.mxu0 0
    %4976 = vmatpush1.bf16.msra.mxu0 %v4667
    %4977 = vmatprep.subr.bf16.mxu0 0
    %4978 = vmatpush1.bf16.msra.mxu0 %v4668
    %4979 = vmatprep.subr.bf16.mxu0 0
    %4980 = vmatpush1.bf16.msra.mxu0 %v4669
    %4981 = vmatprep.subr.bf16.mxu0 0
    %4982 = vmatpush1.bf16.msra.mxu0 %v4670
    %4983 = vmatprep.subr.bf16.mxu0 0
    %4984 = vmatpush1.bf16.msra.mxu0 %v4671
    %4985 = vmatprep.subr.bf16.mxu0 0
    %4986 = vmatpush1.bf16.msra.mxu0 %v4672
    %4987 = vmatprep.subr.bf16.mxu0 0
    %4988 = vmatpush1.bf16.msra.mxu0 %v4673
    %4989 = vmatprep.subr.bf16.mxu0 0
    %4990 = vmatpush1.bf16.msra.mxu0 %v4674
    %4991 = vmatprep.subr.bf16.mxu0 0
    %4992 = vmatpush1.bf16.msra.mxu0 %v4961
    %4993 = vmatprep.subr.bf16.mxu0 0
    %4994 = vmatpush1.bf16.msra.mxu0 %v4962
    %4995 = vmatprep.subr.bf16.mxu0 0
    %4996 = vmatpush1.bf16.msra.mxu0 %v4963
    %4997 = vmatprep.subr.bf16.mxu0 0
    %4998 = vmatpush1.bf16.msra.mxu0 %v4964
    %4999 = vmatprep.mubr.bf16.mxu0 %v2132
    %5000 = vmatmul.mubr.bf16.gmra.mrb[0].mxu0 %v2131
    %v5001 = vpop.f32.mrb[0].mxu0
    %v5002 = vadd.f32 0.0, %v5001
    %v5003 = vpop.f32.mrb[0].mxu0
    %v5004 = vpop.f32.mrb[0].mxu0
    %v5005 = vadd.f32 0.0, %v5004
    %v5006 = vpop.f32.mrb[0].mxu0
    %5007 = vmatprep.mubr.bf16.mxu0 %v2135
    %5008 = vmatmul.mubr.bf16.gmra.mrb[0].mxu0 %v2134
    %v5009 = vpop.f32.mrb[0].mxu0
    %v5010 = vadd.f32 0.0, %v5009
    %v5011 = vpop.f32.mrb[0].mxu0
    %v5012 = vpop.f32.mrb[0].mxu0
    %v5013 = vadd.f32 0.0, %v5012
    %v5014 = vpop.f32.mrb[0].mxu0
    %5015 = vmatprep.mubr.bf16.mxu0 %v2138
    %5016 = vmatmul.mubr.bf16.gmra.mrb[0].mxu0 %v2137
    %v5017 = vpop.f32.mrb[0].mxu0
    %v5018 = vadd.f32 0.0, %v5017
    %v5019 = vpop.f32.mrb[0].mxu0
    %v5020 = vpop.f32.mrb[0].mxu0
    %v5021 = vadd.f32 0.0, %v5020
    %v5022 = vpop.f32.mrb[0].mxu0
    %5023 = vmatprep.mubr.bf16.mxu0 %v2141
    %5024 = vmatmul.mubr.bf16.gmra.mrb[0].mxu0 %v2140
    %v5025 = vpop.f32.mrb[0].mxu0
    %v5026 = vadd.f32 0.0, %v5025
    %v5027 = vpop.f32.mrb[0].mxu0
    %v5028 = vpop.f32.mrb[0].mxu0
    %v5029 = vadd.f32 0.0, %v5028
    %v5030 = vpop.f32.mrb[0].mxu0
    %5031 = vdwg.mxu0
    %5032 = vmatprep.subr.bf16.mxu0 0
    %5033 = vmatpush1.bf16.msra.mxu0 %v4965
    %5034 = vmatprep.subr.bf16.mxu0 0
    %5035 = vmatpush1.bf16.msra.mxu0 %v4966
    %5036 = vmatprep.subr.bf16.mxu0 0
    %5037 = vmatpush1.bf16.msra.mxu0 0
    %5038 = vmatprep.subr.bf16.mxu0 0
    %5039 = vmatpush1.bf16.msra.mxu0 0
    %5040 = vmatprep.subr.bf16.mxu0 0
    %5041 = vmatpush1.bf16.msra.mxu0 0
    %5042 = vmatprep.subr.bf16.mxu0 0
    %5043 = vmatpush1.bf16.msra.mxu0 0
    %5044 = vmatprep.subr.bf16.mxu0 0
    %5045 = vmatpush1.bf16.msra.mxu0 0
    %5046 = vmatprep.subr.bf16.mxu0 0
    %5047 = vmatpush1.bf16.msra.mxu0 0
    %5048 = vmatprep.subr.bf16.mxu0 0
    %5049 = vmatpush1.bf16.msra.mxu0 0
    %5050 = vmatprep.subr.bf16.mxu0 0
    %5051 = vmatpush1.bf16.msra.mxu0 0
    %5052 = vmatprep.subr.bf16.mxu0 0
    %5053 = vmatpush1.bf16.msra.mxu0 0
    %5054 = vmatprep.subr.bf16.mxu0 0
    %5055 = vmatpush1.bf16.msra.mxu0 0
    %5056 = vmatprep.subr.bf16.mxu0 0
    %5057 = vmatpush1.bf16.msra.mxu0 0
    %5058 = vmatprep.subr.bf16.mxu0 0
    %5059 = vmatpush1.bf16.msra.mxu0 0
    %5060 = vmatprep.subr.bf16.mxu0 0
    %5061 = vmatpush1.bf16.msra.mxu0 0
    %5062 = vmatprep.subr.bf16.mxu0 0
    %5063 = vmatpush1.bf16.msra.mxu0 0
    %5064 = vmatprep.mubr.bf16.mxu0 0
    %5065 = vmatmul.mubr.bf16.gmra.mrb[0].mxu0 %v2153
    %v5066 = vpop.f32.mrb[0].mxu0
    %v5067 = vadd.f32 %v5002, %v5066
    %v5068 = vpop.f32.mrb[0].mxu0
    %v5069 = vpop.f32.mrb[0].mxu0
    %v5070 = vadd.f32 %v5005, %v5069
    %v5071 = vpop.f32.mrb[0].mxu0
    %5072 = vmatprep.mubr.bf16.mxu0 0
    %5073 = vmatmul.mubr.bf16.gmra.mrb[0].mxu0 %v2156
    %v5074 = vpop.f32.mrb[0].mxu0
    %v5075 = vadd.f32 %v5010, %v5074
    %v5076 = vpop.f32.mrb[0].mxu0
    %v5077 = vpop.f32.mrb[0].mxu0
    %v5078 = vadd.f32 %v5013, %v5077
    %v5079 = vpop.f32.mrb[0].mxu0
    %5080 = vmatprep.mubr.bf16.mxu0 0
    %5081 = vmatmul.mubr.bf16.gmra.mrb[0].mxu0 %v2159
    %v5082 = vpop.f32.mrb[0].mxu0
    %v5083 = vadd.f32 %v5018, %v5082
    %v5084 = vpop.f32.mrb[0].mxu0
    %v5085 = vpop.f32.mrb[0].mxu0
    %v5086 = vadd.f32 %v5021, %v5085
    %v5087 = vpop.f32.mrb[0].mxu0
    %5088 = vmatprep.mubr.bf16.mxu0 0
    %5089 = vmatmul.mubr.bf16.gmra.mrb[0].mxu0 %v2162
    %v5090 = vpop.f32.mrb[0].mxu0
    %v5091 = vadd.f32 %v5026, %v5090
    %v5092 = vpop.f32.mrb[0].mxu0
    %v5093 = vpop.f32.mrb[0].mxu0
    %v5094 = vadd.f32 %v5029, %v5093
    %v5095 = vpop.f32.mrb[0].mxu0
    %5096 = vdwg.mxu0
    %v5097 = vmax.f32 %v4953, %v5067
    %v5098 = vmax.f32 %v4954, %v5070
    %v5099 = vmax.f32 %v4955, %v5075
    %v5100 = vmax.f32 %v4956, %v5078
    %v5101 = vmax.f32 %v4957, %v5083
    %v5102 = vmax.f32 %v4958, %v5086
    %v5103 = vmax.f32 %v4959, %v5091
    %v5104 = vmax.f32 %v4960, %v5094
    %v5105 = vld [vmem:[%s2453 + $0x90] sm:$0xff]
    %v5106 = vld [vmem:[%s2453 + $0x98] sm:$0xff]
    %v5107 = vld [vmem:[%s2453 + $0xa0] sm:$0xff]
    %v5108 = vld [vmem:[%s2453 + $0xa8] sm:$0xff]
    %v5109 = vld [vmem:[%s2453 + $0xb0] sm:$0xff]
    %v5110 = vld [vmem:[%s2453 + $0xb8] sm:$0xff]
    %5111 = vmatprep.subr.bf16.mxu0 0
    %5112 = vmatpush1.bf16.msra.mxu0 %v4811
    %5113 = vmatprep.subr.bf16.mxu0 0
    %5114 = vmatpush1.bf16.msra.mxu0 %v4812
    %5115 = vmatprep.subr.bf16.mxu0 0
    %5116 = vmatpush1.bf16.msra.mxu0 %v4813
    %5117 = vmatprep.subr.bf16.mxu0 0
    %5118 = vmatpush1.bf16.msra.mxu0 %v4814
    %5119 = vmatprep.subr.bf16.mxu0 0
    %5120 = vmatpush1.bf16.msra.mxu0 %v4815
    %5121 = vmatprep.subr.bf16.mxu0 0
    %5122 = vmatpush1.bf16.msra.mxu0 %v4816
    %5123 = vmatprep.subr.bf16.mxu0 0
    %5124 = vmatpush1.bf16.msra.mxu0 %v4817
    %5125 = vmatprep.subr.bf16.mxu0 0
    %5126 = vmatpush1.bf16.msra.mxu0 %v4818
    %5127 = vmatprep.subr.bf16.mxu0 0
    %5128 = vmatpush1.bf16.msra.mxu0 %v4819
    %5129 = vmatprep.subr.bf16.mxu0 0
    %5130 = vmatpush1.bf16.msra.mxu0 %v4820
    %5131 = vmatprep.subr.bf16.mxu0 0
    %5132 = vmatpush1.bf16.msra.mxu0 %v4821
    %5133 = vmatprep.subr.bf16.mxu0 0
    %5134 = vmatpush1.bf16.msra.mxu0 %v4822
    %5135 = vmatprep.subr.bf16.mxu0 0
    %5136 = vmatpush1.bf16.msra.mxu0 %v5105
    %5137 = vmatprep.subr.bf16.mxu0 0
    %5138 = vmatpush1.bf16.msra.mxu0 %v5106
    %5139 = vmatprep.subr.bf16.mxu0 0
    %5140 = vmatpush1.bf16.msra.mxu0 %v5107
    %5141 = vmatprep.subr.bf16.mxu0 0
    %5142 = vmatpush1.bf16.msra.mxu0 %v5108
    %5143 = vmatprep.mubr.bf16.mxu0 %v2132
    %5144 = vmatmul.mubr.bf16.gmra.mrb[0].mxu0 %v2131
    %v5145 = vpop.f32.mrb[0].mxu0
    %v5146 = vadd.f32 0.0, %v5145
    %v5147 = vpop.f32.mrb[0].mxu0
    %v5148 = vpop.f32.mrb[0].mxu0
    %v5149 = vadd.f32 0.0, %v5148
    %v5150 = vpop.f32.mrb[0].mxu0
    %5151 = vmatprep.mubr.bf16.mxu0 %v2135
    %5152 = vmatmul.mubr.bf16.gmra.mrb[0].mxu0 %v2134
    %v5153 = vpop.f32.mrb[0].mxu0
    %v5154 = vadd.f32 0.0, %v5153
    %v5155 = vpop.f32.mrb[0].mxu0
    %v5156 = vpop.f32.mrb[0].mxu0
    %v5157 = vadd.f32 0.0, %v5156
    %v5158 = vpop.f32.mrb[0].mxu0
    %5159 = vmatprep.mubr.bf16.mxu0 %v2138
    %5160 = vmatmul.mubr.bf16.gmra.mrb[0].mxu0 %v2137
    %v5161 = vpop.f32.mrb[0].mxu0
    %v5162 = vadd.f32 0.0, %v5161
    %v5163 = vpop.f32.mrb[0].mxu0
    %v5164 = vpop.f32.mrb[0].mxu0
    %v5165 = vadd.f32 0.0, %v5164
    %v5166 = vpop.f32.mrb[0].mxu0
    %5167 = vmatprep.mubr.bf16.mxu0 %v2141
    %5168 = vmatmul.mubr.bf16.gmra.mrb[0].mxu0 %v2140
    %v5169 = vpop.f32.mrb[0].mxu0
    %v5170 = vadd.f32 0.0, %v5169
    %v5171 = vpop.f32.mrb[0].mxu0
    %v5172 = vpop.f32.mrb[0].mxu0
    %v5173 = vadd.f32 0.0, %v5172
    %v5174 = vpop.f32.mrb[0].mxu0
    %5175 = vdwg.mxu0
    %5176 = vmatprep.subr.bf16.mxu0 0
    %5177 = vmatpush1.bf16.msra.mxu0 %v5109
    %5178 = vmatprep.subr.bf16.mxu0 0
    %5179 = vmatpush1.bf16.msra.mxu0 %v5110
    %5180 = vmatprep.subr.bf16.mxu0 0
    %5181 = vmatpush1.bf16.msra.mxu0 0
    %5182 = vmatprep.subr.bf16.mxu0 0
    %5183 = vmatpush1.bf16.msra.mxu0 0
    %5184 = vmatprep.subr.bf16.mxu0 0
    %5185 = vmatpush1.bf16.msra.mxu0 0
    %5186 = vmatprep.subr.bf16.mxu0 0
    %5187 = vmatpush1.bf16.msra.mxu0 0
    %5188 = vmatprep.subr.bf16.mxu0 0
    %5189 = vmatpush1.bf16.msra.mxu0 0
    %5190 = vmatprep.subr.bf16.mxu0 0
    %5191 = vmatpush1.bf16.msra.mxu0 0
    %5192 = vmatprep.subr.bf16.mxu0 0
    %5193 = vmatpush1.bf16.msra.mxu0 0
    %5194 = vmatprep.subr.bf16.mxu0 0
    %5195 = vmatpush1.bf16.msra.mxu0 0
    %5196 = vmatprep.subr.bf16.mxu0 0
    %5197 = vmatpush1.bf16.msra.mxu0 0
    %5198 = vmatprep.subr.bf16.mxu0 0
    %5199 = vmatpush1.bf16.msra.mxu0 0
    %5200 = vmatprep.subr.bf16.mxu0 0
    %5201 = vmatpush1.bf16.msra.mxu0 0
    %5202 = vmatprep.subr.bf16.mxu0 0
    %5203 = vmatpush1.bf16.msra.mxu0 0
    %5204 = vmatprep.subr.bf16.mxu0 0
    %5205 = vmatpush1.bf16.msra.mxu0 0
    %5206 = vmatprep.subr.bf16.mxu0 0
    %5207 = vmatpush1.bf16.msra.mxu0 0
    %5208 = vmatprep.mubr.bf16.mxu0 0
    %5209 = vmatmul.mubr.bf16.gmra.mrb[0].mxu0 %v2153
    %v5210 = vpop.f32.mrb[0].mxu0
    %v5211 = vadd.f32 %v5146, %v5210
    %v5212 = vpop.f32.mrb[0].mxu0
    %v5213 = vpop.f32.mrb[0].mxu0
    %v5214 = vadd.f32 %v5149, %v5213
    %v5215 = vpop.f32.mrb[0].mxu0
    %5216 = vmatprep.mubr.bf16.mxu0 0
    %5217 = vmatmul.mubr.bf16.gmra.mrb[0].mxu0 %v2156
    %v5218 = vpop.f32.mrb[0].mxu0
    %v5219 = vadd.f32 %v5154, %v5218
    %v5220 = vpop.f32.mrb[0].mxu0
    %v5221 = vpop.f32.mrb[0].mxu0
    %v5222 = vadd.f32 %v5157, %v5221
    %v5223 = vpop.f32.mrb[0].mxu0
    %5224 = vmatprep.mubr.bf16.mxu0 0
    %5225 = vmatmul.mubr.bf16.gmra.mrb[0].mxu0 %v2159
    %v5226 = vpop.f32.mrb[0].mxu0
    %v5227 = vadd.f32 %v5162, %v5226
    %v5228 = vpop.f32.mrb[0].mxu0
    %v5229 = vpop.f32.mrb[0].mxu0
    %v5230 = vadd.f32 %v5165, %v5229
    %v5231 = vpop.f32.mrb[0].mxu0
    %5232 = vmatprep.mubr.bf16.mxu0 0
    %5233 = vmatmul.mubr.bf16.gmra.mrb[0].mxu0 %v2162
    %v5234 = vpop.f32.mrb[0].mxu0
    %v5235 = vadd.f32 %v5170, %v5234
    %v5236 = vpop.f32.mrb[0].mxu0
    %v5237 = vpop.f32.mrb[0].mxu0
    %v5238 = vadd.f32 %v5173, %v5237
    %v5239 = vpop.f32.mrb[0].mxu0
    %5240 = vdwg.mxu0
    %v5241 = vmax.f32 %v5097, %v5211
    %v5242 = vmax.f32 %v5098, %v5214
    %v5243 = vmax.f32 %v5099, %v5219
    %v5244 = vmax.f32 %v5100, %v5222
    %v5245 = vmax.f32 %v5101, %v5227
    %v5246 = vmax.f32 %v5102, %v5230
    %v5247 = vmax.f32 %v5103, %v5235
    %v5248 = vmax.f32 %v5104, %v5238
    %v5249 = vadd.f32 %v5241, %v2745
    %v5250 = vadd.f32 %v5242, %v2750
    %v5251 = vadd.f32 %v5243, %v2755
    %v5252 = vadd.f32 %v5244, %v2760
    %v5253 = vadd.f32 %v5245, %v2765
    %v5254 = vadd.f32 %v5246, %v2770
    %v5255 = vadd.f32 %v5247, %v2775
    %v5256 = vadd.f32 %v5248, %v2780
    %v5257 = vmax.f32 %v5249, 0.0
    %v5258 = vmax.f32 %v5250, 0.0
    %v5259 = vmax.f32 %v5251, 0.0
    %v5260 = vmax.f32 %v5252, 0.0
    %v5261 = vmax.f32 %v5253, 0.0
    %v5262 = vmax.f32 %v5254, 0.0
    %v5263 = vmax.f32 %v5255, 0.0
    %v5264 = vmax.f32 %v5256, 0.0
    %v5265 = vpack.c.bf16 %v5258, %v5257
    %v5266 = vpack.c.bf16 %v5260, %v5259
    %v5267 = vpack.c.bf16 %v5262, %v5261
    %v5268 = vpack.c.bf16 %v5264, %v5263
    %5269 = vst [vmem:[%s2804 + $0x80] sm:$0xff] %v5265
    %5270 = vst [vmem:[%s2804 + $0x88] sm:$0xff] %v5266
    %5271 = vst [vmem:[%s2804 + $0x90] sm:$0xff] %v5267
    %5272 = vst [vmem:[%s2804 + $0x98] sm:$0xff] %v5268
  $region45: #{conv_mnist_forward.1} parent=0 // loop_footer
    %s2036 = sadd.s32 1, %s2032
  $region46: #{conv_mnist_forward.1} parent=0 // loop_footer_branch
    %2031 = sbr.rel target = $region42
  $region47: #{conv_mnist_forward.1} parent=0 // loop_exit
    _
  %v5273 = vld [vmem:[%s4] sm:$0xff]
  %v5274 = vld [vmem:[%s4 + $0x8] sm:$0xf]
  %v5275 = vld [vmem:[%s4 + $0xc] sm:$0xff]
  %v5276 = vld [vmem:[%s4 + $0x14] sm:$0xf]
  %v5277 = vld [vmem:[%s4 + $0x18] sm:$0xff]
  %v5278 = vld [vmem:[%s4 + $0x20] sm:$0xf]
  %v5279 = vld [vmem:[%s4 + $0x24] sm:$0xff]
  %v5280 = vld [vmem:[%s4 + $0x2c] sm:$0xf]
  %v5281 = vld [vmem:[%s4 + $0x30] sm:$0xff]
  %v5282 = vld [vmem:[%s4 + $0x38] sm:$0xf]
  %v5283 = vld [vmem:[%s4 + $0x3c] sm:$0xff]
  %v5284 = vld [vmem:[%s4 + $0x44] sm:$0xf]
  %v5285 = vld [vmem:[%s4 + $0x48] sm:$0xff]
  %v5286 = vld [vmem:[%s4 + $0x50] sm:$0xf]
  %v5287 = vld [vmem:[%s4 + $0x54] sm:$0xff]
  %v5288 = vld [vmem:[%s4 + $0x5c] sm:$0xf]
  %v5289 = vld [vmem:[%s4 + $0x60] sm:$0xff]
  %v5290 = vld [vmem:[%s4 + $0x68] sm:$0xf]
  %v5291 = vld [vmem:[%s4 + $0x6c] sm:$0xff]
  %v5292 = vld [vmem:[%s4 + $0x74] sm:$0xf]
  %v5293 = vld [vmem:[%s4 + $0x78] sm:$0xff]
  %v5294 = vld [vmem:[%s4 + $0x80] sm:$0xf]
  %v5295 = vld [vmem:[%s4 + $0x84] sm:$0xff]
  %v5296 = vld [vmem:[%s4 + $0x8c] sm:$0xf]
  %v5297 = vld [vmem:[%s4 + $0x90] sm:$0xff]
  %v5298 = vld [vmem:[%s4 + $0x98] sm:$0xf]
  %v5299 = vld [vmem:[%s4 + $0x9c] sm:$0xff]
  %v5300 = vld [vmem:[%s4 + $0xa4] sm:$0xf]
  %v5301 = vld [vmem:[%s4 + $0xa8] sm:$0xff]
  %v5302 = vld [vmem:[%s4 + $0xb0] sm:$0xf]
  %v5303 = vld [vmem:[%s4 + $0xb4] sm:$0xff]
  %v5304 = vld [vmem:[%s4 + $0xbc] sm:$0xf]
  %v5305 = vld [vmem:[#allocation4] sm:$0xff]
  %v5306 = vld [vmem:[#allocation4 + $0x8] sm:$0xff]
  %v5307 = vld [vmem:[#allocation4 + $0x10] sm:$0xff]
  %v5308 = vld [vmem:[#allocation4 + $0x18] sm:$0xff]
  %v5309 = vld [vmem:[#allocation4 + $0x20] sm:$0xff]
  %v5310 = vld [vmem:[#allocation4 + $0x28] sm:$0xff]
  %v5311 = vld [vmem:[#allocation4 + $0x30] sm:$0xff]
  %v5312 = vld [vmem:[#allocation4 + $0x38] sm:$0xff]
  %v5313 = vld [vmem:[#allocation4 + $0x40] sm:$0xff]
  %v5314 = vld [vmem:[#allocation4 + $0x48] sm:$0xff]
  %v5315 = vld [vmem:[#allocation4 + $0x50] sm:$0xff]
  %v5316 = vld [vmem:[#allocation4 + $0x58] sm:$0xff]
  %v5317 = vld [vmem:[#allocation4 + $0x60] sm:$0xff]
  %v5318 = vld [vmem:[#allocation4 + $0x68] sm:$0xff]
  %v5319 = vld [vmem:[#allocation4 + $0x70] sm:$0xff]
  %v5320 = vld [vmem:[#allocation4 + $0x78] sm:$0xff]
  %v5321 = vld [vmem:[#allocation4 + $0x80] sm:$0xff]
  %v5322 = vld [vmem:[#allocation4 + $0x88] sm:$0xff]
  %v5323 = vld [vmem:[#allocation4 + $0x90] sm:$0xff]
  %v5324 = vld [vmem:[#allocation4 + $0x98] sm:$0xff]
  %s5325 = scalar_lea.vmem %s4, 192
  %v5326 = vld [vmem:[%s5325] sm:$0xff]
  %v5327 = vld [vmem:[%s5325 + $0x8] sm:$0xf]
  %v5328 = vld [vmem:[%s5325 + $0xc] sm:$0xff]
  %v5329 = vld [vmem:[%s5325 + $0x14] sm:$0xf]
  %v5330 = vld [vmem:[%s5325 + $0x18] sm:$0xff]
  %v5331 = vld [vmem:[%s5325 + $0x20] sm:$0xf]
  %v5332 = vld [vmem:[%s5325 + $0x24] sm:$0xff]
  %v5333 = vld [vmem:[%s5325 + $0x2c] sm:$0xf]
  %v5334 = vld [vmem:[%s5325 + $0x30] sm:$0xff]
  %v5335 = vld [vmem:[%s5325 + $0x38] sm:$0xf]
  %v5336 = vld [vmem:[%s5325 + $0x3c] sm:$0xff]
  %v5337 = vld [vmem:[%s5325 + $0x44] sm:$0xf]
  %v5338 = vld [vmem:[%s5325 + $0x48] sm:$0xff]
  %v5339 = vld [vmem:[%s5325 + $0x50] sm:$0xf]
  %v5340 = vld [vmem:[%s5325 + $0x54] sm:$0xff]
  %v5341 = vld [vmem:[%s5325 + $0x5c] sm:$0xf]
  %v5342 = vld [vmem:[%s5325 + $0x60] sm:$0xff]
  %v5343 = vld [vmem:[%s5325 + $0x68] sm:$0xf]
  %v5344 = vld [vmem:[%s5325 + $0x6c] sm:$0xff]
  %v5345 = vld [vmem:[%s5325 + $0x74] sm:$0xf]
  %v5346 = vld [vmem:[%s5325 + $0x78] sm:$0xff]
  %v5347 = vld [vmem:[%s5325 + $0x80] sm:$0xf]
  %v5348 = vld [vmem:[%s5325 + $0x84] sm:$0xff]
  %v5349 = vld [vmem:[%s5325 + $0x8c] sm:$0xf]
  %v5350 = vld [vmem:[%s5325 + $0x90] sm:$0xff]
  %v5351 = vld [vmem:[%s5325 + $0x98] sm:$0xf]
  %v5352 = vld [vmem:[%s5325 + $0x9c] sm:$0xff]
  %v5353 = vld [vmem:[%s5325 + $0xa4] sm:$0xf]
  %v5354 = vld [vmem:[%s5325 + $0xa8] sm:$0xff]
  %v5355 = vld [vmem:[%s5325 + $0xb0] sm:$0xf]
  %v5356 = vld [vmem:[%s5325 + $0xb4] sm:$0xff]
  %v5357 = vld [vmem:[%s5325 + $0xbc] sm:$0xf]
  %s5358 = scalar_lea.vmem [#allocation4], 160
  %v5359 = vld [vmem:[%s5358] sm:$0xff]
  %v5360 = vld [vmem:[%s5358 + $0x8] sm:$0xff]
  %v5361 = vld [vmem:[%s5358 + $0x10] sm:$0xff]
  %v5362 = vld [vmem:[%s5358 + $0x18] sm:$0xff]
  %v5363 = vld [vmem:[%s5358 + $0x20] sm:$0xff]
  %v5364 = vld [vmem:[%s5358 + $0x28] sm:$0xff]
  %v5365 = vld [vmem:[%s5358 + $0x30] sm:$0xff]
  %v5366 = vld [vmem:[%s5358 + $0x38] sm:$0xff]
  %v5367 = vld [vmem:[%s5358 + $0x40] sm:$0xff]
  %v5368 = vld [vmem:[%s5358 + $0x48] sm:$0xff]
  %v5369 = vld [vmem:[%s5358 + $0x50] sm:$0xff]
  %v5370 = vld [vmem:[%s5358 + $0x58] sm:$0xff]
  %v5371 = vld [vmem:[%s5358 + $0x60] sm:$0xff]
  %v5372 = vld [vmem:[%s5358 + $0x68] sm:$0xff]
  %v5373 = vld [vmem:[%s5358 + $0x70] sm:$0xff]
  %v5374 = vld [vmem:[%s5358 + $0x78] sm:$0xff]
  %v5375 = vld [vmem:[%s5358 + $0x80] sm:$0xff]
  %v5376 = vld [vmem:[%s5358 + $0x88] sm:$0xff]
  %v5377 = vld [vmem:[%s5358 + $0x90] sm:$0xff]
  %v5378 = vld [vmem:[%s5358 + $0x98] sm:$0xff]
  %v5411 = vunpack.c.l.b16 %v5326
  %v5412 = vunpack.c.h.b16 %v5326
  %v5413 = vunpack.c.l.b16 %v5327
  %v5414 = vunpack.c.l.b16 %v5328
  %v5415 = vunpack.c.h.b16 %v5328
  %v5416 = vunpack.c.l.b16 %v5329
  %v5417 = vunpack.c.l.b16 %v5330
  %v5418 = vunpack.c.h.b16 %v5330
  %v5419 = vunpack.c.l.b16 %v5331
  %v5420 = vunpack.c.l.b16 %v5332
  %v5421 = vunpack.c.h.b16 %v5332
  %v5422 = vunpack.c.l.b16 %v5333
  %v5423 = vunpack.c.l.b16 %v5334
  %v5424 = vunpack.c.h.b16 %v5334
  %v5425 = vunpack.c.l.b16 %v5335
  %v5426 = vunpack.c.l.b16 %v5336
  %v5427 = vunpack.c.h.b16 %v5336
  %v5428 = vunpack.c.l.b16 %v5337
  %v5429 = vunpack.c.l.b16 %v5338
  %v5430 = vunpack.c.h.b16 %v5338
  %v5431 = vunpack.c.l.b16 %v5339
  %v5432 = vunpack.c.l.b16 %v5340
  %v5433 = vunpack.c.h.b16 %v5340
  %v5434 = vunpack.c.l.b16 %v5341
  %v5435 = vunpack.c.l.b16 %v5342
  %v5436 = vunpack.c.h.b16 %v5342
  %v5437 = vunpack.c.l.b16 %v5343
  %v5438 = vunpack.c.l.b16 %v5344
  %v5439 = vunpack.c.h.b16 %v5344
  %v5440 = vunpack.c.l.b16 %v5345
  %v5441 = vunpack.c.l.b16 %v5346
  %v5442 = vunpack.c.h.b16 %v5346
  %v5443 = vunpack.c.l.b16 %v5347
  %v5444 = vunpack.c.l.b16 %v5348
  %v5445 = vunpack.c.h.b16 %v5348
  %v5446 = vunpack.c.l.b16 %v5349
  %v5447 = vunpack.c.l.b16 %v5350
  %v5448 = vunpack.c.h.b16 %v5350
  %v5449 = vunpack.c.l.b16 %v5351
  %v5450 = vunpack.c.l.b16 %v5352
  %v5451 = vunpack.c.h.b16 %v5352
  %v5452 = vunpack.c.l.b16 %v5353
  %v5453 = vunpack.c.l.b16 %v5354
  %v5454 = vunpack.c.h.b16 %v5354
  %v5455 = vunpack.c.l.b16 %v5355
  %v5456 = vunpack.c.l.b16 %v5356
  %v5457 = vunpack.c.h.b16 %v5356
  %v5458 = vunpack.c.l.b16 %v5357
  %v5459 = vpack.c.b16 %v5414, %v5411
  %v5460 = vpack.c.b16 %v5415, %v5412
  %v5461 = vpack.c.b16 %v5416, %v5413
  %v5462 = vpack.c.b16 %v5420, %v5417
  %v5463 = vpack.c.b16 %v5421, %v5418
  %v5464 = vpack.c.b16 %v5422, %v5419
  %v5465 = vpack.c.b16 %v5426, %v5423
  %v5466 = vpack.c.b16 %v5427, %v5424
  %v5467 = vpack.c.b16 %v5428, %v5425
  %v5468 = vpack.c.b16 %v5432, %v5429
  %v5469 = vpack.c.b16 %v5433, %v5430
  %v5470 = vpack.c.b16 %v5434, %v5431
  %v5471 = vpack.c.b16 %v5438, %v5435
  %v5472 = vpack.c.b16 %v5439, %v5436
  %v5473 = vpack.c.b16 %v5440, %v5437
  %v5474 = vpack.c.b16 %v5444, %v5441
  %v5475 = vpack.c.b16 %v5445, %v5442
  %v5476 = vpack.c.b16 %v5446, %v5443
  %v5477 = vpack.c.b16 %v5450, %v5447
  %v5478 = vpack.c.b16 %v5451, %v5448
  %v5479 = vpack.c.b16 %v5452, %v5449
  %v5480 = vpack.c.b16 %v5456, %v5453
  %v5481 = vpack.c.b16 %v5457, %v5454
  %v5482 = vpack.c.b16 %v5458, %v5455
  %vm5499 = vcmask 523264
  %v5501 = vsel %vm5499, %v5461, 0
  %v5504 = vsel %vm5499, %v5464, 0
  %v5507 = vsel %vm5499, %v5467, 0
  %v5510 = vsel %vm5499, %v5470, 0
  %v5513 = vsel %vm5499, %v5473, 0
  %v5516 = vsel %vm5499, %v5476, 0
  %v5519 = vsel %vm5499, %v5479, 0
  %v5522 = vsel %vm5499, %v5482, 0
  %5524 = vmatprep.subr.bf16.mxu0 0
  %5525 = vmatpush1.bf16.msra.mxu0 %v5359
  %5526 = vmatprep.subr.bf16.mxu0 0
  %5527 = vmatpush1.bf16.msra.mxu0 %v5360
  %5528 = vmatprep.subr.bf16.mxu0 0
  %5529 = vmatpush1.bf16.msra.mxu0 %v5361
  %5530 = vmatprep.subr.bf16.mxu0 0
  %5531 = vmatpush1.bf16.msra.mxu0 %v5362
  %5532 = vmatprep.subr.bf16.mxu0 0
  %5533 = vmatpush1.bf16.msra.mxu0 %v5363
  %5534 = vmatprep.subr.bf16.mxu0 0
  %5535 = vmatpush1.bf16.msra.mxu0 %v5364
  %5536 = vmatprep.subr.bf16.mxu0 0
  %5537 = vmatpush1.bf16.msra.mxu0 %v5365
  %5538 = vmatprep.subr.bf16.mxu0 0
  %5539 = vmatpush1.bf16.msra.mxu0 %v5366
  %5540 = vmatprep.subr.bf16.mxu0 0
  %5541 = vmatpush1.bf16.msra.mxu0 %v5367
  %5542 = vmatprep.subr.bf16.mxu0 0
  %5543 = vmatpush1.bf16.msra.mxu0 %v5368
  %5544 = vmatprep.subr.bf16.mxu0 0
  %5545 = vmatpush1.bf16.msra.mxu0 %v5369
  %5546 = vmatprep.subr.bf16.mxu0 0
  %5547 = vmatpush1.bf16.msra.mxu0 %v5370
  %5548 = vmatprep.subr.bf16.mxu0 0
  %5549 = vmatpush1.bf16.msra.mxu0 %v5371
  %5550 = vmatprep.subr.bf16.mxu0 0
  %5551 = vmatpush1.bf16.msra.mxu0 %v5372
  %5552 = vmatprep.subr.bf16.mxu0 0
  %5553 = vmatpush1.bf16.msra.mxu0 %v5373
  %5554 = vmatprep.subr.bf16.mxu0 0
  %5555 = vmatpush1.bf16.msra.mxu0 %v5374
  %5556 = vmatprep.mubr.bf16.mxu0 %v5460
  %5557 = vmatmul.mubr.bf16.gmra.mrb[0].mxu0 %v5459
  %v5558 = vpop.f32.mrb[0].mxu0
  %v5559 = vadd.f32 0.0, %v5558
  %v5560 = vpop.f32.mrb[0].mxu0
  %v5561 = vpop.f32.mrb[0].mxu0
  %v5562 = vadd.f32 0.0, %v5561
  %v5563 = vpop.f32.mrb[0].mxu0
  %5564 = vmatprep.mubr.bf16.mxu0 %v5463
  %5565 = vmatmul.mubr.bf16.gmra.mrb[0].mxu0 %v5462
  %v5566 = vpop.f32.mrb[0].mxu0
  %v5567 = vadd.f32 0.0, %v5566
  %v5568 = vpop.f32.mrb[0].mxu0
  %v5569 = vpop.f32.mrb[0].mxu0
  %v5570 = vadd.f32 0.0, %v5569
  %v5571 = vpop.f32.mrb[0].mxu0
  %5572 = vmatprep.mubr.bf16.mxu0 %v5466
  %5573 = vmatmul.mubr.bf16.gmra.mrb[0].mxu0 %v5465
  %v5574 = vpop.f32.mrb[0].mxu0
  %v5575 = vadd.f32 0.0, %v5574
  %v5576 = vpop.f32.mrb[0].mxu0
  %v5577 = vpop.f32.mrb[0].mxu0
  %v5578 = vadd.f32 0.0, %v5577
  %v5579 = vpop.f32.mrb[0].mxu0
  %5580 = vmatprep.mubr.bf16.mxu0 %v5469
  %5581 = vmatmul.mubr.bf16.gmra.mrb[0].mxu0 %v5468
  %v5582 = vpop.f32.mrb[0].mxu0
  %v5583 = vadd.f32 0.0, %v5582
  %v5584 = vpop.f32.mrb[0].mxu0
  %v5585 = vpop.f32.mrb[0].mxu0
  %v5586 = vadd.f32 0.0, %v5585
  %v5587 = vpop.f32.mrb[0].mxu0
  %5588 = vmatprep.mubr.bf16.mxu0 %v5472
  %5589 = vmatmul.mubr.bf16.gmra.mrb[0].mxu0 %v5471
  %v5590 = vpop.f32.mrb[0].mxu0
  %v5591 = vadd.f32 0.0, %v5590
  %v5592 = vpop.f32.mrb[0].mxu0
  %v5593 = vpop.f32.mrb[0].mxu0
  %v5594 = vadd.f32 0.0, %v5593
  %v5595 = vpop.f32.mrb[0].mxu0
  %5596 = vmatprep.mubr.bf16.mxu0 %v5475
  %5597 = vmatmul.mubr.bf16.gmra.mrb[0].mxu0 %v5474
  %v5598 = vpop.f32.mrb[0].mxu0
  %v5599 = vadd.f32 0.0, %v5598
  %v5600 = vpop.f32.mrb[0].mxu0
  %v5601 = vpop.f32.mrb[0].mxu0
  %v5602 = vadd.f32 0.0, %v5601
  %v5603 = vpop.f32.mrb[0].mxu0
  %5604 = vmatprep.mubr.bf16.mxu0 %v5478
  %5605 = vmatmul.mubr.bf16.gmra.mrb[0].mxu0 %v5477
  %v5606 = vpop.f32.mrb[0].mxu0
  %v5607 = vadd.f32 0.0, %v5606
  %v5608 = vpop.f32.mrb[0].mxu0
  %v5609 = vpop.f32.mrb[0].mxu0
  %v5610 = vadd.f32 0.0, %v5609
  %v5611 = vpop.f32.mrb[0].mxu0
  %5612 = vmatprep.mubr.bf16.mxu0 %v5481
  %5613 = vmatmul.mubr.bf16.gmra.mrb[0].mxu0 %v5480
  %v5614 = vpop.f32.mrb[0].mxu0
  %v5615 = vadd.f32 0.0, %v5614
  %v5616 = vpop.f32.mrb[0].mxu0
  %v5617 = vpop.f32.mrb[0].mxu0
  %v5618 = vadd.f32 0.0, %v5617
  %v5619 = vpop.f32.mrb[0].mxu0
  %5620 = vdwg.mxu0
  %5621 = vmatprep.subr.bf16.mxu0 0
  %5622 = vmatpush1.bf16.msra.mxu0 %v5375
  %5623 = vmatprep.subr.bf16.mxu0 0
  %5624 = vmatpush1.bf16.msra.mxu0 %v5376
  %5625 = vmatprep.subr.bf16.mxu0 0
  %5626 = vmatpush1.bf16.msra.mxu0 %v5377
  %5627 = vmatprep.subr.bf16.mxu0 0
  %5628 = vmatpush1.bf16.msra.mxu0 %v5378
  %5629 = vmatprep.subr.bf16.mxu0 0
  %5630 = vmatpush1.bf16.msra.mxu0 0
  %5631 = vmatprep.subr.bf16.mxu0 0
  %5632 = vmatpush1.bf16.msra.mxu0 0
  %5633 = vmatprep.subr.bf16.mxu0 0
  %5634 = vmatpush1.bf16.msra.mxu0 0
  %5635 = vmatprep.subr.bf16.mxu0 0
  %5636 = vmatpush1.bf16.msra.mxu0 0
  %5637 = vmatprep.subr.bf16.mxu0 0
  %5638 = vmatpush1.bf16.msra.mxu0 0
  %5639 = vmatprep.subr.bf16.mxu0 0
  %5640 = vmatpush1.bf16.msra.mxu0 0
  %5641 = vmatprep.subr.bf16.mxu0 0
  %5642 = vmatpush1.bf16.msra.mxu0 0
  %5643 = vmatprep.subr.bf16.mxu0 0
  %5644 = vmatpush1.bf16.msra.mxu0 0
  %5645 = vmatprep.subr.bf16.mxu0 0
  %5646 = vmatpush1.bf16.msra.mxu0 0
  %5647 = vmatprep.subr.bf16.mxu0 0
  %5648 = vmatpush1.bf16.msra.mxu0 0
  %5649 = vmatprep.subr.bf16.mxu0 0
  %5650 = vmatpush1.bf16.msra.mxu0 0
  %5651 = vmatprep.subr.bf16.mxu0 0
  %5652 = vmatpush1.bf16.msra.mxu0 0
  %5653 = vmatprep.mubr.bf16.mxu0 0
  %5654 = vmatmul.mubr.bf16.gmra.mrb[0].mxu0 %v5501
  %v5655 = vpop.f32.mrb[0].mxu0
  %v5656 = vadd.f32 %v5559, %v5655
  %v5657 = vpop.f32.mrb[0].mxu0
  %v5658 = vpop.f32.mrb[0].mxu0
  %v5659 = vadd.f32 %v5562, %v5658
  %v5660 = vpop.f32.mrb[0].mxu0
  %5661 = vmatprep.mubr.bf16.mxu0 0
  %5662 = vmatmul.mubr.bf16.gmra.mrb[0].mxu0 %v5504
  %v5663 = vpop.f32.mrb[0].mxu0
  %v5664 = vadd.f32 %v5567, %v5663
  %v5665 = vpop.f32.mrb[0].mxu0
  %v5666 = vpop.f32.mrb[0].mxu0
  %v5667 = vadd.f32 %v5570, %v5666
  %v5668 = vpop.f32.mrb[0].mxu0
  %5669 = vmatprep.mubr.bf16.mxu0 0
  %5670 = vmatmul.mubr.bf16.gmra.mrb[0].mxu0 %v5507
  %v5671 = vpop.f32.mrb[0].mxu0
  %v5672 = vadd.f32 %v5575, %v5671
  %v5673 = vpop.f32.mrb[0].mxu0
  %v5674 = vpop.f32.mrb[0].mxu0
  %v5675 = vadd.f32 %v5578, %v5674
  %v5676 = vpop.f32.mrb[0].mxu0
  %5677 = vmatprep.mubr.bf16.mxu0 0
  %5678 = vmatmul.mubr.bf16.gmra.mrb[0].mxu0 %v5510
  %v5679 = vpop.f32.mrb[0].mxu0
  %v5680 = vadd.f32 %v5583, %v5679
  %v5681 = vpop.f32.mrb[0].mxu0
  %v5682 = vpop.f32.mrb[0].mxu0
  %v5683 = vadd.f32 %v5586, %v5682
  %v5684 = vpop.f32.mrb[0].mxu0
  %5685 = vmatprep.mubr.bf16.mxu0 0
  %5686 = vmatmul.mubr.bf16.gmra.mrb[0].mxu0 %v5513
  %v5687 = vpop.f32.mrb[0].mxu0
  %v5688 = vadd.f32 %v5591, %v5687
  %v5689 = vpop.f32.mrb[0].mxu0
  %v5690 = vpop.f32.mrb[0].mxu0
  %v5691 = vadd.f32 %v5594, %v5690
  %v5692 = vpop.f32.mrb[0].mxu0
  %5693 = vmatprep.mubr.bf16.mxu0 0
  %5694 = vmatmul.mubr.bf16.gmra.mrb[0].mxu0 %v5516
  %v5695 = vpop.f32.mrb[0].mxu0
  %v5696 = vadd.f32 %v5599, %v5695
  %v5697 = vpop.f32.mrb[0].mxu0
  %v5698 = vpop.f32.mrb[0].mxu0
  %v5699 = vadd.f32 %v5602, %v5698
  %v5700 = vpop.f32.mrb[0].mxu0
  %5701 = vmatprep.mubr.bf16.mxu0 0
  %5702 = vmatmul.mubr.bf16.gmra.mrb[0].mxu0 %v5519
  %v5703 = vpop.f32.mrb[0].mxu0
  %v5704 = vadd.f32 %v5607, %v5703
  %v5705 = vpop.f32.mrb[0].mxu0
  %v5706 = vpop.f32.mrb[0].mxu0
  %v5707 = vadd.f32 %v5610, %v5706
  %v5708 = vpop.f32.mrb[0].mxu0
  %5709 = vmatprep.mubr.bf16.mxu0 0
  %5710 = vmatmul.mubr.bf16.gmra.mrb[0].mxu0 %v5522
  %v5711 = vpop.f32.mrb[0].mxu0
  %v5712 = vadd.f32 %v5615, %v5711
  %v5713 = vpop.f32.mrb[0].mxu0
  %v5714 = vpop.f32.mrb[0].mxu0
  %v5715 = vadd.f32 %v5618, %v5714
  %v5716 = vpop.f32.mrb[0].mxu0
  %5717 = vdwg.mxu0
  %v5750 = vunpack.c.l.b16 %v5273
  %v5751 = vunpack.c.h.b16 %v5273
  %v5752 = vunpack.c.l.b16 %v5274
  %v5753 = vunpack.c.l.b16 %v5275
  %v5754 = vunpack.c.h.b16 %v5275
  %v5755 = vunpack.c.l.b16 %v5276
  %v5756 = vunpack.c.l.b16 %v5277
  %v5757 = vunpack.c.h.b16 %v5277
  %v5758 = vunpack.c.l.b16 %v5278
  %v5759 = vunpack.c.l.b16 %v5279
  %v5760 = vunpack.c.h.b16 %v5279
  %v5761 = vunpack.c.l.b16 %v5280
  %v5762 = vunpack.c.l.b16 %v5281
  %v5763 = vunpack.c.h.b16 %v5281
  %v5764 = vunpack.c.l.b16 %v5282
  %v5765 = vunpack.c.l.b16 %v5283
  %v5766 = vunpack.c.h.b16 %v5283
  %v5767 = vunpack.c.l.b16 %v5284
  %v5768 = vunpack.c.l.b16 %v5285
  %v5769 = vunpack.c.h.b16 %v5285
  %v5770 = vunpack.c.l.b16 %v5286
  %v5771 = vunpack.c.l.b16 %v5287
  %v5772 = vunpack.c.h.b16 %v5287
  %v5773 = vunpack.c.l.b16 %v5288
  %v5774 = vunpack.c.l.b16 %v5289
  %v5775 = vunpack.c.h.b16 %v5289
  %v5776 = vunpack.c.l.b16 %v5290
  %v5777 = vunpack.c.l.b16 %v5291
  %v5778 = vunpack.c.h.b16 %v5291
  %v5779 = vunpack.c.l.b16 %v5292
  %v5780 = vunpack.c.l.b16 %v5293
  %v5781 = vunpack.c.h.b16 %v5293
  %v5782 = vunpack.c.l.b16 %v5294
  %v5783 = vunpack.c.l.b16 %v5295
  %v5784 = vunpack.c.h.b16 %v5295
  %v5785 = vunpack.c.l.b16 %v5296
  %v5786 = vunpack.c.l.b16 %v5297
  %v5787 = vunpack.c.h.b16 %v5297
  %v5788 = vunpack.c.l.b16 %v5298
  %v5789 = vunpack.c.l.b16 %v5299
  %v5790 = vunpack.c.h.b16 %v5299
  %v5791 = vunpack.c.l.b16 %v5300
  %v5792 = vunpack.c.l.b16 %v5301
  %v5793 = vunpack.c.h.b16 %v5301
  %v5794 = vunpack.c.l.b16 %v5302
  %v5795 = vunpack.c.l.b16 %v5303
  %v5796 = vunpack.c.h.b16 %v5303
  %v5797 = vunpack.c.l.b16 %v5304
  %v5798 = vpack.c.b16 %v5753, %v5750
  %v5799 = vpack.c.b16 %v5754, %v5751
  %v5800 = vpack.c.b16 %v5755, %v5752
  %v5801 = vpack.c.b16 %v5759, %v5756
  %v5802 = vpack.c.b16 %v5760, %v5757
  %v5803 = vpack.c.b16 %v5761, %v5758
  %v5804 = vpack.c.b16 %v5765, %v5762
  %v5805 = vpack.c.b16 %v5766, %v5763
  %v5806 = vpack.c.b16 %v5767, %v5764
  %v5807 = vpack.c.b16 %v5771, %v5768
  %v5808 = vpack.c.b16 %v5772, %v5769
  %v5809 = vpack.c.b16 %v5773, %v5770
  %v5810 = vpack.c.b16 %v5777, %v5774
  %v5811 = vpack.c.b16 %v5778, %v5775
  %v5812 = vpack.c.b16 %v5779, %v5776
  %v5813 = vpack.c.b16 %v5783, %v5780
  %v5814 = vpack.c.b16 %v5784, %v5781
  %v5815 = vpack.c.b16 %v5785, %v5782
  %v5816 = vpack.c.b16 %v5789, %v5786
  %v5817 = vpack.c.b16 %v5790, %v5787
  %v5818 = vpack.c.b16 %v5791, %v5788
  %v5819 = vpack.c.b16 %v5795, %v5792
  %v5820 = vpack.c.b16 %v5796, %v5793
  %v5821 = vpack.c.b16 %v5797, %v5794
  %v5839 = vsel %vm5499, %v5800, 0
  %v5842 = vsel %vm5499, %v5803, 0
  %v5845 = vsel %vm5499, %v5806, 0
  %v5848 = vsel %vm5499, %v5809, 0
  %v5851 = vsel %vm5499, %v5812, 0
  %v5854 = vsel %vm5499, %v5815, 0
  %v5857 = vsel %vm5499, %v5818, 0
  %v5860 = vsel %vm5499, %v5821, 0
  %5862 = vmatprep.subr.bf16.mxu0 0
  %5863 = vmatpush1.bf16.msra.mxu0 %v5305
  %5864 = vmatprep.subr.bf16.mxu0 0
  %5865 = vmatpush1.bf16.msra.mxu0 %v5306
  %5866 = vmatprep.subr.bf16.mxu0 0
  %5867 = vmatpush1.bf16.msra.mxu0 %v5307
  %5868 = vmatprep.subr.bf16.mxu0 0
  %5869 = vmatpush1.bf16.msra.mxu0 %v5308
  %5870 = vmatprep.subr.bf16.mxu0 0
  %5871 = vmatpush1.bf16.msra.mxu0 %v5309
  %5872 = vmatprep.subr.bf16.mxu0 0
  %5873 = vmatpush1.bf16.msra.mxu0 %v5310
  %5874 = vmatprep.subr.bf16.mxu0 0
  %5875 = vmatpush1.bf16.msra.mxu0 %v5311
  %5876 = vmatprep.subr.bf16.mxu0 0
  %5877 = vmatpush1.bf16.msra.mxu0 %v5312
  %5878 = vmatprep.subr.bf16.mxu0 0
  %5879 = vmatpush1.bf16.msra.mxu0 %v5313
  %5880 = vmatprep.subr.bf16.mxu0 0
  %5881 = vmatpush1.bf16.msra.mxu0 %v5314
  %5882 = vmatprep.subr.bf16.mxu0 0
  %5883 = vmatpush1.bf16.msra.mxu0 %v5315
  %5884 = vmatprep.subr.bf16.mxu0 0
  %5885 = vmatpush1.bf16.msra.mxu0 %v5316
  %5886 = vmatprep.subr.bf16.mxu0 0
  %5887 = vmatpush1.bf16.msra.mxu0 %v5317
  %5888 = vmatprep.subr.bf16.mxu0 0
  %5889 = vmatpush1.bf16.msra.mxu0 %v5318
  %5890 = vmatprep.subr.bf16.mxu0 0
  %5891 = vmatpush1.bf16.msra.mxu0 %v5319
  %5892 = vmatprep.subr.bf16.mxu0 0
  %5893 = vmatpush1.bf16.msra.mxu0 %v5320
  %5894 = vmatprep.mubr.bf16.mxu0 %v5799
  %5895 = vmatmul.mubr.bf16.gmra.mrb[0].mxu0 %v5798
  %v5896 = vpop.f32.mrb[0].mxu0
  %v5897 = vadd.f32 %v5656, %v5896
  %v5898 = vpop.f32.mrb[0].mxu0
  %v5899 = vpop.f32.mrb[0].mxu0
  %v5900 = vadd.f32 %v5659, %v5899
  %v5901 = vpop.f32.mrb[0].mxu0
  %5902 = vmatprep.mubr.bf16.mxu0 %v5802
  %5903 = vmatmul.mubr.bf16.gmra.mrb[0].mxu0 %v5801
  %v5904 = vpop.f32.mrb[0].mxu0
  %v5905 = vadd.f32 %v5664, %v5904
  %v5906 = vpop.f32.mrb[0].mxu0
  %v5907 = vpop.f32.mrb[0].mxu0
  %v5908 = vadd.f32 %v5667, %v5907
  %v5909 = vpop.f32.mrb[0].mxu0
  %5910 = vmatprep.mubr.bf16.mxu0 %v5805
  %5911 = vmatmul.mubr.bf16.gmra.mrb[0].mxu0 %v5804
  %v5912 = vpop.f32.mrb[0].mxu0
  %v5913 = vadd.f32 %v5672, %v5912
  %v5914 = vpop.f32.mrb[0].mxu0
  %v5915 = vpop.f32.mrb[0].mxu0
  %v5916 = vadd.f32 %v5675, %v5915
  %v5917 = vpop.f32.mrb[0].mxu0
  %5918 = vmatprep.mubr.bf16.mxu0 %v5808
  %5919 = vmatmul.mubr.bf16.gmra.mrb[0].mxu0 %v5807
  %v5920 = vpop.f32.mrb[0].mxu0
  %v5921 = vadd.f32 %v5680, %v5920
  %v5922 = vpop.f32.mrb[0].mxu0
  %v5923 = vpop.f32.mrb[0].mxu0
  %v5924 = vadd.f32 %v5683, %v5923
  %v5925 = vpop.f32.mrb[0].mxu0
  %5926 = vmatprep.mubr.bf16.mxu0 %v5811
  %5927 = vmatmul.mubr.bf16.gmra.mrb[0].mxu0 %v5810
  %v5928 = vpop.f32.mrb[0].mxu0
  %v5929 = vadd.f32 %v5688, %v5928
  %v5930 = vpop.f32.mrb[0].mxu0
  %v5931 = vpop.f32.mrb[0].mxu0
  %v5932 = vadd.f32 %v5691, %v5931
  %v5933 = vpop.f32.mrb[0].mxu0
  %5934 = vmatprep.mubr.bf16.mxu0 %v5814
  %5935 = vmatmul.mubr.bf16.gmra.mrb[0].mxu0 %v5813
  %v5936 = vpop.f32.mrb[0].mxu0
  %v5937 = vadd.f32 %v5696, %v5936
  %v5938 = vpop.f32.mrb[0].mxu0
  %v5939 = vpop.f32.mrb[0].mxu0
  %v5940 = vadd.f32 %v5699, %v5939
  %v5941 = vpop.f32.mrb[0].mxu0
  %5942 = vmatprep.mubr.bf16.mxu0 %v5817
  %5943 = vmatmul.mubr.bf16.gmra.mrb[0].mxu0 %v5816
  %v5944 = vpop.f32.mrb[0].mxu0
  %v5945 = vadd.f32 %v5704, %v5944
  %v5946 = vpop.f32.mrb[0].mxu0
  %v5947 = vpop.f32.mrb[0].mxu0
  %v5948 = vadd.f32 %v5707, %v5947
  %v5949 = vpop.f32.mrb[0].mxu0
  %5950 = vmatprep.mubr.bf16.mxu0 %v5820
  %5951 = vmatmul.mubr.bf16.gmra.mrb[0].mxu0 %v5819
  %v5952 = vpop.f32.mrb[0].mxu0
  %v5953 = vadd.f32 %v5712, %v5952
  %v5954 = vpop.f32.mrb[0].mxu0
  %v5955 = vpop.f32.mrb[0].mxu0
  %v5956 = vadd.f32 %v5715, %v5955
  %v5957 = vpop.f32.mrb[0].mxu0
  %5958 = vdwg.mxu0
  %5959 = vmatprep.subr.bf16.mxu0 0
  %5960 = vmatpush1.bf16.msra.mxu0 %v5321
  %5961 = vmatprep.subr.bf16.mxu0 0
  %5962 = vmatpush1.bf16.msra.mxu0 %v5322
  %5963 = vmatprep.subr.bf16.mxu0 0
  %5964 = vmatpush1.bf16.msra.mxu0 %v5323
  %5965 = vmatprep.subr.bf16.mxu0 0
  %5966 = vmatpush1.bf16.msra.mxu0 %v5324
  %5967 = vmatprep.subr.bf16.mxu0 0
  %5968 = vmatpush1.bf16.msra.mxu0 0
  %5969 = vmatprep.subr.bf16.mxu0 0
  %5970 = vmatpush1.bf16.msra.mxu0 0
  %5971 = vmatprep.subr.bf16.mxu0 0
  %5972 = vmatpush1.bf16.msra.mxu0 0
  %5973 = vmatprep.subr.bf16.mxu0 0
  %5974 = vmatpush1.bf16.msra.mxu0 0
  %5975 = vmatprep.subr.bf16.mxu0 0
  %5976 = vmatpush1.bf16.msra.mxu0 0
  %5977 = vmatprep.subr.bf16.mxu0 0
  %5978 = vmatpush1.bf16.msra.mxu0 0
  %5979 = vmatprep.subr.bf16.mxu0 0
  %5980 = vmatpush1.bf16.msra.mxu0 0
  %5981 = vmatprep.subr.bf16.mxu0 0
  %5982 = vmatpush1.bf16.msra.mxu0 0
  %5983 = vmatprep.subr.bf16.mxu0 0
  %5984 = vmatpush1.bf16.msra.mxu0 0
  %5985 = vmatprep.subr.bf16.mxu0 0
  %5986 = vmatpush1.bf16.msra.mxu0 0
  %5987 = vmatprep.subr.bf16.mxu0 0
  %5988 = vmatpush1.bf16.msra.mxu0 0
  %5989 = vmatprep.subr.bf16.mxu0 0
  %5990 = vmatpush1.bf16.msra.mxu0 0
  %5991 = vmatprep.mubr.bf16.mxu0 0
  %5992 = vmatmul.mubr.bf16.gmra.mrb[0].mxu0 %v5839
  %v5993 = vpop.f32.mrb[0].mxu0
  %v5994 = vadd.f32 %v5897, %v5993
  %v5995 = vpop.f32.mrb[0].mxu0
  %v5996 = vpop.f32.mrb[0].mxu0
  %v5997 = vadd.f32 %v5900, %v5996
  %v5998 = vpop.f32.mrb[0].mxu0
  %5999 = vmatprep.mubr.bf16.mxu0 0
  %6000 = vmatmul.mubr.bf16.gmra.mrb[0].mxu0 %v5842
  %v6001 = vpop.f32.mrb[0].mxu0
  %v6002 = vadd.f32 %v5905, %v6001
  %v6003 = vpop.f32.mrb[0].mxu0
  %v6004 = vpop.f32.mrb[0].mxu0
  %v6005 = vadd.f32 %v5908, %v6004
  %v6006 = vpop.f32.mrb[0].mxu0
  %6007 = vmatprep.mubr.bf16.mxu0 0
  %6008 = vmatmul.mubr.bf16.gmra.mrb[0].mxu0 %v5845
  %v6009 = vpop.f32.mrb[0].mxu0
  %v6010 = vadd.f32 %v5913, %v6009
  %v6011 = vpop.f32.mrb[0].mxu0
  %v6012 = vpop.f32.mrb[0].mxu0
  %v6013 = vadd.f32 %v5916, %v6012
  %v6014 = vpop.f32.mrb[0].mxu0
  %6015 = vmatprep.mubr.bf16.mxu0 0
  %6016 = vmatmul.mubr.bf16.gmra.mrb[0].mxu0 %v5848
  %v6017 = vpop.f32.mrb[0].mxu0
  %v6018 = vadd.f32 %v5921, %v6017
  %v6019 = vpop.f32.mrb[0].mxu0
  %v6020 = vpop.f32.mrb[0].mxu0
  %v6021 = vadd.f32 %v5924, %v6020
  %v6022 = vpop.f32.mrb[0].mxu0
  %6023 = vmatprep.mubr.bf16.mxu0 0
  %6024 = vmatmul.mubr.bf16.gmra.mrb[0].mxu0 %v5851
  %v6025 = vpop.f32.mrb[0].mxu0
  %v6026 = vadd.f32 %v5929, %v6025
  %v6027 = vpop.f32.mrb[0].mxu0
  %v6028 = vpop.f32.mrb[0].mxu0
  %v6029 = vadd.f32 %v5932, %v6028
  %v6030 = vpop.f32.mrb[0].mxu0
  %6031 = vmatprep.mubr.bf16.mxu0 0
  %6032 = vmatmul.mubr.bf16.gmra.mrb[0].mxu0 %v5854
  %v6033 = vpop.f32.mrb[0].mxu0
  %v6034 = vadd.f32 %v5937, %v6033
  %v6035 = vpop.f32.mrb[0].mxu0
  %v6036 = vpop.f32.mrb[0].mxu0
  %v6037 = vadd.f32 %v5940, %v6036
  %v6038 = vpop.f32.mrb[0].mxu0
  %6039 = vmatprep.mubr.bf16.mxu0 0
  %6040 = vmatmul.mubr.bf16.gmra.mrb[0].mxu0 %v5857
  %v6041 = vpop.f32.mrb[0].mxu0
  %v6042 = vadd.f32 %v5945, %v6041
  %v6043 = vpop.f32.mrb[0].mxu0
  %v6044 = vpop.f32.mrb[0].mxu0
  %v6045 = vadd.f32 %v5948, %v6044
  %v6046 = vpop.f32.mrb[0].mxu0
  %6047 = vmatprep.mubr.bf16.mxu0 0
  %6048 = vmatmul.mubr.bf16.gmra.mrb[0].mxu0 %v5860
  %v6049 = vpop.f32.mrb[0].mxu0
  %v6050 = vadd.f32 %v5953, %v6049
  %v6051 = vpop.f32.mrb[0].mxu0
  %v6052 = vpop.f32.mrb[0].mxu0
  %v6053 = vadd.f32 %v5956, %v6052
  %v6054 = vpop.f32.mrb[0].mxu0
  %6055 = vdwg.mxu0
  %s6056 = scalar_lea.vmem %s4, 384
  %v6057 = vld [vmem:[%s6056] sm:$0xff]
  %v6058 = vld [vmem:[%s6056 + $0x8] sm:$0xf]
  %v6059 = vld [vmem:[%s6056 + $0xc] sm:$0xff]
  %v6060 = vld [vmem:[%s6056 + $0x14] sm:$0xf]
  %v6061 = vld [vmem:[%s6056 + $0x18] sm:$0xff]
  %v6062 = vld [vmem:[%s6056 + $0x20] sm:$0xf]
  %v6063 = vld [vmem:[%s6056 + $0x24] sm:$0xff]
  %v6064 = vld [vmem:[%s6056 + $0x2c] sm:$0xf]
  %v6065 = vld [vmem:[%s6056 + $0x30] sm:$0xff]
  %v6066 = vld [vmem:[%s6056 + $0x38] sm:$0xf]
  %v6067 = vld [vmem:[%s6056 + $0x3c] sm:$0xff]
  %v6068 = vld [vmem:[%s6056 + $0x44] sm:$0xf]
  %v6069 = vld [vmem:[%s6056 + $0x48] sm:$0xff]
  %v6070 = vld [vmem:[%s6056 + $0x50] sm:$0xf]
  %v6071 = vld [vmem:[%s6056 + $0x54] sm:$0xff]
  %v6072 = vld [vmem:[%s6056 + $0x5c] sm:$0xf]
  %v6073 = vld [vmem:[%s6056 + $0x60] sm:$0xff]
  %v6074 = vld [vmem:[%s6056 + $0x68] sm:$0xf]
  %v6075 = vld [vmem:[%s6056 + $0x6c] sm:$0xff]
  %v6076 = vld [vmem:[%s6056 + $0x74] sm:$0xf]
  %v6077 = vld [vmem:[%s6056 + $0x78] sm:$0xff]
  %v6078 = vld [vmem:[%s6056 + $0x80] sm:$0xf]
  %v6079 = vld [vmem:[%s6056 + $0x84] sm:$0xff]
  %v6080 = vld [vmem:[%s6056 + $0x8c] sm:$0xf]
  %v6081 = vld [vmem:[%s6056 + $0x90] sm:$0xff]
  %v6082 = vld [vmem:[%s6056 + $0x98] sm:$0xf]
  %v6083 = vld [vmem:[%s6056 + $0x9c] sm:$0xff]
  %v6084 = vld [vmem:[%s6056 + $0xa4] sm:$0xf]
  %v6085 = vld [vmem:[%s6056 + $0xa8] sm:$0xff]
  %v6086 = vld [vmem:[%s6056 + $0xb0] sm:$0xf]
  %v6087 = vld [vmem:[%s6056 + $0xb4] sm:$0xff]
  %v6088 = vld [vmem:[%s6056 + $0xbc] sm:$0xf]
  %s6089 = scalar_lea.vmem [#allocation4], 320
  %v6090 = vld [vmem:[%s6089] sm:$0xff]
  %v6091 = vld [vmem:[%s6089 + $0x8] sm:$0xff]
  %v6092 = vld [vmem:[%s6089 + $0x10] sm:$0xff]
  %v6093 = vld [vmem:[%s6089 + $0x18] sm:$0xff]
  %v6094 = vld [vmem:[%s6089 + $0x20] sm:$0xff]
  %v6095 = vld [vmem:[%s6089 + $0x28] sm:$0xff]
  %v6096 = vld [vmem:[%s6089 + $0x30] sm:$0xff]
  %v6097 = vld [vmem:[%s6089 + $0x38] sm:$0xff]
  %v6098 = vld [vmem:[%s6089 + $0x40] sm:$0xff]
  %v6099 = vld [vmem:[%s6089 + $0x48] sm:$0xff]
  %v6100 = vld [vmem:[%s6089 + $0x50] sm:$0xff]
  %v6101 = vld [vmem:[%s6089 + $0x58] sm:$0xff]
  %v6102 = vld [vmem:[%s6089 + $0x60] sm:$0xff]
  %v6103 = vld [vmem:[%s6089 + $0x68] sm:$0xff]
  %v6104 = vld [vmem:[%s6089 + $0x70] sm:$0xff]
  %v6105 = vld [vmem:[%s6089 + $0x78] sm:$0xff]
  %v6106 = vld [vmem:[%s6089 + $0x80] sm:$0xff]
  %v6107 = vld [vmem:[%s6089 + $0x88] sm:$0xff]
  %v6108 = vld [vmem:[%s6089 + $0x90] sm:$0xff]
  %v6109 = vld [vmem:[%s6089 + $0x98] sm:$0xff]
  %v6142 = vunpack.c.l.b16 %v6057
  %v6143 = vunpack.c.h.b16 %v6057
  %v6144 = vunpack.c.l.b16 %v6058
  %v6145 = vunpack.c.l.b16 %v6059
  %v6146 = vunpack.c.h.b16 %v6059
  %v6147 = vunpack.c.l.b16 %v6060
  %v6148 = vunpack.c.l.b16 %v6061
  %v6149 = vunpack.c.h.b16 %v6061
  %v6150 = vunpack.c.l.b16 %v6062
  %v6151 = vunpack.c.l.b16 %v6063
  %v6152 = vunpack.c.h.b16 %v6063
  %v6153 = vunpack.c.l.b16 %v6064
  %v6154 = vunpack.c.l.b16 %v6065
  %v6155 = vunpack.c.h.b16 %v6065
  %v6156 = vunpack.c.l.b16 %v6066
  %v6157 = vunpack.c.l.b16 %v6067
  %v6158 = vunpack.c.h.b16 %v6067
  %v6159 = vunpack.c.l.b16 %v6068
  %v6160 = vunpack.c.l.b16 %v6069
  %v6161 = vunpack.c.h.b16 %v6069
  %v6162 = vunpack.c.l.b16 %v6070
  %v6163 = vunpack.c.l.b16 %v6071
  %v6164 = vunpack.c.h.b16 %v6071
  %v6165 = vunpack.c.l.b16 %v6072
  %v6166 = vunpack.c.l.b16 %v6073
  %v6167 = vunpack.c.h.b16 %v6073
  %v6168 = vunpack.c.l.b16 %v6074
  %v6169 = vunpack.c.l.b16 %v6075
  %v6170 = vunpack.c.h.b16 %v6075
  %v6171 = vunpack.c.l.b16 %v6076
  %v6172 = vunpack.c.l.b16 %v6077
  %v6173 = vunpack.c.h.b16 %v6077
  %v6174 = vunpack.c.l.b16 %v6078
  %v6175 = vunpack.c.l.b16 %v6079
  %v6176 = vunpack.c.h.b16 %v6079
  %v6177 = vunpack.c.l.b16 %v6080
  %v6178 = vunpack.c.l.b16 %v6081
  %v6179 = vunpack.c.h.b16 %v6081
  %v6180 = vunpack.c.l.b16 %v6082
  %v6181 = vunpack.c.l.b16 %v6083
  %v6182 = vunpack.c.h.b16 %v6083
  %v6183 = vunpack.c.l.b16 %v6084
  %v6184 = vunpack.c.l.b16 %v6085
  %v6185 = vunpack.c.h.b16 %v6085
  %v6186 = vunpack.c.l.b16 %v6086
  %v6187 = vunpack.c.l.b16 %v6087
  %v6188 = vunpack.c.h.b16 %v6087
  %v6189 = vunpack.c.l.b16 %v6088
  %v6190 = vpack.c.b16 %v6145, %v6142
  %v6191 = vpack.c.b16 %v6146, %v6143
  %v6192 = vpack.c.b16 %v6147, %v6144
  %v6193 = vpack.c.b16 %v6151, %v6148
  %v6194 = vpack.c.b16 %v6152, %v6149
  %v6195 = vpack.c.b16 %v6153, %v6150
  %v6196 = vpack.c.b16 %v6157, %v6154
  %v6197 = vpack.c.b16 %v6158, %v6155
  %v6198 = vpack.c.b16 %v6159, %v6156
  %v6199 = vpack.c.b16 %v6163, %v6160
  %v6200 = vpack.c.b16 %v6164, %v6161
  %v6201 = vpack.c.b16 %v6165, %v6162
  %v6202 = vpack.c.b16 %v6169, %v6166
  %v6203 = vpack.c.b16 %v6170, %v6167
  %v6204 = vpack.c.b16 %v6171, %v6168
  %v6205 = vpack.c.b16 %v6175, %v6172
  %v6206 = vpack.c.b16 %v6176, %v6173
  %v6207 = vpack.c.b16 %v6177, %v6174
  %v6208 = vpack.c.b16 %v6181, %v6178
  %v6209 = vpack.c.b16 %v6182, %v6179
  %v6210 = vpack.c.b16 %v6183, %v6180
  %v6211 = vpack.c.b16 %v6187, %v6184
  %v6212 = vpack.c.b16 %v6188, %v6185
  %v6213 = vpack.c.b16 %v6189, %v6186
  %v6231 = vsel %vm5499, %v6192, 0
  %v6234 = vsel %vm5499, %v6195, 0
  %v6237 = vsel %vm5499, %v6198, 0
  %v6240 = vsel %vm5499, %v6201, 0
  %v6243 = vsel %vm5499, %v6204, 0
  %v6246 = vsel %vm5499, %v6207, 0
  %v6249 = vsel %vm5499, %v6210, 0
  %v6252 = vsel %vm5499, %v6213, 0
  %6254 = vmatprep.subr.bf16.mxu0 0
  %6255 = vmatpush1.bf16.msra.mxu0 %v6090
  %6256 = vmatprep.subr.bf16.mxu0 0
  %6257 = vmatpush1.bf16.msra.mxu0 %v6091
  %6258 = vmatprep.subr.bf16.mxu0 0
  %6259 = vmatpush1.bf16.msra.mxu0 %v6092
  %6260 = vmatprep.subr.bf16.mxu0 0
  %6261 = vmatpush1.bf16.msra.mxu0 %v6093
  %6262 = vmatprep.subr.bf16.mxu0 0
  %6263 = vmatpush1.bf16.msra.mxu0 %v6094
  %6264 = vmatprep.subr.bf16.mxu0 0
  %6265 = vmatpush1.bf16.msra.mxu0 %v6095
  %6266 = vmatprep.subr.bf16.mxu0 0
  %6267 = vmatpush1.bf16.msra.mxu0 %v6096
  %6268 = vmatprep.subr.bf16.mxu0 0
  %6269 = vmatpush1.bf16.msra.mxu0 %v6097
  %6270 = vmatprep.subr.bf16.mxu0 0
  %6271 = vmatpush1.bf16.msra.mxu0 %v6098
  %6272 = vmatprep.subr.bf16.mxu0 0
  %6273 = vmatpush1.bf16.msra.mxu0 %v6099
  %6274 = vmatprep.subr.bf16.mxu0 0
  %6275 = vmatpush1.bf16.msra.mxu0 %v6100
  %6276 = vmatprep.subr.bf16.mxu0 0
  %6277 = vmatpush1.bf16.msra.mxu0 %v6101
  %6278 = vmatprep.subr.bf16.mxu0 0
  %6279 = vmatpush1.bf16.msra.mxu0 %v6102
  %6280 = vmatprep.subr.bf16.mxu0 0
  %6281 = vmatpush1.bf16.msra.mxu0 %v6103
  %6282 = vmatprep.subr.bf16.mxu0 0
  %6283 = vmatpush1.bf16.msra.mxu0 %v6104
  %6284 = vmatprep.subr.bf16.mxu0 0
  %6285 = vmatpush1.bf16.msra.mxu0 %v6105
  %6286 = vmatprep.mubr.bf16.mxu0 %v6191
  %6287 = vmatmul.mubr.bf16.gmra.mrb[0].mxu0 %v6190
  %v6288 = vpop.f32.mrb[0].mxu0
  %v6289 = vadd.f32 0.0, %v6288
  %v6290 = vpop.f32.mrb[0].mxu0
  %v6291 = vpop.f32.mrb[0].mxu0
  %v6292 = vadd.f32 0.0, %v6291
  %v6293 = vpop.f32.mrb[0].mxu0
  %6294 = vmatprep.mubr.bf16.mxu0 %v6194
  %6295 = vmatmul.mubr.bf16.gmra.mrb[0].mxu0 %v6193
  %v6296 = vpop.f32.mrb[0].mxu0
  %v6297 = vadd.f32 0.0, %v6296
  %v6298 = vpop.f32.mrb[0].mxu0
  %v6299 = vpop.f32.mrb[0].mxu0
  %v6300 = vadd.f32 0.0, %v6299
  %v6301 = vpop.f32.mrb[0].mxu0
  %6302 = vmatprep.mubr.bf16.mxu0 %v6197
  %6303 = vmatmul.mubr.bf16.gmra.mrb[0].mxu0 %v6196
  %v6304 = vpop.f32.mrb[0].mxu0
  %v6305 = vadd.f32 0.0, %v6304
  %v6306 = vpop.f32.mrb[0].mxu0
  %v6307 = vpop.f32.mrb[0].mxu0
  %v6308 = vadd.f32 0.0, %v6307
  %v6309 = vpop.f32.mrb[0].mxu0
  %6310 = vmatprep.mubr.bf16.mxu0 %v6200
  %6311 = vmatmul.mubr.bf16.gmra.mrb[0].mxu0 %v6199
  %v6312 = vpop.f32.mrb[0].mxu0
  %v6313 = vadd.f32 0.0, %v6312
  %v6314 = vpop.f32.mrb[0].mxu0
  %v6315 = vpop.f32.mrb[0].mxu0
  %v6316 = vadd.f32 0.0, %v6315
  %v6317 = vpop.f32.mrb[0].mxu0
  %6318 = vmatprep.mubr.bf16.mxu0 %v6203
  %6319 = vmatmul.mubr.bf16.gmra.mrb[0].mxu0 %v6202
  %v6320 = vpop.f32.mrb[0].mxu0
  %v6321 = vadd.f32 0.0, %v6320
  %v6322 = vpop.f32.mrb[0].mxu0
  %v6323 = vpop.f32.mrb[0].mxu0
  %v6324 = vadd.f32 0.0, %v6323
  %v6325 = vpop.f32.mrb[0].mxu0
  %6326 = vmatprep.mubr.bf16.mxu0 %v6206
  %6327 = vmatmul.mubr.bf16.gmra.mrb[0].mxu0 %v6205
  %v6328 = vpop.f32.mrb[0].mxu0
  %v6329 = vadd.f32 0.0, %v6328
  %v6330 = vpop.f32.mrb[0].mxu0
  %v6331 = vpop.f32.mrb[0].mxu0
  %v6332 = vadd.f32 0.0, %v6331
  %v6333 = vpop.f32.mrb[0].mxu0
  %6334 = vmatprep.mubr.bf16.mxu0 %v6209
  %6335 = vmatmul.mubr.bf16.gmra.mrb[0].mxu0 %v6208
  %v6336 = vpop.f32.mrb[0].mxu0
  %v6337 = vadd.f32 0.0, %v6336
  %v6338 = vpop.f32.mrb[0].mxu0
  %v6339 = vpop.f32.mrb[0].mxu0
  %v6340 = vadd.f32 0.0, %v6339
  %v6341 = vpop.f32.mrb[0].mxu0
  %6342 = vmatprep.mubr.bf16.mxu0 %v6212
  %6343 = vmatmul.mubr.bf16.gmra.mrb[0].mxu0 %v6211
  %v6344 = vpop.f32.mrb[0].mxu0
  %v6345 = vadd.f32 0.0, %v6344
  %v6346 = vpop.f32.mrb[0].mxu0
  %v6347 = vpop.f32.mrb[0].mxu0
  %v6348 = vadd.f32 0.0, %v6347
  %v6349 = vpop.f32.mrb[0].mxu0
  %6350 = vdwg.mxu0
  %6351 = vmatprep.subr.bf16.mxu0 0
  %6352 = vmatpush1.bf16.msra.mxu0 %v6106
  %6353 = vmatprep.subr.bf16.mxu0 0
  %6354 = vmatpush1.bf16.msra.mxu0 %v6107
  %6355 = vmatprep.subr.bf16.mxu0 0
  %6356 = vmatpush1.bf16.msra.mxu0 %v6108
  %6357 = vmatprep.subr.bf16.mxu0 0
  %6358 = vmatpush1.bf16.msra.mxu0 %v6109
  %6359 = vmatprep.subr.bf16.mxu0 0
  %6360 = vmatpush1.bf16.msra.mxu0 0
  %6361 = vmatprep.subr.bf16.mxu0 0
  %6362 = vmatpush1.bf16.msra.mxu0 0
  %6363 = vmatprep.subr.bf16.mxu0 0
  %6364 = vmatpush1.bf16.msra.mxu0 0
  %6365 = vmatprep.subr.bf16.mxu0 0
  %6366 = vmatpush1.bf16.msra.mxu0 0
  %6367 = vmatprep.subr.bf16.mxu0 0
  %6368 = vmatpush1.bf16.msra.mxu0 0
  %6369 = vmatprep.subr.bf16.mxu0 0
  %6370 = vmatpush1.bf16.msra.mxu0 0
  %6371 = vmatprep.subr.bf16.mxu0 0
  %6372 = vmatpush1.bf16.msra.mxu0 0
  %6373 = vmatprep.subr.bf16.mxu0 0
  %6374 = vmatpush1.bf16.msra.mxu0 0
  %6375 = vmatprep.subr.bf16.mxu0 0
  %6376 = vmatpush1.bf16.msra.mxu0 0
  %6377 = vmatprep.subr.bf16.mxu0 0
  %6378 = vmatpush1.bf16.msra.mxu0 0
  %6379 = vmatprep.subr.bf16.mxu0 0
  %6380 = vmatpush1.bf16.msra.mxu0 0
  %6381 = vmatprep.subr.bf16.mxu0 0
  %6382 = vmatpush1.bf16.msra.mxu0 0
  %6383 = vmatprep.mubr.bf16.mxu0 0
  %6384 = vmatmul.mubr.bf16.gmra.mrb[0].mxu0 %v6231
  %v6385 = vpop.f32.mrb[0].mxu0
  %v6386 = vadd.f32 %v6289, %v6385
  %v6387 = vpop.f32.mrb[0].mxu0
  %v6388 = vpop.f32.mrb[0].mxu0
  %v6389 = vadd.f32 %v6292, %v6388
  %v6390 = vpop.f32.mrb[0].mxu0
  %6391 = vmatprep.mubr.bf16.mxu0 0
  %6392 = vmatmul.mubr.bf16.gmra.mrb[0].mxu0 %v6234
  %v6393 = vpop.f32.mrb[0].mxu0
  %v6394 = vadd.f32 %v6297, %v6393
  %v6395 = vpop.f32.mrb[0].mxu0
  %v6396 = vpop.f32.mrb[0].mxu0
  %v6397 = vadd.f32 %v6300, %v6396
  %v6398 = vpop.f32.mrb[0].mxu0
  %6399 = vmatprep.mubr.bf16.mxu0 0
  %6400 = vmatmul.mubr.bf16.gmra.mrb[0].mxu0 %v6237
  %v6401 = vpop.f32.mrb[0].mxu0
  %v6402 = vadd.f32 %v6305, %v6401
  %v6403 = vpop.f32.mrb[0].mxu0
  %v6404 = vpop.f32.mrb[0].mxu0
  %v6405 = vadd.f32 %v6308, %v6404
  %v6406 = vpop.f32.mrb[0].mxu0
  %6407 = vmatprep.mubr.bf16.mxu0 0
  %6408 = vmatmul.mubr.bf16.gmra.mrb[0].mxu0 %v6240
  %v6409 = vpop.f32.mrb[0].mxu0
  %v6410 = vadd.f32 %v6313, %v6409
  %v6411 = vpop.f32.mrb[0].mxu0
  %v6412 = vpop.f32.mrb[0].mxu0
  %v6413 = vadd.f32 %v6316, %v6412
  %v6414 = vpop.f32.mrb[0].mxu0
  %6415 = vmatprep.mubr.bf16.mxu0 0
  %6416 = vmatmul.mubr.bf16.gmra.mrb[0].mxu0 %v6243
  %v6417 = vpop.f32.mrb[0].mxu0
  %v6418 = vadd.f32 %v6321, %v6417
  %v6419 = vpop.f32.mrb[0].mxu0
  %v6420 = vpop.f32.mrb[0].mxu0
  %v6421 = vadd.f32 %v6324, %v6420
  %v6422 = vpop.f32.mrb[0].mxu0
  %6423 = vmatprep.mubr.bf16.mxu0 0
  %6424 = vmatmul.mubr.bf16.gmra.mrb[0].mxu0 %v6246
  %v6425 = vpop.f32.mrb[0].mxu0
  %v6426 = vadd.f32 %v6329, %v6425
  %v6427 = vpop.f32.mrb[0].mxu0
  %v6428 = vpop.f32.mrb[0].mxu0
  %v6429 = vadd.f32 %v6332, %v6428
  %v6430 = vpop.f32.mrb[0].mxu0
  %6431 = vmatprep.mubr.bf16.mxu0 0
  %6432 = vmatmul.mubr.bf16.gmra.mrb[0].mxu0 %v6249
  %v6433 = vpop.f32.mrb[0].mxu0
  %v6434 = vadd.f32 %v6337, %v6433
  %v6435 = vpop.f32.mrb[0].mxu0
  %v6436 = vpop.f32.mrb[0].mxu0
  %v6437 = vadd.f32 %v6340, %v6436
  %v6438 = vpop.f32.mrb[0].mxu0
  %6439 = vmatprep.mubr.bf16.mxu0 0
  %6440 = vmatmul.mubr.bf16.gmra.mrb[0].mxu0 %v6252
  %v6441 = vpop.f32.mrb[0].mxu0
  %v6442 = vadd.f32 %v6345, %v6441
  %v6443 = vpop.f32.mrb[0].mxu0
  %v6444 = vpop.f32.mrb[0].mxu0
  %v6445 = vadd.f32 %v6348, %v6444
  %v6446 = vpop.f32.mrb[0].mxu0
  %6447 = vdwg.mxu0
  %v6448 = vadd.f32 %v5994, %v6386
  %v6449 = vadd.f32 %v5997, %v6389
  %v6450 = vadd.f32 %v6002, %v6394
  %v6451 = vadd.f32 %v6005, %v6397
  %v6452 = vadd.f32 %v6010, %v6402
  %v6453 = vadd.f32 %v6013, %v6405
  %v6454 = vadd.f32 %v6018, %v6410
  %v6455 = vadd.f32 %v6021, %v6413
  %v6456 = vadd.f32 %v6026, %v6418
  %v6457 = vadd.f32 %v6029, %v6421
  %v6458 = vadd.f32 %v6034, %v6426
  %v6459 = vadd.f32 %v6037, %v6429
  %v6460 = vadd.f32 %v6042, %v6434
  %v6461 = vadd.f32 %v6045, %v6437
  %v6462 = vadd.f32 %v6050, %v6442
  %v6463 = vadd.f32 %v6053, %v6445
  %s6464 = scalar_lea.vmem %s4, 576
  %v6465 = vld [vmem:[%s6464] sm:$0xff]
  %v6466 = vld [vmem:[%s6464 + $0x8] sm:$0xf]
  %v6467 = vld [vmem:[%s6464 + $0xc] sm:$0xff]
  %v6468 = vld [vmem:[%s6464 + $0x14] sm:$0xf]
  %v6469 = vld [vmem:[%s6464 + $0x18] sm:$0xff]
  %v6470 = vld [vmem:[%s6464 + $0x20] sm:$0xf]
  %v6471 = vld [vmem:[%s6464 + $0x24] sm:$0xff]
  %v6472 = vld [vmem:[%s6464 + $0x2c] sm:$0xf]
  %v6473 = vld [vmem:[%s6464 + $0x30] sm:$0xff]
  %v6474 = vld [vmem:[%s6464 + $0x38] sm:$0xf]
  %v6475 = vld [vmem:[%s6464 + $0x3c] sm:$0xff]
  %v6476 = vld [vmem:[%s6464 + $0x44] sm:$0xf]
  %v6477 = vld [vmem:[%s6464 + $0x48] sm:$0xff]
  %v6478 = vld [vmem:[%s6464 + $0x50] sm:$0xf]
  %v6479 = vld [vmem:[%s6464 + $0x54] sm:$0xff]
  %v6480 = vld [vmem:[%s6464 + $0x5c] sm:$0xf]
  %v6481 = vld [vmem:[%s6464 + $0x60] sm:$0xff]
  %v6482 = vld [vmem:[%s6464 + $0x68] sm:$0xf]
  %v6483 = vld [vmem:[%s6464 + $0x6c] sm:$0xff]
  %v6484 = vld [vmem:[%s6464 + $0x74] sm:$0xf]
  %v6485 = vld [vmem:[%s6464 + $0x78] sm:$0xff]
  %v6486 = vld [vmem:[%s6464 + $0x80] sm:$0xf]
  %v6487 = vld [vmem:[%s6464 + $0x84] sm:$0xff]
  %v6488 = vld [vmem:[%s6464 + $0x8c] sm:$0xf]
  %v6489 = vld [vmem:[%s6464 + $0x90] sm:$0xff]
  %v6490 = vld [vmem:[%s6464 + $0x98] sm:$0xf]
  %v6491 = vld [vmem:[%s6464 + $0x9c] sm:$0xff]
  %v6492 = vld [vmem:[%s6464 + $0xa4] sm:$0xf]
  %v6493 = vld [vmem:[%s6464 + $0xa8] sm:$0xff]
  %v6494 = vld [vmem:[%s6464 + $0xb0] sm:$0xf]
  %v6495 = vld [vmem:[%s6464 + $0xb4] sm:$0xff]
  %v6496 = vld [vmem:[%s6464 + $0xbc] sm:$0xf]
  %s6497 = scalar_lea.vmem [#allocation4], 480
  %v6498 = vld [vmem:[%s6497] sm:$0xff]
  %v6499 = vld [vmem:[%s6497 + $0x8] sm:$0xff]
  %v6500 = vld [vmem:[%s6497 + $0x10] sm:$0xff]
  %v6501 = vld [vmem:[%s6497 + $0x18] sm:$0xff]
  %v6502 = vld [vmem:[%s6497 + $0x20] sm:$0xff]
  %v6503 = vld [vmem:[%s6497 + $0x28] sm:$0xff]
  %v6504 = vld [vmem:[%s6497 + $0x30] sm:$0xff]
  %v6505 = vld [vmem:[%s6497 + $0x38] sm:$0xff]
  %v6506 = vld [vmem:[%s6497 + $0x40] sm:$0xff]
  %v6507 = vld [vmem:[%s6497 + $0x48] sm:$0xff]
  %v6508 = vld [vmem:[%s6497 + $0x50] sm:$0xff]
  %v6509 = vld [vmem:[%s6497 + $0x58] sm:$0xff]
  %v6510 = vld [vmem:[%s6497 + $0x60] sm:$0xff]
  %v6511 = vld [vmem:[%s6497 + $0x68] sm:$0xff]
  %v6512 = vld [vmem:[%s6497 + $0x70] sm:$0xff]
  %v6513 = vld [vmem:[%s6497 + $0x78] sm:$0xff]
  %v6514 = vld [vmem:[%s6497 + $0x80] sm:$0xff]
  %v6515 = vld [vmem:[%s6497 + $0x88] sm:$0xff]
  %v6516 = vld [vmem:[%s6497 + $0x90] sm:$0xff]
  %v6517 = vld [vmem:[%s6497 + $0x98] sm:$0xff]
  %v6550 = vunpack.c.l.b16 %v6465
  %v6551 = vunpack.c.h.b16 %v6465
  %v6552 = vunpack.c.l.b16 %v6466
  %v6553 = vunpack.c.l.b16 %v6467
  %v6554 = vunpack.c.h.b16 %v6467
  %v6555 = vunpack.c.l.b16 %v6468
  %v6556 = vunpack.c.l.b16 %v6469
  %v6557 = vunpack.c.h.b16 %v6469
  %v6558 = vunpack.c.l.b16 %v6470
  %v6559 = vunpack.c.l.b16 %v6471
  %v6560 = vunpack.c.h.b16 %v6471
  %v6561 = vunpack.c.l.b16 %v6472
  %v6562 = vunpack.c.l.b16 %v6473
  %v6563 = vunpack.c.h.b16 %v6473
  %v6564 = vunpack.c.l.b16 %v6474
  %v6565 = vunpack.c.l.b16 %v6475
  %v6566 = vunpack.c.h.b16 %v6475
  %v6567 = vunpack.c.l.b16 %v6476
  %v6568 = vunpack.c.l.b16 %v6477
  %v6569 = vunpack.c.h.b16 %v6477
  %v6570 = vunpack.c.l.b16 %v6478
  %v6571 = vunpack.c.l.b16 %v6479
  %v6572 = vunpack.c.h.b16 %v6479
  %v6573 = vunpack.c.l.b16 %v6480
  %v6574 = vunpack.c.l.b16 %v6481
  %v6575 = vunpack.c.h.b16 %v6481
  %v6576 = vunpack.c.l.b16 %v6482
  %v6577 = vunpack.c.l.b16 %v6483
  %v6578 = vunpack.c.h.b16 %v6483
  %v6579 = vunpack.c.l.b16 %v6484
  %v6580 = vunpack.c.l.b16 %v6485
  %v6581 = vunpack.c.h.b16 %v6485
  %v6582 = vunpack.c.l.b16 %v6486
  %v6583 = vunpack.c.l.b16 %v6487
  %v6584 = vunpack.c.h.b16 %v6487
  %v6585 = vunpack.c.l.b16 %v6488
  %v6586 = vunpack.c.l.b16 %v6489
  %v6587 = vunpack.c.h.b16 %v6489
  %v6588 = vunpack.c.l.b16 %v6490
  %v6589 = vunpack.c.l.b16 %v6491
  %v6590 = vunpack.c.h.b16 %v6491
  %v6591 = vunpack.c.l.b16 %v6492
  %v6592 = vunpack.c.l.b16 %v6493
  %v6593 = vunpack.c.h.b16 %v6493
  %v6594 = vunpack.c.l.b16 %v6494
  %v6595 = vunpack.c.l.b16 %v6495
  %v6596 = vunpack.c.h.b16 %v6495
  %v6597 = vunpack.c.l.b16 %v6496
  %v6598 = vpack.c.b16 %v6553, %v6550
  %v6599 = vpack.c.b16 %v6554, %v6551
  %v6600 = vpack.c.b16 %v6555, %v6552
  %v6601 = vpack.c.b16 %v6559, %v6556
  %v6602 = vpack.c.b16 %v6560, %v6557
  %v6603 = vpack.c.b16 %v6561, %v6558
  %v6604 = vpack.c.b16 %v6565, %v6562
  %v6605 = vpack.c.b16 %v6566, %v6563
  %v6606 = vpack.c.b16 %v6567, %v6564
  %v6607 = vpack.c.b16 %v6571, %v6568
  %v6608 = vpack.c.b16 %v6572, %v6569
  %v6609 = vpack.c.b16 %v6573, %v6570
  %v6610 = vpack.c.b16 %v6577, %v6574
  %v6611 = vpack.c.b16 %v6578, %v6575
  %v6612 = vpack.c.b16 %v6579, %v6576
  %v6613 = vpack.c.b16 %v6583, %v6580
  %v6614 = vpack.c.b16 %v6584, %v6581
  %v6615 = vpack.c.b16 %v6585, %v6582
  %v6616 = vpack.c.b16 %v6589, %v6586
  %v6617 = vpack.c.b16 %v6590, %v6587
  %v6618 = vpack.c.b16 %v6591, %v6588
  %v6619 = vpack.c.b16 %v6595, %v6592
  %v6620 = vpack.c.b16 %v6596, %v6593
  %v6621 = vpack.c.b16 %v6597, %v6594
  %v6639 = vsel %vm5499, %v6600, 0
  %v6642 = vsel %vm5499, %v6603, 0
  %v6645 = vsel %vm5499, %v6606, 0
  %v6648 = vsel %vm5499, %v6609, 0
  %v6651 = vsel %vm5499, %v6612, 0
  %v6654 = vsel %vm5499, %v6615, 0
  %v6657 = vsel %vm5499, %v6618, 0
  %v6660 = vsel %vm5499, %v6621, 0
  %6662 = vmatprep.subr.bf16.mxu0 0
  %6663 = vmatpush1.bf16.msra.mxu0 %v6498
  %6664 = vmatprep.subr.bf16.mxu0 0
  %6665 = vmatpush1.bf16.msra.mxu0 %v6499
  %6666 = vmatprep.subr.bf16.mxu0 0
  %6667 = vmatpush1.bf16.msra.mxu0 %v6500
  %6668 = vmatprep.subr.bf16.mxu0 0
  %6669 = vmatpush1.bf16.msra.mxu0 %v6501
  %6670 = vmatprep.subr.bf16.mxu0 0
  %6671 = vmatpush1.bf16.msra.mxu0 %v6502
  %6672 = vmatprep.subr.bf16.mxu0 0
  %6673 = vmatpush1.bf16.msra.mxu0 %v6503
  %6674 = vmatprep.subr.bf16.mxu0 0
  %6675 = vmatpush1.bf16.msra.mxu0 %v6504
  %6676 = vmatprep.subr.bf16.mxu0 0
  %6677 = vmatpush1.bf16.msra.mxu0 %v6505
  %6678 = vmatprep.subr.bf16.mxu0 0
  %6679 = vmatpush1.bf16.msra.mxu0 %v6506
  %6680 = vmatprep.subr.bf16.mxu0 0
  %6681 = vmatpush1.bf16.msra.mxu0 %v6507
  %6682 = vmatprep.subr.bf16.mxu0 0
  %6683 = vmatpush1.bf16.msra.mxu0 %v6508
  %6684 = vmatprep.subr.bf16.mxu0 0
  %6685 = vmatpush1.bf16.msra.mxu0 %v6509
  %6686 = vmatprep.subr.bf16.mxu0 0
  %6687 = vmatpush1.bf16.msra.mxu0 %v6510
  %6688 = vmatprep.subr.bf16.mxu0 0
  %6689 = vmatpush1.bf16.msra.mxu0 %v6511
  %6690 = vmatprep.subr.bf16.mxu0 0
  %6691 = vmatpush1.bf16.msra.mxu0 %v6512
  %6692 = vmatprep.subr.bf16.mxu0 0
  %6693 = vmatpush1.bf16.msra.mxu0 %v6513
  %6694 = vmatprep.mubr.bf16.mxu0 %v6599
  %6695 = vmatmul.mubr.bf16.gmra.mrb[0].mxu0 %v6598
  %v6696 = vpop.f32.mrb[0].mxu0
  %v6697 = vadd.f32 0.0, %v6696
  %v6698 = vpop.f32.mrb[0].mxu0
  %v6699 = vpop.f32.mrb[0].mxu0
  %v6700 = vadd.f32 0.0, %v6699
  %v6701 = vpop.f32.mrb[0].mxu0
  %6702 = vmatprep.mubr.bf16.mxu0 %v6602
  %6703 = vmatmul.mubr.bf16.gmra.mrb[0].mxu0 %v6601
  %v6704 = vpop.f32.mrb[0].mxu0
  %v6705 = vadd.f32 0.0, %v6704
  %v6706 = vpop.f32.mrb[0].mxu0
  %v6707 = vpop.f32.mrb[0].mxu0
  %v6708 = vadd.f32 0.0, %v6707
  %v6709 = vpop.f32.mrb[0].mxu0
  %6710 = vmatprep.mubr.bf16.mxu0 %v6605
  %6711 = vmatmul.mubr.bf16.gmra.mrb[0].mxu0 %v6604
  %v6712 = vpop.f32.mrb[0].mxu0
  %v6713 = vadd.f32 0.0, %v6712
  %v6714 = vpop.f32.mrb[0].mxu0
  %v6715 = vpop.f32.mrb[0].mxu0
  %v6716 = vadd.f32 0.0, %v6715
  %v6717 = vpop.f32.mrb[0].mxu0
  %6718 = vmatprep.mubr.bf16.mxu0 %v6608
  %6719 = vmatmul.mubr.bf16.gmra.mrb[0].mxu0 %v6607
  %v6720 = vpop.f32.mrb[0].mxu0
  %v6721 = vadd.f32 0.0, %v6720
  %v6722 = vpop.f32.mrb[0].mxu0
  %v6723 = vpop.f32.mrb[0].mxu0
  %v6724 = vadd.f32 0.0, %v6723
  %v6725 = vpop.f32.mrb[0].mxu0
  %6726 = vmatprep.mubr.bf16.mxu0 %v6611
  %6727 = vmatmul.mubr.bf16.gmra.mrb[0].mxu0 %v6610
  %v6728 = vpop.f32.mrb[0].mxu0
  %v6729 = vadd.f32 0.0, %v6728
  %v6730 = vpop.f32.mrb[0].mxu0
  %v6731 = vpop.f32.mrb[0].mxu0
  %v6732 = vadd.f32 0.0, %v6731
  %v6733 = vpop.f32.mrb[0].mxu0
  %6734 = vmatprep.mubr.bf16.mxu0 %v6614
  %6735 = vmatmul.mubr.bf16.gmra.mrb[0].mxu0 %v6613
  %v6736 = vpop.f32.mrb[0].mxu0
  %v6737 = vadd.f32 0.0, %v6736
  %v6738 = vpop.f32.mrb[0].mxu0
  %v6739 = vpop.f32.mrb[0].mxu0
  %v6740 = vadd.f32 0.0, %v6739
  %v6741 = vpop.f32.mrb[0].mxu0
  %6742 = vmatprep.mubr.bf16.mxu0 %v6617
  %6743 = vmatmul.mubr.bf16.gmra.mrb[0].mxu0 %v6616
  %v6744 = vpop.f32.mrb[0].mxu0
  %v6745 = vadd.f32 0.0, %v6744
  %v6746 = vpop.f32.mrb[0].mxu0
  %v6747 = vpop.f32.mrb[0].mxu0
  %v6748 = vadd.f32 0.0, %v6747
  %v6749 = vpop.f32.mrb[0].mxu0
  %6750 = vmatprep.mubr.bf16.mxu0 %v6620
  %6751 = vmatmul.mubr.bf16.gmra.mrb[0].mxu0 %v6619
  %v6752 = vpop.f32.mrb[0].mxu0
  %v6753 = vadd.f32 0.0, %v6752
  %v6754 = vpop.f32.mrb[0].mxu0
  %v6755 = vpop.f32.mrb[0].mxu0
  %v6756 = vadd.f32 0.0, %v6755
  %v6757 = vpop.f32.mrb[0].mxu0
  %6758 = vdwg.mxu0
  %6759 = vmatprep.subr.bf16.mxu0 0
  %6760 = vmatpush1.bf16.msra.mxu0 %v6514
  %6761 = vmatprep.subr.bf16.mxu0 0
  %6762 = vmatpush1.bf16.msra.mxu0 %v6515
  %6763 = vmatprep.subr.bf16.mxu0 0
  %6764 = vmatpush1.bf16.msra.mxu0 %v6516
  %6765 = vmatprep.subr.bf16.mxu0 0
  %6766 = vmatpush1.bf16.msra.mxu0 %v6517
  %6767 = vmatprep.subr.bf16.mxu0 0
  %6768 = vmatpush1.bf16.msra.mxu0 0
  %6769 = vmatprep.subr.bf16.mxu0 0
  %6770 = vmatpush1.bf16.msra.mxu0 0
  %6771 = vmatprep.subr.bf16.mxu0 0
  %6772 = vmatpush1.bf16.msra.mxu0 0
  %6773 = vmatprep.subr.bf16.mxu0 0
  %6774 = vmatpush1.bf16.msra.mxu0 0
  %6775 = vmatprep.subr.bf16.mxu0 0
  %6776 = vmatpush1.bf16.msra.mxu0 0
  %6777 = vmatprep.subr.bf16.mxu0 0
  %6778 = vmatpush1.bf16.msra.mxu0 0
  %6779 = vmatprep.subr.bf16.mxu0 0
  %6780 = vmatpush1.bf16.msra.mxu0 0
  %6781 = vmatprep.subr.bf16.mxu0 0
  %6782 = vmatpush1.bf16.msra.mxu0 0
  %6783 = vmatprep.subr.bf16.mxu0 0
  %6784 = vmatpush1.bf16.msra.mxu0 0
  %6785 = vmatprep.subr.bf16.mxu0 0
  %6786 = vmatpush1.bf16.msra.mxu0 0
  %6787 = vmatprep.subr.bf16.mxu0 0
  %6788 = vmatpush1.bf16.msra.mxu0 0
  %6789 = vmatprep.subr.bf16.mxu0 0
  %6790 = vmatpush1.bf16.msra.mxu0 0
  %6791 = vmatprep.mubr.bf16.mxu0 0
  %6792 = vmatmul.mubr.bf16.gmra.mrb[0].mxu0 %v6639
  %v6793 = vpop.f32.mrb[0].mxu0
  %v6794 = vadd.f32 %v6697, %v6793
  %v6795 = vpop.f32.mrb[0].mxu0
  %v6796 = vpop.f32.mrb[0].mxu0
  %v6797 = vadd.f32 %v6700, %v6796
  %v6798 = vpop.f32.mrb[0].mxu0
  %6799 = vmatprep.mubr.bf16.mxu0 0
  %6800 = vmatmul.mubr.bf16.gmra.mrb[0].mxu0 %v6642
  %v6801 = vpop.f32.mrb[0].mxu0
  %v6802 = vadd.f32 %v6705, %v6801
  %v6803 = vpop.f32.mrb[0].mxu0
  %v6804 = vpop.f32.mrb[0].mxu0
  %v6805 = vadd.f32 %v6708, %v6804
  %v6806 = vpop.f32.mrb[0].mxu0
  %6807 = vmatprep.mubr.bf16.mxu0 0
  %6808 = vmatmul.mubr.bf16.gmra.mrb[0].mxu0 %v6645
  %v6809 = vpop.f32.mrb[0].mxu0
  %v6810 = vadd.f32 %v6713, %v6809
  %v6811 = vpop.f32.mrb[0].mxu0
  %v6812 = vpop.f32.mrb[0].mxu0
  %v6813 = vadd.f32 %v6716, %v6812
  %v6814 = vpop.f32.mrb[0].mxu0
  %6815 = vmatprep.mubr.bf16.mxu0 0
  %6816 = vmatmul.mubr.bf16.gmra.mrb[0].mxu0 %v6648
  %v6817 = vpop.f32.mrb[0].mxu0
  %v6818 = vadd.f32 %v6721, %v6817
  %v6819 = vpop.f32.mrb[0].mxu0
  %v6820 = vpop.f32.mrb[0].mxu0
  %v6821 = vadd.f32 %v6724, %v6820
  %v6822 = vpop.f32.mrb[0].mxu0
  %6823 = vmatprep.mubr.bf16.mxu0 0
  %6824 = vmatmul.mubr.bf16.gmra.mrb[0].mxu0 %v6651
  %v6825 = vpop.f32.mrb[0].mxu0
  %v6826 = vadd.f32 %v6729, %v6825
  %v6827 = vpop.f32.mrb[0].mxu0
  %v6828 = vpop.f32.mrb[0].mxu0
  %v6829 = vadd.f32 %v6732, %v6828
  %v6830 = vpop.f32.mrb[0].mxu0
  %6831 = vmatprep.mubr.bf16.mxu0 0
  %6832 = vmatmul.mubr.bf16.gmra.mrb[0].mxu0 %v6654
  %v6833 = vpop.f32.mrb[0].mxu0
  %v6834 = vadd.f32 %v6737, %v6833
  %v6835 = vpop.f32.mrb[0].mxu0
  %v6836 = vpop.f32.mrb[0].mxu0
  %v6837 = vadd.f32 %v6740, %v6836
  %v6838 = vpop.f32.mrb[0].mxu0
  %6839 = vmatprep.mubr.bf16.mxu0 0
  %6840 = vmatmul.mubr.bf16.gmra.mrb[0].mxu0 %v6657
  %v6841 = vpop.f32.mrb[0].mxu0
  %v6842 = vadd.f32 %v6745, %v6841
  %v6843 = vpop.f32.mrb[0].mxu0
  %v6844 = vpop.f32.mrb[0].mxu0
  %v6845 = vadd.f32 %v6748, %v6844
  %v6846 = vpop.f32.mrb[0].mxu0
  %6847 = vmatprep.mubr.bf16.mxu0 0
  %6848 = vmatmul.mubr.bf16.gmra.mrb[0].mxu0 %v6660
  %v6849 = vpop.f32.mrb[0].mxu0
  %v6850 = vadd.f32 %v6753, %v6849
  %v6851 = vpop.f32.mrb[0].mxu0
  %v6852 = vpop.f32.mrb[0].mxu0
  %v6853 = vadd.f32 %v6756, %v6852
  %v6854 = vpop.f32.mrb[0].mxu0
  %6855 = vdwg.mxu0
  %v6856 = vadd.f32 %v6448, %v6794
  %v6857 = vadd.f32 %v6449, %v6797
  %v6858 = vadd.f32 %v6450, %v6802
  %v6859 = vadd.f32 %v6451, %v6805
  %v6860 = vadd.f32 %v6452, %v6810
  %v6861 = vadd.f32 %v6453, %v6813
  %v6862 = vadd.f32 %v6454, %v6818
  %v6863 = vadd.f32 %v6455, %v6821
  %v6864 = vadd.f32 %v6456, %v6826
  %v6865 = vadd.f32 %v6457, %v6829
  %v6866 = vadd.f32 %v6458, %v6834
  %v6867 = vadd.f32 %v6459, %v6837
  %v6868 = vadd.f32 %v6460, %v6842
  %v6869 = vadd.f32 %v6461, %v6845
  %v6870 = vadd.f32 %v6462, %v6850
  %v6871 = vadd.f32 %v6463, %v6853
  %s6872 = scalar_lea.vmem %s4, 768
  %v6873 = vld [vmem:[%s6872] sm:$0xff]
  %v6874 = vld [vmem:[%s6872 + $0x8] sm:$0xf]
  %v6875 = vld [vmem:[%s6872 + $0xc] sm:$0xff]
  %v6876 = vld [vmem:[%s6872 + $0x14] sm:$0xf]
  %v6877 = vld [vmem:[%s6872 + $0x18] sm:$0xff]
  %v6878 = vld [vmem:[%s6872 + $0x20] sm:$0xf]
  %v6879 = vld [vmem:[%s6872 + $0x24] sm:$0xff]
  %v6880 = vld [vmem:[%s6872 + $0x2c] sm:$0xf]
  %v6881 = vld [vmem:[%s6872 + $0x30] sm:$0xff]
  %v6882 = vld [vmem:[%s6872 + $0x38] sm:$0xf]
  %v6883 = vld [vmem:[%s6872 + $0x3c] sm:$0xff]
  %v6884 = vld [vmem:[%s6872 + $0x44] sm:$0xf]
  %v6885 = vld [vmem:[%s6872 + $0x48] sm:$0xff]
  %v6886 = vld [vmem:[%s6872 + $0x50] sm:$0xf]
  %v6887 = vld [vmem:[%s6872 + $0x54] sm:$0xff]
  %v6888 = vld [vmem:[%s6872 + $0x5c] sm:$0xf]
  %v6889 = vld [vmem:[%s6872 + $0x60] sm:$0xff]
  %v6890 = vld [vmem:[%s6872 + $0x68] sm:$0xf]
  %v6891 = vld [vmem:[%s6872 + $0x6c] sm:$0xff]
  %v6892 = vld [vmem:[%s6872 + $0x74] sm:$0xf]
  %v6893 = vld [vmem:[%s6872 + $0x78] sm:$0xff]
  %v6894 = vld [vmem:[%s6872 + $0x80] sm:$0xf]
  %v6895 = vld [vmem:[%s6872 + $0x84] sm:$0xff]
  %v6896 = vld [vmem:[%s6872 + $0x8c] sm:$0xf]
  %v6897 = vld [vmem:[%s6872 + $0x90] sm:$0xff]
  %v6898 = vld [vmem:[%s6872 + $0x98] sm:$0xf]
  %v6899 = vld [vmem:[%s6872 + $0x9c] sm:$0xff]
  %v6900 = vld [vmem:[%s6872 + $0xa4] sm:$0xf]
  %v6901 = vld [vmem:[%s6872 + $0xa8] sm:$0xff]
  %v6902 = vld [vmem:[%s6872 + $0xb0] sm:$0xf]
  %v6903 = vld [vmem:[%s6872 + $0xb4] sm:$0xff]
  %v6904 = vld [vmem:[%s6872 + $0xbc] sm:$0xf]
  %s6905 = scalar_lea.vmem [#allocation4], 640
  %v6906 = vld [vmem:[%s6905] sm:$0xff]
  %v6907 = vld [vmem:[%s6905 + $0x8] sm:$0xff]
  %v6908 = vld [vmem:[%s6905 + $0x10] sm:$0xff]
  %v6909 = vld [vmem:[%s6905 + $0x18] sm:$0xff]
  %v6910 = vld [vmem:[%s6905 + $0x20] sm:$0xff]
  %v6911 = vld [vmem:[%s6905 + $0x28] sm:$0xff]
  %v6912 = vld [vmem:[%s6905 + $0x30] sm:$0xff]
  %v6913 = vld [vmem:[%s6905 + $0x38] sm:$0xff]
  %v6914 = vld [vmem:[%s6905 + $0x40] sm:$0xff]
  %v6915 = vld [vmem:[%s6905 + $0x48] sm:$0xff]
  %v6916 = vld [vmem:[%s6905 + $0x50] sm:$0xff]
  %v6917 = vld [vmem:[%s6905 + $0x58] sm:$0xff]
  %v6918 = vld [vmem:[%s6905 + $0x60] sm:$0xff]
  %v6919 = vld [vmem:[%s6905 + $0x68] sm:$0xff]
  %v6920 = vld [vmem:[%s6905 + $0x70] sm:$0xff]
  %v6921 = vld [vmem:[%s6905 + $0x78] sm:$0xff]
  %v6922 = vld [vmem:[%s6905 + $0x80] sm:$0xff]
  %v6923 = vld [vmem:[%s6905 + $0x88] sm:$0xff]
  %v6924 = vld [vmem:[%s6905 + $0x90] sm:$0xff]
  %v6925 = vld [vmem:[%s6905 + $0x98] sm:$0xff]
  %v6958 = vunpack.c.l.b16 %v6873
  %v6959 = vunpack.c.h.b16 %v6873
  %v6960 = vunpack.c.l.b16 %v6874
  %v6961 = vunpack.c.l.b16 %v6875
  %v6962 = vunpack.c.h.b16 %v6875
  %v6963 = vunpack.c.l.b16 %v6876
  %v6964 = vunpack.c.l.b16 %v6877
  %v6965 = vunpack.c.h.b16 %v6877
  %v6966 = vunpack.c.l.b16 %v6878
  %v6967 = vunpack.c.l.b16 %v6879
  %v6968 = vunpack.c.h.b16 %v6879
  %v6969 = vunpack.c.l.b16 %v6880
  %v6970 = vunpack.c.l.b16 %v6881
  %v6971 = vunpack.c.h.b16 %v6881
  %v6972 = vunpack.c.l.b16 %v6882
  %v6973 = vunpack.c.l.b16 %v6883
  %v6974 = vunpack.c.h.b16 %v6883
  %v6975 = vunpack.c.l.b16 %v6884
  %v6976 = vunpack.c.l.b16 %v6885
  %v6977 = vunpack.c.h.b16 %v6885
  %v6978 = vunpack.c.l.b16 %v6886
  %v6979 = vunpack.c.l.b16 %v6887
  %v6980 = vunpack.c.h.b16 %v6887
  %v6981 = vunpack.c.l.b16 %v6888
  %v6982 = vunpack.c.l.b16 %v6889
  %v6983 = vunpack.c.h.b16 %v6889
  %v6984 = vunpack.c.l.b16 %v6890
  %v6985 = vunpack.c.l.b16 %v6891
  %v6986 = vunpack.c.h.b16 %v6891
  %v6987 = vunpack.c.l.b16 %v6892
  %v6988 = vunpack.c.l.b16 %v6893
  %v6989 = vunpack.c.h.b16 %v6893
  %v6990 = vunpack.c.l.b16 %v6894
  %v6991 = vunpack.c.l.b16 %v6895
  %v6992 = vunpack.c.h.b16 %v6895
  %v6993 = vunpack.c.l.b16 %v6896
  %v6994 = vunpack.c.l.b16 %v6897
  %v6995 = vunpack.c.h.b16 %v6897
  %v6996 = vunpack.c.l.b16 %v6898
  %v6997 = vunpack.c.l.b16 %v6899
  %v6998 = vunpack.c.h.b16 %v6899
  %v6999 = vunpack.c.l.b16 %v6900
  %v7000 = vunpack.c.l.b16 %v6901
  %v7001 = vunpack.c.h.b16 %v6901
  %v7002 = vunpack.c.l.b16 %v6902
  %v7003 = vunpack.c.l.b16 %v6903
  %v7004 = vunpack.c.h.b16 %v6903
  %v7005 = vunpack.c.l.b16 %v6904
  %v7006 = vpack.c.b16 %v6961, %v6958
  %v7007 = vpack.c.b16 %v6962, %v6959
  %v7008 = vpack.c.b16 %v6963, %v6960
  %v7009 = vpack.c.b16 %v6967, %v6964
  %v7010 = vpack.c.b16 %v6968, %v6965
  %v7011 = vpack.c.b16 %v6969, %v6966
  %v7012 = vpack.c.b16 %v6973, %v6970
  %v7013 = vpack.c.b16 %v6974, %v6971
  %v7014 = vpack.c.b16 %v6975, %v6972
  %v7015 = vpack.c.b16 %v6979, %v6976
  %v7016 = vpack.c.b16 %v6980, %v6977
  %v7017 = vpack.c.b16 %v6981, %v6978
  %v7018 = vpack.c.b16 %v6985, %v6982
  %v7019 = vpack.c.b16 %v6986, %v6983
  %v7020 = vpack.c.b16 %v6987, %v6984
  %v7021 = vpack.c.b16 %v6991, %v6988
  %v7022 = vpack.c.b16 %v6992, %v6989
  %v7023 = vpack.c.b16 %v6993, %v6990
  %v7024 = vpack.c.b16 %v6997, %v6994
  %v7025 = vpack.c.b16 %v6998, %v6995
  %v7026 = vpack.c.b16 %v6999, %v6996
  %v7027 = vpack.c.b16 %v7003, %v7000
  %v7028 = vpack.c.b16 %v7004, %v7001
  %v7029 = vpack.c.b16 %v7005, %v7002
  %v7047 = vsel %vm5499, %v7008, 0
  %v7050 = vsel %vm5499, %v7011, 0
  %v7053 = vsel %vm5499, %v7014, 0
  %v7056 = vsel %vm5499, %v7017, 0
  %v7059 = vsel %vm5499, %v7020, 0
  %v7062 = vsel %vm5499, %v7023, 0
  %v7065 = vsel %vm5499, %v7026, 0
  %v7068 = vsel %vm5499, %v7029, 0
  %7070 = vmatprep.subr.bf16.mxu0 0
  %7071 = vmatpush1.bf16.msra.mxu0 %v6906
  %7072 = vmatprep.subr.bf16.mxu0 0
  %7073 = vmatpush1.bf16.msra.mxu0 %v6907
  %7074 = vmatprep.subr.bf16.mxu0 0
  %7075 = vmatpush1.bf16.msra.mxu0 %v6908
  %7076 = vmatprep.subr.bf16.mxu0 0
  %7077 = vmatpush1.bf16.msra.mxu0 %v6909
  %7078 = vmatprep.subr.bf16.mxu0 0
  %7079 = vmatpush1.bf16.msra.mxu0 %v6910
  %7080 = vmatprep.subr.bf16.mxu0 0
  %7081 = vmatpush1.bf16.msra.mxu0 %v6911
  %7082 = vmatprep.subr.bf16.mxu0 0
  %7083 = vmatpush1.bf16.msra.mxu0 %v6912
  %7084 = vmatprep.subr.bf16.mxu0 0
  %7085 = vmatpush1.bf16.msra.mxu0 %v6913
  %7086 = vmatprep.subr.bf16.mxu0 0
  %7087 = vmatpush1.bf16.msra.mxu0 %v6914
  %7088 = vmatprep.subr.bf16.mxu0 0
  %7089 = vmatpush1.bf16.msra.mxu0 %v6915
  %7090 = vmatprep.subr.bf16.mxu0 0
  %7091 = vmatpush1.bf16.msra.mxu0 %v6916
  %7092 = vmatprep.subr.bf16.mxu0 0
  %7093 = vmatpush1.bf16.msra.mxu0 %v6917
  %7094 = vmatprep.subr.bf16.mxu0 0
  %7095 = vmatpush1.bf16.msra.mxu0 %v6918
  %7096 = vmatprep.subr.bf16.mxu0 0
  %7097 = vmatpush1.bf16.msra.mxu0 %v6919
  %7098 = vmatprep.subr.bf16.mxu0 0
  %7099 = vmatpush1.bf16.msra.mxu0 %v6920
  %7100 = vmatprep.subr.bf16.mxu0 0
  %7101 = vmatpush1.bf16.msra.mxu0 %v6921
  %7102 = vmatprep.mubr.bf16.mxu0 %v7007
  %7103 = vmatmul.mubr.bf16.gmra.mrb[0].mxu0 %v7006
  %v7104 = vpop.f32.mrb[0].mxu0
  %v7105 = vadd.f32 0.0, %v7104
  %v7106 = vpop.f32.mrb[0].mxu0
  %v7107 = vpop.f32.mrb[0].mxu0
  %v7108 = vadd.f32 0.0, %v7107
  %v7109 = vpop.f32.mrb[0].mxu0
  %7110 = vmatprep.mubr.bf16.mxu0 %v7010
  %7111 = vmatmul.mubr.bf16.gmra.mrb[0].mxu0 %v7009
  %v7112 = vpop.f32.mrb[0].mxu0
  %v7113 = vadd.f32 0.0, %v7112
  %v7114 = vpop.f32.mrb[0].mxu0
  %v7115 = vpop.f32.mrb[0].mxu0
  %v7116 = vadd.f32 0.0, %v7115
  %v7117 = vpop.f32.mrb[0].mxu0
  %7118 = vmatprep.mubr.bf16.mxu0 %v7013
  %7119 = vmatmul.mubr.bf16.gmra.mrb[0].mxu0 %v7012
  %v7120 = vpop.f32.mrb[0].mxu0
  %v7121 = vadd.f32 0.0, %v7120
  %v7122 = vpop.f32.mrb[0].mxu0
  %v7123 = vpop.f32.mrb[0].mxu0
  %v7124 = vadd.f32 0.0, %v7123
  %v7125 = vpop.f32.mrb[0].mxu0
  %7126 = vmatprep.mubr.bf16.mxu0 %v7016
  %7127 = vmatmul.mubr.bf16.gmra.mrb[0].mxu0 %v7015
  %v7128 = vpop.f32.mrb[0].mxu0
  %v7129 = vadd.f32 0.0, %v7128
  %v7130 = vpop.f32.mrb[0].mxu0
  %v7131 = vpop.f32.mrb[0].mxu0
  %v7132 = vadd.f32 0.0, %v7131
  %v7133 = vpop.f32.mrb[0].mxu0
  %7134 = vmatprep.mubr.bf16.mxu0 %v7019
  %7135 = vmatmul.mubr.bf16.gmra.mrb[0].mxu0 %v7018
  %v7136 = vpop.f32.mrb[0].mxu0
  %v7137 = vadd.f32 0.0, %v7136
  %v7138 = vpop.f32.mrb[0].mxu0
  %v7139 = vpop.f32.mrb[0].mxu0
  %v7140 = vadd.f32 0.0, %v7139
  %v7141 = vpop.f32.mrb[0].mxu0
  %7142 = vmatprep.mubr.bf16.mxu0 %v7022
  %7143 = vmatmul.mubr.bf16.gmra.mrb[0].mxu0 %v7021
  %v7144 = vpop.f32.mrb[0].mxu0
  %v7145 = vadd.f32 0.0, %v7144
  %v7146 = vpop.f32.mrb[0].mxu0
  %v7147 = vpop.f32.mrb[0].mxu0
  %v7148 = vadd.f32 0.0, %v7147
  %v7149 = vpop.f32.mrb[0].mxu0
  %7150 = vmatprep.mubr.bf16.mxu0 %v7025
  %7151 = vmatmul.mubr.bf16.gmra.mrb[0].mxu0 %v7024
  %v7152 = vpop.f32.mrb[0].mxu0
  %v7153 = vadd.f32 0.0, %v7152
  %v7154 = vpop.f32.mrb[0].mxu0
  %v7155 = vpop.f32.mrb[0].mxu0
  %v7156 = vadd.f32 0.0, %v7155
  %v7157 = vpop.f32.mrb[0].mxu0
  %7158 = vmatprep.mubr.bf16.mxu0 %v7028
  %7159 = vmatmul.mubr.bf16.gmra.mrb[0].mxu0 %v7027
  %v7160 = vpop.f32.mrb[0].mxu0
  %v7161 = vadd.f32 0.0, %v7160
  %v7162 = vpop.f32.mrb[0].mxu0
  %v7163 = vpop.f32.mrb[0].mxu0
  %v7164 = vadd.f32 0.0, %v7163
  %v7165 = vpop.f32.mrb[0].mxu0
  %7166 = vdwg.mxu0
  %7167 = vmatprep.subr.bf16.mxu0 0
  %7168 = vmatpush1.bf16.msra.mxu0 %v6922
  %7169 = vmatprep.subr.bf16.mxu0 0
  %7170 = vmatpush1.bf16.msra.mxu0 %v6923
  %7171 = vmatprep.subr.bf16.mxu0 0
  %7172 = vmatpush1.bf16.msra.mxu0 %v6924
  %7173 = vmatprep.subr.bf16.mxu0 0
  %7174 = vmatpush1.bf16.msra.mxu0 %v6925
  %7175 = vmatprep.subr.bf16.mxu0 0
  %7176 = vmatpush1.bf16.msra.mxu0 0
  %7177 = vmatprep.subr.bf16.mxu0 0
  %7178 = vmatpush1.bf16.msra.mxu0 0
  %7179 = vmatprep.subr.bf16.mxu0 0
  %7180 = vmatpush1.bf16.msra.mxu0 0
  %7181 = vmatprep.subr.bf16.mxu0 0
  %7182 = vmatpush1.bf16.msra.mxu0 0
  %7183 = vmatprep.subr.bf16.mxu0 0
  %7184 = vmatpush1.bf16.msra.mxu0 0
  %7185 = vmatprep.subr.bf16.mxu0 0
  %7186 = vmatpush1.bf16.msra.mxu0 0
  %7187 = vmatprep.subr.bf16.mxu0 0
  %7188 = vmatpush1.bf16.msra.mxu0 0
  %7189 = vmatprep.subr.bf16.mxu0 0
  %7190 = vmatpush1.bf16.msra.mxu0 0
  %7191 = vmatprep.subr.bf16.mxu0 0
  %7192 = vmatpush1.bf16.msra.mxu0 0
  %7193 = vmatprep.subr.bf16.mxu0 0
  %7194 = vmatpush1.bf16.msra.mxu0 0
  %7195 = vmatprep.subr.bf16.mxu0 0
  %7196 = vmatpush1.bf16.msra.mxu0 0
  %7197 = vmatprep.subr.bf16.mxu0 0
  %7198 = vmatpush1.bf16.msra.mxu0 0
  %7199 = vmatprep.mubr.bf16.mxu0 0
  %7200 = vmatmul.mubr.bf16.gmra.mrb[0].mxu0 %v7047
  %v7201 = vpop.f32.mrb[0].mxu0
  %v7202 = vadd.f32 %v7105, %v7201
  %v7203 = vpop.f32.mrb[0].mxu0
  %v7204 = vpop.f32.mrb[0].mxu0
  %v7205 = vadd.f32 %v7108, %v7204
  %v7206 = vpop.f32.mrb[0].mxu0
  %7207 = vmatprep.mubr.bf16.mxu0 0
  %7208 = vmatmul.mubr.bf16.gmra.mrb[0].mxu0 %v7050
  %v7209 = vpop.f32.mrb[0].mxu0
  %v7210 = vadd.f32 %v7113, %v7209
  %v7211 = vpop.f32.mrb[0].mxu0
  %v7212 = vpop.f32.mrb[0].mxu0
  %v7213 = vadd.f32 %v7116, %v7212
  %v7214 = vpop.f32.mrb[0].mxu0
  %7215 = vmatprep.mubr.bf16.mxu0 0
  %7216 = vmatmul.mubr.bf16.gmra.mrb[0].mxu0 %v7053
  %v7217 = vpop.f32.mrb[0].mxu0
  %v7218 = vadd.f32 %v7121, %v7217
  %v7219 = vpop.f32.mrb[0].mxu0
  %v7220 = vpop.f32.mrb[0].mxu0
  %v7221 = vadd.f32 %v7124, %v7220
  %v7222 = vpop.f32.mrb[0].mxu0
  %7223 = vmatprep.mubr.bf16.mxu0 0
  %7224 = vmatmul.mubr.bf16.gmra.mrb[0].mxu0 %v7056
  %v7225 = vpop.f32.mrb[0].mxu0
  %v7226 = vadd.f32 %v7129, %v7225
  %v7227 = vpop.f32.mrb[0].mxu0
  %v7228 = vpop.f32.mrb[0].mxu0
  %v7229 = vadd.f32 %v7132, %v7228
  %v7230 = vpop.f32.mrb[0].mxu0
  %7231 = vmatprep.mubr.bf16.mxu0 0
  %7232 = vmatmul.mubr.bf16.gmra.mrb[0].mxu0 %v7059
  %v7233 = vpop.f32.mrb[0].mxu0
  %v7234 = vadd.f32 %v7137, %v7233
  %v7235 = vpop.f32.mrb[0].mxu0
  %v7236 = vpop.f32.mrb[0].mxu0
  %v7237 = vadd.f32 %v7140, %v7236
  %v7238 = vpop.f32.mrb[0].mxu0
  %7239 = vmatprep.mubr.bf16.mxu0 0
  %7240 = vmatmul.mubr.bf16.gmra.mrb[0].mxu0 %v7062
  %v7241 = vpop.f32.mrb[0].mxu0
  %v7242 = vadd.f32 %v7145, %v7241
  %v7243 = vpop.f32.mrb[0].mxu0
  %v7244 = vpop.f32.mrb[0].mxu0
  %v7245 = vadd.f32 %v7148, %v7244
  %v7246 = vpop.f32.mrb[0].mxu0
  %7247 = vmatprep.mubr.bf16.mxu0 0
  %7248 = vmatmul.mubr.bf16.gmra.mrb[0].mxu0 %v7065
  %v7249 = vpop.f32.mrb[0].mxu0
  %v7250 = vadd.f32 %v7153, %v7249
  %v7251 = vpop.f32.mrb[0].mxu0
  %v7252 = vpop.f32.mrb[0].mxu0
  %v7253 = vadd.f32 %v7156, %v7252
  %v7254 = vpop.f32.mrb[0].mxu0
  %7255 = vmatprep.mubr.bf16.mxu0 0
  %7256 = vmatmul.mubr.bf16.gmra.mrb[0].mxu0 %v7068
  %v7257 = vpop.f32.mrb[0].mxu0
  %v7258 = vadd.f32 %v7161, %v7257
  %v7259 = vpop.f32.mrb[0].mxu0
  %v7260 = vpop.f32.mrb[0].mxu0
  %v7261 = vadd.f32 %v7164, %v7260
  %v7262 = vpop.f32.mrb[0].mxu0
  %7263 = vdwg.mxu0
  %v7264 = vadd.f32 %v6856, %v7202
  %v7265 = vadd.f32 %v6857, %v7205
  %v7266 = vadd.f32 %v6858, %v7210
  %v7267 = vadd.f32 %v6859, %v7213
  %v7268 = vadd.f32 %v6860, %v7218
  %v7269 = vadd.f32 %v6861, %v7221
  %v7270 = vadd.f32 %v6862, %v7226
  %v7271 = vadd.f32 %v6863, %v7229
  %v7272 = vadd.f32 %v6864, %v7234
  %v7273 = vadd.f32 %v6865, %v7237
  %v7274 = vadd.f32 %v6866, %v7242
  %v7275 = vadd.f32 %v6867, %v7245
  %v7276 = vadd.f32 %v6868, %v7250
  %v7277 = vadd.f32 %v6869, %v7253
  %v7278 = vadd.f32 %v6870, %v7258
  %v7279 = vadd.f32 %v6871, %v7261
  %v7280 = vld [vmem:[%s5] sm:$0xff]
  %v7281 = vld [vmem:[%s5 + $0x8] sm:$0xff]
  %v7282 = vld [vmem:[%s5 + $0x10] sm:$0xff]
  %v7283 = vld [vmem:[%s5 + $0x18] sm:$0xff]
  %v7284 = vld [vmem:[%s5 + $0x20] sm:$0xff]
  %v7285 = vld [vmem:[%s5 + $0x28] sm:$0xff]
  %v7286 = vld [vmem:[%s5 + $0x30] sm:$0xff]
  %v7287 = vld [vmem:[%s5 + $0x38] sm:$0xff]
  %v7288 = vld [vmem:[%s5 + $0x40] sm:$0xff]
  %v7289 = vld [vmem:[%s5 + $0x48] sm:$0xff]
  %v7290 = vld [vmem:[%s5 + $0x50] sm:$0xff]
  %v7291 = vld [vmem:[%s5 + $0x58] sm:$0xff]
  %v7292 = vld [vmem:[%s5 + $0x60] sm:$0xff]
  %v7293 = vld [vmem:[%s5 + $0x68] sm:$0xff]
  %v7294 = vld [vmem:[%s5 + $0x70] sm:$0xff]
  %v7295 = vld [vmem:[%s5 + $0x78] sm:$0xff]
  %7297 = vset.pattern.permute.xlu0 0
  %7298 = vperm.xlu0 %7297, %v7280
  %v7299 = vpop.permute.xlu0 %7298
  %7302 = vset.pattern.permute.xlu0 0
  %7303 = vperm.xlu0 %7302, %v7281
  %v7304 = vpop.permute.xlu0 %7303
  %7307 = vset.pattern.permute.xlu0 0
  %7308 = vperm.xlu0 %7307, %v7282
  %v7309 = vpop.permute.xlu0 %7308
  %7312 = vset.pattern.permute.xlu0 0
  %7313 = vperm.xlu0 %7312, %v7283
  %v7314 = vpop.permute.xlu0 %7313
  %7317 = vset.pattern.permute.xlu0 0
  %7318 = vperm.xlu0 %7317, %v7284
  %v7319 = vpop.permute.xlu0 %7318
  %7322 = vset.pattern.permute.xlu0 0
  %7323 = vperm.xlu0 %7322, %v7285
  %v7324 = vpop.permute.xlu0 %7323
  %7327 = vset.pattern.permute.xlu0 0
  %7328 = vperm.xlu0 %7327, %v7286
  %v7329 = vpop.permute.xlu0 %7328
  %7332 = vset.pattern.permute.xlu0 0
  %7333 = vperm.xlu0 %7332, %v7287
  %v7334 = vpop.permute.xlu0 %7333
  %7337 = vset.pattern.permute.xlu0 0
  %7338 = vperm.xlu0 %7337, %v7288
  %v7339 = vpop.permute.xlu0 %7338
  %7342 = vset.pattern.permute.xlu0 0
  %7343 = vperm.xlu0 %7342, %v7289
  %v7344 = vpop.permute.xlu0 %7343
  %7347 = vset.pattern.permute.xlu0 0
  %7348 = vperm.xlu0 %7347, %v7290
  %v7349 = vpop.permute.xlu0 %7348
  %7352 = vset.pattern.permute.xlu0 0
  %7353 = vperm.xlu0 %7352, %v7291
  %v7354 = vpop.permute.xlu0 %7353
  %7357 = vset.pattern.permute.xlu0 0
  %7358 = vperm.xlu0 %7357, %v7292
  %v7359 = vpop.permute.xlu0 %7358
  %7362 = vset.pattern.permute.xlu0 0
  %7363 = vperm.xlu0 %7362, %v7293
  %v7364 = vpop.permute.xlu0 %7363
  %7367 = vset.pattern.permute.xlu0 0
  %7368 = vperm.xlu0 %7367, %v7294
  %v7369 = vpop.permute.xlu0 %7368
  %7372 = vset.pattern.permute.xlu0 0
  %7373 = vperm.xlu0 %7372, %v7295
  %v7374 = vpop.permute.xlu0 %7373
  %v7376 = vadd.f32 %v7264, %v7299
  %v7377 = vadd.f32 %v7265, %v7304
  %v7378 = vadd.f32 %v7266, %v7309
  %v7379 = vadd.f32 %v7267, %v7314
  %v7380 = vadd.f32 %v7268, %v7319
  %v7381 = vadd.f32 %v7269, %v7324
  %v7382 = vadd.f32 %v7270, %v7329
  %v7383 = vadd.f32 %v7271, %v7334
  %v7384 = vadd.f32 %v7272, %v7339
  %v7385 = vadd.f32 %v7273, %v7344
  %v7386 = vadd.f32 %v7274, %v7349
  %v7387 = vadd.f32 %v7275, %v7354
  %v7388 = vadd.f32 %v7276, %v7359
  %v7389 = vadd.f32 %v7277, %v7364
  %v7390 = vadd.f32 %v7278, %v7369
  %v7391 = vadd.f32 %v7279, %v7374
  %v7392 = vld [vmem:[%s6] sm:$0xf]
  %v7393 = vld [vmem:[%s6 + $0x4] sm:$0xf]
  %v7394 = vpack.c.bf16 %v7377, %v7376
  %v7395 = vpack.c.bf16 %v7379, %v7378
  %v7396 = vpack.c.bf16 %v7381, %v7380
  %v7397 = vpack.c.bf16 %v7383, %v7382
  %v7398 = vpack.c.bf16 %v7385, %v7384
  %v7399 = vpack.c.bf16 %v7387, %v7386
  %v7400 = vpack.c.bf16 %v7389, %v7388
  %v7401 = vpack.c.bf16 %v7391, %v7390
  %v7402 = vld [vmem:[%s7] sm:$0xff]
  %v7403 = vld [vmem:[%s7 + $0x8] sm:$0xff]
  %7405 = vset.pattern.permute.xlu0 0
  %7406 = vperm.xlu0 %7405, %v7402
  %v7407 = vpop.permute.xlu0 %7406
  %7410 = vset.pattern.permute.xlu0 0
  %7411 = vperm.xlu0 %7410, %v7403
  %v7412 = vpop.permute.xlu0 %7411
  %v7416 = vunpack.c.l.b16 %v7392
  %v7417 = vunpack.c.l.b16 %v7393
  %v7418 = vpack.c.b16 %v7417, %v7416
  %7420 = vmatprep.subr.bf16.mxu0 0
  %7421 = vmatpush1.bf16.msra.mxu0 %v7394
  %7422 = vmatprep.subr.bf16.mxu0 0
  %7423 = vmatpush1.bf16.msra.mxu0 %v7395
  %7424 = vmatprep.subr.bf16.mxu0 0
  %7425 = vmatpush1.bf16.msra.mxu0 %v7396
  %7426 = vmatprep.subr.bf16.mxu0 0
  %7427 = vmatpush1.bf16.msra.mxu0 %v7397
  %7428 = vmatprep.subr.bf16.mxu0 0
  %7429 = vmatpush1.bf16.msra.mxu0 %v7398
  %7430 = vmatprep.subr.bf16.mxu0 0
  %7431 = vmatpush1.bf16.msra.mxu0 %v7399
  %7432 = vmatprep.subr.bf16.mxu0 0
  %7433 = vmatpush1.bf16.msra.mxu0 %v7400
  %7434 = vmatprep.subr.bf16.mxu0 0
  %7435 = vmatpush1.bf16.msra.mxu0 %v7401
  %7436 = vmatprep.subr.bf16.mxu0 0
  %7437 = vmatpush1.bf16.msra.mxu0 0
  %7438 = vmatprep.subr.bf16.mxu0 0
  %7439 = vmatpush1.bf16.msra.mxu0 0
  %7440 = vmatprep.subr.bf16.mxu0 0
  %7441 = vmatpush1.bf16.msra.mxu0 0
  %7442 = vmatprep.subr.bf16.mxu0 0
  %7443 = vmatpush1.bf16.msra.mxu0 0
  %7444 = vmatprep.subr.bf16.mxu0 0
  %7445 = vmatpush1.bf16.msra.mxu0 0
  %7446 = vmatprep.subr.bf16.mxu0 0
  %7447 = vmatpush1.bf16.msra.mxu0 0
  %7448 = vmatprep.subr.bf16.mxu0 0
  %7449 = vmatpush1.bf16.msra.mxu0 0
  %7450 = vmatprep.subr.bf16.mxu0 0
  %7451 = vmatpush1.bf16.msra.mxu0 0
  %7452 = vmatprep.mubr.bf16.mxu0 0
  %7453 = vmatmul.mubr.bf16.gmra.mrb[0].mxu0 %v7418
  %v7454 = vpop.f32.mrb[0].mxu0
  %v7455 = vadd.f32 %v7407, %v7454
  %v7456 = vpop.f32.mrb[0].mxu0
  %v7457 = vpop.f32.mrb[0].mxu0
  %v7458 = vadd.f32 %v7412, %v7457
  %v7459 = vpop.f32.mrb[0].mxu0
  %7460 = vdwg.mxu0
  %7461 = vst [vmem:[%s8] sm:$0xff] %v7455
  %7462 = vst [vmem:[%s8 + $0x8] sm:$0xff] %v7458
  // Predicated region
  $region48: #{conv_mnist_forward.1} parent=0 // pred_check
    _
  $region49: #{conv_mnist_forward.1} parent=0 // pred_check_branch
    %7464 = sbr.rel (0) target = $region51
  $region50: #{conv_mnist_forward.1} parent=0 // pred_region
    _
  $region51: #{conv_mnist_forward.1} parent=0 // pred_fallthru
    _
  // Predicated region
  $region52: #{conv_mnist_forward.1} parent=0 // pred_check
    _
  $region53: #{conv_mnist_forward.1} parent=0 // pred_check_branch
    %7466 = sbr.rel (0) target = $region55
  $region54: #{conv_mnist_forward.1} parent=0 // pred_region
    _
  $region55: #{conv_mnist_forward.1} parent=0 // pred_fallthru
    _

</llo_original>
